<compile_context>
chip_gen: v7x
topology: tpu7x:2x2x1
jax: 0.10.0
libtpu: 0.0.40
codegen_flags: <defaults>
</compile_context>

<pallas_src>
import functools

import jax
import jax.numpy as jnp
from jax import lax
from jax.experimental import pallas as pl
from jax.experimental.pallas import tpu as pltpu


def _triple(v):
    if isinstance(v, (tuple, list)):
        assert len(v) == 3
        return tuple(int(e) for e in v)
    return (int(v),) * 3


def _cdiv(a, b):
    return -(-a // b)


def _vmem_limit_bytes():
    cap = None
    try:
        if hasattr(pltpu, "get_tpu_info"):
            cap = getattr(pltpu.get_tpu_info(), "vmem_capacity_bytes", None)
    except Exception:
        cap = None
    if not cap:
        return 48 * 1024 * 1024                       # safe on every generation
    return int(min(100 * 1024 * 1024, max(32 * 1024 * 1024, (int(cap) * 3) // 4)))


# ------------------------------ Pallas kernel ------------------------------ #
def _convt_phase_kernel(x_ref, w_ref, b_ref, o_ref, p_ref, *,
                        Kd, Kh, Kw, TD, Qh, Qwp, base_d, base_h, base_w, cin):
    """One (batch, coarse-D tile) step of the phase-decomposed ConvTranspose3d.

    x_ref: (1, Dp, Hp, Wp, Cin)      bf16  original (un-dilated) padded input, ch-last
    w_ref: (PH*Cout, Kd*Kh*Kw*Cin)   bf16  phase-fused weight matrix
    b_ref: (PH*Cout, 1)              f32   bias replicated per phase
    o_ref: (1, 1, PH*Cout, M_tile)   f32   lane-dense output tile
    p_ref: (M_tile, Kd*Kh*Kw*Cin)    bf16  im2col scratch (VMEM only, never HBM)
    """
    d0 = pl.program_id(1) * TD                        # first coarse-D row of this tile
    m = TD * Qh * Qwp

    # im2col in VMEM: P[(td, qh, qw), (jd, jh, jw, ci)]
    for jd in range(Kd):
        for jh in range(Kh):
            for jw in range(Kw):
                win = x_ref[0,
                            pl.ds(d0 + (base_d - jd), TD),
                            base_h - jh:base_h - jh + Qh,
                            base_w - jw:base_w - jw + Qwp,
                            :]                        # (TD, Qh, Qwp, Cin)
                j = (jd * Kh + jh) * Kw + jw
                # Qwp is a native-sublane multiple -> this reshape is a pure regroup.
                p_ref[:, j * cin:(j + 1) * cin] = win.reshape(m, cin)

    # single fused MXU contraction over K = Kd*Kh*Kw*Cin, f32 accumulation
    acc = lax.dot_general(w_ref[...], p_ref[...],
                          (((1,), (1,)), ((), ())),
                          preferred_element_type=jnp.float32)   # (PH*Cout, M_tile)

    out = jnp.maximum(acc + b_ref[...], 0.0)          # fused bias + ReLU in f32
    o_ref[0, 0] = out.astype(o_ref.dtype)             # lane-dense store


# ------------------------------ wrapper (glue) ------------------------------ #
@functools.partial(jax.jit,
                   static_argnames=("stride", "padding", "output_padding", "compute_dtype"))
def convT3d_relu(x, weight, bias, *, stride, padding, output_padding,
                 compute_dtype=jnp.bfloat16):
    """Forward of `convT`: ConvTranspose3d + ReLU.

    x      : (N, Cin, D, H, W)          float32 (PyTorch NCDHW)
    weight : (Cin, Cout, kd, kh, kw)    float32 (PyTorch ConvTranspose3d layout)
    bias   : (Cout,)                    float32
    returns: (N, Cout, Do, Ho, Wo)      float32
    """
    N, Cin, D, H, W = x.shape
    Cin_w, Cout, kd, kh, kw = weight.shape
    assert Cin == Cin_w
    sd, sh, sw = _triple(stride)
    pd, ph, pw = _triple(padding)
    opd, oph, opw = _triple(output_padding)

    Do = (D - 1) * sd - 2 * pd + kd + opd
    Ho = (H - 1) * sh - 2 * ph + kh + oph
    Wo = (W - 1) * sw - 2 * pw + kw + opw
    assert Do > 0 and Ho > 0 and Wo > 0

    # Phase geometry per dim: output o satisfies o + p = q*s + r (q coarse pos, r phase)
    # and y[q, r] = sum_{j < ceil(k/s)} x[q - j] * w[j*s + r].
    def geom(inp, out, k, s, p):
        kq = _cdiv(k, s)                  # taps per phase
        q_lo = p // s                     # first coarse position landing in [0, out)
        q_hi = (out - 1 + p) // s         # last one
        nq = q_hi - q_lo + 1
        lo_pad = max(0, kq - 1 - q_lo)    # left zero-pad of the input
        base = q_lo + lo_pad              # padded-input index of coarse position q_lo
        crop = p % s                      # crop offset in the assembled fine grid
        return kq, q_lo, nq, lo_pad, base, crop

    Kd_, qlo_d, Qd, Ld, base_d, od0 = geom(D, Do, kd, sd, pd)
    Kh_, qlo_h, Qh, Lh, base_h, oh0 = geom(H, Ho, kh, sh, ph)
    Kw_, qlo_w, Qw, Lw, base_w, ow0 = geom(W, Wo, kw, sw, pw)

    PH = sd * sh * sw                     # number of phases
    PHC = PH * Cout
    Ktot = Kd_ * Kh_ * Kw_ * Cin

    # Pad the coarse-W extent to a native sublane multiple so the per-tap
    # (TD, Qh, Qwp, Cin) -> (M, Cin) reshape is layout-free (no relayout copies).
    sub = 8 * max(1, 4 // jnp.dtype(compute_dtype).itemsize)
    Qwp = _cdiv(Qw, sub) * sub

    # Coarse-D tile: bounded by a VMEM budget, and >=2 tiles whenever possible so both
    # v7x TensorCores get work even at N == 1.
    per_row_bytes = Qh * Qwp * (12 * PHC + 2 * Ktot)
    TD = max(1, min(Qd, (8 * 1024 * 1024) // max(per_row_bytes, 1)))
    if Qd >= 2:
        TD = min(TD, _cdiv(Qd, 2))
    NDT = _cdiv(Qd, TD)
    Qd_pad = NDT * TD
    M_tile = TD * Qh * Qwp

    # Channels-last ORIGINAL input (no stride zero-insertion), zero-padded so every
    # (coarse position, tap) window is in range.
    Rd = max(0, qlo_d + Qd_pad - D)
    Rh = max(0, qlo_h + Qh - H)
    Rw = max(0, qlo_w + Qwp - W)
    x_cl = jnp.transpose(x, (0, 2, 3, 4, 1)).astype(compute_dtype)
    xp = jnp.pad(x_cl, ((0, 0), (Ld, Rd), (Lh, Rh), (Lw, Rw), (0, 0)))
    Dp, Hp, Wp = D + Ld + Rd, H + Lh + Rh, W + Lw + Rw
    # TODO(synk): for tiny Cin a (Wp*Cin)-merged minor dim would make the input DMA fully
    # lane-dense; kept channels-last so all in-kernel reshapes stay layout-free.

    # Phase-fused weight matrix:
    #   wmat[((rd*sh+rh)*sw+rw)*Cout + co, ((jd*Kh+jh)*Kw+jw)*Cin + ci]
    #     = weight[ci, co, jd*sd + rd, jh*sh + rh, jw*sw + rw]   (0 beyond kernel extent)
    wpad = jnp.pad(weight, ((0, 0), (0, 0),
                            (0, Kd_ * sd - kd), (0, Kh_ * sh - kh), (0, Kw_ * sw - kw)))
    wmat = wpad.reshape(Cin, Cout, Kd_, sd, Kh_, sh, Kw_, sw)
    wmat = jnp.transpose(wmat, (3, 5, 7, 1, 2, 4, 6, 0))
    wmat = wmat.reshape(PHC, Ktot).astype(compute_dtype)
    bvec = jnp.tile(bias.astype(jnp.float32), (PH,)).reshape(PHC, 1)

    kernel = functools.partial(
        _convt_phase_kernel, Kd=Kd_, Kh=Kh_, Kw=Kw_, TD=TD, Qh=Qh, Qwp=Qwp,
        base_d=base_d, base_h=base_h, base_w=base_w, cin=Cin)

    # TODO(synk): for volumes where one whole padded image exceeds VMEM, switch the input
    # to memory_space=pl.ANY and DMA a (TD + Kd - 1)-row halo slab per step.
    out_flat = pl.pallas_call(
        kernel,
        out_shape=jax.ShapeDtypeStruct((N, NDT, PHC, M_tile), jnp.float32),
        grid_spec=pltpu.PrefetchScalarGridSpec(
            num_scalar_prefetch=0,
            grid=(N, NDT),
            in_specs=[
                pl.BlockSpec((1, Dp, Hp, Wp, Cin), lambda n, d: (n, 0, 0, 0, 0)),
                pl.BlockSpec((PHC, Ktot), lambda n, d: (0, 0)),
                pl.BlockSpec((PHC, 1), lambda n, d: (0, 0)),
            ],
            out_specs=pl.BlockSpec((1, 1, PHC, M_tile), lambda n, d: (n, d, 0, 0)),
            scratch_shapes=[pltpu.VMEM((M_tile, Ktot), compute_dtype)],
        ),
        compiler_params=pltpu.CompilerParams(
            dimension_semantics=("parallel", "parallel"),
            vmem_limit_bytes=_vmem_limit_bytes(),
        ),
    )(xp, wmat, bvec)

    # Phase un-shuffle (pixel shuffle) + crop: layout plumbing, done once in XLA.
    out = out_flat.reshape(N, NDT, sd, sh, sw, Cout, TD, Qh, Qwp)
    out = jnp.transpose(out, (0, 5, 1, 6, 2, 7, 3, 8, 4))
    out = out.reshape(N, Cout, Qd_pad * sd, Qh * sh, Qwp * sw)
    return out[:, :, od0:od0 + Do, oh0:oh0 + Ho, ow0:ow0 + Wo]


# ---------------------------------- main ------------------------------------ #
if __name__ == "__main__":
    key = jax.random.PRNGKey(0)
    k_x, k_w, k_b = jax.random.split(key, 3)

    # convT(inC=4, outC=8, kernel_size=3, padding=1, output_padding=1, stride=2):
    # classic U-Net decoder up-conv, 8^3 -> 16^3.
    N, inC, outC = 2, 4, 8
    D = H = W = 8
    ksize, pad, out_pad, stride = 3, 1, 1, 2

    x = jax.random.normal(k_x, (N, inC, D, H, W), dtype=jnp.float32)

    fan = outC * ksize ** 3
    bound = float(fan) ** -0.5
    weight = jax.random.uniform(k_w, (inC, outC, ksize, ksize, ksize),
                                dtype=jnp.float32, minval=-bound, maxval=bound)
    bias = jax.random.uniform(k_b, (outC,), dtype=jnp.float32,
                              minval=-bound, maxval=bound)

    out = convT3d_relu(x, weight, bias, stride=stride, padding=pad,
                       output_padding=out_pad)
    out = jax.block_until_ready(out)

    Do = (D - 1) * stride - 2 * pad + ksize + out_pad
    assert out.shape == (N, outC, Do, Do, Do), out.shape

    # Reference: ConvTranspose3d as an lhs-dilated conv (on the same bf16-rounded
    # operands the kernel uses) + bias + ReLU.
    xq = x.astype(jnp.bfloat16).astype(jnp.float32)
    wq = weight.astype(jnp.bfloat16).astype(jnp.float32)
    w_conv = jnp.transpose(jnp.flip(wq, axis=(2, 3, 4)), (1, 0, 2, 3, 4))
    lo = ksize - 1 - pad
    ref = lax.conv_general_dilated(
        xq, w_conv,
        window_strides=(1, 1, 1),
        padding=[(lo, lo + out_pad)] * 3,
        lhs_dilation=(stride, stride, stride),
        dimension_numbers=("NCDHW", "OIDHW", "NCDHW"),
    ) + bias.reshape(1, outC, 1, 1, 1)
    ref = jnp.maximum(ref, 0.0)

    err = float(jnp.max(jnp.abs(out - ref)))
    assert jnp.allclose(out, ref, atol=2e-3, rtol=2e-3), err

    print("KERNEL_OK")
</pallas_src>

<mosaic_0001>
module attributes {stable_mosaic.version = 11 : i64} {
  func.func @_convt_phase_kernel(%arg0: i32, %arg1: i32, %arg2: memref<1x11x10x17x4xbf16, #tpu.memory_space<vmem>>, %arg3: memref<64x32xbf16, #tpu.memory_space<vmem>>, %arg4: memref<64x1xf32, #tpu.memory_space<vmem>>, %arg5: memref<1x1x64x720xf32, #tpu.memory_space<vmem>>, %arg6: memref<720x32xbf16, #tpu.memory_space<vmem>>) attributes {dimension_semantics = [#tpu.dimension_semantics<parallel>, #tpu.dimension_semantics<parallel>], iteration_bounds = array<i64: 2, 2>, scalar_prefetch = 0 : i64, scratch_operands = 1 : i64, tpu.core_type = #tpu.core_type<tc>, window_params = [{transform_indices = @transform_0, window_bounds = array<i64: 1, 11, 10, 17, 4>}, {pipeline_mode = #tpu.pipeline_mode<synchronous>, transform_indices = @transform_1, window_bounds = array<i64: 64, 32>}, {pipeline_mode = #tpu.pipeline_mode<synchronous>, transform_indices = @transform_2, window_bounds = array<i64: 64, 1>}, {transform_indices = @transform_3, window_bounds = array<i64: 1, 1, 64, 720>}]} {
    %c5_i32 = arith.constant 5 : i32
    %0 = arith.muli %arg1, %c5_i32 : i32
    %c1_i32 = arith.constant 1 : i32
    %1 = arith.addi %0, %c1_i32 : i32
    %c0 = arith.constant 0 : index
    %2 = arith.index_cast %1 : i32 to index
    %c1 = arith.constant 1 : index
    %c1_0 = arith.constant 1 : index
    %c0_1 = arith.constant 0 : index
    %3 = vector.load %arg2[%c0, %2, %c1, %c1_0, %c0_1] : memref<1x11x10x17x4xbf16, #tpu.memory_space<vmem>>, vector<1x5x9x16x4xbf16>
    %4 = vector.shape_cast %3 : vector<1x5x9x16x4xbf16> to vector<5x9x16x4xbf16>
    %5 = vector.shape_cast %4 : vector<5x9x16x4xbf16> to vector<720x4xbf16>
    %c0_2 = arith.constant 0 : index
    %c0_3 = arith.constant 0 : index
    %6 = vector.load %arg6[%c0_2, %c0_3] : memref<720x32xbf16, #tpu.memory_space<vmem>>, vector<720x4xbf16>
    tpu.vector_store %arg6[%c0_2, %c0_3], %5 {strides = array<i32>} : memref<720x32xbf16, #tpu.memory_space<vmem>>, vector<720x4xbf16>,
    %c1_i32_4 = arith.constant 1 : i32
    %7 = arith.addi %0, %c1_i32_4 : i32
    %c0_5 = arith.constant 0 : index
    %8 = arith.index_cast %7 : i32 to index
    %c1_6 = arith.constant 1 : index
    %c0_7 = arith.constant 0 : index
    %c0_8 = arith.constant 0 : index
    %9 = vector.load %arg2[%c0_5, %8, %c1_6, %c0_7, %c0_8] : memref<1x11x10x17x4xbf16, #tpu.memory_space<vmem>>, vector<1x5x9x16x4xbf16>
    %10 = vector.shape_cast %9 : vector<1x5x9x16x4xbf16> to vector<5x9x16x4xbf16>
    %11 = vector.shape_cast %10 : vector<5x9x16x4xbf16> to vector<720x4xbf16>
    %c0_9 = arith.constant 0 : index
    %c4 = arith.constant 4 : index
    %12 = vector.load %arg6[%c0_9, %c4] : memref<720x32xbf16, #tpu.memory_space<vmem>>, vector<720x4xbf16>
    tpu.vector_store %arg6[%c0_9, %c4], %11 {strides = array<i32>} : memref<720x32xbf16, #tpu.memory_space<vmem>>, vector<720x4xbf16>,
    %c1_i32_10 = arith.constant 1 : i32
    %13 = arith.addi %0, %c1_i32_10 : i32
    %c0_11 = arith.constant 0 : index
    %14 = arith.index_cast %13 : i32 to index
    %c0_12 = arith.constant 0 : index
    %c1_13 = arith.constant 1 : index
    %c0_14 = arith.constant 0 : index
    %15 = vector.load %arg2[%c0_11, %14, %c0_12, %c1_13, %c0_14] : memref<1x11x10x17x4xbf16, #tpu.memory_space<vmem>>, vector<1x5x9x16x4xbf16>
    %16 = vector.shape_cast %15 : vector<1x5x9x16x4xbf16> to vector<5x9x16x4xbf16>
    %17 = vector.shape_cast %16 : vector<5x9x16x4xbf16> to vector<720x4xbf16>
    %c0_15 = arith.constant 0 : index
    %c8 = arith.constant 8 : index
    %18 = vector.load %arg6[%c0_15, %c8] : memref<720x32xbf16, #tpu.memory_space<vmem>>, vector<720x4xbf16>
    tpu.vector_store %arg6[%c0_15, %c8], %17 {strides = array<i32>} : memref<720x32xbf16, #tpu.memory_space<vmem>>, vector<720x4xbf16>,
    %c1_i32_16 = arith.constant 1 : i32
    %19 = arith.addi %0, %c1_i32_16 : i32
    %c0_17 = arith.constant 0 : index
    %20 = arith.index_cast %19 : i32 to index
    %c0_18 = arith.constant 0 : index
    %c0_19 = arith.constant 0 : index
    %c0_20 = arith.constant 0 : index
    %21 = vector.load %arg2[%c0_17, %20, %c0_18, %c0_19, %c0_20] : memref<1x11x10x17x4xbf16, #tpu.memory_space<vmem>>, vector<1x5x9x16x4xbf16>
    %22 = vector.shape_cast %21 : vector<1x5x9x16x4xbf16> to vector<5x9x16x4xbf16>
    %23 = vector.shape_cast %22 : vector<5x9x16x4xbf16> to vector<720x4xbf16>
    %c0_21 = arith.constant 0 : index
    %c12 = arith.constant 12 : index
    %24 = vector.load %arg6[%c0_21, %c12] : memref<720x32xbf16, #tpu.memory_space<vmem>>, vector<720x4xbf16>
    tpu.vector_store %arg6[%c0_21, %c12], %23 {strides = array<i32>} : memref<720x32xbf16, #tpu.memory_space<vmem>>, vector<720x4xbf16>,
    %c0_i32 = arith.constant 0 : i32
    %25 = arith.addi %0, %c0_i32 : i32
    %c0_22 = arith.constant 0 : index
    %26 = arith.index_cast %25 : i32 to index
    %c1_23 = arith.constant 1 : index
    %c1_24 = arith.constant 1 : index
    %c0_25 = arith.constant 0 : index
    %27 = vector.load %arg2[%c0_22, %26, %c1_23, %c1_24, %c0_25] : memref<1x11x10x17x4xbf16, #tpu.memory_space<vmem>>, vector<1x5x9x16x4xbf16>
    %28 = vector.shape_cast %27 : vector<1x5x9x16x4xbf16> to vector<5x9x16x4xbf16>
    %29 = vector.shape_cast %28 : vector<5x9x16x4xbf16> to vector<720x4xbf16>
    %c0_26 = arith.constant 0 : index
    %c16 = arith.constant 16 : index
    %30 = vector.load %arg6[%c0_26, %c16] : memref<720x32xbf16, #tpu.memory_space<vmem>>, vector<720x4xbf16>
    tpu.vector_store %arg6[%c0_26, %c16], %29 {strides = array<i32>} : memref<720x32xbf16, #tpu.memory_space<vmem>>, vector<720x4xbf16>,
    %c0_i32_27 = arith.constant 0 : i32
    %31 = arith.addi %0, %c0_i32_27 : i32
    %c0_28 = arith.constant 0 : index
    %32 = arith.index_cast %31 : i32 to index
    %c1_29 = arith.constant 1 : index
    %c0_30 = arith.constant 0 : index
    %c0_31 = arith.constant 0 : index
    %33 = vector.load %arg2[%c0_28, %32, %c1_29, %c0_30, %c0_31] : memref<1x11x10x17x4xbf16, #tpu.memory_space<vmem>>, vector<1x5x9x16x4xbf16>
    %34 = vector.shape_cast %33 : vector<1x5x9x16x4xbf16> to vector<5x9x16x4xbf16>
    %35 = vector.shape_cast %34 : vector<5x9x16x4xbf16> to vector<720x4xbf16>
    %c0_32 = arith.constant 0 : index
    %c20 = arith.constant 20 : index
    %36 = vector.load %arg6[%c0_32, %c20] : memref<720x32xbf16, #tpu.memory_space<vmem>>, vector<720x4xbf16>
    tpu.vector_store %arg6[%c0_32, %c20], %35 {strides = array<i32>} : memref<720x32xbf16, #tpu.memory_space<vmem>>, vector<720x4xbf16>,
    %c0_i32_33 = arith.constant 0 : i32
    %37 = arith.addi %0, %c0_i32_33 : i32
    %c0_34 = arith.constant 0 : index
    %38 = arith.index_cast %37 : i32 to index
    %c0_35 = arith.constant 0 : index
    %c1_36 = arith.constant 1 : index
    %c0_37 = arith.constant 0 : index
    %39 = vector.load %arg2[%c0_34, %38, %c0_35, %c1_36, %c0_37] : memref<1x11x10x17x4xbf16, #tpu.memory_space<vmem>>, vector<1x5x9x16x4xbf16>
    %40 = vector.shape_cast %39 : vector<1x5x9x16x4xbf16> to vector<5x9x16x4xbf16>
    %41 = vector.shape_cast %40 : vector<5x9x16x4xbf16> to vector<720x4xbf16>
    %c0_38 = arith.constant 0 : index
    %c24 = arith.constant 24 : index
    %42 = vector.load %arg6[%c0_38, %c24] : memref<720x32xbf16, #tpu.memory_space<vmem>>, vector<720x4xbf16>
    tpu.vector_store %arg6[%c0_38, %c24], %41 {strides = array<i32>} : memref<720x32xbf16, #tpu.memory_space<vmem>>, vector<720x4xbf16>,
    %c0_i32_39 = arith.constant 0 : i32
    %43 = arith.addi %0, %c0_i32_39 : i32
    %c0_40 = arith.constant 0 : index
    %44 = arith.index_cast %43 : i32 to index
    %c0_41 = arith.constant 0 : index
    %c0_42 = arith.constant 0 : index
    %c0_43 = arith.constant 0 : index
    %45 = vector.load %arg2[%c0_40, %44, %c0_41, %c0_42, %c0_43] : memref<1x11x10x17x4xbf16, #tpu.memory_space<vmem>>, vector<1x5x9x16x4xbf16>
    %46 = vector.shape_cast %45 : vector<1x5x9x16x4xbf16> to vector<5x9x16x4xbf16>
    %47 = vector.shape_cast %46 : vector<5x9x16x4xbf16> to vector<720x4xbf16>
    %c0_44 = arith.constant 0 : index
    %c28 = arith.constant 28 : index
    %48 = vector.load %arg6[%c0_44, %c28] : memref<720x32xbf16, #tpu.memory_space<vmem>>, vector<720x4xbf16>
    tpu.vector_store %arg6[%c0_44, %c28], %47 {strides = array<i32>} : memref<720x32xbf16, #tpu.memory_space<vmem>>, vector<720x4xbf16>,
    %c0_45 = arith.constant 0 : index
    %c0_46 = arith.constant 0 : index
    %49 = vector.load %arg3[%c0_45, %c0_46] : memref<64x32xbf16, #tpu.memory_space<vmem>>, vector<64x32xbf16>
    %c0_47 = arith.constant 0 : index
    %c0_48 = arith.constant 0 : index
    %50 = vector.load %arg6[%c0_47, %c0_48] : memref<720x32xbf16, #tpu.memory_space<vmem>>, vector<720x32xbf16>
    %cst = arith.constant dense<0.000000e+00> : vector<64x720xf32>
    %51 = tpu.matmul %49, %50, %cst {dimension_numbers = #tpu.dot_dimension_numbers<[1], [1], [0], [0], [0, 0, 1, 0], [], []>} : vector<64x32xbf16>, vector<720x32xbf16>, vector<64x720xf32> -> vector<64x720xf32>
    %c0_49 = arith.constant 0 : index
    %c0_50 = arith.constant 0 : index
    %52 = vector.load %arg4[%c0_49, %c0_50] : memref<64x1xf32, #tpu.memory_space<vmem>>, vector<64x1xf32>
    %53 = vector.broadcast %52 : vector<64x1xf32> to vector<64x720xf32>
    %54 = arith.addf %51, %53 : vector<64x720xf32>
    %cst_51 = arith.constant 0.000000e+00 : f32
    %55 = vector.broadcast %cst_51 : f32 to vector<64x720xf32>
    %56 = arith.maximumf %54, %55 : vector<64x720xf32>
    %c0_52 = arith.constant 0 : index
    %c0_53 = arith.constant 0 : index
    %c0_54 = arith.constant 0 : index
    %c0_55 = arith.constant 0 : index
    %57 = vector.load %arg5[%c0_52, %c0_53, %c0_54, %c0_55] : memref<1x1x64x720xf32, #tpu.memory_space<vmem>>, vector<1x1x64x720xf32>
    %58 = vector.shape_cast %57 : vector<1x1x64x720xf32> to vector<64x720xf32>
    %59 = vector.shape_cast %56 : vector<64x720xf32> to vector<1x1x64x720xf32>
    tpu.vector_store %arg5[%c0_52, %c0_53, %c0_54, %c0_55], %59 {strides = array<i32>} : memref<1x1x64x720xf32, #tpu.memory_space<vmem>>, vector<1x1x64x720xf32>,
    return
  }
  func.func @transform_0(%arg0: i32, %arg1: i32) -> (i32, i32, i32, i32, i32) {
    %c0_i32 = arith.constant 0 : i32
    %c0_i32_0 = arith.constant 0 : i32
    %c0_i32_1 = arith.constant 0 : i32
    %c0_i32_2 = arith.constant 0 : i32
    %c0_i32_3 = arith.constant 0 : i32
    return %arg0, %c0_i32, %c0_i32_0, %c0_i32_1, %c0_i32_2 : i32, i32, i32, i32, i32
  }
  func.func @transform_1(%arg0: i32, %arg1: i32) -> (i32, i32) {
    %c0_i32 = arith.constant 0 : i32
    %c0_i32_0 = arith.constant 0 : i32
    %c0_i32_1 = arith.constant 0 : i32
    return %c0_i32, %c0_i32_0 : i32, i32
  }
  func.func @transform_2(%arg0: i32, %arg1: i32) -> (i32, i32) {
    %c0_i32 = arith.constant 0 : i32
    %c0_i32_0 = arith.constant 0 : i32
    %c0_i32_1 = arith.constant 0 : i32
    return %c0_i32, %c0_i32_0 : i32, i32
  }
  func.func @transform_3(%arg0: i32, %arg1: i32) -> (i32, i32, i32, i32) {
    %c0_i32 = arith.constant 0 : i32
    %c0_i32_0 = arith.constant 0 : i32
    %c0_i32_1 = arith.constant 0 : i32
    return %arg0, %arg1, %c0_i32, %c0_i32_0 : i32, i32, i32, i32
  }
}

</mosaic_0001>

<llo_original>
// kernel: tile.8
$region0: #{tile.8}
  #allocation2 [shape = 's32[1]{0}', space=sflag, size = 0x4, scoped, tag = 'scoped memory for tile.8']
  %s0 = inlined_call_operand.hbm [shape: f32[8], index: 0, kind: input, shape index: {}]
  %s1 = inlined_call_operand.vmem [shape: f32[8,8], index: 1, kind: output, shape index: {}]
  $region1: #{tile.8} parent=0
    #allocation0 [shape = 'u8[512]{0}', space=vmem, size = 0x400, scoped, tag = 'operand span for operand 0']
    #allocation1 [shape = 's32[1]{0}', space=sflag, size = 0x4, scoped, tag = 'scoped memory for tile.8']
    %2 = vsyncpa [#allocation1], 0
    // Predicated region
    $region2: #{tile.8} parent=1 // pred_check
      _
    $region3: #{tile.8} parent=1 // pred_check_branch
      %4 = sbr.rel (0) target = $region5
    $region4: #{tile.8} parent=1 // pred_region
      %s6 = ssub.s32 16, 16
      %7 = vsyncadd [#allocation1], %s6
      %s9 = sshll.u32 [#allocation0], 4
      %s10 = int_to_ptr.vmem [resolvable:$true] %s9
      %12 = dma.hbm_to_vmem [thread:$0]  %s0, 16, %s10, [#allocation1]
    $region5: #{tile.8} parent=1 // pred_fallthru
      _
    // Predicated region
    $region6: #{tile.8} parent=1 // pred_check
      _
    $region7: #{tile.8} parent=1 // pred_check_branch
      %14 = sbr.rel (0) target = $region9
    $region8: #{tile.8} parent=1 // pred_region
      %15 = dma.done [#allocation1], 16
    $region9: #{tile.8} parent=1 // pred_fallthru
      _
    %v16 = vld [vmem:[#allocation0] ss:$0 sm:$0xff]
    %17 = vst [vmem:[%s1] sm:$0xff] %v16
    %18 = vsyncpa [#allocation1], 1

// kernel: tile.0
$region0: #{tile.0}
  %s0 = inlined_call_operand.vmem [shape: f32[8,8], index: 0, kind: input, shape index: {}]
  %s1 = inlined_call_operand.vmem [shape: f32[64,1], index: 1, kind: output, shape index: {}]
  %v2 = vld [vmem:[%s0] sm:$0xff]
  %vm3 = vcmask 7168
  %4 = vst.msk [vmem:[%s1] ss:$8 sm:$0xf] %vm3, %v2
  %5 = vst.msk [vmem:[%s1] ss:$8 sm:$0xf0] %vm3, %v2
  %v6 = vld [vmem:[%s0] sm:$0xff]
  %7 = vrot.lane.b32.xlu0 %v6, 127
  %v8 = vpop.permute.xlu0 %7
  %vm9 = vcmask 7168
  %s10 = scalar_lea.vmem %s1, 1
  %11 = vst.msk [vmem:[%s10] ss:$8 sm:$0xf] %vm9, %v8
  %s12 = scalar_lea.vmem %s1, 1
  %13 = vst.msk [vmem:[%s12] ss:$8 sm:$0xf0] %vm9, %v8
  %v14 = vld [vmem:[%s0] sm:$0xff]
  %15 = vrot.lane.b32.xlu0 %v14, 126
  %v16 = vpop.permute.xlu0 %15
  %vm17 = vcmask 7168
  %s18 = scalar_lea.vmem %s1, 2
  %19 = vst.msk [vmem:[%s18] ss:$8 sm:$0xf] %vm17, %v16
  %s20 = scalar_lea.vmem %s1, 2
  %21 = vst.msk [vmem:[%s20] ss:$8 sm:$0xf0] %vm17, %v16
  %v22 = vld [vmem:[%s0] sm:$0xff]
  %23 = vrot.lane.b32.xlu0 %v22, 125
  %v24 = vpop.permute.xlu0 %23
  %vm25 = vcmask 7168
  %s26 = scalar_lea.vmem %s1, 3
  %27 = vst.msk [vmem:[%s26] ss:$8 sm:$0xf] %vm25, %v24
  %s28 = scalar_lea.vmem %s1, 3
  %29 = vst.msk [vmem:[%s28] ss:$8 sm:$0xf0] %vm25, %v24
  %v30 = vld [vmem:[%s0] sm:$0xff]
  %31 = vrot.lane.b32.xlu0 %v30, 124
  %v32 = vpop.permute.xlu0 %31
  %vm33 = vcmask 7168
  %s34 = scalar_lea.vmem %s1, 4
  %35 = vst.msk [vmem:[%s34] ss:$8 sm:$0xf] %vm33, %v32
  %s36 = scalar_lea.vmem %s1, 4
  %37 = vst.msk [vmem:[%s36] ss:$8 sm:$0xf0] %vm33, %v32
  %v38 = vld [vmem:[%s0] sm:$0xff]
  %39 = vrot.lane.b32.xlu0 %v38, 123
  %v40 = vpop.permute.xlu0 %39
  %vm41 = vcmask 7168
  %s42 = scalar_lea.vmem %s1, 5
  %43 = vst.msk [vmem:[%s42] ss:$8 sm:$0xf] %vm41, %v40
  %s44 = scalar_lea.vmem %s1, 5
  %45 = vst.msk [vmem:[%s44] ss:$8 sm:$0xf0] %vm41, %v40
  %v46 = vld [vmem:[%s0] sm:$0xff]
  %47 = vrot.lane.b32.xlu0 %v46, 122
  %v48 = vpop.permute.xlu0 %47
  %vm49 = vcmask 7168
  %s50 = scalar_lea.vmem %s1, 6
  %51 = vst.msk [vmem:[%s50] ss:$8 sm:$0xf] %vm49, %v48
  %s52 = scalar_lea.vmem %s1, 6
  %53 = vst.msk [vmem:[%s52] ss:$8 sm:$0xf0] %vm49, %v48
  %v54 = vld [vmem:[%s0] sm:$0xff]
  %55 = vrot.lane.b32.xlu0 %v54, 121
  %v56 = vpop.permute.xlu0 %55
  %vm57 = vcmask 7168
  %s58 = scalar_lea.vmem %s1, 7
  %59 = vst.msk [vmem:[%s58] ss:$8 sm:$0xf] %vm57, %v56
  %s60 = scalar_lea.vmem %s1, 7
  %61 = vst.msk [vmem:[%s60] ss:$8 sm:$0xf0] %vm57, %v56

// kernel: convT3d_relu.1
$region0: #{convT3d_relu.1}
  #allocation0 [shape = 'u32[]', space=smem, size = 0x4, offset = 0x4, fixed_abs, tag = 'smem constant byte address 0x4 - core index']
  #allocation1 [shape = 'u32[144,128]{1,0:T(1,128)}', space=vmem, size = 0x12000, scoped, tag = 'internal scratch']
  #allocation2 [shape = 'bf16[720,32]{1,0:T(16,128)(2,1)}', space=vmem, size = 0x2d000, scoped, tag = 'scratch operand']
  %s0 = inlined_call_operand.vmem [shape: bf16[2,11,10,17,4], index: 0, kind: input, shape index: {}]
  %s1 = inlined_call_operand.vmem [shape: bf16[64,32], index: 1, kind: input, shape index: {}]
  %s2 = inlined_call_operand.vmem [shape: f32[64,1], index: 2, kind: input, shape index: {}]
  %s3 = inlined_call_operand.vmem [shape: f32[2,2,64,720], index: 3, kind: output, shape index: {}]
  %s4 = sld [smem:[#allocation0]]
  $region45: #{convT3d_relu.1} parent=0
    _
  %s6 = ssub.s32 1, %s4
  %s7 = scalar_select 0, %s6, %s4
  loop: start=0, step=1, limit=6
  $region2: #{convT3d_relu.1} parent=0 // loop_pre_header
    _
  $region3: #{convT3d_relu.1} parent=0 // loop_header
    %s9 = sphi 0, %s13
    %p10 = scmp.ge.s32.totalorder %s9, 6
    %s16 = sphi 0, %s28
    %s17 = sphi 0, %s24
    %s18 = sphi 0, %s16
    %s19 = sphi 0, %s17
    %s20 = sphi 0, %s18
    %s21 = sphi 0, %s19
    %s31 = sphi 0, %s33
    %s34 = sphi 0, %s31
    %s35 = sphi 0, %s34
    %s51 = sphi 0, %s35
    %s55 = sphi 0, %s55
    %s57 = sphi 0, %s55
    %s58 = sphi 0, %s57
    %s72 = sphi 0, %s58
    %s76 = sphi 0, %s76
    %s78 = sphi 0, %s76
    %s79 = sphi 0, %s78
    %s93 = sphi 0, %s79
    %s101 = sphi 0, %s103
    %s104 = sphi 0, %s101
    %s105 = sphi 0, %s104
    %s121 = sphi 0, %s105
  $region4: #{convT3d_relu.1} parent=0 // loop_header_branch
    %12 = sbr.rel (%p10) target = $region8
  $region5: #{convT3d_relu.1} parent=0 // loop_body
    %s14 = ssub.s32 %s9, 1
    %s15 = ssub.s32 %s9, 2
    %s22 = sadd.s32 1, %s17
    %p23 = scmp.ge.s32.totalorder %s22, 2
    %s24 = scalar_select %p23, 0, %s22
    %s25 = sadd.s32 1, %s16
    %s26 = scalar_select %p23, %s25, %s16
    %p27 = scmp.ge.s32.totalorder %s26, 2
    %s28 = scalar_select %p27, 0, %s26
    %s29 = ssub.s32 %s16, %s28
    %p30 = scmp.eq.s32.totalorder %s29, 0
    %s32 = sadd.s32 %s31, 1
    %s33 = scalar_select %p30, %s31, %s32
    %p36 = pneg %p30
    %p37 = scmp.eq.s32.totalorder %s9, 3
    %p38 = por %p36, %p37
    %p39 = scmp.ne.s32.totalorder %s31, %s34
    %p40 = scmp.eq.s32.totalorder %s9, 0
    %p41 = por %p39, %p40
    %p42 = scmp.ne.s32.totalorder %s31, %s34
    %p43 = scmp.eq.s32.totalorder %s14, 3
    %p44 = por %p42, %p43
    %p45 = scmp.ne.s32.totalorder %s34, %s35
    %p46 = scmp.eq.s32.totalorder %s14, 0
    %p47 = por %p45, %p46
    %p48 = scmp.ne.s32.totalorder %s34, %s35
    %p49 = scmp.eq.s32.totalorder %s15, 3
    %p50 = por %p48, %p49
    %p52 = scmp.ne.s32.totalorder %s35, %s51
    %p53 = scmp.eq.s32.totalorder %s15, 0
    %p54 = por %p52, %p53
    %s56 = sadd.s32 %s55, 1
    %p59 = scmp.eq.s32.totalorder %s9, 3
    %p60 = scmp.ne.s32.totalorder %s55, %s57
    %p61 = scmp.eq.s32.totalorder %s9, 0
    %p62 = por %p60, %p61
    %p63 = scmp.ne.s32.totalorder %s55, %s57
    %p64 = scmp.eq.s32.totalorder %s14, 3
    %p65 = por %p63, %p64
    %p66 = scmp.ne.s32.totalorder %s57, %s58
    %p67 = scmp.eq.s32.totalorder %s14, 0
    %p68 = por %p66, %p67
    %p69 = scmp.ne.s32.totalorder %s57, %s58
    %p70 = scmp.eq.s32.totalorder %s15, 3
    %p71 = por %p69, %p70
    %p73 = scmp.ne.s32.totalorder %s58, %s72
    %p74 = scmp.eq.s32.totalorder %s15, 0
    %p75 = por %p73, %p74
    %s77 = sadd.s32 %s76, 1
    %p80 = scmp.eq.s32.totalorder %s9, 3
    %p81 = scmp.ne.s32.totalorder %s76, %s78
    %p82 = scmp.eq.s32.totalorder %s9, 0
    %p83 = por %p81, %p82
    %p84 = scmp.ne.s32.totalorder %s76, %s78
    %p85 = scmp.eq.s32.totalorder %s14, 3
    %p86 = por %p84, %p85
    %p87 = scmp.ne.s32.totalorder %s78, %s79
    %p88 = scmp.eq.s32.totalorder %s14, 0
    %p89 = por %p87, %p88
    %p90 = scmp.ne.s32.totalorder %s78, %s79
    %p91 = scmp.eq.s32.totalorder %s15, 3
    %p92 = por %p90, %p91
    %p94 = scmp.ne.s32.totalorder %s79, %s93
    %p95 = scmp.eq.s32.totalorder %s15, 0
    %p96 = por %p94, %p95
    %s97 = ssub.s32 %s16, %s28
    %s98 = ssub.s32 %s17, %s24
    %s99 = sor.u32 %s97, %s98
    %p100 = scmp.eq.s32.totalorder %s99, 0
    %s102 = sadd.s32 %s101, 1
    %s103 = scalar_select %p100, %s101, %s102
    %p106 = pneg %p100
    %p107 = scmp.eq.s32.totalorder %s9, 3
    %p108 = por %p106, %p107
    %p109 = scmp.ne.s32.totalorder %s101, %s104
    %p110 = scmp.eq.s32.totalorder %s9, 0
    %p111 = por %p109, %p110
    %p112 = scmp.ne.s32.totalorder %s101, %s104
    %p113 = scmp.eq.s32.totalorder %s14, 3
    %p114 = por %p112, %p113
    %p115 = scmp.ne.s32.totalorder %s104, %s105
    %p116 = scmp.eq.s32.totalorder %s14, 0
    %p117 = por %p115, %p116
    %p118 = scmp.ne.s32.totalorder %s104, %s105
    %p119 = scmp.eq.s32.totalorder %s15, 3
    %p120 = por %p118, %p119
    %p122 = scmp.ne.s32.totalorder %s105, %s121
    %p123 = scmp.eq.s32.totalorder %s15, 0
    %p124 = por %p122, %p123
    %p125 = scmp.le.s32.totalorder 1, %s9
    %p126 = scmp.lt.s32.totalorder %s9, 5
    %p127 = pnand %p125, %p126
    %p128 = pneg %p127
    // Predicated region
    $region9: #{convT3d_relu.1} parent=5 // pred_check
      _
    $region10: #{convT3d_relu.1} parent=5 // pred_check_branch
      %130 = sbr.rel (%p127) target = $region12
    $region11: #{convT3d_relu.1} parent=5 // pred_region
      %s131 = ssub.s32 %s9, 1
      // Predicated region
      $region13: #{convT3d_relu.1} parent=11 // pred_check
        %p132 = pneg %p68
      $region14: #{convT3d_relu.1} parent=11 // pred_check_branch
        %134 = sbr.rel (%p132) target = $region16
      $region15: #{convT3d_relu.1} parent=11 // pred_region
        _
      $region16: #{convT3d_relu.1} parent=11 // pred_fallthru
        _
      // Predicated region
      $region17: #{convT3d_relu.1} parent=11 // pred_check
        %p135 = pneg %p89
      $region18: #{convT3d_relu.1} parent=11 // pred_check_branch
        %137 = sbr.rel (%p135) target = $region20
      $region19: #{convT3d_relu.1} parent=11 // pred_region
        _
      $region20: #{convT3d_relu.1} parent=11 // pred_fallthru
        _
    $region12: #{convT3d_relu.1} parent=5 // pred_fallthru
      _
    %p138 = scmp.lt.s32.totalorder %s9, 4
    // Predicated region
    $region21: #{convT3d_relu.1} parent=5 // pred_check
      %p139 = pneg %p138
    $region22: #{convT3d_relu.1} parent=5 // pred_check_branch
      %141 = sbr.rel (%p139) target = $region24
    $region23: #{convT3d_relu.1} parent=5 // pred_region
      // Predicated region
      $region25: #{convT3d_relu.1} parent=23 // pred_check
        %p142 = pneg %p41
      $region26: #{convT3d_relu.1} parent=23 // pred_check_branch
        %144 = sbr.rel (%p142) target = $region28
      $region27: #{convT3d_relu.1} parent=23 // pred_region
        %p145 = scmp.lt.s32.totalorder %s16, 1
        %s146 = scalar_select %p145, %s16, 1
        %s147 = smul.addr %s146, 330
        %s148 = smul.addr %s147, 4
        %s149 = scalar_lea.vmem %s0, %s148
      $region28: #{convT3d_relu.1} parent=23 // pred_fallthru
        _
    $region24: #{convT3d_relu.1} parent=5 // pred_fallthru
      _
    %p150 = scmp.le.s32.totalorder 1, %s9
    %p151 = scmp.lt.s32.totalorder %s9, 5
    %p152 = pnand %p150, %p151
    %p153 = pneg %p152
    // Predicated region
    $region29: #{convT3d_relu.1} parent=5 // pred_check
      _
    $region30: #{convT3d_relu.1} parent=5 // pred_check_branch
      %155 = sbr.rel (%p152) target = $region32
    $region31: #{convT3d_relu.1} parent=5 // pred_region
      %s156 = ssub.s32 %s9, 1
      %p157 = scmp.lt.s32.totalorder %s18, 1
      %s158 = scalar_select %p157, %s18, 1
      %s159 = smul.addr %s158, 330
      %s160 = smul.addr %s159, 4
      %s161 = scalar_lea.vmem %s0, %s160
      %p162 = pneg %p47
      %p163 = pneg %p44
      %p164 = pneg %p68
      %p165 = pneg %p65
      %p166 = pneg %p89
      %p167 = pneg %p86
      %p168 = pneg %p117
      %p169 = pneg %p114
      %p170 = scmp.lt.s32.totalorder %s18, 1
      %s171 = scalar_select %p170, %s18, 1
      %p172 = scmp.lt.s32.totalorder %s19, 1
      %s173 = scalar_select %p172, %s19, 1
      %s174 = smul.addr %s173, 48
      %s175 = smul.addr %s171, 96
      %s176 = sadd.s32 %s174, %s175
      %s177 = smul.addr %s176, 8
      %s178 = scalar_lea.vmem %s3, %s177
      %p179 = scmp.lt.s32.totalorder %s18, 1
      %s180 = scalar_select %p179, %s18, 1
      %s181 = smul.addr %s180, 330
      %s182 = smul.addr %s181, 4
      %s183 = scalar_lea.vmem %s0, %s182
      %p184 = scmp.lt.s32.totalorder %s18, 1
      %s185 = scalar_select %p184, %s18, 1
      %p186 = scmp.lt.s32.totalorder %s19, 1
      %s187 = scalar_select %p186, %s19, 1
      %s188 = smul.addr %s187, 48
      %s189 = smul.addr %s185, 96
      %s190 = sadd.s32 %s188, %s189
      %s191 = smul.addr %s190, 8
      %s192 = scalar_lea.vmem %s3, %s191
      %s194 = smul.u32 %s19, 5
      %s195 = sadd.s32 %s194, 1
      %s196 = smul.u32 %s195, 30
      %s197 = sadd.s32 3, %s196
      %s198 = smul.addr %s197, 4
      %s199 = scalar_lea.vmem %s183, %s198
      %v200 = vld [vmem:[%s199] sm:$0xf]
      %v201 = vld [vmem:[%s199 + $0x4] sm:$0xf]
      %v202 = vld [vmem:[%s199 + $0x8] sm:$0x1]
      %v203 = vld [vmem:[%s199 + $0xc] sm:$0xf]
      %v204 = vld [vmem:[%s199 + $0x10] sm:$0xf]
      %v205 = vld [vmem:[%s199 + $0x14] sm:$0x1]
      %v206 = vld [vmem:[%s199 + $0x18] sm:$0xf]
      %v207 = vld [vmem:[%s199 + $0x1c] sm:$0xf]
      %v208 = vld [vmem:[%s199 + $0x20] sm:$0x1]
      %v209 = vld [vmem:[%s199 + $0x24] sm:$0xf]
      %v210 = vld [vmem:[%s199 + $0x28] sm:$0xf]
      %v211 = vld [vmem:[%s199 + $0x2c] sm:$0x1]
      %v212 = vld [vmem:[%s199 + $0x30] sm:$0xf]
      %v213 = vld [vmem:[%s199 + $0x34] sm:$0xf]
      %v214 = vld [vmem:[%s199 + $0x38] sm:$0x1]
      %v215 = vld [vmem:[%s199 + $0x3c] sm:$0xf]
      %v216 = vld [vmem:[%s199 + $0x40] sm:$0xf]
      %v217 = vld [vmem:[%s199 + $0x44] sm:$0x1]
      %v218 = vld [vmem:[%s199 + $0x48] sm:$0xf]
      %v219 = vld [vmem:[%s199 + $0x4c] sm:$0xf]
      %v220 = vld [vmem:[%s199 + $0x50] sm:$0x1]
      %v221 = vld [vmem:[%s199 + $0x54] sm:$0xf]
      %v222 = vld [vmem:[%s199 + $0x58] sm:$0xf]
      %v223 = vld [vmem:[%s199 + $0x5c] sm:$0x1]
      %v224 = vld [vmem:[%s199 + $0x60] sm:$0xf]
      %v225 = vld [vmem:[%s199 + $0x64] sm:$0xf]
      %v226 = vld [vmem:[%s199 + $0x68] sm:$0x1]
      %v227 = vld [vmem:[%s199 + $0x78] sm:$0xf]
      %v228 = vld [vmem:[%s199 + $0x7c] sm:$0xf]
      %v229 = vld [vmem:[%s199 + $0x80] sm:$0x1]
      %v230 = vld [vmem:[%s199 + $0x84] sm:$0xf]
      %v231 = vld [vmem:[%s199 + $0x88] sm:$0xf]
      %v232 = vld [vmem:[%s199 + $0x8c] sm:$0x1]
      %v233 = vld [vmem:[%s199 + $0x90] sm:$0xf]
      %v234 = vld [vmem:[%s199 + $0x94] sm:$0xf]
      %v235 = vld [vmem:[%s199 + $0x98] sm:$0x1]
      %v236 = vld [vmem:[%s199 + $0x9c] sm:$0xf]
      %v237 = vld [vmem:[%s199 + $0xa0] sm:$0xf]
      %v238 = vld [vmem:[%s199 + $0xa4] sm:$0x1]
      %v239 = vld [vmem:[%s199 + $0xa8] sm:$0xf]
      %v240 = vld [vmem:[%s199 + $0xac] sm:$0xf]
      %v241 = vld [vmem:[%s199 + $0xb0] sm:$0x1]
      %v242 = vld [vmem:[%s199 + $0xb4] sm:$0xf]
      %v243 = vld [vmem:[%s199 + $0xb8] sm:$0xf]
      %v244 = vld [vmem:[%s199 + $0xbc] sm:$0x1]
      %v245 = vld [vmem:[%s199 + $0xc0] sm:$0xf]
      %v246 = vld [vmem:[%s199 + $0xc4] sm:$0xf]
      %v247 = vld [vmem:[%s199 + $0xc8] sm:$0x1]
      %v248 = vld [vmem:[%s199 + $0xcc] sm:$0xf]
      %v249 = vld [vmem:[%s199 + $0xd0] sm:$0xf]
      %v250 = vld [vmem:[%s199 + $0xd4] sm:$0x1]
      %v251 = vld [vmem:[%s199 + $0xd8] sm:$0xf]
      %v252 = vld [vmem:[%s199 + $0xdc] sm:$0xf]
      %v253 = vld [vmem:[%s199 + $0xe0] sm:$0x1]
      %v254 = vld [vmem:[%s199 + $0xf0] sm:$0xf]
      %v255 = vld [vmem:[%s199 + $0xf4] sm:$0xf]
      %v256 = vld [vmem:[%s199 + $0xf8] sm:$0x1]
      %v257 = vld [vmem:[%s199 + $0xfc] sm:$0xf]
      %v258 = vld [vmem:[%s199 + $0x100] sm:$0xf]
      %v259 = vld [vmem:[%s199 + $0x104] sm:$0x1]
      %v260 = vld [vmem:[%s199 + $0x108] sm:$0xf]
      %v261 = vld [vmem:[%s199 + $0x10c] sm:$0xf]
      %v262 = vld [vmem:[%s199 + $0x110] sm:$0x1]
      %v263 = vld [vmem:[%s199 + $0x114] sm:$0xf]
      %v264 = vld [vmem:[%s199 + $0x118] sm:$0xf]
      %v265 = vld [vmem:[%s199 + $0x11c] sm:$0x1]
      %v266 = vld [vmem:[%s199 + $0x120] sm:$0xf]
      %v267 = vld [vmem:[%s199 + $0x124] sm:$0xf]
      %v268 = vld [vmem:[%s199 + $0x128] sm:$0x1]
      %v269 = vld [vmem:[%s199 + $0x12c] sm:$0xf]
      %v270 = vld [vmem:[%s199 + $0x130] sm:$0xf]
      %v271 = vld [vmem:[%s199 + $0x134] sm:$0x1]
      %v272 = vld [vmem:[%s199 + $0x138] sm:$0xf]
      %v273 = vld [vmem:[%s199 + $0x13c] sm:$0xf]
      %v274 = vld [vmem:[%s199 + $0x140] sm:$0x1]
      %v275 = vld [vmem:[%s199 + $0x144] sm:$0xf]
      %v276 = vld [vmem:[%s199 + $0x148] sm:$0xf]
      %v277 = vld [vmem:[%s199 + $0x14c] sm:$0x1]
      %v278 = vld [vmem:[%s199 + $0x150] sm:$0xf]
      %v279 = vld [vmem:[%s199 + $0x154] sm:$0xf]
      %v280 = vld [vmem:[%s199 + $0x158] sm:$0x1]
      %v281 = vld [vmem:[%s199 + $0x168] sm:$0xf]
      %v282 = vld [vmem:[%s199 + $0x16c] sm:$0xf]
      %v283 = vld [vmem:[%s199 + $0x170] sm:$0x1]
      %v284 = vld [vmem:[%s199 + $0x174] sm:$0xf]
      %v285 = vld [vmem:[%s199 + $0x178] sm:$0xf]
      %v286 = vld [vmem:[%s199 + $0x17c] sm:$0x1]
      %v287 = vld [vmem:[%s199 + $0x180] sm:$0xf]
      %v288 = vld [vmem:[%s199 + $0x184] sm:$0xf]
      %v289 = vld [vmem:[%s199 + $0x188] sm:$0x1]
      %v290 = vld [vmem:[%s199 + $0x18c] sm:$0xf]
      %v291 = vld [vmem:[%s199 + $0x190] sm:$0xf]
      %v292 = vld [vmem:[%s199 + $0x194] sm:$0x1]
      %v293 = vld [vmem:[%s199 + $0x198] sm:$0xf]
      %v294 = vld [vmem:[%s199 + $0x19c] sm:$0xf]
      %v295 = vld [vmem:[%s199 + $0x1a0] sm:$0x1]
      %v296 = vld [vmem:[%s199 + $0x1a4] sm:$0xf]
      %v297 = vld [vmem:[%s199 + $0x1a8] sm:$0xf]
      %v298 = vld [vmem:[%s199 + $0x1ac] sm:$0x1]
      %v299 = vld [vmem:[%s199 + $0x1b0] sm:$0xf]
      %v300 = vld [vmem:[%s199 + $0x1b4] sm:$0xf]
      %v301 = vld [vmem:[%s199 + $0x1b8] sm:$0x1]
      %v302 = vld [vmem:[%s199 + $0x1bc] sm:$0xf]
      %v303 = vld [vmem:[%s199 + $0x1c0] sm:$0xf]
      %v304 = vld [vmem:[%s199 + $0x1c4] sm:$0x1]
      %v305 = vld [vmem:[%s199 + $0x1c8] sm:$0xf]
      %v306 = vld [vmem:[%s199 + $0x1cc] sm:$0xf]
      %v307 = vld [vmem:[%s199 + $0x1d0] sm:$0x1]
      %v308 = vld [vmem:[%s199 + $0x1e0] sm:$0xf]
      %v309 = vld [vmem:[%s199 + $0x1e4] sm:$0xf]
      %v310 = vld [vmem:[%s199 + $0x1e8] sm:$0x1]
      %v311 = vld [vmem:[%s199 + $0x1ec] sm:$0xf]
      %v312 = vld [vmem:[%s199 + $0x1f0] sm:$0xf]
      %v313 = vld [vmem:[%s199 + $0x1f4] sm:$0x1]
      %v314 = vld [vmem:[%s199 + $0x1f8] sm:$0xf]
      %v315 = vld [vmem:[%s199 + $0x1fc] sm:$0xf]
      %v316 = vld [vmem:[%s199 + $0x200] sm:$0x1]
      %v317 = vld [vmem:[%s199 + $0x204] sm:$0xf]
      %v318 = vld [vmem:[%s199 + $0x208] sm:$0xf]
      %v319 = vld [vmem:[%s199 + $0x20c] sm:$0x1]
      %v320 = vld [vmem:[%s199 + $0x210] sm:$0xf]
      %v321 = vld [vmem:[%s199 + $0x214] sm:$0xf]
      %v322 = vld [vmem:[%s199 + $0x218] sm:$0x1]
      %v323 = vld [vmem:[%s199 + $0x21c] sm:$0xf]
      %v324 = vld [vmem:[%s199 + $0x220] sm:$0xf]
      %v325 = vld [vmem:[%s199 + $0x224] sm:$0x1]
      %v326 = vld [vmem:[%s199 + $0x228] sm:$0xf]
      %v327 = vld [vmem:[%s199 + $0x22c] sm:$0xf]
      %v328 = vld [vmem:[%s199 + $0x230] sm:$0x1]
      %v329 = vld [vmem:[%s199 + $0x234] sm:$0xf]
      %v330 = vld [vmem:[%s199 + $0x238] sm:$0xf]
      %v331 = vld [vmem:[%s199 + $0x23c] sm:$0x1]
      %v332 = vld [vmem:[%s199 + $0x240] sm:$0xf]
      %v333 = vld [vmem:[%s199 + $0x244] sm:$0xf]
      %v334 = vld [vmem:[%s199 + $0x248] sm:$0x1]
      %vm335 = vsmask.f32 3328
      %vm336 = vsmask.f32 7440
      %vm337 = vmor %vm335, %vm336
      %v339 = vshrl.u32 %v200, 16
      %v341 = vrot.slane %v339, 4
      %v342 = vshll.u32 %v200, 16
      %v344 = vrot.slane %v342, 5
      %v345 = vor.u32 %v341, %v344
      %v346 = vrot.slane %v345, 4
      %v348 = vshll.u32 %v201, 16
      %v350 = vrot.slane %v348, 5
      %v351 = vsel %vm337, %v346, %v350
      %v352 = vshrl.u32 %v201, 16
      %v354 = vrot.slane %v352, 4
      %v355 = vor.u32 %v354, %v350
      %v356 = vrot.slane %v355, 4
      %v358 = vshll.u32 %v202, 16
      %v360 = vrot.slane %v358, 5
      %v361 = vsel %vm337, %v356, %v360
      %v363 = vshrl.u32 %v203, 16
      %v365 = vrot.slane %v363, 4
      %v366 = vshll.u32 %v203, 16
      %v368 = vrot.slane %v366, 5
      %v369 = vor.u32 %v365, %v368
      %v370 = vrot.slane %v369, 4
      %v372 = vshll.u32 %v204, 16
      %v374 = vrot.slane %v372, 5
      %v375 = vsel %vm337, %v370, %v374
      %v376 = vshrl.u32 %v204, 16
      %v378 = vrot.slane %v376, 4
      %v379 = vor.u32 %v378, %v374
      %v380 = vrot.slane %v379, 4
      %v382 = vshll.u32 %v205, 16
      %v384 = vrot.slane %v382, 5
      %v385 = vsel %vm337, %v380, %v384
      %v387 = vshrl.u32 %v206, 16
      %v389 = vrot.slane %v387, 4
      %v390 = vshll.u32 %v206, 16
      %v392 = vrot.slane %v390, 5
      %v393 = vor.u32 %v389, %v392
      %v394 = vrot.slane %v393, 4
      %v396 = vshll.u32 %v207, 16
      %v398 = vrot.slane %v396, 5
      %v399 = vsel %vm337, %v394, %v398
      %v400 = vshrl.u32 %v207, 16
      %v402 = vrot.slane %v400, 4
      %v403 = vor.u32 %v402, %v398
      %v404 = vrot.slane %v403, 4
      %v406 = vshll.u32 %v208, 16
      %v408 = vrot.slane %v406, 5
      %v409 = vsel %vm337, %v404, %v408
      %v411 = vshrl.u32 %v209, 16
      %v413 = vrot.slane %v411, 4
      %v414 = vshll.u32 %v209, 16
      %v416 = vrot.slane %v414, 5
      %v417 = vor.u32 %v413, %v416
      %v418 = vrot.slane %v417, 4
      %v420 = vshll.u32 %v210, 16
      %v422 = vrot.slane %v420, 5
      %v423 = vsel %vm337, %v418, %v422
      %v424 = vshrl.u32 %v210, 16
      %v426 = vrot.slane %v424, 4
      %v427 = vor.u32 %v426, %v422
      %v428 = vrot.slane %v427, 4
      %v430 = vshll.u32 %v211, 16
      %v432 = vrot.slane %v430, 5
      %v433 = vsel %vm337, %v428, %v432
      %v435 = vshrl.u32 %v212, 16
      %v437 = vrot.slane %v435, 4
      %v438 = vshll.u32 %v212, 16
      %v440 = vrot.slane %v438, 5
      %v441 = vor.u32 %v437, %v440
      %v442 = vrot.slane %v441, 4
      %v444 = vshll.u32 %v213, 16
      %v446 = vrot.slane %v444, 5
      %v447 = vsel %vm337, %v442, %v446
      %v448 = vshrl.u32 %v213, 16
      %v450 = vrot.slane %v448, 4
      %v451 = vor.u32 %v450, %v446
      %v452 = vrot.slane %v451, 4
      %v454 = vshll.u32 %v214, 16
      %v456 = vrot.slane %v454, 5
      %v457 = vsel %vm337, %v452, %v456
      %v459 = vshrl.u32 %v215, 16
      %v461 = vrot.slane %v459, 4
      %v462 = vshll.u32 %v215, 16
      %v464 = vrot.slane %v462, 5
      %v465 = vor.u32 %v461, %v464
      %v466 = vrot.slane %v465, 4
      %v468 = vshll.u32 %v216, 16
      %v470 = vrot.slane %v468, 5
      %v471 = vsel %vm337, %v466, %v470
      %v472 = vshrl.u32 %v216, 16
      %v474 = vrot.slane %v472, 4
      %v475 = vor.u32 %v474, %v470
      %v476 = vrot.slane %v475, 4
      %v478 = vshll.u32 %v217, 16
      %v480 = vrot.slane %v478, 5
      %v481 = vsel %vm337, %v476, %v480
      %v483 = vshrl.u32 %v218, 16
      %v485 = vrot.slane %v483, 4
      %v486 = vshll.u32 %v218, 16
      %v488 = vrot.slane %v486, 5
      %v489 = vor.u32 %v485, %v488
      %v490 = vrot.slane %v489, 4
      %v492 = vshll.u32 %v219, 16
      %v494 = vrot.slane %v492, 5
      %v495 = vsel %vm337, %v490, %v494
      %v496 = vshrl.u32 %v219, 16
      %v498 = vrot.slane %v496, 4
      %v499 = vor.u32 %v498, %v494
      %v500 = vrot.slane %v499, 4
      %v502 = vshll.u32 %v220, 16
      %v504 = vrot.slane %v502, 5
      %v505 = vsel %vm337, %v500, %v504
      %v507 = vshrl.u32 %v221, 16
      %v509 = vrot.slane %v507, 4
      %v510 = vshll.u32 %v221, 16
      %v512 = vrot.slane %v510, 5
      %v513 = vor.u32 %v509, %v512
      %v514 = vrot.slane %v513, 4
      %v516 = vshll.u32 %v222, 16
      %v518 = vrot.slane %v516, 5
      %v519 = vsel %vm337, %v514, %v518
      %v520 = vshrl.u32 %v222, 16
      %v522 = vrot.slane %v520, 4
      %v523 = vor.u32 %v522, %v518
      %v524 = vrot.slane %v523, 4
      %v526 = vshll.u32 %v223, 16
      %v528 = vrot.slane %v526, 5
      %v529 = vsel %vm337, %v524, %v528
      %v531 = vshrl.u32 %v224, 16
      %v533 = vrot.slane %v531, 4
      %v534 = vshll.u32 %v224, 16
      %v536 = vrot.slane %v534, 5
      %v537 = vor.u32 %v533, %v536
      %v538 = vrot.slane %v537, 4
      %v540 = vshll.u32 %v225, 16
      %v542 = vrot.slane %v540, 5
      %v543 = vsel %vm337, %v538, %v542
      %v544 = vshrl.u32 %v225, 16
      %v546 = vrot.slane %v544, 4
      %v547 = vor.u32 %v546, %v542
      %v548 = vrot.slane %v547, 4
      %v550 = vshll.u32 %v226, 16
      %v552 = vrot.slane %v550, 5
      %v553 = vsel %vm337, %v548, %v552
      %v555 = vshrl.u32 %v227, 16
      %v557 = vrot.slane %v555, 4
      %v558 = vshll.u32 %v227, 16
      %v560 = vrot.slane %v558, 5
      %v561 = vor.u32 %v557, %v560
      %v562 = vrot.slane %v561, 4
      %v564 = vshll.u32 %v228, 16
      %v566 = vrot.slane %v564, 5
      %v567 = vsel %vm337, %v562, %v566
      %v568 = vshrl.u32 %v228, 16
      %v570 = vrot.slane %v568, 4
      %v571 = vor.u32 %v570, %v566
      %v572 = vrot.slane %v571, 4
      %v574 = vshll.u32 %v229, 16
      %v576 = vrot.slane %v574, 5
      %v577 = vsel %vm337, %v572, %v576
      %v579 = vshrl.u32 %v230, 16
      %v581 = vrot.slane %v579, 4
      %v582 = vshll.u32 %v230, 16
      %v584 = vrot.slane %v582, 5
      %v585 = vor.u32 %v581, %v584
      %v586 = vrot.slane %v585, 4
      %v588 = vshll.u32 %v231, 16
      %v590 = vrot.slane %v588, 5
      %v591 = vsel %vm337, %v586, %v590
      %v592 = vshrl.u32 %v231, 16
      %v594 = vrot.slane %v592, 4
      %v595 = vor.u32 %v594, %v590
      %v596 = vrot.slane %v595, 4
      %v598 = vshll.u32 %v232, 16
      %v600 = vrot.slane %v598, 5
      %v601 = vsel %vm337, %v596, %v600
      %v603 = vshrl.u32 %v233, 16
      %v605 = vrot.slane %v603, 4
      %v606 = vshll.u32 %v233, 16
      %v608 = vrot.slane %v606, 5
      %v609 = vor.u32 %v605, %v608
      %v610 = vrot.slane %v609, 4
      %v612 = vshll.u32 %v234, 16
      %v614 = vrot.slane %v612, 5
      %v615 = vsel %vm337, %v610, %v614
      %v616 = vshrl.u32 %v234, 16
      %v618 = vrot.slane %v616, 4
      %v619 = vor.u32 %v618, %v614
      %v620 = vrot.slane %v619, 4
      %v622 = vshll.u32 %v235, 16
      %v624 = vrot.slane %v622, 5
      %v625 = vsel %vm337, %v620, %v624
      %v627 = vshrl.u32 %v236, 16
      %v629 = vrot.slane %v627, 4
      %v630 = vshll.u32 %v236, 16
      %v632 = vrot.slane %v630, 5
      %v633 = vor.u32 %v629, %v632
      %v634 = vrot.slane %v633, 4
      %v636 = vshll.u32 %v237, 16
      %v638 = vrot.slane %v636, 5
      %v639 = vsel %vm337, %v634, %v638
      %v640 = vshrl.u32 %v237, 16
      %v642 = vrot.slane %v640, 4
      %v643 = vor.u32 %v642, %v638
      %v644 = vrot.slane %v643, 4
      %v646 = vshll.u32 %v238, 16
      %v648 = vrot.slane %v646, 5
      %v649 = vsel %vm337, %v644, %v648
      %v651 = vshrl.u32 %v239, 16
      %v653 = vrot.slane %v651, 4
      %v654 = vshll.u32 %v239, 16
      %v656 = vrot.slane %v654, 5
      %v657 = vor.u32 %v653, %v656
      %v658 = vrot.slane %v657, 4
      %v660 = vshll.u32 %v240, 16
      %v662 = vrot.slane %v660, 5
      %v663 = vsel %vm337, %v658, %v662
      %v664 = vshrl.u32 %v240, 16
      %v666 = vrot.slane %v664, 4
      %v667 = vor.u32 %v666, %v662
      %v668 = vrot.slane %v667, 4
      %v670 = vshll.u32 %v241, 16
      %v672 = vrot.slane %v670, 5
      %v673 = vsel %vm337, %v668, %v672
      %v675 = vshrl.u32 %v242, 16
      %v677 = vrot.slane %v675, 4
      %v678 = vshll.u32 %v242, 16
      %v680 = vrot.slane %v678, 5
      %v681 = vor.u32 %v677, %v680
      %v682 = vrot.slane %v681, 4
      %v684 = vshll.u32 %v243, 16
      %v686 = vrot.slane %v684, 5
      %v687 = vsel %vm337, %v682, %v686
      %v688 = vshrl.u32 %v243, 16
      %v690 = vrot.slane %v688, 4
      %v691 = vor.u32 %v690, %v686
      %v692 = vrot.slane %v691, 4
      %v694 = vshll.u32 %v244, 16
      %v696 = vrot.slane %v694, 5
      %v697 = vsel %vm337, %v692, %v696
      %v699 = vshrl.u32 %v245, 16
      %v701 = vrot.slane %v699, 4
      %v702 = vshll.u32 %v245, 16
      %v704 = vrot.slane %v702, 5
      %v705 = vor.u32 %v701, %v704
      %v706 = vrot.slane %v705, 4
      %v708 = vshll.u32 %v246, 16
      %v710 = vrot.slane %v708, 5
      %v711 = vsel %vm337, %v706, %v710
      %v712 = vshrl.u32 %v246, 16
      %v714 = vrot.slane %v712, 4
      %v715 = vor.u32 %v714, %v710
      %v716 = vrot.slane %v715, 4
      %v718 = vshll.u32 %v247, 16
      %v720 = vrot.slane %v718, 5
      %v721 = vsel %vm337, %v716, %v720
      %v723 = vshrl.u32 %v248, 16
      %v725 = vrot.slane %v723, 4
      %v726 = vshll.u32 %v248, 16
      %v728 = vrot.slane %v726, 5
      %v729 = vor.u32 %v725, %v728
      %v730 = vrot.slane %v729, 4
      %v732 = vshll.u32 %v249, 16
      %v734 = vrot.slane %v732, 5
      %v735 = vsel %vm337, %v730, %v734
      %v736 = vshrl.u32 %v249, 16
      %v738 = vrot.slane %v736, 4
      %v739 = vor.u32 %v738, %v734
      %v740 = vrot.slane %v739, 4
      %v742 = vshll.u32 %v250, 16
      %v744 = vrot.slane %v742, 5
      %v745 = vsel %vm337, %v740, %v744
      %v747 = vshrl.u32 %v251, 16
      %v749 = vrot.slane %v747, 4
      %v750 = vshll.u32 %v251, 16
      %v752 = vrot.slane %v750, 5
      %v753 = vor.u32 %v749, %v752
      %v754 = vrot.slane %v753, 4
      %v756 = vshll.u32 %v252, 16
      %v758 = vrot.slane %v756, 5
      %v759 = vsel %vm337, %v754, %v758
      %v760 = vshrl.u32 %v252, 16
      %v762 = vrot.slane %v760, 4
      %v763 = vor.u32 %v762, %v758
      %v764 = vrot.slane %v763, 4
      %v766 = vshll.u32 %v253, 16
      %v768 = vrot.slane %v766, 5
      %v769 = vsel %vm337, %v764, %v768
      %v771 = vshrl.u32 %v254, 16
      %v773 = vrot.slane %v771, 4
      %v774 = vshll.u32 %v254, 16
      %v776 = vrot.slane %v774, 5
      %v777 = vor.u32 %v773, %v776
      %v778 = vrot.slane %v777, 4
      %v780 = vshll.u32 %v255, 16
      %v782 = vrot.slane %v780, 5
      %v783 = vsel %vm337, %v778, %v782
      %v784 = vshrl.u32 %v255, 16
      %v786 = vrot.slane %v784, 4
      %v787 = vor.u32 %v786, %v782
      %v788 = vrot.slane %v787, 4
      %v790 = vshll.u32 %v256, 16
      %v792 = vrot.slane %v790, 5
      %v793 = vsel %vm337, %v788, %v792
      %v795 = vshrl.u32 %v257, 16
      %v797 = vrot.slane %v795, 4
      %v798 = vshll.u32 %v257, 16
      %v800 = vrot.slane %v798, 5
      %v801 = vor.u32 %v797, %v800
      %v802 = vrot.slane %v801, 4
      %v804 = vshll.u32 %v258, 16
      %v806 = vrot.slane %v804, 5
      %v807 = vsel %vm337, %v802, %v806
      %v808 = vshrl.u32 %v258, 16
      %v810 = vrot.slane %v808, 4
      %v811 = vor.u32 %v810, %v806
      %v812 = vrot.slane %v811, 4
      %v814 = vshll.u32 %v259, 16
      %v816 = vrot.slane %v814, 5
      %v817 = vsel %vm337, %v812, %v816
      %v819 = vshrl.u32 %v260, 16
      %v821 = vrot.slane %v819, 4
      %v822 = vshll.u32 %v260, 16
      %v824 = vrot.slane %v822, 5
      %v825 = vor.u32 %v821, %v824
      %v826 = vrot.slane %v825, 4
      %v828 = vshll.u32 %v261, 16
      %v830 = vrot.slane %v828, 5
      %v831 = vsel %vm337, %v826, %v830
      %v832 = vshrl.u32 %v261, 16
      %v834 = vrot.slane %v832, 4
      %v835 = vor.u32 %v834, %v830
      %v836 = vrot.slane %v835, 4
      %v838 = vshll.u32 %v262, 16
      %v840 = vrot.slane %v838, 5
      %v841 = vsel %vm337, %v836, %v840
      %v843 = vshrl.u32 %v263, 16
      %v845 = vrot.slane %v843, 4
      %v846 = vshll.u32 %v263, 16
      %v848 = vrot.slane %v846, 5
      %v849 = vor.u32 %v845, %v848
      %v850 = vrot.slane %v849, 4
      %v852 = vshll.u32 %v264, 16
      %v854 = vrot.slane %v852, 5
      %v855 = vsel %vm337, %v850, %v854
      %v856 = vshrl.u32 %v264, 16
      %v858 = vrot.slane %v856, 4
      %v859 = vor.u32 %v858, %v854
      %v860 = vrot.slane %v859, 4
      %v862 = vshll.u32 %v265, 16
      %v864 = vrot.slane %v862, 5
      %v865 = vsel %vm337, %v860, %v864
      %v867 = vshrl.u32 %v266, 16
      %v869 = vrot.slane %v867, 4
      %v870 = vshll.u32 %v266, 16
      %v872 = vrot.slane %v870, 5
      %v873 = vor.u32 %v869, %v872
      %v874 = vrot.slane %v873, 4
      %v876 = vshll.u32 %v267, 16
      %v878 = vrot.slane %v876, 5
      %v879 = vsel %vm337, %v874, %v878
      %v880 = vshrl.u32 %v267, 16
      %v882 = vrot.slane %v880, 4
      %v883 = vor.u32 %v882, %v878
      %v884 = vrot.slane %v883, 4
      %v886 = vshll.u32 %v268, 16
      %v888 = vrot.slane %v886, 5
      %v889 = vsel %vm337, %v884, %v888
      %v891 = vshrl.u32 %v269, 16
      %v893 = vrot.slane %v891, 4
      %v894 = vshll.u32 %v269, 16
      %v896 = vrot.slane %v894, 5
      %v897 = vor.u32 %v893, %v896
      %v898 = vrot.slane %v897, 4
      %v900 = vshll.u32 %v270, 16
      %v902 = vrot.slane %v900, 5
      %v903 = vsel %vm337, %v898, %v902
      %v904 = vshrl.u32 %v270, 16
      %v906 = vrot.slane %v904, 4
      %v907 = vor.u32 %v906, %v902
      %v908 = vrot.slane %v907, 4
      %v910 = vshll.u32 %v271, 16
      %v912 = vrot.slane %v910, 5
      %v913 = vsel %vm337, %v908, %v912
      %v915 = vshrl.u32 %v272, 16
      %v917 = vrot.slane %v915, 4
      %v918 = vshll.u32 %v272, 16
      %v920 = vrot.slane %v918, 5
      %v921 = vor.u32 %v917, %v920
      %v922 = vrot.slane %v921, 4
      %v924 = vshll.u32 %v273, 16
      %v926 = vrot.slane %v924, 5
      %v927 = vsel %vm337, %v922, %v926
      %v928 = vshrl.u32 %v273, 16
      %v930 = vrot.slane %v928, 4
      %v931 = vor.u32 %v930, %v926
      %v932 = vrot.slane %v931, 4
      %v934 = vshll.u32 %v274, 16
      %v936 = vrot.slane %v934, 5
      %v937 = vsel %vm337, %v932, %v936
      %v939 = vshrl.u32 %v275, 16
      %v941 = vrot.slane %v939, 4
      %v942 = vshll.u32 %v275, 16
      %v944 = vrot.slane %v942, 5
      %v945 = vor.u32 %v941, %v944
      %v946 = vrot.slane %v945, 4
      %v948 = vshll.u32 %v276, 16
      %v950 = vrot.slane %v948, 5
      %v951 = vsel %vm337, %v946, %v950
      %v952 = vshrl.u32 %v276, 16
      %v954 = vrot.slane %v952, 4
      %v955 = vor.u32 %v954, %v950
      %v956 = vrot.slane %v955, 4
      %v958 = vshll.u32 %v277, 16
      %v960 = vrot.slane %v958, 5
      %v961 = vsel %vm337, %v956, %v960
      %v963 = vshrl.u32 %v278, 16
      %v965 = vrot.slane %v963, 4
      %v966 = vshll.u32 %v278, 16
      %v968 = vrot.slane %v966, 5
      %v969 = vor.u32 %v965, %v968
      %v970 = vrot.slane %v969, 4
      %v972 = vshll.u32 %v279, 16
      %v974 = vrot.slane %v972, 5
      %v975 = vsel %vm337, %v970, %v974
      %v976 = vshrl.u32 %v279, 16
      %v978 = vrot.slane %v976, 4
      %v979 = vor.u32 %v978, %v974
      %v980 = vrot.slane %v979, 4
      %v982 = vshll.u32 %v280, 16
      %v984 = vrot.slane %v982, 5
      %v985 = vsel %vm337, %v980, %v984
      %v987 = vshrl.u32 %v281, 16
      %v989 = vrot.slane %v987, 4
      %v990 = vshll.u32 %v281, 16
      %v992 = vrot.slane %v990, 5
      %v993 = vor.u32 %v989, %v992
      %v994 = vrot.slane %v993, 4
      %v996 = vshll.u32 %v282, 16
      %v998 = vrot.slane %v996, 5
      %v999 = vsel %vm337, %v994, %v998
      %v1000 = vshrl.u32 %v282, 16
      %v1002 = vrot.slane %v1000, 4
      %v1003 = vor.u32 %v1002, %v998
      %v1004 = vrot.slane %v1003, 4
      %v1006 = vshll.u32 %v283, 16
      %v1008 = vrot.slane %v1006, 5
      %v1009 = vsel %vm337, %v1004, %v1008
      %v1011 = vshrl.u32 %v284, 16
      %v1013 = vrot.slane %v1011, 4
      %v1014 = vshll.u32 %v284, 16
      %v1016 = vrot.slane %v1014, 5
      %v1017 = vor.u32 %v1013, %v1016
      %v1018 = vrot.slane %v1017, 4
      %v1020 = vshll.u32 %v285, 16
      %v1022 = vrot.slane %v1020, 5
      %v1023 = vsel %vm337, %v1018, %v1022
      %v1024 = vshrl.u32 %v285, 16
      %v1026 = vrot.slane %v1024, 4
      %v1027 = vor.u32 %v1026, %v1022
      %v1028 = vrot.slane %v1027, 4
      %v1030 = vshll.u32 %v286, 16
      %v1032 = vrot.slane %v1030, 5
      %v1033 = vsel %vm337, %v1028, %v1032
      %v1035 = vshrl.u32 %v287, 16
      %v1037 = vrot.slane %v1035, 4
      %v1038 = vshll.u32 %v287, 16
      %v1040 = vrot.slane %v1038, 5
      %v1041 = vor.u32 %v1037, %v1040
      %v1042 = vrot.slane %v1041, 4
      %v1044 = vshll.u32 %v288, 16
      %v1046 = vrot.slane %v1044, 5
      %v1047 = vsel %vm337, %v1042, %v1046
      %v1048 = vshrl.u32 %v288, 16
      %v1050 = vrot.slane %v1048, 4
      %v1051 = vor.u32 %v1050, %v1046
      %v1052 = vrot.slane %v1051, 4
      %v1054 = vshll.u32 %v289, 16
      %v1056 = vrot.slane %v1054, 5
      %v1057 = vsel %vm337, %v1052, %v1056
      %v1059 = vshrl.u32 %v290, 16
      %v1061 = vrot.slane %v1059, 4
      %v1062 = vshll.u32 %v290, 16
      %v1064 = vrot.slane %v1062, 5
      %v1065 = vor.u32 %v1061, %v1064
      %v1066 = vrot.slane %v1065, 4
      %v1068 = vshll.u32 %v291, 16
      %v1070 = vrot.slane %v1068, 5
      %v1071 = vsel %vm337, %v1066, %v1070
      %v1072 = vshrl.u32 %v291, 16
      %v1074 = vrot.slane %v1072, 4
      %v1075 = vor.u32 %v1074, %v1070
      %v1076 = vrot.slane %v1075, 4
      %v1078 = vshll.u32 %v292, 16
      %v1080 = vrot.slane %v1078, 5
      %v1081 = vsel %vm337, %v1076, %v1080
      %v1083 = vshrl.u32 %v293, 16
      %v1085 = vrot.slane %v1083, 4
      %v1086 = vshll.u32 %v293, 16
      %v1088 = vrot.slane %v1086, 5
      %v1089 = vor.u32 %v1085, %v1088
      %v1090 = vrot.slane %v1089, 4
      %v1092 = vshll.u32 %v294, 16
      %v1094 = vrot.slane %v1092, 5
      %v1095 = vsel %vm337, %v1090, %v1094
      %v1096 = vshrl.u32 %v294, 16
      %v1098 = vrot.slane %v1096, 4
      %v1099 = vor.u32 %v1098, %v1094
      %v1100 = vrot.slane %v1099, 4
      %v1102 = vshll.u32 %v295, 16
      %v1104 = vrot.slane %v1102, 5
      %v1105 = vsel %vm337, %v1100, %v1104
      %v1107 = vshrl.u32 %v296, 16
      %v1109 = vrot.slane %v1107, 4
      %v1110 = vshll.u32 %v296, 16
      %v1112 = vrot.slane %v1110, 5
      %v1113 = vor.u32 %v1109, %v1112
      %v1114 = vrot.slane %v1113, 4
      %v1116 = vshll.u32 %v297, 16
      %v1118 = vrot.slane %v1116, 5
      %v1119 = vsel %vm337, %v1114, %v1118
      %v1120 = vshrl.u32 %v297, 16
      %v1122 = vrot.slane %v1120, 4
      %v1123 = vor.u32 %v1122, %v1118
      %v1124 = vrot.slane %v1123, 4
      %v1126 = vshll.u32 %v298, 16
      %v1128 = vrot.slane %v1126, 5
      %v1129 = vsel %vm337, %v1124, %v1128
      %v1131 = vshrl.u32 %v299, 16
      %v1133 = vrot.slane %v1131, 4
      %v1134 = vshll.u32 %v299, 16
      %v1136 = vrot.slane %v1134, 5
      %v1137 = vor.u32 %v1133, %v1136
      %v1138 = vrot.slane %v1137, 4
      %v1140 = vshll.u32 %v300, 16
      %v1142 = vrot.slane %v1140, 5
      %v1143 = vsel %vm337, %v1138, %v1142
      %v1144 = vshrl.u32 %v300, 16
      %v1146 = vrot.slane %v1144, 4
      %v1147 = vor.u32 %v1146, %v1142
      %v1148 = vrot.slane %v1147, 4
      %v1150 = vshll.u32 %v301, 16
      %v1152 = vrot.slane %v1150, 5
      %v1153 = vsel %vm337, %v1148, %v1152
      %v1155 = vshrl.u32 %v302, 16
      %v1157 = vrot.slane %v1155, 4
      %v1158 = vshll.u32 %v302, 16
      %v1160 = vrot.slane %v1158, 5
      %v1161 = vor.u32 %v1157, %v1160
      %v1162 = vrot.slane %v1161, 4
      %v1164 = vshll.u32 %v303, 16
      %v1166 = vrot.slane %v1164, 5
      %v1167 = vsel %vm337, %v1162, %v1166
      %v1168 = vshrl.u32 %v303, 16
      %v1170 = vrot.slane %v1168, 4
      %v1171 = vor.u32 %v1170, %v1166
      %v1172 = vrot.slane %v1171, 4
      %v1174 = vshll.u32 %v304, 16
      %v1176 = vrot.slane %v1174, 5
      %v1177 = vsel %vm337, %v1172, %v1176
      %v1179 = vshrl.u32 %v305, 16
      %v1181 = vrot.slane %v1179, 4
      %v1182 = vshll.u32 %v305, 16
      %v1184 = vrot.slane %v1182, 5
      %v1185 = vor.u32 %v1181, %v1184
      %v1186 = vrot.slane %v1185, 4
      %v1188 = vshll.u32 %v306, 16
      %v1190 = vrot.slane %v1188, 5
      %v1191 = vsel %vm337, %v1186, %v1190
      %v1192 = vshrl.u32 %v306, 16
      %v1194 = vrot.slane %v1192, 4
      %v1195 = vor.u32 %v1194, %v1190
      %v1196 = vrot.slane %v1195, 4
      %v1198 = vshll.u32 %v307, 16
      %v1200 = vrot.slane %v1198, 5
      %v1201 = vsel %vm337, %v1196, %v1200
      %v1203 = vshrl.u32 %v308, 16
      %v1205 = vrot.slane %v1203, 4
      %v1206 = vshll.u32 %v308, 16
      %v1208 = vrot.slane %v1206, 5
      %v1209 = vor.u32 %v1205, %v1208
      %v1210 = vrot.slane %v1209, 4
      %v1212 = vshll.u32 %v309, 16
      %v1214 = vrot.slane %v1212, 5
      %v1215 = vsel %vm337, %v1210, %v1214
      %v1216 = vshrl.u32 %v309, 16
      %v1218 = vrot.slane %v1216, 4
      %v1219 = vor.u32 %v1218, %v1214
      %v1220 = vrot.slane %v1219, 4
      %v1222 = vshll.u32 %v310, 16
      %v1224 = vrot.slane %v1222, 5
      %v1225 = vsel %vm337, %v1220, %v1224
      %v1227 = vshrl.u32 %v311, 16
      %v1229 = vrot.slane %v1227, 4
      %v1230 = vshll.u32 %v311, 16
      %v1232 = vrot.slane %v1230, 5
      %v1233 = vor.u32 %v1229, %v1232
      %v1234 = vrot.slane %v1233, 4
      %v1236 = vshll.u32 %v312, 16
      %v1238 = vrot.slane %v1236, 5
      %v1239 = vsel %vm337, %v1234, %v1238
      %v1240 = vshrl.u32 %v312, 16
      %v1242 = vrot.slane %v1240, 4
      %v1243 = vor.u32 %v1242, %v1238
      %v1244 = vrot.slane %v1243, 4
      %v1246 = vshll.u32 %v313, 16
      %v1248 = vrot.slane %v1246, 5
      %v1249 = vsel %vm337, %v1244, %v1248
      %v1251 = vshrl.u32 %v314, 16
      %v1253 = vrot.slane %v1251, 4
      %v1254 = vshll.u32 %v314, 16
      %v1256 = vrot.slane %v1254, 5
      %v1257 = vor.u32 %v1253, %v1256
      %v1258 = vrot.slane %v1257, 4
      %v1260 = vshll.u32 %v315, 16
      %v1262 = vrot.slane %v1260, 5
      %v1263 = vsel %vm337, %v1258, %v1262
      %v1264 = vshrl.u32 %v315, 16
      %v1266 = vrot.slane %v1264, 4
      %v1267 = vor.u32 %v1266, %v1262
      %v1268 = vrot.slane %v1267, 4
      %v1270 = vshll.u32 %v316, 16
      %v1272 = vrot.slane %v1270, 5
      %v1273 = vsel %vm337, %v1268, %v1272
      %v1275 = vshrl.u32 %v317, 16
      %v1277 = vrot.slane %v1275, 4
      %v1278 = vshll.u32 %v317, 16
      %v1280 = vrot.slane %v1278, 5
      %v1281 = vor.u32 %v1277, %v1280
      %v1282 = vrot.slane %v1281, 4
      %v1284 = vshll.u32 %v318, 16
      %v1286 = vrot.slane %v1284, 5
      %v1287 = vsel %vm337, %v1282, %v1286
      %v1288 = vshrl.u32 %v318, 16
      %v1290 = vrot.slane %v1288, 4
      %v1291 = vor.u32 %v1290, %v1286
      %v1292 = vrot.slane %v1291, 4
      %v1294 = vshll.u32 %v319, 16
      %v1296 = vrot.slane %v1294, 5
      %v1297 = vsel %vm337, %v1292, %v1296
      %v1299 = vshrl.u32 %v320, 16
      %v1301 = vrot.slane %v1299, 4
      %v1302 = vshll.u32 %v320, 16
      %v1304 = vrot.slane %v1302, 5
      %v1305 = vor.u32 %v1301, %v1304
      %v1306 = vrot.slane %v1305, 4
      %v1308 = vshll.u32 %v321, 16
      %v1310 = vrot.slane %v1308, 5
      %v1311 = vsel %vm337, %v1306, %v1310
      %v1312 = vshrl.u32 %v321, 16
      %v1314 = vrot.slane %v1312, 4
      %v1315 = vor.u32 %v1314, %v1310
      %v1316 = vrot.slane %v1315, 4
      %v1318 = vshll.u32 %v322, 16
      %v1320 = vrot.slane %v1318, 5
      %v1321 = vsel %vm337, %v1316, %v1320
      %v1323 = vshrl.u32 %v323, 16
      %v1325 = vrot.slane %v1323, 4
      %v1326 = vshll.u32 %v323, 16
      %v1328 = vrot.slane %v1326, 5
      %v1329 = vor.u32 %v1325, %v1328
      %v1330 = vrot.slane %v1329, 4
      %v1332 = vshll.u32 %v324, 16
      %v1334 = vrot.slane %v1332, 5
      %v1335 = vsel %vm337, %v1330, %v1334
      %v1336 = vshrl.u32 %v324, 16
      %v1338 = vrot.slane %v1336, 4
      %v1339 = vor.u32 %v1338, %v1334
      %v1340 = vrot.slane %v1339, 4
      %v1342 = vshll.u32 %v325, 16
      %v1344 = vrot.slane %v1342, 5
      %v1345 = vsel %vm337, %v1340, %v1344
      %v1347 = vshrl.u32 %v326, 16
      %v1349 = vrot.slane %v1347, 4
      %v1350 = vshll.u32 %v326, 16
      %v1352 = vrot.slane %v1350, 5
      %v1353 = vor.u32 %v1349, %v1352
      %v1354 = vrot.slane %v1353, 4
      %v1356 = vshll.u32 %v327, 16
      %v1358 = vrot.slane %v1356, 5
      %v1359 = vsel %vm337, %v1354, %v1358
      %v1360 = vshrl.u32 %v327, 16
      %v1362 = vrot.slane %v1360, 4
      %v1363 = vor.u32 %v1362, %v1358
      %v1364 = vrot.slane %v1363, 4
      %v1366 = vshll.u32 %v328, 16
      %v1368 = vrot.slane %v1366, 5
      %v1369 = vsel %vm337, %v1364, %v1368
      %v1371 = vshrl.u32 %v329, 16
      %v1373 = vrot.slane %v1371, 4
      %v1374 = vshll.u32 %v329, 16
      %v1376 = vrot.slane %v1374, 5
      %v1377 = vor.u32 %v1373, %v1376
      %v1378 = vrot.slane %v1377, 4
      %v1380 = vshll.u32 %v330, 16
      %v1382 = vrot.slane %v1380, 5
      %v1383 = vsel %vm337, %v1378, %v1382
      %v1384 = vshrl.u32 %v330, 16
      %v1386 = vrot.slane %v1384, 4
      %v1387 = vor.u32 %v1386, %v1382
      %v1388 = vrot.slane %v1387, 4
      %v1390 = vshll.u32 %v331, 16
      %v1392 = vrot.slane %v1390, 5
      %v1393 = vsel %vm337, %v1388, %v1392
      %v1395 = vshrl.u32 %v332, 16
      %v1397 = vrot.slane %v1395, 4
      %v1398 = vshll.u32 %v332, 16
      %v1400 = vrot.slane %v1398, 5
      %v1401 = vor.u32 %v1397, %v1400
      %v1402 = vrot.slane %v1401, 4
      %v1404 = vshll.u32 %v333, 16
      %v1406 = vrot.slane %v1404, 5
      %v1407 = vsel %vm337, %v1402, %v1406
      %v1408 = vshrl.u32 %v333, 16
      %v1410 = vrot.slane %v1408, 4
      %v1411 = vor.u32 %v1410, %v1406
      %v1412 = vrot.slane %v1411, 4
      %v1414 = vshll.u32 %v334, 16
      %v1416 = vrot.slane %v1414, 5
      %v1417 = vsel %vm337, %v1412, %v1416
      %v1418 = vunpack.c.l.b16 %v351
      %v1419 = vunpack.c.l.b16 %v361
      %v1420 = vunpack.c.l.b16 %v375
      %v1421 = vunpack.c.l.b16 %v385
      %v1422 = vunpack.c.l.b16 %v399
      %v1423 = vunpack.c.l.b16 %v409
      %v1424 = vunpack.c.l.b16 %v423
      %v1425 = vunpack.c.l.b16 %v433
      %v1426 = vunpack.c.l.b16 %v447
      %v1427 = vunpack.c.l.b16 %v457
      %v1428 = vunpack.c.l.b16 %v471
      %v1429 = vunpack.c.l.b16 %v481
      %v1430 = vunpack.c.l.b16 %v495
      %v1431 = vunpack.c.l.b16 %v505
      %v1432 = vunpack.c.l.b16 %v519
      %v1433 = vunpack.c.l.b16 %v529
      %v1434 = vunpack.c.l.b16 %v543
      %v1435 = vunpack.c.l.b16 %v553
      %v1436 = vunpack.c.l.b16 %v567
      %v1437 = vunpack.c.l.b16 %v577
      %v1438 = vunpack.c.l.b16 %v591
      %v1439 = vunpack.c.l.b16 %v601
      %v1440 = vunpack.c.l.b16 %v615
      %v1441 = vunpack.c.l.b16 %v625
      %v1442 = vunpack.c.l.b16 %v639
      %v1443 = vunpack.c.l.b16 %v649
      %v1444 = vunpack.c.l.b16 %v663
      %v1445 = vunpack.c.l.b16 %v673
      %v1446 = vunpack.c.l.b16 %v687
      %v1447 = vunpack.c.l.b16 %v697
      %v1448 = vunpack.c.l.b16 %v711
      %v1449 = vunpack.c.l.b16 %v721
      %v1450 = vunpack.c.l.b16 %v735
      %v1451 = vunpack.c.l.b16 %v745
      %v1452 = vunpack.c.l.b16 %v759
      %v1453 = vunpack.c.l.b16 %v769
      %v1454 = vunpack.c.l.b16 %v783
      %v1455 = vunpack.c.l.b16 %v793
      %v1456 = vunpack.c.l.b16 %v807
      %v1457 = vunpack.c.l.b16 %v817
      %v1458 = vunpack.c.l.b16 %v831
      %v1459 = vunpack.c.l.b16 %v841
      %v1460 = vunpack.c.l.b16 %v855
      %v1461 = vunpack.c.l.b16 %v865
      %v1462 = vunpack.c.l.b16 %v879
      %v1463 = vunpack.c.l.b16 %v889
      %v1464 = vunpack.c.l.b16 %v903
      %v1465 = vunpack.c.l.b16 %v913
      %v1466 = vunpack.c.l.b16 %v927
      %v1467 = vunpack.c.l.b16 %v937
      %v1468 = vunpack.c.l.b16 %v951
      %v1469 = vunpack.c.l.b16 %v961
      %v1470 = vunpack.c.l.b16 %v975
      %v1471 = vunpack.c.l.b16 %v985
      %v1472 = vunpack.c.l.b16 %v999
      %v1473 = vunpack.c.l.b16 %v1009
      %v1474 = vunpack.c.l.b16 %v1023
      %v1475 = vunpack.c.l.b16 %v1033
      %v1476 = vunpack.c.l.b16 %v1047
      %v1477 = vunpack.c.l.b16 %v1057
      %v1478 = vunpack.c.l.b16 %v1071
      %v1479 = vunpack.c.l.b16 %v1081
      %v1480 = vunpack.c.l.b16 %v1095
      %v1481 = vunpack.c.l.b16 %v1105
      %v1482 = vunpack.c.l.b16 %v1119
      %v1483 = vunpack.c.l.b16 %v1129
      %v1484 = vunpack.c.l.b16 %v1143
      %v1485 = vunpack.c.l.b16 %v1153
      %v1486 = vunpack.c.l.b16 %v1167
      %v1487 = vunpack.c.l.b16 %v1177
      %v1488 = vunpack.c.l.b16 %v1191
      %v1489 = vunpack.c.l.b16 %v1201
      %v1490 = vunpack.c.l.b16 %v1215
      %v1491 = vunpack.c.l.b16 %v1225
      %v1492 = vunpack.c.l.b16 %v1239
      %v1493 = vunpack.c.l.b16 %v1249
      %v1494 = vunpack.c.l.b16 %v1263
      %v1495 = vunpack.c.l.b16 %v1273
      %v1496 = vunpack.c.l.b16 %v1287
      %v1497 = vunpack.c.l.b16 %v1297
      %v1498 = vunpack.c.l.b16 %v1311
      %v1499 = vunpack.c.l.b16 %v1321
      %v1500 = vunpack.c.l.b16 %v1335
      %v1501 = vunpack.c.l.b16 %v1345
      %v1502 = vunpack.c.l.b16 %v1359
      %v1503 = vunpack.c.l.b16 %v1369
      %v1504 = vunpack.c.l.b16 %v1383
      %v1505 = vunpack.c.l.b16 %v1393
      %v1506 = vunpack.c.l.b16 %v1407
      %v1507 = vunpack.c.l.b16 %v1417
      %v1508 = vpack.c.b16 %v1419, %v1418
      %v1509 = vpack.c.b16 %v1421, %v1420
      %v1510 = vpack.c.b16 %v1423, %v1422
      %v1511 = vpack.c.b16 %v1425, %v1424
      %v1512 = vpack.c.b16 %v1427, %v1426
      %v1513 = vpack.c.b16 %v1429, %v1428
      %v1514 = vpack.c.b16 %v1431, %v1430
      %v1515 = vpack.c.b16 %v1433, %v1432
      %v1516 = vpack.c.b16 %v1435, %v1434
      %v1517 = vpack.c.b16 %v1437, %v1436
      %v1518 = vpack.c.b16 %v1439, %v1438
      %v1519 = vpack.c.b16 %v1441, %v1440
      %v1520 = vpack.c.b16 %v1443, %v1442
      %v1521 = vpack.c.b16 %v1445, %v1444
      %v1522 = vpack.c.b16 %v1447, %v1446
      %v1523 = vpack.c.b16 %v1449, %v1448
      %v1524 = vpack.c.b16 %v1451, %v1450
      %v1525 = vpack.c.b16 %v1453, %v1452
      %v1526 = vpack.c.b16 %v1455, %v1454
      %v1527 = vpack.c.b16 %v1457, %v1456
      %v1528 = vpack.c.b16 %v1459, %v1458
      %v1529 = vpack.c.b16 %v1461, %v1460
      %v1530 = vpack.c.b16 %v1463, %v1462
      %v1531 = vpack.c.b16 %v1465, %v1464
      %v1532 = vpack.c.b16 %v1467, %v1466
      %v1533 = vpack.c.b16 %v1469, %v1468
      %v1534 = vpack.c.b16 %v1471, %v1470
      %v1535 = vpack.c.b16 %v1473, %v1472
      %v1536 = vpack.c.b16 %v1475, %v1474
      %v1537 = vpack.c.b16 %v1477, %v1476
      %v1538 = vpack.c.b16 %v1479, %v1478
      %v1539 = vpack.c.b16 %v1481, %v1480
      %v1540 = vpack.c.b16 %v1483, %v1482
      %v1541 = vpack.c.b16 %v1485, %v1484
      %v1542 = vpack.c.b16 %v1487, %v1486
      %v1543 = vpack.c.b16 %v1489, %v1488
      %v1544 = vpack.c.b16 %v1491, %v1490
      %v1545 = vpack.c.b16 %v1493, %v1492
      %v1546 = vpack.c.b16 %v1495, %v1494
      %v1547 = vpack.c.b16 %v1497, %v1496
      %v1548 = vpack.c.b16 %v1499, %v1498
      %v1549 = vpack.c.b16 %v1501, %v1500
      %v1550 = vpack.c.b16 %v1503, %v1502
      %v1551 = vpack.c.b16 %v1505, %v1504
      %v1552 = vpack.c.b16 %v1507, %v1506
      %vm1598 = vcmask 31744
      %1599 = vst.msk [vmem:[#allocation2] sm:$0xff] %vm1598, %v1508
      %1600 = vst.msk [vmem:[#allocation2 + $0x8] sm:$0xff] %vm1598, %v1509
      %1601 = vst.msk [vmem:[#allocation2 + $0x10] sm:$0xff] %vm1598, %v1510
      %1602 = vst.msk [vmem:[#allocation2 + $0x18] sm:$0xff] %vm1598, %v1511
      %1603 = vst.msk [vmem:[#allocation2 + $0x20] sm:$0xff] %vm1598, %v1512
      %1604 = vst.msk [vmem:[#allocation2 + $0x28] sm:$0xff] %vm1598, %v1513
      %1605 = vst.msk [vmem:[#allocation2 + $0x30] sm:$0xff] %vm1598, %v1514
      %1606 = vst.msk [vmem:[#allocation2 + $0x38] sm:$0xff] %vm1598, %v1515
      %1607 = vst.msk [vmem:[#allocation2 + $0x40] sm:$0xff] %vm1598, %v1516
      %1608 = vst.msk [vmem:[#allocation2 + $0x48] sm:$0xff] %vm1598, %v1517
      %1609 = vst.msk [vmem:[#allocation2 + $0x50] sm:$0xff] %vm1598, %v1518
      %1610 = vst.msk [vmem:[#allocation2 + $0x58] sm:$0xff] %vm1598, %v1519
      %1611 = vst.msk [vmem:[#allocation2 + $0x60] sm:$0xff] %vm1598, %v1520
      %1612 = vst.msk [vmem:[#allocation2 + $0x68] sm:$0xff] %vm1598, %v1521
      %1613 = vst.msk [vmem:[#allocation2 + $0x70] sm:$0xff] %vm1598, %v1522
      %1614 = vst.msk [vmem:[#allocation2 + $0x78] sm:$0xff] %vm1598, %v1523
      %1615 = vst.msk [vmem:[#allocation2 + $0x80] sm:$0xff] %vm1598, %v1524
      %1616 = vst.msk [vmem:[#allocation2 + $0x88] sm:$0xff] %vm1598, %v1525
      %1617 = vst.msk [vmem:[#allocation2 + $0x90] sm:$0xff] %vm1598, %v1526
      %1618 = vst.msk [vmem:[#allocation2 + $0x98] sm:$0xff] %vm1598, %v1527
      %1619 = vst.msk [vmem:[#allocation2 + $0xa0] sm:$0xff] %vm1598, %v1528
      %1620 = vst.msk [vmem:[#allocation2 + $0xa8] sm:$0xff] %vm1598, %v1529
      %1621 = vst.msk [vmem:[#allocation2 + $0xb0] sm:$0xff] %vm1598, %v1530
      %1622 = vst.msk [vmem:[#allocation2 + $0xb8] sm:$0xff] %vm1598, %v1531
      %1623 = vst.msk [vmem:[#allocation2 + $0xc0] sm:$0xff] %vm1598, %v1532
      %1624 = vst.msk [vmem:[#allocation2 + $0xc8] sm:$0xff] %vm1598, %v1533
      %1625 = vst.msk [vmem:[#allocation2 + $0xd0] sm:$0xff] %vm1598, %v1534
      %1626 = vst.msk [vmem:[#allocation2 + $0xd8] sm:$0xff] %vm1598, %v1535
      %1627 = vst.msk [vmem:[#allocation2 + $0xe0] sm:$0xff] %vm1598, %v1536
      %1628 = vst.msk [vmem:[#allocation2 + $0xe8] sm:$0xff] %vm1598, %v1537
      %1629 = vst.msk [vmem:[#allocation2 + $0xf0] sm:$0xff] %vm1598, %v1538
      %1630 = vst.msk [vmem:[#allocation2 + $0xf8] sm:$0xff] %vm1598, %v1539
      %1631 = vst.msk [vmem:[#allocation2 + $0x100] sm:$0xff] %vm1598, %v1540
      %1632 = vst.msk [vmem:[#allocation2 + $0x108] sm:$0xff] %vm1598, %v1541
      %1633 = vst.msk [vmem:[#allocation2 + $0x110] sm:$0xff] %vm1598, %v1542
      %1634 = vst.msk [vmem:[#allocation2 + $0x118] sm:$0xff] %vm1598, %v1543
      %1635 = vst.msk [vmem:[#allocation2 + $0x120] sm:$0xff] %vm1598, %v1544
      %1636 = vst.msk [vmem:[#allocation2 + $0x128] sm:$0xff] %vm1598, %v1545
      %1637 = vst.msk [vmem:[#allocation2 + $0x130] sm:$0xff] %vm1598, %v1546
      %1638 = vst.msk [vmem:[#allocation2 + $0x138] sm:$0xff] %vm1598, %v1547
      %1639 = vst.msk [vmem:[#allocation2 + $0x140] sm:$0xff] %vm1598, %v1548
      %1640 = vst.msk [vmem:[#allocation2 + $0x148] sm:$0xff] %vm1598, %v1549
      %1641 = vst.msk [vmem:[#allocation2 + $0x150] sm:$0xff] %vm1598, %v1550
      %1642 = vst.msk [vmem:[#allocation2 + $0x158] sm:$0xff] %vm1598, %v1551
      %1643 = vst.msk [vmem:[#allocation2 + $0x160] sm:$0xff] %vm1598, %v1552
      %v1644 = vld [vmem:[%s199] sm:$0xf]
      %v1645 = vld [vmem:[%s199 + $0x4] sm:$0xf]
      %v1646 = vld [vmem:[%s199 + $0xc] sm:$0xf]
      %v1647 = vld [vmem:[%s199 + $0x10] sm:$0xf]
      %v1648 = vld [vmem:[%s199 + $0x18] sm:$0xf]
      %v1649 = vld [vmem:[%s199 + $0x1c] sm:$0xf]
      %v1650 = vld [vmem:[%s199 + $0x24] sm:$0xf]
      %v1651 = vld [vmem:[%s199 + $0x28] sm:$0xf]
      %v1652 = vld [vmem:[%s199 + $0x30] sm:$0xf]
      %v1653 = vld [vmem:[%s199 + $0x34] sm:$0xf]
      %v1654 = vld [vmem:[%s199 + $0x3c] sm:$0xf]
      %v1655 = vld [vmem:[%s199 + $0x40] sm:$0xf]
      %v1656 = vld [vmem:[%s199 + $0x48] sm:$0xf]
      %v1657 = vld [vmem:[%s199 + $0x4c] sm:$0xf]
      %v1658 = vld [vmem:[%s199 + $0x54] sm:$0xf]
      %v1659 = vld [vmem:[%s199 + $0x58] sm:$0xf]
      %v1660 = vld [vmem:[%s199 + $0x60] sm:$0xf]
      %v1661 = vld [vmem:[%s199 + $0x64] sm:$0xf]
      %v1662 = vld [vmem:[%s199 + $0x78] sm:$0xf]
      %v1663 = vld [vmem:[%s199 + $0x7c] sm:$0xf]
      %v1664 = vld [vmem:[%s199 + $0x84] sm:$0xf]
      %v1665 = vld [vmem:[%s199 + $0x88] sm:$0xf]
      %v1666 = vld [vmem:[%s199 + $0x90] sm:$0xf]
      %v1667 = vld [vmem:[%s199 + $0x94] sm:$0xf]
      %v1668 = vld [vmem:[%s199 + $0x9c] sm:$0xf]
      %v1669 = vld [vmem:[%s199 + $0xa0] sm:$0xf]
      %v1670 = vld [vmem:[%s199 + $0xa8] sm:$0xf]
      %v1671 = vld [vmem:[%s199 + $0xac] sm:$0xf]
      %v1672 = vld [vmem:[%s199 + $0xb4] sm:$0xf]
      %v1673 = vld [vmem:[%s199 + $0xb8] sm:$0xf]
      %v1674 = vld [vmem:[%s199 + $0xc0] sm:$0xf]
      %v1675 = vld [vmem:[%s199 + $0xc4] sm:$0xf]
      %v1676 = vld [vmem:[%s199 + $0xcc] sm:$0xf]
      %v1677 = vld [vmem:[%s199 + $0xd0] sm:$0xf]
      %v1678 = vld [vmem:[%s199 + $0xd8] sm:$0xf]
      %v1679 = vld [vmem:[%s199 + $0xdc] sm:$0xf]
      %v1680 = vld [vmem:[%s199 + $0xf0] sm:$0xf]
      %v1681 = vld [vmem:[%s199 + $0xf4] sm:$0xf]
      %v1682 = vld [vmem:[%s199 + $0xfc] sm:$0xf]
      %v1683 = vld [vmem:[%s199 + $0x100] sm:$0xf]
      %v1684 = vld [vmem:[%s199 + $0x108] sm:$0xf]
      %v1685 = vld [vmem:[%s199 + $0x10c] sm:$0xf]
      %v1686 = vld [vmem:[%s199 + $0x114] sm:$0xf]
      %v1687 = vld [vmem:[%s199 + $0x118] sm:$0xf]
      %v1688 = vld [vmem:[%s199 + $0x120] sm:$0xf]
      %v1689 = vld [vmem:[%s199 + $0x124] sm:$0xf]
      %v1690 = vld [vmem:[%s199 + $0x12c] sm:$0xf]
      %v1691 = vld [vmem:[%s199 + $0x130] sm:$0xf]
      %v1692 = vld [vmem:[%s199 + $0x138] sm:$0xf]
      %v1693 = vld [vmem:[%s199 + $0x13c] sm:$0xf]
      %v1694 = vld [vmem:[%s199 + $0x144] sm:$0xf]
      %v1695 = vld [vmem:[%s199 + $0x148] sm:$0xf]
      %v1696 = vld [vmem:[%s199 + $0x150] sm:$0xf]
      %v1697 = vld [vmem:[%s199 + $0x154] sm:$0xf]
      %v1698 = vld [vmem:[%s199 + $0x168] sm:$0xf]
      %v1699 = vld [vmem:[%s199 + $0x16c] sm:$0xf]
      %v1700 = vld [vmem:[%s199 + $0x174] sm:$0xf]
      %v1701 = vld [vmem:[%s199 + $0x178] sm:$0xf]
      %v1702 = vld [vmem:[%s199 + $0x180] sm:$0xf]
      %v1703 = vld [vmem:[%s199 + $0x184] sm:$0xf]
      %v1704 = vld [vmem:[%s199 + $0x18c] sm:$0xf]
      %v1705 = vld [vmem:[%s199 + $0x190] sm:$0xf]
      %v1706 = vld [vmem:[%s199 + $0x198] sm:$0xf]
      %v1707 = vld [vmem:[%s199 + $0x19c] sm:$0xf]
      %v1708 = vld [vmem:[%s199 + $0x1a4] sm:$0xf]
      %v1709 = vld [vmem:[%s199 + $0x1a8] sm:$0xf]
      %v1710 = vld [vmem:[%s199 + $0x1b0] sm:$0xf]
      %v1711 = vld [vmem:[%s199 + $0x1b4] sm:$0xf]
      %v1712 = vld [vmem:[%s199 + $0x1bc] sm:$0xf]
      %v1713 = vld [vmem:[%s199 + $0x1c0] sm:$0xf]
      %v1714 = vld [vmem:[%s199 + $0x1c8] sm:$0xf]
      %v1715 = vld [vmem:[%s199 + $0x1cc] sm:$0xf]
      %v1716 = vld [vmem:[%s199 + $0x1e0] sm:$0xf]
      %v1717 = vld [vmem:[%s199 + $0x1e4] sm:$0xf]
      %v1718 = vld [vmem:[%s199 + $0x1ec] sm:$0xf]
      %v1719 = vld [vmem:[%s199 + $0x1f0] sm:$0xf]
      %v1720 = vld [vmem:[%s199 + $0x1f8] sm:$0xf]
      %v1721 = vld [vmem:[%s199 + $0x1fc] sm:$0xf]
      %v1722 = vld [vmem:[%s199 + $0x204] sm:$0xf]
      %v1723 = vld [vmem:[%s199 + $0x208] sm:$0xf]
      %v1724 = vld [vmem:[%s199 + $0x210] sm:$0xf]
      %v1725 = vld [vmem:[%s199 + $0x214] sm:$0xf]
      %v1726 = vld [vmem:[%s199 + $0x21c] sm:$0xf]
      %v1727 = vld [vmem:[%s199 + $0x220] sm:$0xf]
      %v1728 = vld [vmem:[%s199 + $0x228] sm:$0xf]
      %v1729 = vld [vmem:[%s199 + $0x22c] sm:$0xf]
      %v1730 = vld [vmem:[%s199 + $0x234] sm:$0xf]
      %v1731 = vld [vmem:[%s199 + $0x238] sm:$0xf]
      %v1732 = vld [vmem:[%s199 + $0x240] sm:$0xf]
      %v1733 = vld [vmem:[%s199 + $0x244] sm:$0xf]
      %v1824 = vunpack.c.l.b16 %v1644
      %v1825 = vunpack.c.l.b16 %v1645
      %v1826 = vunpack.c.l.b16 %v1646
      %v1827 = vunpack.c.l.b16 %v1647
      %v1828 = vunpack.c.l.b16 %v1648
      %v1829 = vunpack.c.l.b16 %v1649
      %v1830 = vunpack.c.l.b16 %v1650
      %v1831 = vunpack.c.l.b16 %v1651
      %v1832 = vunpack.c.l.b16 %v1652
      %v1833 = vunpack.c.l.b16 %v1653
      %v1834 = vunpack.c.l.b16 %v1654
      %v1835 = vunpack.c.l.b16 %v1655
      %v1836 = vunpack.c.l.b16 %v1656
      %v1837 = vunpack.c.l.b16 %v1657
      %v1838 = vunpack.c.l.b16 %v1658
      %v1839 = vunpack.c.l.b16 %v1659
      %v1840 = vunpack.c.l.b16 %v1660
      %v1841 = vunpack.c.l.b16 %v1661
      %v1842 = vunpack.c.l.b16 %v1662
      %v1843 = vunpack.c.l.b16 %v1663
      %v1844 = vunpack.c.l.b16 %v1664
      %v1845 = vunpack.c.l.b16 %v1665
      %v1846 = vunpack.c.l.b16 %v1666
      %v1847 = vunpack.c.l.b16 %v1667
      %v1848 = vunpack.c.l.b16 %v1668
      %v1849 = vunpack.c.l.b16 %v1669
      %v1850 = vunpack.c.l.b16 %v1670
      %v1851 = vunpack.c.l.b16 %v1671
      %v1852 = vunpack.c.l.b16 %v1672
      %v1853 = vunpack.c.l.b16 %v1673
      %v1854 = vunpack.c.l.b16 %v1674
      %v1855 = vunpack.c.l.b16 %v1675
      %v1856 = vunpack.c.l.b16 %v1676
      %v1857 = vunpack.c.l.b16 %v1677
      %v1858 = vunpack.c.l.b16 %v1678
      %v1859 = vunpack.c.l.b16 %v1679
      %v1860 = vunpack.c.l.b16 %v1680
      %v1861 = vunpack.c.l.b16 %v1681
      %v1862 = vunpack.c.l.b16 %v1682
      %v1863 = vunpack.c.l.b16 %v1683
      %v1864 = vunpack.c.l.b16 %v1684
      %v1865 = vunpack.c.l.b16 %v1685
      %v1866 = vunpack.c.l.b16 %v1686
      %v1867 = vunpack.c.l.b16 %v1687
      %v1868 = vunpack.c.l.b16 %v1688
      %v1869 = vunpack.c.l.b16 %v1689
      %v1870 = vunpack.c.l.b16 %v1690
      %v1871 = vunpack.c.l.b16 %v1691
      %v1872 = vunpack.c.l.b16 %v1692
      %v1873 = vunpack.c.l.b16 %v1693
      %v1874 = vunpack.c.l.b16 %v1694
      %v1875 = vunpack.c.l.b16 %v1695
      %v1876 = vunpack.c.l.b16 %v1696
      %v1877 = vunpack.c.l.b16 %v1697
      %v1878 = vunpack.c.l.b16 %v1698
      %v1879 = vunpack.c.l.b16 %v1699
      %v1880 = vunpack.c.l.b16 %v1700
      %v1881 = vunpack.c.l.b16 %v1701
      %v1882 = vunpack.c.l.b16 %v1702
      %v1883 = vunpack.c.l.b16 %v1703
      %v1884 = vunpack.c.l.b16 %v1704
      %v1885 = vunpack.c.l.b16 %v1705
      %v1886 = vunpack.c.l.b16 %v1706
      %v1887 = vunpack.c.l.b16 %v1707
      %v1888 = vunpack.c.l.b16 %v1708
      %v1889 = vunpack.c.l.b16 %v1709
      %v1890 = vunpack.c.l.b16 %v1710
      %v1891 = vunpack.c.l.b16 %v1711
      %v1892 = vunpack.c.l.b16 %v1712
      %v1893 = vunpack.c.l.b16 %v1713
      %v1894 = vunpack.c.l.b16 %v1714
      %v1895 = vunpack.c.l.b16 %v1715
      %v1896 = vunpack.c.l.b16 %v1716
      %v1897 = vunpack.c.l.b16 %v1717
      %v1898 = vunpack.c.l.b16 %v1718
      %v1899 = vunpack.c.l.b16 %v1719
      %v1900 = vunpack.c.l.b16 %v1720
      %v1901 = vunpack.c.l.b16 %v1721
      %v1902 = vunpack.c.l.b16 %v1722
      %v1903 = vunpack.c.l.b16 %v1723
      %v1904 = vunpack.c.l.b16 %v1724
      %v1905 = vunpack.c.l.b16 %v1725
      %v1906 = vunpack.c.l.b16 %v1726
      %v1907 = vunpack.c.l.b16 %v1727
      %v1908 = vunpack.c.l.b16 %v1728
      %v1909 = vunpack.c.l.b16 %v1729
      %v1910 = vunpack.c.l.b16 %v1730
      %v1911 = vunpack.c.l.b16 %v1731
      %v1912 = vunpack.c.l.b16 %v1732
      %v1913 = vunpack.c.l.b16 %v1733
      %v1914 = vpack.c.b16 %v1825, %v1824
      %v1915 = vpack.c.b16 %v1827, %v1826
      %v1916 = vpack.c.b16 %v1829, %v1828
      %v1917 = vpack.c.b16 %v1831, %v1830
      %v1918 = vpack.c.b16 %v1833, %v1832
      %v1919 = vpack.c.b16 %v1835, %v1834
      %v1920 = vpack.c.b16 %v1837, %v1836
      %v1921 = vpack.c.b16 %v1839, %v1838
      %v1922 = vpack.c.b16 %v1841, %v1840
      %v1923 = vpack.c.b16 %v1843, %v1842
      %v1924 = vpack.c.b16 %v1845, %v1844
      %v1925 = vpack.c.b16 %v1847, %v1846
      %v1926 = vpack.c.b16 %v1849, %v1848
      %v1927 = vpack.c.b16 %v1851, %v1850
      %v1928 = vpack.c.b16 %v1853, %v1852
      %v1929 = vpack.c.b16 %v1855, %v1854
      %v1930 = vpack.c.b16 %v1857, %v1856
      %v1931 = vpack.c.b16 %v1859, %v1858
      %v1932 = vpack.c.b16 %v1861, %v1860
      %v1933 = vpack.c.b16 %v1863, %v1862
      %v1934 = vpack.c.b16 %v1865, %v1864
      %v1935 = vpack.c.b16 %v1867, %v1866
      %v1936 = vpack.c.b16 %v1869, %v1868
      %v1937 = vpack.c.b16 %v1871, %v1870
      %v1938 = vpack.c.b16 %v1873, %v1872
      %v1939 = vpack.c.b16 %v1875, %v1874
      %v1940 = vpack.c.b16 %v1877, %v1876
      %v1941 = vpack.c.b16 %v1879, %v1878
      %v1942 = vpack.c.b16 %v1881, %v1880
      %v1943 = vpack.c.b16 %v1883, %v1882
      %v1944 = vpack.c.b16 %v1885, %v1884
      %v1945 = vpack.c.b16 %v1887, %v1886
      %v1946 = vpack.c.b16 %v1889, %v1888
      %v1947 = vpack.c.b16 %v1891, %v1890
      %v1948 = vpack.c.b16 %v1893, %v1892
      %v1949 = vpack.c.b16 %v1895, %v1894
      %v1950 = vpack.c.b16 %v1897, %v1896
      %v1951 = vpack.c.b16 %v1899, %v1898
      %v1952 = vpack.c.b16 %v1901, %v1900
      %v1953 = vpack.c.b16 %v1903, %v1902
      %v1954 = vpack.c.b16 %v1905, %v1904
      %v1955 = vpack.c.b16 %v1907, %v1906
      %v1956 = vpack.c.b16 %v1909, %v1908
      %v1957 = vpack.c.b16 %v1911, %v1910
      %v1958 = vpack.c.b16 %v1913, %v1912
      %1959 = vrot.lane.b32.xlu0 %v1914, 4
      %v1960 = vpop.permute.xlu0 %1959
      %1961 = vrot.lane.b32.xlu0 %v1915, 4
      %v1962 = vpop.permute.xlu0 %1961
      %1963 = vrot.lane.b32.xlu0 %v1916, 4
      %v1964 = vpop.permute.xlu0 %1963
      %1965 = vrot.lane.b32.xlu0 %v1917, 4
      %v1966 = vpop.permute.xlu0 %1965
      %1967 = vrot.lane.b32.xlu0 %v1918, 4
      %v1968 = vpop.permute.xlu0 %1967
      %1969 = vrot.lane.b32.xlu0 %v1919, 4
      %v1970 = vpop.permute.xlu0 %1969
      %1971 = vrot.lane.b32.xlu0 %v1920, 4
      %v1972 = vpop.permute.xlu0 %1971
      %1973 = vrot.lane.b32.xlu0 %v1921, 4
      %v1974 = vpop.permute.xlu0 %1973
      %1975 = vrot.lane.b32.xlu0 %v1922, 4
      %v1976 = vpop.permute.xlu0 %1975
      %1977 = vrot.lane.b32.xlu0 %v1923, 4
      %v1978 = vpop.permute.xlu0 %1977
      %1979 = vrot.lane.b32.xlu0 %v1924, 4
      %v1980 = vpop.permute.xlu0 %1979
      %1981 = vrot.lane.b32.xlu0 %v1925, 4
      %v1982 = vpop.permute.xlu0 %1981
      %1983 = vrot.lane.b32.xlu0 %v1926, 4
      %v1984 = vpop.permute.xlu0 %1983
      %1985 = vrot.lane.b32.xlu0 %v1927, 4
      %v1986 = vpop.permute.xlu0 %1985
      %1987 = vrot.lane.b32.xlu0 %v1928, 4
      %v1988 = vpop.permute.xlu0 %1987
      %1989 = vrot.lane.b32.xlu0 %v1929, 4
      %v1990 = vpop.permute.xlu0 %1989
      %1991 = vrot.lane.b32.xlu0 %v1930, 4
      %v1992 = vpop.permute.xlu0 %1991
      %1993 = vrot.lane.b32.xlu0 %v1931, 4
      %v1994 = vpop.permute.xlu0 %1993
      %1995 = vrot.lane.b32.xlu0 %v1932, 4
      %v1996 = vpop.permute.xlu0 %1995
      %1997 = vrot.lane.b32.xlu0 %v1933, 4
      %v1998 = vpop.permute.xlu0 %1997
      %1999 = vrot.lane.b32.xlu0 %v1934, 4
      %v2000 = vpop.permute.xlu0 %1999
      %2001 = vrot.lane.b32.xlu0 %v1935, 4
      %v2002 = vpop.permute.xlu0 %2001
      %2003 = vrot.lane.b32.xlu0 %v1936, 4
      %v2004 = vpop.permute.xlu0 %2003
      %2005 = vrot.lane.b32.xlu0 %v1937, 4
      %v2006 = vpop.permute.xlu0 %2005
      %2007 = vrot.lane.b32.xlu0 %v1938, 4
      %v2008 = vpop.permute.xlu0 %2007
      %2009 = vrot.lane.b32.xlu0 %v1939, 4
      %v2010 = vpop.permute.xlu0 %2009
      %2011 = vrot.lane.b32.xlu0 %v1940, 4
      %v2012 = vpop.permute.xlu0 %2011
      %2013 = vrot.lane.b32.xlu0 %v1941, 4
      %v2014 = vpop.permute.xlu0 %2013
      %2015 = vrot.lane.b32.xlu0 %v1942, 4
      %v2016 = vpop.permute.xlu0 %2015
      %2017 = vrot.lane.b32.xlu0 %v1943, 4
      %v2018 = vpop.permute.xlu0 %2017
      %2019 = vrot.lane.b32.xlu0 %v1944, 4
      %v2020 = vpop.permute.xlu0 %2019
      %2021 = vrot.lane.b32.xlu0 %v1945, 4
      %v2022 = vpop.permute.xlu0 %2021
      %2023 = vrot.lane.b32.xlu0 %v1946, 4
      %v2024 = vpop.permute.xlu0 %2023
      %2025 = vrot.lane.b32.xlu0 %v1947, 4
      %v2026 = vpop.permute.xlu0 %2025
      %2027 = vrot.lane.b32.xlu0 %v1948, 4
      %v2028 = vpop.permute.xlu0 %2027
      %2029 = vrot.lane.b32.xlu0 %v1949, 4
      %v2030 = vpop.permute.xlu0 %2029
      %2031 = vrot.lane.b32.xlu0 %v1950, 4
      %v2032 = vpop.permute.xlu0 %2031
      %2033 = vrot.lane.b32.xlu0 %v1951, 4
      %v2034 = vpop.permute.xlu0 %2033
      %2035 = vrot.lane.b32.xlu0 %v1952, 4
      %v2036 = vpop.permute.xlu0 %2035
      %2037 = vrot.lane.b32.xlu0 %v1953, 4
      %v2038 = vpop.permute.xlu0 %2037
      %2039 = vrot.lane.b32.xlu0 %v1954, 4
      %v2040 = vpop.permute.xlu0 %2039
      %2041 = vrot.lane.b32.xlu0 %v1955, 4
      %v2042 = vpop.permute.xlu0 %2041
      %2043 = vrot.lane.b32.xlu0 %v1956, 4
      %v2044 = vpop.permute.xlu0 %2043
      %2045 = vrot.lane.b32.xlu0 %v1957, 4
      %v2046 = vpop.permute.xlu0 %2045
      %2047 = vrot.lane.b32.xlu0 %v1958, 4
      %v2048 = vpop.permute.xlu0 %2047
      %vm2094 = vcmask 64544
      %2095 = vst.msk [vmem:[#allocation2] sm:$0xff] %vm2094, %v1960
      %2096 = vst.msk [vmem:[#allocation2 + $0x8] sm:$0xff] %vm2094, %v1962
      %2097 = vst.msk [vmem:[#allocation2 + $0x10] sm:$0xff] %vm2094, %v1964
      %2098 = vst.msk [vmem:[#allocation2 + $0x18] sm:$0xff] %vm2094, %v1966
      %2099 = vst.msk [vmem:[#allocation2 + $0x20] sm:$0xff] %vm2094, %v1968
      %2100 = vst.msk [vmem:[#allocation2 + $0x28] sm:$0xff] %vm2094, %v1970
      %2101 = vst.msk [vmem:[#allocation2 + $0x30] sm:$0xff] %vm2094, %v1972
      %2102 = vst.msk [vmem:[#allocation2 + $0x38] sm:$0xff] %vm2094, %v1974
      %2103 = vst.msk [vmem:[#allocation2 + $0x40] sm:$0xff] %vm2094, %v1976
      %2104 = vst.msk [vmem:[#allocation2 + $0x48] sm:$0xff] %vm2094, %v1978
      %2105 = vst.msk [vmem:[#allocation2 + $0x50] sm:$0xff] %vm2094, %v1980
      %2106 = vst.msk [vmem:[#allocation2 + $0x58] sm:$0xff] %vm2094, %v1982
      %2107 = vst.msk [vmem:[#allocation2 + $0x60] sm:$0xff] %vm2094, %v1984
      %2108 = vst.msk [vmem:[#allocation2 + $0x68] sm:$0xff] %vm2094, %v1986
      %2109 = vst.msk [vmem:[#allocation2 + $0x70] sm:$0xff] %vm2094, %v1988
      %2110 = vst.msk [vmem:[#allocation2 + $0x78] sm:$0xff] %vm2094, %v1990
      %2111 = vst.msk [vmem:[#allocation2 + $0x80] sm:$0xff] %vm2094, %v1992
      %2112 = vst.msk [vmem:[#allocation2 + $0x88] sm:$0xff] %vm2094, %v1994
      %2113 = vst.msk [vmem:[#allocation2 + $0x90] sm:$0xff] %vm2094, %v1996
      %2114 = vst.msk [vmem:[#allocation2 + $0x98] sm:$0xff] %vm2094, %v1998
      %2115 = vst.msk [vmem:[#allocation2 + $0xa0] sm:$0xff] %vm2094, %v2000
      %2116 = vst.msk [vmem:[#allocation2 + $0xa8] sm:$0xff] %vm2094, %v2002
      %2117 = vst.msk [vmem:[#allocation2 + $0xb0] sm:$0xff] %vm2094, %v2004
      %2118 = vst.msk [vmem:[#allocation2 + $0xb8] sm:$0xff] %vm2094, %v2006
      %2119 = vst.msk [vmem:[#allocation2 + $0xc0] sm:$0xff] %vm2094, %v2008
      %2120 = vst.msk [vmem:[#allocation2 + $0xc8] sm:$0xff] %vm2094, %v2010
      %2121 = vst.msk [vmem:[#allocation2 + $0xd0] sm:$0xff] %vm2094, %v2012
      %2122 = vst.msk [vmem:[#allocation2 + $0xd8] sm:$0xff] %vm2094, %v2014
      %2123 = vst.msk [vmem:[#allocation2 + $0xe0] sm:$0xff] %vm2094, %v2016
      %2124 = vst.msk [vmem:[#allocation2 + $0xe8] sm:$0xff] %vm2094, %v2018
      %2125 = vst.msk [vmem:[#allocation2 + $0xf0] sm:$0xff] %vm2094, %v2020
      %2126 = vst.msk [vmem:[#allocation2 + $0xf8] sm:$0xff] %vm2094, %v2022
      %2127 = vst.msk [vmem:[#allocation2 + $0x100] sm:$0xff] %vm2094, %v2024
      %2128 = vst.msk [vmem:[#allocation2 + $0x108] sm:$0xff] %vm2094, %v2026
      %2129 = vst.msk [vmem:[#allocation2 + $0x110] sm:$0xff] %vm2094, %v2028
      %2130 = vst.msk [vmem:[#allocation2 + $0x118] sm:$0xff] %vm2094, %v2030
      %2131 = vst.msk [vmem:[#allocation2 + $0x120] sm:$0xff] %vm2094, %v2032
      %2132 = vst.msk [vmem:[#allocation2 + $0x128] sm:$0xff] %vm2094, %v2034
      %2133 = vst.msk [vmem:[#allocation2 + $0x130] sm:$0xff] %vm2094, %v2036
      %2134 = vst.msk [vmem:[#allocation2 + $0x138] sm:$0xff] %vm2094, %v2038
      %2135 = vst.msk [vmem:[#allocation2 + $0x140] sm:$0xff] %vm2094, %v2040
      %2136 = vst.msk [vmem:[#allocation2 + $0x148] sm:$0xff] %vm2094, %v2042
      %2137 = vst.msk [vmem:[#allocation2 + $0x150] sm:$0xff] %vm2094, %v2044
      %2138 = vst.msk [vmem:[#allocation2 + $0x158] sm:$0xff] %vm2094, %v2046
      %2139 = vst.msk [vmem:[#allocation2 + $0x160] sm:$0xff] %vm2094, %v2048
      %s2140 = smul.addr %s196, 4
      %s2141 = scalar_lea.vmem %s183, %s2140
      %v2142 = vld [vmem:[%s2141] sm:$0xf]
      %v2143 = vld [vmem:[%s2141 + $0x4] sm:$0xf]
      %v2144 = vld [vmem:[%s2141 + $0x8] sm:$0x1]
      %v2145 = vld [vmem:[%s2141 + $0xc] sm:$0xf]
      %v2146 = vld [vmem:[%s2141 + $0x10] sm:$0xf]
      %v2147 = vld [vmem:[%s2141 + $0x14] sm:$0x1]
      %v2148 = vld [vmem:[%s2141 + $0x18] sm:$0xf]
      %v2149 = vld [vmem:[%s2141 + $0x1c] sm:$0xf]
      %v2150 = vld [vmem:[%s2141 + $0x20] sm:$0x1]
      %v2151 = vld [vmem:[%s2141 + $0x24] sm:$0xf]
      %v2152 = vld [vmem:[%s2141 + $0x28] sm:$0xf]
      %v2153 = vld [vmem:[%s2141 + $0x2c] sm:$0x1]
      %v2154 = vld [vmem:[%s2141 + $0x30] sm:$0xf]
      %v2155 = vld [vmem:[%s2141 + $0x34] sm:$0xf]
      %v2156 = vld [vmem:[%s2141 + $0x38] sm:$0x1]
      %v2157 = vld [vmem:[%s2141 + $0x3c] sm:$0xf]
      %v2158 = vld [vmem:[%s2141 + $0x40] sm:$0xf]
      %v2159 = vld [vmem:[%s2141 + $0x44] sm:$0x1]
      %v2160 = vld [vmem:[%s2141 + $0x48] sm:$0xf]
      %v2161 = vld [vmem:[%s2141 + $0x4c] sm:$0xf]
      %v2162 = vld [vmem:[%s2141 + $0x50] sm:$0x1]
      %v2163 = vld [vmem:[%s2141 + $0x54] sm:$0xf]
      %v2164 = vld [vmem:[%s2141 + $0x58] sm:$0xf]
      %v2165 = vld [vmem:[%s2141 + $0x5c] sm:$0x1]
      %v2166 = vld [vmem:[%s2141 + $0x60] sm:$0xf]
      %v2167 = vld [vmem:[%s2141 + $0x64] sm:$0xf]
      %v2168 = vld [vmem:[%s2141 + $0x68] sm:$0x1]
      %v2169 = vld [vmem:[%s2141 + $0x78] sm:$0xf]
      %v2170 = vld [vmem:[%s2141 + $0x7c] sm:$0xf]
      %v2171 = vld [vmem:[%s2141 + $0x80] sm:$0x1]
      %v2172 = vld [vmem:[%s2141 + $0x84] sm:$0xf]
      %v2173 = vld [vmem:[%s2141 + $0x88] sm:$0xf]
      %v2174 = vld [vmem:[%s2141 + $0x8c] sm:$0x1]
      %v2175 = vld [vmem:[%s2141 + $0x90] sm:$0xf]
      %v2176 = vld [vmem:[%s2141 + $0x94] sm:$0xf]
      %v2177 = vld [vmem:[%s2141 + $0x98] sm:$0x1]
      %v2178 = vld [vmem:[%s2141 + $0x9c] sm:$0xf]
      %v2179 = vld [vmem:[%s2141 + $0xa0] sm:$0xf]
      %v2180 = vld [vmem:[%s2141 + $0xa4] sm:$0x1]
      %v2181 = vld [vmem:[%s2141 + $0xa8] sm:$0xf]
      %v2182 = vld [vmem:[%s2141 + $0xac] sm:$0xf]
      %v2183 = vld [vmem:[%s2141 + $0xb0] sm:$0x1]
      %v2184 = vld [vmem:[%s2141 + $0xb4] sm:$0xf]
      %v2185 = vld [vmem:[%s2141 + $0xb8] sm:$0xf]
      %v2186 = vld [vmem:[%s2141 + $0xbc] sm:$0x1]
      %v2187 = vld [vmem:[%s2141 + $0xc0] sm:$0xf]
      %v2188 = vld [vmem:[%s2141 + $0xc4] sm:$0xf]
      %v2189 = vld [vmem:[%s2141 + $0xc8] sm:$0x1]
      %v2190 = vld [vmem:[%s2141 + $0xcc] sm:$0xf]
      %v2191 = vld [vmem:[%s2141 + $0xd0] sm:$0xf]
      %v2192 = vld [vmem:[%s2141 + $0xd4] sm:$0x1]
      %v2193 = vld [vmem:[%s2141 + $0xd8] sm:$0xf]
      %v2194 = vld [vmem:[%s2141 + $0xdc] sm:$0xf]
      %v2195 = vld [vmem:[%s2141 + $0xe0] sm:$0x1]
      %v2196 = vld [vmem:[%s2141 + $0xf0] sm:$0xf]
      %v2197 = vld [vmem:[%s2141 + $0xf4] sm:$0xf]
      %v2198 = vld [vmem:[%s2141 + $0xf8] sm:$0x1]
      %v2199 = vld [vmem:[%s2141 + $0xfc] sm:$0xf]
      %v2200 = vld [vmem:[%s2141 + $0x100] sm:$0xf]
      %v2201 = vld [vmem:[%s2141 + $0x104] sm:$0x1]
      %v2202 = vld [vmem:[%s2141 + $0x108] sm:$0xf]
      %v2203 = vld [vmem:[%s2141 + $0x10c] sm:$0xf]
      %v2204 = vld [vmem:[%s2141 + $0x110] sm:$0x1]
      %v2205 = vld [vmem:[%s2141 + $0x114] sm:$0xf]
      %v2206 = vld [vmem:[%s2141 + $0x118] sm:$0xf]
      %v2207 = vld [vmem:[%s2141 + $0x11c] sm:$0x1]
      %v2208 = vld [vmem:[%s2141 + $0x120] sm:$0xf]
      %v2209 = vld [vmem:[%s2141 + $0x124] sm:$0xf]
      %v2210 = vld [vmem:[%s2141 + $0x128] sm:$0x1]
      %v2211 = vld [vmem:[%s2141 + $0x12c] sm:$0xf]
      %v2212 = vld [vmem:[%s2141 + $0x130] sm:$0xf]
      %v2213 = vld [vmem:[%s2141 + $0x134] sm:$0x1]
      %v2214 = vld [vmem:[%s2141 + $0x138] sm:$0xf]
      %v2215 = vld [vmem:[%s2141 + $0x13c] sm:$0xf]
      %v2216 = vld [vmem:[%s2141 + $0x140] sm:$0x1]
      %v2217 = vld [vmem:[%s2141 + $0x144] sm:$0xf]
      %v2218 = vld [vmem:[%s2141 + $0x148] sm:$0xf]
      %v2219 = vld [vmem:[%s2141 + $0x14c] sm:$0x1]
      %v2220 = vld [vmem:[%s2141 + $0x150] sm:$0xf]
      %v2221 = vld [vmem:[%s2141 + $0x154] sm:$0xf]
      %v2222 = vld [vmem:[%s2141 + $0x158] sm:$0x1]
      %v2223 = vld [vmem:[%s2141 + $0x168] sm:$0xf]
      %v2224 = vld [vmem:[%s2141 + $0x16c] sm:$0xf]
      %v2225 = vld [vmem:[%s2141 + $0x170] sm:$0x1]
      %v2226 = vld [vmem:[%s2141 + $0x174] sm:$0xf]
      %v2227 = vld [vmem:[%s2141 + $0x178] sm:$0xf]
      %v2228 = vld [vmem:[%s2141 + $0x17c] sm:$0x1]
      %v2229 = vld [vmem:[%s2141 + $0x180] sm:$0xf]
      %v2230 = vld [vmem:[%s2141 + $0x184] sm:$0xf]
      %v2231 = vld [vmem:[%s2141 + $0x188] sm:$0x1]
      %v2232 = vld [vmem:[%s2141 + $0x18c] sm:$0xf]
      %v2233 = vld [vmem:[%s2141 + $0x190] sm:$0xf]
      %v2234 = vld [vmem:[%s2141 + $0x194] sm:$0x1]
      %v2235 = vld [vmem:[%s2141 + $0x198] sm:$0xf]
      %v2236 = vld [vmem:[%s2141 + $0x19c] sm:$0xf]
      %v2237 = vld [vmem:[%s2141 + $0x1a0] sm:$0x1]
      %v2238 = vld [vmem:[%s2141 + $0x1a4] sm:$0xf]
      %v2239 = vld [vmem:[%s2141 + $0x1a8] sm:$0xf]
      %v2240 = vld [vmem:[%s2141 + $0x1ac] sm:$0x1]
      %v2241 = vld [vmem:[%s2141 + $0x1b0] sm:$0xf]
      %v2242 = vld [vmem:[%s2141 + $0x1b4] sm:$0xf]
      %v2243 = vld [vmem:[%s2141 + $0x1b8] sm:$0x1]
      %v2244 = vld [vmem:[%s2141 + $0x1bc] sm:$0xf]
      %v2245 = vld [vmem:[%s2141 + $0x1c0] sm:$0xf]
      %v2246 = vld [vmem:[%s2141 + $0x1c4] sm:$0x1]
      %v2247 = vld [vmem:[%s2141 + $0x1c8] sm:$0xf]
      %v2248 = vld [vmem:[%s2141 + $0x1cc] sm:$0xf]
      %v2249 = vld [vmem:[%s2141 + $0x1d0] sm:$0x1]
      %v2250 = vld [vmem:[%s2141 + $0x1e0] sm:$0xf]
      %v2251 = vld [vmem:[%s2141 + $0x1e4] sm:$0xf]
      %v2252 = vld [vmem:[%s2141 + $0x1e8] sm:$0x1]
      %v2253 = vld [vmem:[%s2141 + $0x1ec] sm:$0xf]
      %v2254 = vld [vmem:[%s2141 + $0x1f0] sm:$0xf]
      %v2255 = vld [vmem:[%s2141 + $0x1f4] sm:$0x1]
      %v2256 = vld [vmem:[%s2141 + $0x1f8] sm:$0xf]
      %v2257 = vld [vmem:[%s2141 + $0x1fc] sm:$0xf]
      %v2258 = vld [vmem:[%s2141 + $0x200] sm:$0x1]
      %v2259 = vld [vmem:[%s2141 + $0x204] sm:$0xf]
      %v2260 = vld [vmem:[%s2141 + $0x208] sm:$0xf]
      %v2261 = vld [vmem:[%s2141 + $0x20c] sm:$0x1]
      %v2262 = vld [vmem:[%s2141 + $0x210] sm:$0xf]
      %v2263 = vld [vmem:[%s2141 + $0x214] sm:$0xf]
      %v2264 = vld [vmem:[%s2141 + $0x218] sm:$0x1]
      %v2265 = vld [vmem:[%s2141 + $0x21c] sm:$0xf]
      %v2266 = vld [vmem:[%s2141 + $0x220] sm:$0xf]
      %v2267 = vld [vmem:[%s2141 + $0x224] sm:$0x1]
      %v2268 = vld [vmem:[%s2141 + $0x228] sm:$0xf]
      %v2269 = vld [vmem:[%s2141 + $0x22c] sm:$0xf]
      %v2270 = vld [vmem:[%s2141 + $0x230] sm:$0x1]
      %v2271 = vld [vmem:[%s2141 + $0x234] sm:$0xf]
      %v2272 = vld [vmem:[%s2141 + $0x238] sm:$0xf]
      %v2273 = vld [vmem:[%s2141 + $0x23c] sm:$0x1]
      %v2274 = vld [vmem:[%s2141 + $0x240] sm:$0xf]
      %v2275 = vld [vmem:[%s2141 + $0x244] sm:$0xf]
      %v2276 = vld [vmem:[%s2141 + $0x248] sm:$0x1]
      %v2278 = vshrl.u32 %v2142, 16
      %v2280 = vrot.slane %v2278, 4
      %v2281 = vshll.u32 %v2142, 16
      %v2283 = vrot.slane %v2281, 5
      %v2284 = vor.u32 %v2280, %v2283
      %v2285 = vrot.slane %v2284, 4
      %v2287 = vshll.u32 %v2143, 16
      %v2289 = vrot.slane %v2287, 5
      %v2290 = vsel %vm337, %v2285, %v2289
      %v2291 = vshrl.u32 %v2143, 16
      %v2293 = vrot.slane %v2291, 4
      %v2294 = vor.u32 %v2293, %v2289
      %v2295 = vrot.slane %v2294, 4
      %v2297 = vshll.u32 %v2144, 16
      %v2299 = vrot.slane %v2297, 5
      %v2300 = vsel %vm337, %v2295, %v2299
      %v2302 = vshrl.u32 %v2145, 16
      %v2304 = vrot.slane %v2302, 4
      %v2305 = vshll.u32 %v2145, 16
      %v2307 = vrot.slane %v2305, 5
      %v2308 = vor.u32 %v2304, %v2307
      %v2309 = vrot.slane %v2308, 4
      %v2311 = vshll.u32 %v2146, 16
      %v2313 = vrot.slane %v2311, 5
      %v2314 = vsel %vm337, %v2309, %v2313
      %v2315 = vshrl.u32 %v2146, 16
      %v2317 = vrot.slane %v2315, 4
      %v2318 = vor.u32 %v2317, %v2313
      %v2319 = vrot.slane %v2318, 4
      %v2321 = vshll.u32 %v2147, 16
      %v2323 = vrot.slane %v2321, 5
      %v2324 = vsel %vm337, %v2319, %v2323
      %v2326 = vshrl.u32 %v2148, 16
      %v2328 = vrot.slane %v2326, 4
      %v2329 = vshll.u32 %v2148, 16
      %v2331 = vrot.slane %v2329, 5
      %v2332 = vor.u32 %v2328, %v2331
      %v2333 = vrot.slane %v2332, 4
      %v2335 = vshll.u32 %v2149, 16
      %v2337 = vrot.slane %v2335, 5
      %v2338 = vsel %vm337, %v2333, %v2337
      %v2339 = vshrl.u32 %v2149, 16
      %v2341 = vrot.slane %v2339, 4
      %v2342 = vor.u32 %v2341, %v2337
      %v2343 = vrot.slane %v2342, 4
      %v2345 = vshll.u32 %v2150, 16
      %v2347 = vrot.slane %v2345, 5
      %v2348 = vsel %vm337, %v2343, %v2347
      %v2350 = vshrl.u32 %v2151, 16
      %v2352 = vrot.slane %v2350, 4
      %v2353 = vshll.u32 %v2151, 16
      %v2355 = vrot.slane %v2353, 5
      %v2356 = vor.u32 %v2352, %v2355
      %v2357 = vrot.slane %v2356, 4
      %v2359 = vshll.u32 %v2152, 16
      %v2361 = vrot.slane %v2359, 5
      %v2362 = vsel %vm337, %v2357, %v2361
      %v2363 = vshrl.u32 %v2152, 16
      %v2365 = vrot.slane %v2363, 4
      %v2366 = vor.u32 %v2365, %v2361
      %v2367 = vrot.slane %v2366, 4
      %v2369 = vshll.u32 %v2153, 16
      %v2371 = vrot.slane %v2369, 5
      %v2372 = vsel %vm337, %v2367, %v2371
      %v2374 = vshrl.u32 %v2154, 16
      %v2376 = vrot.slane %v2374, 4
      %v2377 = vshll.u32 %v2154, 16
      %v2379 = vrot.slane %v2377, 5
      %v2380 = vor.u32 %v2376, %v2379
      %v2381 = vrot.slane %v2380, 4
      %v2383 = vshll.u32 %v2155, 16
      %v2385 = vrot.slane %v2383, 5
      %v2386 = vsel %vm337, %v2381, %v2385
      %v2387 = vshrl.u32 %v2155, 16
      %v2389 = vrot.slane %v2387, 4
      %v2390 = vor.u32 %v2389, %v2385
      %v2391 = vrot.slane %v2390, 4
      %v2393 = vshll.u32 %v2156, 16
      %v2395 = vrot.slane %v2393, 5
      %v2396 = vsel %vm337, %v2391, %v2395
      %v2398 = vshrl.u32 %v2157, 16
      %v2400 = vrot.slane %v2398, 4
      %v2401 = vshll.u32 %v2157, 16
      %v2403 = vrot.slane %v2401, 5
      %v2404 = vor.u32 %v2400, %v2403
      %v2405 = vrot.slane %v2404, 4
      %v2407 = vshll.u32 %v2158, 16
      %v2409 = vrot.slane %v2407, 5
      %v2410 = vsel %vm337, %v2405, %v2409
      %v2411 = vshrl.u32 %v2158, 16
      %v2413 = vrot.slane %v2411, 4
      %v2414 = vor.u32 %v2413, %v2409
      %v2415 = vrot.slane %v2414, 4
      %v2417 = vshll.u32 %v2159, 16
      %v2419 = vrot.slane %v2417, 5
      %v2420 = vsel %vm337, %v2415, %v2419
      %v2422 = vshrl.u32 %v2160, 16
      %v2424 = vrot.slane %v2422, 4
      %v2425 = vshll.u32 %v2160, 16
      %v2427 = vrot.slane %v2425, 5
      %v2428 = vor.u32 %v2424, %v2427
      %v2429 = vrot.slane %v2428, 4
      %v2431 = vshll.u32 %v2161, 16
      %v2433 = vrot.slane %v2431, 5
      %v2434 = vsel %vm337, %v2429, %v2433
      %v2435 = vshrl.u32 %v2161, 16
      %v2437 = vrot.slane %v2435, 4
      %v2438 = vor.u32 %v2437, %v2433
      %v2439 = vrot.slane %v2438, 4
      %v2441 = vshll.u32 %v2162, 16
      %v2443 = vrot.slane %v2441, 5
      %v2444 = vsel %vm337, %v2439, %v2443
      %v2446 = vshrl.u32 %v2163, 16
      %v2448 = vrot.slane %v2446, 4
      %v2449 = vshll.u32 %v2163, 16
      %v2451 = vrot.slane %v2449, 5
      %v2452 = vor.u32 %v2448, %v2451
      %v2453 = vrot.slane %v2452, 4
      %v2455 = vshll.u32 %v2164, 16
      %v2457 = vrot.slane %v2455, 5
      %v2458 = vsel %vm337, %v2453, %v2457
      %v2459 = vshrl.u32 %v2164, 16
      %v2461 = vrot.slane %v2459, 4
      %v2462 = vor.u32 %v2461, %v2457
      %v2463 = vrot.slane %v2462, 4
      %v2465 = vshll.u32 %v2165, 16
      %v2467 = vrot.slane %v2465, 5
      %v2468 = vsel %vm337, %v2463, %v2467
      %v2470 = vshrl.u32 %v2166, 16
      %v2472 = vrot.slane %v2470, 4
      %v2473 = vshll.u32 %v2166, 16
      %v2475 = vrot.slane %v2473, 5
      %v2476 = vor.u32 %v2472, %v2475
      %v2477 = vrot.slane %v2476, 4
      %v2479 = vshll.u32 %v2167, 16
      %v2481 = vrot.slane %v2479, 5
      %v2482 = vsel %vm337, %v2477, %v2481
      %v2483 = vshrl.u32 %v2167, 16
      %v2485 = vrot.slane %v2483, 4
      %v2486 = vor.u32 %v2485, %v2481
      %v2487 = vrot.slane %v2486, 4
      %v2489 = vshll.u32 %v2168, 16
      %v2491 = vrot.slane %v2489, 5
      %v2492 = vsel %vm337, %v2487, %v2491
      %v2494 = vshrl.u32 %v2169, 16
      %v2496 = vrot.slane %v2494, 4
      %v2497 = vshll.u32 %v2169, 16
      %v2499 = vrot.slane %v2497, 5
      %v2500 = vor.u32 %v2496, %v2499
      %v2501 = vrot.slane %v2500, 4
      %v2503 = vshll.u32 %v2170, 16
      %v2505 = vrot.slane %v2503, 5
      %v2506 = vsel %vm337, %v2501, %v2505
      %v2507 = vshrl.u32 %v2170, 16
      %v2509 = vrot.slane %v2507, 4
      %v2510 = vor.u32 %v2509, %v2505
      %v2511 = vrot.slane %v2510, 4
      %v2513 = vshll.u32 %v2171, 16
      %v2515 = vrot.slane %v2513, 5
      %v2516 = vsel %vm337, %v2511, %v2515
      %v2518 = vshrl.u32 %v2172, 16
      %v2520 = vrot.slane %v2518, 4
      %v2521 = vshll.u32 %v2172, 16
      %v2523 = vrot.slane %v2521, 5
      %v2524 = vor.u32 %v2520, %v2523
      %v2525 = vrot.slane %v2524, 4
      %v2527 = vshll.u32 %v2173, 16
      %v2529 = vrot.slane %v2527, 5
      %v2530 = vsel %vm337, %v2525, %v2529
      %v2531 = vshrl.u32 %v2173, 16
      %v2533 = vrot.slane %v2531, 4
      %v2534 = vor.u32 %v2533, %v2529
      %v2535 = vrot.slane %v2534, 4
      %v2537 = vshll.u32 %v2174, 16
      %v2539 = vrot.slane %v2537, 5
      %v2540 = vsel %vm337, %v2535, %v2539
      %v2542 = vshrl.u32 %v2175, 16
      %v2544 = vrot.slane %v2542, 4
      %v2545 = vshll.u32 %v2175, 16
      %v2547 = vrot.slane %v2545, 5
      %v2548 = vor.u32 %v2544, %v2547
      %v2549 = vrot.slane %v2548, 4
      %v2551 = vshll.u32 %v2176, 16
      %v2553 = vrot.slane %v2551, 5
      %v2554 = vsel %vm337, %v2549, %v2553
      %v2555 = vshrl.u32 %v2176, 16
      %v2557 = vrot.slane %v2555, 4
      %v2558 = vor.u32 %v2557, %v2553
      %v2559 = vrot.slane %v2558, 4
      %v2561 = vshll.u32 %v2177, 16
      %v2563 = vrot.slane %v2561, 5
      %v2564 = vsel %vm337, %v2559, %v2563
      %v2566 = vshrl.u32 %v2178, 16
      %v2568 = vrot.slane %v2566, 4
      %v2569 = vshll.u32 %v2178, 16
      %v2571 = vrot.slane %v2569, 5
      %v2572 = vor.u32 %v2568, %v2571
      %v2573 = vrot.slane %v2572, 4
      %v2575 = vshll.u32 %v2179, 16
      %v2577 = vrot.slane %v2575, 5
      %v2578 = vsel %vm337, %v2573, %v2577
      %v2579 = vshrl.u32 %v2179, 16
      %v2581 = vrot.slane %v2579, 4
      %v2582 = vor.u32 %v2581, %v2577
      %v2583 = vrot.slane %v2582, 4
      %v2585 = vshll.u32 %v2180, 16
      %v2587 = vrot.slane %v2585, 5
      %v2588 = vsel %vm337, %v2583, %v2587
      %v2590 = vshrl.u32 %v2181, 16
      %v2592 = vrot.slane %v2590, 4
      %v2593 = vshll.u32 %v2181, 16
      %v2595 = vrot.slane %v2593, 5
      %v2596 = vor.u32 %v2592, %v2595
      %v2597 = vrot.slane %v2596, 4
      %v2599 = vshll.u32 %v2182, 16
      %v2601 = vrot.slane %v2599, 5
      %v2602 = vsel %vm337, %v2597, %v2601
      %v2603 = vshrl.u32 %v2182, 16
      %v2605 = vrot.slane %v2603, 4
      %v2606 = vor.u32 %v2605, %v2601
      %v2607 = vrot.slane %v2606, 4
      %v2609 = vshll.u32 %v2183, 16
      %v2611 = vrot.slane %v2609, 5
      %v2612 = vsel %vm337, %v2607, %v2611
      %v2614 = vshrl.u32 %v2184, 16
      %v2616 = vrot.slane %v2614, 4
      %v2617 = vshll.u32 %v2184, 16
      %v2619 = vrot.slane %v2617, 5
      %v2620 = vor.u32 %v2616, %v2619
      %v2621 = vrot.slane %v2620, 4
      %v2623 = vshll.u32 %v2185, 16
      %v2625 = vrot.slane %v2623, 5
      %v2626 = vsel %vm337, %v2621, %v2625
      %v2627 = vshrl.u32 %v2185, 16
      %v2629 = vrot.slane %v2627, 4
      %v2630 = vor.u32 %v2629, %v2625
      %v2631 = vrot.slane %v2630, 4
      %v2633 = vshll.u32 %v2186, 16
      %v2635 = vrot.slane %v2633, 5
      %v2636 = vsel %vm337, %v2631, %v2635
      %v2638 = vshrl.u32 %v2187, 16
      %v2640 = vrot.slane %v2638, 4
      %v2641 = vshll.u32 %v2187, 16
      %v2643 = vrot.slane %v2641, 5
      %v2644 = vor.u32 %v2640, %v2643
      %v2645 = vrot.slane %v2644, 4
      %v2647 = vshll.u32 %v2188, 16
      %v2649 = vrot.slane %v2647, 5
      %v2650 = vsel %vm337, %v2645, %v2649
      %v2651 = vshrl.u32 %v2188, 16
      %v2653 = vrot.slane %v2651, 4
      %v2654 = vor.u32 %v2653, %v2649
      %v2655 = vrot.slane %v2654, 4
      %v2657 = vshll.u32 %v2189, 16
      %v2659 = vrot.slane %v2657, 5
      %v2660 = vsel %vm337, %v2655, %v2659
      %v2662 = vshrl.u32 %v2190, 16
      %v2664 = vrot.slane %v2662, 4
      %v2665 = vshll.u32 %v2190, 16
      %v2667 = vrot.slane %v2665, 5
      %v2668 = vor.u32 %v2664, %v2667
      %v2669 = vrot.slane %v2668, 4
      %v2671 = vshll.u32 %v2191, 16
      %v2673 = vrot.slane %v2671, 5
      %v2674 = vsel %vm337, %v2669, %v2673
      %v2675 = vshrl.u32 %v2191, 16
      %v2677 = vrot.slane %v2675, 4
      %v2678 = vor.u32 %v2677, %v2673
      %v2679 = vrot.slane %v2678, 4
      %v2681 = vshll.u32 %v2192, 16
      %v2683 = vrot.slane %v2681, 5
      %v2684 = vsel %vm337, %v2679, %v2683
      %v2686 = vshrl.u32 %v2193, 16
      %v2688 = vrot.slane %v2686, 4
      %v2689 = vshll.u32 %v2193, 16
      %v2691 = vrot.slane %v2689, 5
      %v2692 = vor.u32 %v2688, %v2691
      %v2693 = vrot.slane %v2692, 4
      %v2695 = vshll.u32 %v2194, 16
      %v2697 = vrot.slane %v2695, 5
      %v2698 = vsel %vm337, %v2693, %v2697
      %v2699 = vshrl.u32 %v2194, 16
      %v2701 = vrot.slane %v2699, 4
      %v2702 = vor.u32 %v2701, %v2697
      %v2703 = vrot.slane %v2702, 4
      %v2705 = vshll.u32 %v2195, 16
      %v2707 = vrot.slane %v2705, 5
      %v2708 = vsel %vm337, %v2703, %v2707
      %v2710 = vshrl.u32 %v2196, 16
      %v2712 = vrot.slane %v2710, 4
      %v2713 = vshll.u32 %v2196, 16
      %v2715 = vrot.slane %v2713, 5
      %v2716 = vor.u32 %v2712, %v2715
      %v2717 = vrot.slane %v2716, 4
      %v2719 = vshll.u32 %v2197, 16
      %v2721 = vrot.slane %v2719, 5
      %v2722 = vsel %vm337, %v2717, %v2721
      %v2723 = vshrl.u32 %v2197, 16
      %v2725 = vrot.slane %v2723, 4
      %v2726 = vor.u32 %v2725, %v2721
      %v2727 = vrot.slane %v2726, 4
      %v2729 = vshll.u32 %v2198, 16
      %v2731 = vrot.slane %v2729, 5
      %v2732 = vsel %vm337, %v2727, %v2731
      %v2734 = vshrl.u32 %v2199, 16
      %v2736 = vrot.slane %v2734, 4
      %v2737 = vshll.u32 %v2199, 16
      %v2739 = vrot.slane %v2737, 5
      %v2740 = vor.u32 %v2736, %v2739
      %v2741 = vrot.slane %v2740, 4
      %v2743 = vshll.u32 %v2200, 16
      %v2745 = vrot.slane %v2743, 5
      %v2746 = vsel %vm337, %v2741, %v2745
      %v2747 = vshrl.u32 %v2200, 16
      %v2749 = vrot.slane %v2747, 4
      %v2750 = vor.u32 %v2749, %v2745
      %v2751 = vrot.slane %v2750, 4
      %v2753 = vshll.u32 %v2201, 16
      %v2755 = vrot.slane %v2753, 5
      %v2756 = vsel %vm337, %v2751, %v2755
      %v2758 = vshrl.u32 %v2202, 16
      %v2760 = vrot.slane %v2758, 4
      %v2761 = vshll.u32 %v2202, 16
      %v2763 = vrot.slane %v2761, 5
      %v2764 = vor.u32 %v2760, %v2763
      %v2765 = vrot.slane %v2764, 4
      %v2767 = vshll.u32 %v2203, 16
      %v2769 = vrot.slane %v2767, 5
      %v2770 = vsel %vm337, %v2765, %v2769
      %v2771 = vshrl.u32 %v2203, 16
      %v2773 = vrot.slane %v2771, 4
      %v2774 = vor.u32 %v2773, %v2769
      %v2775 = vrot.slane %v2774, 4
      %v2777 = vshll.u32 %v2204, 16
      %v2779 = vrot.slane %v2777, 5
      %v2780 = vsel %vm337, %v2775, %v2779
      %v2782 = vshrl.u32 %v2205, 16
      %v2784 = vrot.slane %v2782, 4
      %v2785 = vshll.u32 %v2205, 16
      %v2787 = vrot.slane %v2785, 5
      %v2788 = vor.u32 %v2784, %v2787
      %v2789 = vrot.slane %v2788, 4
      %v2791 = vshll.u32 %v2206, 16
      %v2793 = vrot.slane %v2791, 5
      %v2794 = vsel %vm337, %v2789, %v2793
      %v2795 = vshrl.u32 %v2206, 16
      %v2797 = vrot.slane %v2795, 4
      %v2798 = vor.u32 %v2797, %v2793
      %v2799 = vrot.slane %v2798, 4
      %v2801 = vshll.u32 %v2207, 16
      %v2803 = vrot.slane %v2801, 5
      %v2804 = vsel %vm337, %v2799, %v2803
      %v2806 = vshrl.u32 %v2208, 16
      %v2808 = vrot.slane %v2806, 4
      %v2809 = vshll.u32 %v2208, 16
      %v2811 = vrot.slane %v2809, 5
      %v2812 = vor.u32 %v2808, %v2811
      %v2813 = vrot.slane %v2812, 4
      %v2815 = vshll.u32 %v2209, 16
      %v2817 = vrot.slane %v2815, 5
      %v2818 = vsel %vm337, %v2813, %v2817
      %v2819 = vshrl.u32 %v2209, 16
      %v2821 = vrot.slane %v2819, 4
      %v2822 = vor.u32 %v2821, %v2817
      %v2823 = vrot.slane %v2822, 4
      %v2825 = vshll.u32 %v2210, 16
      %v2827 = vrot.slane %v2825, 5
      %v2828 = vsel %vm337, %v2823, %v2827
      %v2830 = vshrl.u32 %v2211, 16
      %v2832 = vrot.slane %v2830, 4
      %v2833 = vshll.u32 %v2211, 16
      %v2835 = vrot.slane %v2833, 5
      %v2836 = vor.u32 %v2832, %v2835
      %v2837 = vrot.slane %v2836, 4
      %v2839 = vshll.u32 %v2212, 16
      %v2841 = vrot.slane %v2839, 5
      %v2842 = vsel %vm337, %v2837, %v2841
      %v2843 = vshrl.u32 %v2212, 16
      %v2845 = vrot.slane %v2843, 4
      %v2846 = vor.u32 %v2845, %v2841
      %v2847 = vrot.slane %v2846, 4
      %v2849 = vshll.u32 %v2213, 16
      %v2851 = vrot.slane %v2849, 5
      %v2852 = vsel %vm337, %v2847, %v2851
      %v2854 = vshrl.u32 %v2214, 16
      %v2856 = vrot.slane %v2854, 4
      %v2857 = vshll.u32 %v2214, 16
      %v2859 = vrot.slane %v2857, 5
      %v2860 = vor.u32 %v2856, %v2859
      %v2861 = vrot.slane %v2860, 4
      %v2863 = vshll.u32 %v2215, 16
      %v2865 = vrot.slane %v2863, 5
      %v2866 = vsel %vm337, %v2861, %v2865
      %v2867 = vshrl.u32 %v2215, 16
      %v2869 = vrot.slane %v2867, 4
      %v2870 = vor.u32 %v2869, %v2865
      %v2871 = vrot.slane %v2870, 4
      %v2873 = vshll.u32 %v2216, 16
      %v2875 = vrot.slane %v2873, 5
      %v2876 = vsel %vm337, %v2871, %v2875
      %v2878 = vshrl.u32 %v2217, 16
      %v2880 = vrot.slane %v2878, 4
      %v2881 = vshll.u32 %v2217, 16
      %v2883 = vrot.slane %v2881, 5
      %v2884 = vor.u32 %v2880, %v2883
      %v2885 = vrot.slane %v2884, 4
      %v2887 = vshll.u32 %v2218, 16
      %v2889 = vrot.slane %v2887, 5
      %v2890 = vsel %vm337, %v2885, %v2889
      %v2891 = vshrl.u32 %v2218, 16
      %v2893 = vrot.slane %v2891, 4
      %v2894 = vor.u32 %v2893, %v2889
      %v2895 = vrot.slane %v2894, 4
      %v2897 = vshll.u32 %v2219, 16
      %v2899 = vrot.slane %v2897, 5
      %v2900 = vsel %vm337, %v2895, %v2899
      %v2902 = vshrl.u32 %v2220, 16
      %v2904 = vrot.slane %v2902, 4
      %v2905 = vshll.u32 %v2220, 16
      %v2907 = vrot.slane %v2905, 5
      %v2908 = vor.u32 %v2904, %v2907
      %v2909 = vrot.slane %v2908, 4
      %v2911 = vshll.u32 %v2221, 16
      %v2913 = vrot.slane %v2911, 5
      %v2914 = vsel %vm337, %v2909, %v2913
      %v2915 = vshrl.u32 %v2221, 16
      %v2917 = vrot.slane %v2915, 4
      %v2918 = vor.u32 %v2917, %v2913
      %v2919 = vrot.slane %v2918, 4
      %v2921 = vshll.u32 %v2222, 16
      %v2923 = vrot.slane %v2921, 5
      %v2924 = vsel %vm337, %v2919, %v2923
      %v2926 = vshrl.u32 %v2223, 16
      %v2928 = vrot.slane %v2926, 4
      %v2929 = vshll.u32 %v2223, 16
      %v2931 = vrot.slane %v2929, 5
      %v2932 = vor.u32 %v2928, %v2931
      %v2933 = vrot.slane %v2932, 4
      %v2935 = vshll.u32 %v2224, 16
      %v2937 = vrot.slane %v2935, 5
      %v2938 = vsel %vm337, %v2933, %v2937
      %v2939 = vshrl.u32 %v2224, 16
      %v2941 = vrot.slane %v2939, 4
      %v2942 = vor.u32 %v2941, %v2937
      %v2943 = vrot.slane %v2942, 4
      %v2945 = vshll.u32 %v2225, 16
      %v2947 = vrot.slane %v2945, 5
      %v2948 = vsel %vm337, %v2943, %v2947
      %v2950 = vshrl.u32 %v2226, 16
      %v2952 = vrot.slane %v2950, 4
      %v2953 = vshll.u32 %v2226, 16
      %v2955 = vrot.slane %v2953, 5
      %v2956 = vor.u32 %v2952, %v2955
      %v2957 = vrot.slane %v2956, 4
      %v2959 = vshll.u32 %v2227, 16
      %v2961 = vrot.slane %v2959, 5
      %v2962 = vsel %vm337, %v2957, %v2961
      %v2963 = vshrl.u32 %v2227, 16
      %v2965 = vrot.slane %v2963, 4
      %v2966 = vor.u32 %v2965, %v2961
      %v2967 = vrot.slane %v2966, 4
      %v2969 = vshll.u32 %v2228, 16
      %v2971 = vrot.slane %v2969, 5
      %v2972 = vsel %vm337, %v2967, %v2971
      %v2974 = vshrl.u32 %v2229, 16
      %v2976 = vrot.slane %v2974, 4
      %v2977 = vshll.u32 %v2229, 16
      %v2979 = vrot.slane %v2977, 5
      %v2980 = vor.u32 %v2976, %v2979
      %v2981 = vrot.slane %v2980, 4
      %v2983 = vshll.u32 %v2230, 16
      %v2985 = vrot.slane %v2983, 5
      %v2986 = vsel %vm337, %v2981, %v2985
      %v2987 = vshrl.u32 %v2230, 16
      %v2989 = vrot.slane %v2987, 4
      %v2990 = vor.u32 %v2989, %v2985
      %v2991 = vrot.slane %v2990, 4
      %v2993 = vshll.u32 %v2231, 16
      %v2995 = vrot.slane %v2993, 5
      %v2996 = vsel %vm337, %v2991, %v2995
      %v2998 = vshrl.u32 %v2232, 16
      %v3000 = vrot.slane %v2998, 4
      %v3001 = vshll.u32 %v2232, 16
      %v3003 = vrot.slane %v3001, 5
      %v3004 = vor.u32 %v3000, %v3003
      %v3005 = vrot.slane %v3004, 4
      %v3007 = vshll.u32 %v2233, 16
      %v3009 = vrot.slane %v3007, 5
      %v3010 = vsel %vm337, %v3005, %v3009
      %v3011 = vshrl.u32 %v2233, 16
      %v3013 = vrot.slane %v3011, 4
      %v3014 = vor.u32 %v3013, %v3009
      %v3015 = vrot.slane %v3014, 4
      %v3017 = vshll.u32 %v2234, 16
      %v3019 = vrot.slane %v3017, 5
      %v3020 = vsel %vm337, %v3015, %v3019
      %v3022 = vshrl.u32 %v2235, 16
      %v3024 = vrot.slane %v3022, 4
      %v3025 = vshll.u32 %v2235, 16
      %v3027 = vrot.slane %v3025, 5
      %v3028 = vor.u32 %v3024, %v3027
      %v3029 = vrot.slane %v3028, 4
      %v3031 = vshll.u32 %v2236, 16
      %v3033 = vrot.slane %v3031, 5
      %v3034 = vsel %vm337, %v3029, %v3033
      %v3035 = vshrl.u32 %v2236, 16
      %v3037 = vrot.slane %v3035, 4
      %v3038 = vor.u32 %v3037, %v3033
      %v3039 = vrot.slane %v3038, 4
      %v3041 = vshll.u32 %v2237, 16
      %v3043 = vrot.slane %v3041, 5
      %v3044 = vsel %vm337, %v3039, %v3043
      %v3046 = vshrl.u32 %v2238, 16
      %v3048 = vrot.slane %v3046, 4
      %v3049 = vshll.u32 %v2238, 16
      %v3051 = vrot.slane %v3049, 5
      %v3052 = vor.u32 %v3048, %v3051
      %v3053 = vrot.slane %v3052, 4
      %v3055 = vshll.u32 %v2239, 16
      %v3057 = vrot.slane %v3055, 5
      %v3058 = vsel %vm337, %v3053, %v3057
      %v3059 = vshrl.u32 %v2239, 16
      %v3061 = vrot.slane %v3059, 4
      %v3062 = vor.u32 %v3061, %v3057
      %v3063 = vrot.slane %v3062, 4
      %v3065 = vshll.u32 %v2240, 16
      %v3067 = vrot.slane %v3065, 5
      %v3068 = vsel %vm337, %v3063, %v3067
      %v3070 = vshrl.u32 %v2241, 16
      %v3072 = vrot.slane %v3070, 4
      %v3073 = vshll.u32 %v2241, 16
      %v3075 = vrot.slane %v3073, 5
      %v3076 = vor.u32 %v3072, %v3075
      %v3077 = vrot.slane %v3076, 4
      %v3079 = vshll.u32 %v2242, 16
      %v3081 = vrot.slane %v3079, 5
      %v3082 = vsel %vm337, %v3077, %v3081
      %v3083 = vshrl.u32 %v2242, 16
      %v3085 = vrot.slane %v3083, 4
      %v3086 = vor.u32 %v3085, %v3081
      %v3087 = vrot.slane %v3086, 4
      %v3089 = vshll.u32 %v2243, 16
      %v3091 = vrot.slane %v3089, 5
      %v3092 = vsel %vm337, %v3087, %v3091
      %v3094 = vshrl.u32 %v2244, 16
      %v3096 = vrot.slane %v3094, 4
      %v3097 = vshll.u32 %v2244, 16
      %v3099 = vrot.slane %v3097, 5
      %v3100 = vor.u32 %v3096, %v3099
      %v3101 = vrot.slane %v3100, 4
      %v3103 = vshll.u32 %v2245, 16
      %v3105 = vrot.slane %v3103, 5
      %v3106 = vsel %vm337, %v3101, %v3105
      %v3107 = vshrl.u32 %v2245, 16
      %v3109 = vrot.slane %v3107, 4
      %v3110 = vor.u32 %v3109, %v3105
      %v3111 = vrot.slane %v3110, 4
      %v3113 = vshll.u32 %v2246, 16
      %v3115 = vrot.slane %v3113, 5
      %v3116 = vsel %vm337, %v3111, %v3115
      %v3118 = vshrl.u32 %v2247, 16
      %v3120 = vrot.slane %v3118, 4
      %v3121 = vshll.u32 %v2247, 16
      %v3123 = vrot.slane %v3121, 5
      %v3124 = vor.u32 %v3120, %v3123
      %v3125 = vrot.slane %v3124, 4
      %v3127 = vshll.u32 %v2248, 16
      %v3129 = vrot.slane %v3127, 5
      %v3130 = vsel %vm337, %v3125, %v3129
      %v3131 = vshrl.u32 %v2248, 16
      %v3133 = vrot.slane %v3131, 4
      %v3134 = vor.u32 %v3133, %v3129
      %v3135 = vrot.slane %v3134, 4
      %v3137 = vshll.u32 %v2249, 16
      %v3139 = vrot.slane %v3137, 5
      %v3140 = vsel %vm337, %v3135, %v3139
      %v3142 = vshrl.u32 %v2250, 16
      %v3144 = vrot.slane %v3142, 4
      %v3145 = vshll.u32 %v2250, 16
      %v3147 = vrot.slane %v3145, 5
      %v3148 = vor.u32 %v3144, %v3147
      %v3149 = vrot.slane %v3148, 4
      %v3151 = vshll.u32 %v2251, 16
      %v3153 = vrot.slane %v3151, 5
      %v3154 = vsel %vm337, %v3149, %v3153
      %v3155 = vshrl.u32 %v2251, 16
      %v3157 = vrot.slane %v3155, 4
      %v3158 = vor.u32 %v3157, %v3153
      %v3159 = vrot.slane %v3158, 4
      %v3161 = vshll.u32 %v2252, 16
      %v3163 = vrot.slane %v3161, 5
      %v3164 = vsel %vm337, %v3159, %v3163
      %v3166 = vshrl.u32 %v2253, 16
      %v3168 = vrot.slane %v3166, 4
      %v3169 = vshll.u32 %v2253, 16
      %v3171 = vrot.slane %v3169, 5
      %v3172 = vor.u32 %v3168, %v3171
      %v3173 = vrot.slane %v3172, 4
      %v3175 = vshll.u32 %v2254, 16
      %v3177 = vrot.slane %v3175, 5
      %v3178 = vsel %vm337, %v3173, %v3177
      %v3179 = vshrl.u32 %v2254, 16
      %v3181 = vrot.slane %v3179, 4
      %v3182 = vor.u32 %v3181, %v3177
      %v3183 = vrot.slane %v3182, 4
      %v3185 = vshll.u32 %v2255, 16
      %v3187 = vrot.slane %v3185, 5
      %v3188 = vsel %vm337, %v3183, %v3187
      %v3190 = vshrl.u32 %v2256, 16
      %v3192 = vrot.slane %v3190, 4
      %v3193 = vshll.u32 %v2256, 16
      %v3195 = vrot.slane %v3193, 5
      %v3196 = vor.u32 %v3192, %v3195
      %v3197 = vrot.slane %v3196, 4
      %v3199 = vshll.u32 %v2257, 16
      %v3201 = vrot.slane %v3199, 5
      %v3202 = vsel %vm337, %v3197, %v3201
      %v3203 = vshrl.u32 %v2257, 16
      %v3205 = vrot.slane %v3203, 4
      %v3206 = vor.u32 %v3205, %v3201
      %v3207 = vrot.slane %v3206, 4
      %v3209 = vshll.u32 %v2258, 16
      %v3211 = vrot.slane %v3209, 5
      %v3212 = vsel %vm337, %v3207, %v3211
      %v3214 = vshrl.u32 %v2259, 16
      %v3216 = vrot.slane %v3214, 4
      %v3217 = vshll.u32 %v2259, 16
      %v3219 = vrot.slane %v3217, 5
      %v3220 = vor.u32 %v3216, %v3219
      %v3221 = vrot.slane %v3220, 4
      %v3223 = vshll.u32 %v2260, 16
      %v3225 = vrot.slane %v3223, 5
      %v3226 = vsel %vm337, %v3221, %v3225
      %v3227 = vshrl.u32 %v2260, 16
      %v3229 = vrot.slane %v3227, 4
      %v3230 = vor.u32 %v3229, %v3225
      %v3231 = vrot.slane %v3230, 4
      %v3233 = vshll.u32 %v2261, 16
      %v3235 = vrot.slane %v3233, 5
      %v3236 = vsel %vm337, %v3231, %v3235
      %v3238 = vshrl.u32 %v2262, 16
      %v3240 = vrot.slane %v3238, 4
      %v3241 = vshll.u32 %v2262, 16
      %v3243 = vrot.slane %v3241, 5
      %v3244 = vor.u32 %v3240, %v3243
      %v3245 = vrot.slane %v3244, 4
      %v3247 = vshll.u32 %v2263, 16
      %v3249 = vrot.slane %v3247, 5
      %v3250 = vsel %vm337, %v3245, %v3249
      %v3251 = vshrl.u32 %v2263, 16
      %v3253 = vrot.slane %v3251, 4
      %v3254 = vor.u32 %v3253, %v3249
      %v3255 = vrot.slane %v3254, 4
      %v3257 = vshll.u32 %v2264, 16
      %v3259 = vrot.slane %v3257, 5
      %v3260 = vsel %vm337, %v3255, %v3259
      %v3262 = vshrl.u32 %v2265, 16
      %v3264 = vrot.slane %v3262, 4
      %v3265 = vshll.u32 %v2265, 16
      %v3267 = vrot.slane %v3265, 5
      %v3268 = vor.u32 %v3264, %v3267
      %v3269 = vrot.slane %v3268, 4
      %v3271 = vshll.u32 %v2266, 16
      %v3273 = vrot.slane %v3271, 5
      %v3274 = vsel %vm337, %v3269, %v3273
      %v3275 = vshrl.u32 %v2266, 16
      %v3277 = vrot.slane %v3275, 4
      %v3278 = vor.u32 %v3277, %v3273
      %v3279 = vrot.slane %v3278, 4
      %v3281 = vshll.u32 %v2267, 16
      %v3283 = vrot.slane %v3281, 5
      %v3284 = vsel %vm337, %v3279, %v3283
      %v3286 = vshrl.u32 %v2268, 16
      %v3288 = vrot.slane %v3286, 4
      %v3289 = vshll.u32 %v2268, 16
      %v3291 = vrot.slane %v3289, 5
      %v3292 = vor.u32 %v3288, %v3291
      %v3293 = vrot.slane %v3292, 4
      %v3295 = vshll.u32 %v2269, 16
      %v3297 = vrot.slane %v3295, 5
      %v3298 = vsel %vm337, %v3293, %v3297
      %v3299 = vshrl.u32 %v2269, 16
      %v3301 = vrot.slane %v3299, 4
      %v3302 = vor.u32 %v3301, %v3297
      %v3303 = vrot.slane %v3302, 4
      %v3305 = vshll.u32 %v2270, 16
      %v3307 = vrot.slane %v3305, 5
      %v3308 = vsel %vm337, %v3303, %v3307
      %v3310 = vshrl.u32 %v2271, 16
      %v3312 = vrot.slane %v3310, 4
      %v3313 = vshll.u32 %v2271, 16
      %v3315 = vrot.slane %v3313, 5
      %v3316 = vor.u32 %v3312, %v3315
      %v3317 = vrot.slane %v3316, 4
      %v3319 = vshll.u32 %v2272, 16
      %v3321 = vrot.slane %v3319, 5
      %v3322 = vsel %vm337, %v3317, %v3321
      %v3323 = vshrl.u32 %v2272, 16
      %v3325 = vrot.slane %v3323, 4
      %v3326 = vor.u32 %v3325, %v3321
      %v3327 = vrot.slane %v3326, 4
      %v3329 = vshll.u32 %v2273, 16
      %v3331 = vrot.slane %v3329, 5
      %v3332 = vsel %vm337, %v3327, %v3331
      %v3334 = vshrl.u32 %v2274, 16
      %v3336 = vrot.slane %v3334, 4
      %v3337 = vshll.u32 %v2274, 16
      %v3339 = vrot.slane %v3337, 5
      %v3340 = vor.u32 %v3336, %v3339
      %v3341 = vrot.slane %v3340, 4
      %v3343 = vshll.u32 %v2275, 16
      %v3345 = vrot.slane %v3343, 5
      %v3346 = vsel %vm337, %v3341, %v3345
      %v3347 = vshrl.u32 %v2275, 16
      %v3349 = vrot.slane %v3347, 4
      %v3350 = vor.u32 %v3349, %v3345
      %v3351 = vrot.slane %v3350, 4
      %v3353 = vshll.u32 %v2276, 16
      %v3355 = vrot.slane %v3353, 5
      %v3356 = vsel %vm337, %v3351, %v3355
      %v3357 = vunpack.c.l.b16 %v2290
      %v3358 = vunpack.c.l.b16 %v2300
      %v3359 = vunpack.c.l.b16 %v2314
      %v3360 = vunpack.c.l.b16 %v2324
      %v3361 = vunpack.c.l.b16 %v2338
      %v3362 = vunpack.c.l.b16 %v2348
      %v3363 = vunpack.c.l.b16 %v2362
      %v3364 = vunpack.c.l.b16 %v2372
      %v3365 = vunpack.c.l.b16 %v2386
      %v3366 = vunpack.c.l.b16 %v2396
      %v3367 = vunpack.c.l.b16 %v2410
      %v3368 = vunpack.c.l.b16 %v2420
      %v3369 = vunpack.c.l.b16 %v2434
      %v3370 = vunpack.c.l.b16 %v2444
      %v3371 = vunpack.c.l.b16 %v2458
      %v3372 = vunpack.c.l.b16 %v2468
      %v3373 = vunpack.c.l.b16 %v2482
      %v3374 = vunpack.c.l.b16 %v2492
      %v3375 = vunpack.c.l.b16 %v2506
      %v3376 = vunpack.c.l.b16 %v2516
      %v3377 = vunpack.c.l.b16 %v2530
      %v3378 = vunpack.c.l.b16 %v2540
      %v3379 = vunpack.c.l.b16 %v2554
      %v3380 = vunpack.c.l.b16 %v2564
      %v3381 = vunpack.c.l.b16 %v2578
      %v3382 = vunpack.c.l.b16 %v2588
      %v3383 = vunpack.c.l.b16 %v2602
      %v3384 = vunpack.c.l.b16 %v2612
      %v3385 = vunpack.c.l.b16 %v2626
      %v3386 = vunpack.c.l.b16 %v2636
      %v3387 = vunpack.c.l.b16 %v2650
      %v3388 = vunpack.c.l.b16 %v2660
      %v3389 = vunpack.c.l.b16 %v2674
      %v3390 = vunpack.c.l.b16 %v2684
      %v3391 = vunpack.c.l.b16 %v2698
      %v3392 = vunpack.c.l.b16 %v2708
      %v3393 = vunpack.c.l.b16 %v2722
      %v3394 = vunpack.c.l.b16 %v2732
      %v3395 = vunpack.c.l.b16 %v2746
      %v3396 = vunpack.c.l.b16 %v2756
      %v3397 = vunpack.c.l.b16 %v2770
      %v3398 = vunpack.c.l.b16 %v2780
      %v3399 = vunpack.c.l.b16 %v2794
      %v3400 = vunpack.c.l.b16 %v2804
      %v3401 = vunpack.c.l.b16 %v2818
      %v3402 = vunpack.c.l.b16 %v2828
      %v3403 = vunpack.c.l.b16 %v2842
      %v3404 = vunpack.c.l.b16 %v2852
      %v3405 = vunpack.c.l.b16 %v2866
      %v3406 = vunpack.c.l.b16 %v2876
      %v3407 = vunpack.c.l.b16 %v2890
      %v3408 = vunpack.c.l.b16 %v2900
      %v3409 = vunpack.c.l.b16 %v2914
      %v3410 = vunpack.c.l.b16 %v2924
      %v3411 = vunpack.c.l.b16 %v2938
      %v3412 = vunpack.c.l.b16 %v2948
      %v3413 = vunpack.c.l.b16 %v2962
      %v3414 = vunpack.c.l.b16 %v2972
      %v3415 = vunpack.c.l.b16 %v2986
      %v3416 = vunpack.c.l.b16 %v2996
      %v3417 = vunpack.c.l.b16 %v3010
      %v3418 = vunpack.c.l.b16 %v3020
      %v3419 = vunpack.c.l.b16 %v3034
      %v3420 = vunpack.c.l.b16 %v3044
      %v3421 = vunpack.c.l.b16 %v3058
      %v3422 = vunpack.c.l.b16 %v3068
      %v3423 = vunpack.c.l.b16 %v3082
      %v3424 = vunpack.c.l.b16 %v3092
      %v3425 = vunpack.c.l.b16 %v3106
      %v3426 = vunpack.c.l.b16 %v3116
      %v3427 = vunpack.c.l.b16 %v3130
      %v3428 = vunpack.c.l.b16 %v3140
      %v3429 = vunpack.c.l.b16 %v3154
      %v3430 = vunpack.c.l.b16 %v3164
      %v3431 = vunpack.c.l.b16 %v3178
      %v3432 = vunpack.c.l.b16 %v3188
      %v3433 = vunpack.c.l.b16 %v3202
      %v3434 = vunpack.c.l.b16 %v3212
      %v3435 = vunpack.c.l.b16 %v3226
      %v3436 = vunpack.c.l.b16 %v3236
      %v3437 = vunpack.c.l.b16 %v3250
      %v3438 = vunpack.c.l.b16 %v3260
      %v3439 = vunpack.c.l.b16 %v3274
      %v3440 = vunpack.c.l.b16 %v3284
      %v3441 = vunpack.c.l.b16 %v3298
      %v3442 = vunpack.c.l.b16 %v3308
      %v3443 = vunpack.c.l.b16 %v3322
      %v3444 = vunpack.c.l.b16 %v3332
      %v3445 = vunpack.c.l.b16 %v3346
      %v3446 = vunpack.c.l.b16 %v3356
      %v3447 = vpack.c.b16 %v3358, %v3357
      %v3448 = vpack.c.b16 %v3360, %v3359
      %v3449 = vpack.c.b16 %v3362, %v3361
      %v3450 = vpack.c.b16 %v3364, %v3363
      %v3451 = vpack.c.b16 %v3366, %v3365
      %v3452 = vpack.c.b16 %v3368, %v3367
      %v3453 = vpack.c.b16 %v3370, %v3369
      %v3454 = vpack.c.b16 %v3372, %v3371
      %v3455 = vpack.c.b16 %v3374, %v3373
      %v3456 = vpack.c.b16 %v3376, %v3375
      %v3457 = vpack.c.b16 %v3378, %v3377
      %v3458 = vpack.c.b16 %v3380, %v3379
      %v3459 = vpack.c.b16 %v3382, %v3381
      %v3460 = vpack.c.b16 %v3384, %v3383
      %v3461 = vpack.c.b16 %v3386, %v3385
      %v3462 = vpack.c.b16 %v3388, %v3387
      %v3463 = vpack.c.b16 %v3390, %v3389
      %v3464 = vpack.c.b16 %v3392, %v3391
      %v3465 = vpack.c.b16 %v3394, %v3393
      %v3466 = vpack.c.b16 %v3396, %v3395
      %v3467 = vpack.c.b16 %v3398, %v3397
      %v3468 = vpack.c.b16 %v3400, %v3399
      %v3469 = vpack.c.b16 %v3402, %v3401
      %v3470 = vpack.c.b16 %v3404, %v3403
      %v3471 = vpack.c.b16 %v3406, %v3405
      %v3472 = vpack.c.b16 %v3408, %v3407
      %v3473 = vpack.c.b16 %v3410, %v3409
      %v3474 = vpack.c.b16 %v3412, %v3411
      %v3475 = vpack.c.b16 %v3414, %v3413
      %v3476 = vpack.c.b16 %v3416, %v3415
      %v3477 = vpack.c.b16 %v3418, %v3417
      %v3478 = vpack.c.b16 %v3420, %v3419
      %v3479 = vpack.c.b16 %v3422, %v3421
      %v3480 = vpack.c.b16 %v3424, %v3423
      %v3481 = vpack.c.b16 %v3426, %v3425
      %v3482 = vpack.c.b16 %v3428, %v3427
      %v3483 = vpack.c.b16 %v3430, %v3429
      %v3484 = vpack.c.b16 %v3432, %v3431
      %v3485 = vpack.c.b16 %v3434, %v3433
      %v3486 = vpack.c.b16 %v3436, %v3435
      %v3487 = vpack.c.b16 %v3438, %v3437
      %v3488 = vpack.c.b16 %v3440, %v3439
      %v3489 = vpack.c.b16 %v3442, %v3441
      %v3490 = vpack.c.b16 %v3444, %v3443
      %v3491 = vpack.c.b16 %v3446, %v3445
      %3492 = vrot.lane.b32.xlu0 %v3447, 8
      %v3493 = vpop.permute.xlu0 %3492
      %3494 = vrot.lane.b32.xlu0 %v3448, 8
      %v3495 = vpop.permute.xlu0 %3494
      %3496 = vrot.lane.b32.xlu0 %v3449, 8
      %v3497 = vpop.permute.xlu0 %3496
      %3498 = vrot.lane.b32.xlu0 %v3450, 8
      %v3499 = vpop.permute.xlu0 %3498
      %3500 = vrot.lane.b32.xlu0 %v3451, 8
      %v3501 = vpop.permute.xlu0 %3500
      %3502 = vrot.lane.b32.xlu0 %v3452, 8
      %v3503 = vpop.permute.xlu0 %3502
      %3504 = vrot.lane.b32.xlu0 %v3453, 8
      %v3505 = vpop.permute.xlu0 %3504
      %3506 = vrot.lane.b32.xlu0 %v3454, 8
      %v3507 = vpop.permute.xlu0 %3506
      %3508 = vrot.lane.b32.xlu0 %v3455, 8
      %v3509 = vpop.permute.xlu0 %3508
      %3510 = vrot.lane.b32.xlu0 %v3456, 8
      %v3511 = vpop.permute.xlu0 %3510
      %3512 = vrot.lane.b32.xlu0 %v3457, 8
      %v3513 = vpop.permute.xlu0 %3512
      %3514 = vrot.lane.b32.xlu0 %v3458, 8
      %v3515 = vpop.permute.xlu0 %3514
      %3516 = vrot.lane.b32.xlu0 %v3459, 8
      %v3517 = vpop.permute.xlu0 %3516
      %3518 = vrot.lane.b32.xlu0 %v3460, 8
      %v3519 = vpop.permute.xlu0 %3518
      %3520 = vrot.lane.b32.xlu0 %v3461, 8
      %v3521 = vpop.permute.xlu0 %3520
      %3522 = vrot.lane.b32.xlu0 %v3462, 8
      %v3523 = vpop.permute.xlu0 %3522
      %3524 = vrot.lane.b32.xlu0 %v3463, 8
      %v3525 = vpop.permute.xlu0 %3524
      %3526 = vrot.lane.b32.xlu0 %v3464, 8
      %v3527 = vpop.permute.xlu0 %3526
      %3528 = vrot.lane.b32.xlu0 %v3465, 8
      %v3529 = vpop.permute.xlu0 %3528
      %3530 = vrot.lane.b32.xlu0 %v3466, 8
      %v3531 = vpop.permute.xlu0 %3530
      %3532 = vrot.lane.b32.xlu0 %v3467, 8
      %v3533 = vpop.permute.xlu0 %3532
      %3534 = vrot.lane.b32.xlu0 %v3468, 8
      %v3535 = vpop.permute.xlu0 %3534
      %3536 = vrot.lane.b32.xlu0 %v3469, 8
      %v3537 = vpop.permute.xlu0 %3536
      %3538 = vrot.lane.b32.xlu0 %v3470, 8
      %v3539 = vpop.permute.xlu0 %3538
      %3540 = vrot.lane.b32.xlu0 %v3471, 8
      %v3541 = vpop.permute.xlu0 %3540
      %3542 = vrot.lane.b32.xlu0 %v3472, 8
      %v3543 = vpop.permute.xlu0 %3542
      %3544 = vrot.lane.b32.xlu0 %v3473, 8
      %v3545 = vpop.permute.xlu0 %3544
      %3546 = vrot.lane.b32.xlu0 %v3474, 8
      %v3547 = vpop.permute.xlu0 %3546
      %3548 = vrot.lane.b32.xlu0 %v3475, 8
      %v3549 = vpop.permute.xlu0 %3548
      %3550 = vrot.lane.b32.xlu0 %v3476, 8
      %v3551 = vpop.permute.xlu0 %3550
      %3552 = vrot.lane.b32.xlu0 %v3477, 8
      %v3553 = vpop.permute.xlu0 %3552
      %3554 = vrot.lane.b32.xlu0 %v3478, 8
      %v3555 = vpop.permute.xlu0 %3554
      %3556 = vrot.lane.b32.xlu0 %v3479, 8
      %v3557 = vpop.permute.xlu0 %3556
      %3558 = vrot.lane.b32.xlu0 %v3480, 8
      %v3559 = vpop.permute.xlu0 %3558
      %3560 = vrot.lane.b32.xlu0 %v3481, 8
      %v3561 = vpop.permute.xlu0 %3560
      %3562 = vrot.lane.b32.xlu0 %v3482, 8
      %v3563 = vpop.permute.xlu0 %3562
      %3564 = vrot.lane.b32.xlu0 %v3483, 8
      %v3565 = vpop.permute.xlu0 %3564
      %3566 = vrot.lane.b32.xlu0 %v3484, 8
      %v3567 = vpop.permute.xlu0 %3566
      %3568 = vrot.lane.b32.xlu0 %v3485, 8
      %v3569 = vpop.permute.xlu0 %3568
      %3570 = vrot.lane.b32.xlu0 %v3486, 8
      %v3571 = vpop.permute.xlu0 %3570
      %3572 = vrot.lane.b32.xlu0 %v3487, 8
      %v3573 = vpop.permute.xlu0 %3572
      %3574 = vrot.lane.b32.xlu0 %v3488, 8
      %v3575 = vpop.permute.xlu0 %3574
      %3576 = vrot.lane.b32.xlu0 %v3489, 8
      %v3577 = vpop.permute.xlu0 %3576
      %3578 = vrot.lane.b32.xlu0 %v3490, 8
      %v3579 = vpop.permute.xlu0 %3578
      %3580 = vrot.lane.b32.xlu0 %v3491, 8
      %v3581 = vpop.permute.xlu0 %3580
      %vm3627 = vcmask 97344
      %3628 = vst.msk [vmem:[#allocation2] sm:$0xff] %vm3627, %v3493
      %3629 = vst.msk [vmem:[#allocation2 + $0x8] sm:$0xff] %vm3627, %v3495
      %3630 = vst.msk [vmem:[#allocation2 + $0x10] sm:$0xff] %vm3627, %v3497
      %3631 = vst.msk [vmem:[#allocation2 + $0x18] sm:$0xff] %vm3627, %v3499
      %3632 = vst.msk [vmem:[#allocation2 + $0x20] sm:$0xff] %vm3627, %v3501
      %3633 = vst.msk [vmem:[#allocation2 + $0x28] sm:$0xff] %vm3627, %v3503
      %3634 = vst.msk [vmem:[#allocation2 + $0x30] sm:$0xff] %vm3627, %v3505
      %3635 = vst.msk [vmem:[#allocation2 + $0x38] sm:$0xff] %vm3627, %v3507
      %3636 = vst.msk [vmem:[#allocation2 + $0x40] sm:$0xff] %vm3627, %v3509
      %3637 = vst.msk [vmem:[#allocation2 + $0x48] sm:$0xff] %vm3627, %v3511
      %3638 = vst.msk [vmem:[#allocation2 + $0x50] sm:$0xff] %vm3627, %v3513
      %3639 = vst.msk [vmem:[#allocation2 + $0x58] sm:$0xff] %vm3627, %v3515
      %3640 = vst.msk [vmem:[#allocation2 + $0x60] sm:$0xff] %vm3627, %v3517
      %3641 = vst.msk [vmem:[#allocation2 + $0x68] sm:$0xff] %vm3627, %v3519
      %3642 = vst.msk [vmem:[#allocation2 + $0x70] sm:$0xff] %vm3627, %v3521
      %3643 = vst.msk [vmem:[#allocation2 + $0x78] sm:$0xff] %vm3627, %v3523
      %3644 = vst.msk [vmem:[#allocation2 + $0x80] sm:$0xff] %vm3627, %v3525
      %3645 = vst.msk [vmem:[#allocation2 + $0x88] sm:$0xff] %vm3627, %v3527
      %3646 = vst.msk [vmem:[#allocation2 + $0x90] sm:$0xff] %vm3627, %v3529
      %3647 = vst.msk [vmem:[#allocation2 + $0x98] sm:$0xff] %vm3627, %v3531
      %3648 = vst.msk [vmem:[#allocation2 + $0xa0] sm:$0xff] %vm3627, %v3533
      %3649 = vst.msk [vmem:[#allocation2 + $0xa8] sm:$0xff] %vm3627, %v3535
      %3650 = vst.msk [vmem:[#allocation2 + $0xb0] sm:$0xff] %vm3627, %v3537
      %3651 = vst.msk [vmem:[#allocation2 + $0xb8] sm:$0xff] %vm3627, %v3539
      %3652 = vst.msk [vmem:[#allocation2 + $0xc0] sm:$0xff] %vm3627, %v3541
      %3653 = vst.msk [vmem:[#allocation2 + $0xc8] sm:$0xff] %vm3627, %v3543
      %3654 = vst.msk [vmem:[#allocation2 + $0xd0] sm:$0xff] %vm3627, %v3545
      %3655 = vst.msk [vmem:[#allocation2 + $0xd8] sm:$0xff] %vm3627, %v3547
      %3656 = vst.msk [vmem:[#allocation2 + $0xe0] sm:$0xff] %vm3627, %v3549
      %3657 = vst.msk [vmem:[#allocation2 + $0xe8] sm:$0xff] %vm3627, %v3551
      %3658 = vst.msk [vmem:[#allocation2 + $0xf0] sm:$0xff] %vm3627, %v3553
      %3659 = vst.msk [vmem:[#allocation2 + $0xf8] sm:$0xff] %vm3627, %v3555
      %3660 = vst.msk [vmem:[#allocation2 + $0x100] sm:$0xff] %vm3627, %v3557
      %3661 = vst.msk [vmem:[#allocation2 + $0x108] sm:$0xff] %vm3627, %v3559
      %3662 = vst.msk [vmem:[#allocation2 + $0x110] sm:$0xff] %vm3627, %v3561
      %3663 = vst.msk [vmem:[#allocation2 + $0x118] sm:$0xff] %vm3627, %v3563
      %3664 = vst.msk [vmem:[#allocation2 + $0x120] sm:$0xff] %vm3627, %v3565
      %3665 = vst.msk [vmem:[#allocation2 + $0x128] sm:$0xff] %vm3627, %v3567
      %3666 = vst.msk [vmem:[#allocation2 + $0x130] sm:$0xff] %vm3627, %v3569
      %3667 = vst.msk [vmem:[#allocation2 + $0x138] sm:$0xff] %vm3627, %v3571
      %3668 = vst.msk [vmem:[#allocation2 + $0x140] sm:$0xff] %vm3627, %v3573
      %3669 = vst.msk [vmem:[#allocation2 + $0x148] sm:$0xff] %vm3627, %v3575
      %3670 = vst.msk [vmem:[#allocation2 + $0x150] sm:$0xff] %vm3627, %v3577
      %3671 = vst.msk [vmem:[#allocation2 + $0x158] sm:$0xff] %vm3627, %v3579
      %3672 = vst.msk [vmem:[#allocation2 + $0x160] sm:$0xff] %vm3627, %v3581
      %v3673 = vld [vmem:[%s2141] sm:$0xf]
      %v3674 = vld [vmem:[%s2141 + $0x4] sm:$0xf]
      %v3675 = vld [vmem:[%s2141 + $0xc] sm:$0xf]
      %v3676 = vld [vmem:[%s2141 + $0x10] sm:$0xf]
      %v3677 = vld [vmem:[%s2141 + $0x18] sm:$0xf]
      %v3678 = vld [vmem:[%s2141 + $0x1c] sm:$0xf]
      %v3679 = vld [vmem:[%s2141 + $0x24] sm:$0xf]
      %v3680 = vld [vmem:[%s2141 + $0x28] sm:$0xf]
      %v3681 = vld [vmem:[%s2141 + $0x30] sm:$0xf]
      %v3682 = vld [vmem:[%s2141 + $0x34] sm:$0xf]
      %v3683 = vld [vmem:[%s2141 + $0x3c] sm:$0xf]
      %v3684 = vld [vmem:[%s2141 + $0x40] sm:$0xf]
      %v3685 = vld [vmem:[%s2141 + $0x48] sm:$0xf]
      %v3686 = vld [vmem:[%s2141 + $0x4c] sm:$0xf]
      %v3687 = vld [vmem:[%s2141 + $0x54] sm:$0xf]
      %v3688 = vld [vmem:[%s2141 + $0x58] sm:$0xf]
      %v3689 = vld [vmem:[%s2141 + $0x60] sm:$0xf]
      %v3690 = vld [vmem:[%s2141 + $0x64] sm:$0xf]
      %v3691 = vld [vmem:[%s2141 + $0x78] sm:$0xf]
      %v3692 = vld [vmem:[%s2141 + $0x7c] sm:$0xf]
      %v3693 = vld [vmem:[%s2141 + $0x84] sm:$0xf]
      %v3694 = vld [vmem:[%s2141 + $0x88] sm:$0xf]
      %v3695 = vld [vmem:[%s2141 + $0x90] sm:$0xf]
      %v3696 = vld [vmem:[%s2141 + $0x94] sm:$0xf]
      %v3697 = vld [vmem:[%s2141 + $0x9c] sm:$0xf]
      %v3698 = vld [vmem:[%s2141 + $0xa0] sm:$0xf]
      %v3699 = vld [vmem:[%s2141 + $0xa8] sm:$0xf]
      %v3700 = vld [vmem:[%s2141 + $0xac] sm:$0xf]
      %v3701 = vld [vmem:[%s2141 + $0xb4] sm:$0xf]
      %v3702 = vld [vmem:[%s2141 + $0xb8] sm:$0xf]
      %v3703 = vld [vmem:[%s2141 + $0xc0] sm:$0xf]
      %v3704 = vld [vmem:[%s2141 + $0xc4] sm:$0xf]
      %v3705 = vld [vmem:[%s2141 + $0xcc] sm:$0xf]
      %v3706 = vld [vmem:[%s2141 + $0xd0] sm:$0xf]
      %v3707 = vld [vmem:[%s2141 + $0xd8] sm:$0xf]
      %v3708 = vld [vmem:[%s2141 + $0xdc] sm:$0xf]
      %v3709 = vld [vmem:[%s2141 + $0xf0] sm:$0xf]
      %v3710 = vld [vmem:[%s2141 + $0xf4] sm:$0xf]
      %v3711 = vld [vmem:[%s2141 + $0xfc] sm:$0xf]
      %v3712 = vld [vmem:[%s2141 + $0x100] sm:$0xf]
      %v3713 = vld [vmem:[%s2141 + $0x108] sm:$0xf]
      %v3714 = vld [vmem:[%s2141 + $0x10c] sm:$0xf]
      %v3715 = vld [vmem:[%s2141 + $0x114] sm:$0xf]
      %v3716 = vld [vmem:[%s2141 + $0x118] sm:$0xf]
      %v3717 = vld [vmem:[%s2141 + $0x120] sm:$0xf]
      %v3718 = vld [vmem:[%s2141 + $0x124] sm:$0xf]
      %v3719 = vld [vmem:[%s2141 + $0x12c] sm:$0xf]
      %v3720 = vld [vmem:[%s2141 + $0x130] sm:$0xf]
      %v3721 = vld [vmem:[%s2141 + $0x138] sm:$0xf]
      %v3722 = vld [vmem:[%s2141 + $0x13c] sm:$0xf]
      %v3723 = vld [vmem:[%s2141 + $0x144] sm:$0xf]
      %v3724 = vld [vmem:[%s2141 + $0x148] sm:$0xf]
      %v3725 = vld [vmem:[%s2141 + $0x150] sm:$0xf]
      %v3726 = vld [vmem:[%s2141 + $0x154] sm:$0xf]
      %v3727 = vld [vmem:[%s2141 + $0x168] sm:$0xf]
      %v3728 = vld [vmem:[%s2141 + $0x16c] sm:$0xf]
      %v3729 = vld [vmem:[%s2141 + $0x174] sm:$0xf]
      %v3730 = vld [vmem:[%s2141 + $0x178] sm:$0xf]
      %v3731 = vld [vmem:[%s2141 + $0x180] sm:$0xf]
      %v3732 = vld [vmem:[%s2141 + $0x184] sm:$0xf]
      %v3733 = vld [vmem:[%s2141 + $0x18c] sm:$0xf]
      %v3734 = vld [vmem:[%s2141 + $0x190] sm:$0xf]
      %v3735 = vld [vmem:[%s2141 + $0x198] sm:$0xf]
      %v3736 = vld [vmem:[%s2141 + $0x19c] sm:$0xf]
      %v3737 = vld [vmem:[%s2141 + $0x1a4] sm:$0xf]
      %v3738 = vld [vmem:[%s2141 + $0x1a8] sm:$0xf]
      %v3739 = vld [vmem:[%s2141 + $0x1b0] sm:$0xf]
      %v3740 = vld [vmem:[%s2141 + $0x1b4] sm:$0xf]
      %v3741 = vld [vmem:[%s2141 + $0x1bc] sm:$0xf]
      %v3742 = vld [vmem:[%s2141 + $0x1c0] sm:$0xf]
      %v3743 = vld [vmem:[%s2141 + $0x1c8] sm:$0xf]
      %v3744 = vld [vmem:[%s2141 + $0x1cc] sm:$0xf]
      %v3745 = vld [vmem:[%s2141 + $0x1e0] sm:$0xf]
      %v3746 = vld [vmem:[%s2141 + $0x1e4] sm:$0xf]
      %v3747 = vld [vmem:[%s2141 + $0x1ec] sm:$0xf]
      %v3748 = vld [vmem:[%s2141 + $0x1f0] sm:$0xf]
      %v3749 = vld [vmem:[%s2141 + $0x1f8] sm:$0xf]
      %v3750 = vld [vmem:[%s2141 + $0x1fc] sm:$0xf]
      %v3751 = vld [vmem:[%s2141 + $0x204] sm:$0xf]
      %v3752 = vld [vmem:[%s2141 + $0x208] sm:$0xf]
      %v3753 = vld [vmem:[%s2141 + $0x210] sm:$0xf]
      %v3754 = vld [vmem:[%s2141 + $0x214] sm:$0xf]
      %v3755 = vld [vmem:[%s2141 + $0x21c] sm:$0xf]
      %v3756 = vld [vmem:[%s2141 + $0x220] sm:$0xf]
      %v3757 = vld [vmem:[%s2141 + $0x228] sm:$0xf]
      %v3758 = vld [vmem:[%s2141 + $0x22c] sm:$0xf]
      %v3759 = vld [vmem:[%s2141 + $0x234] sm:$0xf]
      %v3760 = vld [vmem:[%s2141 + $0x238] sm:$0xf]
      %v3761 = vld [vmem:[%s2141 + $0x240] sm:$0xf]
      %v3762 = vld [vmem:[%s2141 + $0x244] sm:$0xf]
      %v3853 = vunpack.c.l.b16 %v3673
      %v3854 = vunpack.c.l.b16 %v3674
      %v3855 = vunpack.c.l.b16 %v3675
      %v3856 = vunpack.c.l.b16 %v3676
      %v3857 = vunpack.c.l.b16 %v3677
      %v3858 = vunpack.c.l.b16 %v3678
      %v3859 = vunpack.c.l.b16 %v3679
      %v3860 = vunpack.c.l.b16 %v3680
      %v3861 = vunpack.c.l.b16 %v3681
      %v3862 = vunpack.c.l.b16 %v3682
      %v3863 = vunpack.c.l.b16 %v3683
      %v3864 = vunpack.c.l.b16 %v3684
      %v3865 = vunpack.c.l.b16 %v3685
      %v3866 = vunpack.c.l.b16 %v3686
      %v3867 = vunpack.c.l.b16 %v3687
      %v3868 = vunpack.c.l.b16 %v3688
      %v3869 = vunpack.c.l.b16 %v3689
      %v3870 = vunpack.c.l.b16 %v3690
      %v3871 = vunpack.c.l.b16 %v3691
      %v3872 = vunpack.c.l.b16 %v3692
      %v3873 = vunpack.c.l.b16 %v3693
      %v3874 = vunpack.c.l.b16 %v3694
      %v3875 = vunpack.c.l.b16 %v3695
      %v3876 = vunpack.c.l.b16 %v3696
      %v3877 = vunpack.c.l.b16 %v3697
      %v3878 = vunpack.c.l.b16 %v3698
      %v3879 = vunpack.c.l.b16 %v3699
      %v3880 = vunpack.c.l.b16 %v3700
      %v3881 = vunpack.c.l.b16 %v3701
      %v3882 = vunpack.c.l.b16 %v3702
      %v3883 = vunpack.c.l.b16 %v3703
      %v3884 = vunpack.c.l.b16 %v3704
      %v3885 = vunpack.c.l.b16 %v3705
      %v3886 = vunpack.c.l.b16 %v3706
      %v3887 = vunpack.c.l.b16 %v3707
      %v3888 = vunpack.c.l.b16 %v3708
      %v3889 = vunpack.c.l.b16 %v3709
      %v3890 = vunpack.c.l.b16 %v3710
      %v3891 = vunpack.c.l.b16 %v3711
      %v3892 = vunpack.c.l.b16 %v3712
      %v3893 = vunpack.c.l.b16 %v3713
      %v3894 = vunpack.c.l.b16 %v3714
      %v3895 = vunpack.c.l.b16 %v3715
      %v3896 = vunpack.c.l.b16 %v3716
      %v3897 = vunpack.c.l.b16 %v3717
      %v3898 = vunpack.c.l.b16 %v3718
      %v3899 = vunpack.c.l.b16 %v3719
      %v3900 = vunpack.c.l.b16 %v3720
      %v3901 = vunpack.c.l.b16 %v3721
      %v3902 = vunpack.c.l.b16 %v3722
      %v3903 = vunpack.c.l.b16 %v3723
      %v3904 = vunpack.c.l.b16 %v3724
      %v3905 = vunpack.c.l.b16 %v3725
      %v3906 = vunpack.c.l.b16 %v3726
      %v3907 = vunpack.c.l.b16 %v3727
      %v3908 = vunpack.c.l.b16 %v3728
      %v3909 = vunpack.c.l.b16 %v3729
      %v3910 = vunpack.c.l.b16 %v3730
      %v3911 = vunpack.c.l.b16 %v3731
      %v3912 = vunpack.c.l.b16 %v3732
      %v3913 = vunpack.c.l.b16 %v3733
      %v3914 = vunpack.c.l.b16 %v3734
      %v3915 = vunpack.c.l.b16 %v3735
      %v3916 = vunpack.c.l.b16 %v3736
      %v3917 = vunpack.c.l.b16 %v3737
      %v3918 = vunpack.c.l.b16 %v3738
      %v3919 = vunpack.c.l.b16 %v3739
      %v3920 = vunpack.c.l.b16 %v3740
      %v3921 = vunpack.c.l.b16 %v3741
      %v3922 = vunpack.c.l.b16 %v3742
      %v3923 = vunpack.c.l.b16 %v3743
      %v3924 = vunpack.c.l.b16 %v3744
      %v3925 = vunpack.c.l.b16 %v3745
      %v3926 = vunpack.c.l.b16 %v3746
      %v3927 = vunpack.c.l.b16 %v3747
      %v3928 = vunpack.c.l.b16 %v3748
      %v3929 = vunpack.c.l.b16 %v3749
      %v3930 = vunpack.c.l.b16 %v3750
      %v3931 = vunpack.c.l.b16 %v3751
      %v3932 = vunpack.c.l.b16 %v3752
      %v3933 = vunpack.c.l.b16 %v3753
      %v3934 = vunpack.c.l.b16 %v3754
      %v3935 = vunpack.c.l.b16 %v3755
      %v3936 = vunpack.c.l.b16 %v3756
      %v3937 = vunpack.c.l.b16 %v3757
      %v3938 = vunpack.c.l.b16 %v3758
      %v3939 = vunpack.c.l.b16 %v3759
      %v3940 = vunpack.c.l.b16 %v3760
      %v3941 = vunpack.c.l.b16 %v3761
      %v3942 = vunpack.c.l.b16 %v3762
      %v3943 = vpack.c.b16 %v3854, %v3853
      %v3944 = vpack.c.b16 %v3856, %v3855
      %v3945 = vpack.c.b16 %v3858, %v3857
      %v3946 = vpack.c.b16 %v3860, %v3859
      %v3947 = vpack.c.b16 %v3862, %v3861
      %v3948 = vpack.c.b16 %v3864, %v3863
      %v3949 = vpack.c.b16 %v3866, %v3865
      %v3950 = vpack.c.b16 %v3868, %v3867
      %v3951 = vpack.c.b16 %v3870, %v3869
      %v3952 = vpack.c.b16 %v3872, %v3871
      %v3953 = vpack.c.b16 %v3874, %v3873
      %v3954 = vpack.c.b16 %v3876, %v3875
      %v3955 = vpack.c.b16 %v3878, %v3877
      %v3956 = vpack.c.b16 %v3880, %v3879
      %v3957 = vpack.c.b16 %v3882, %v3881
      %v3958 = vpack.c.b16 %v3884, %v3883
      %v3959 = vpack.c.b16 %v3886, %v3885
      %v3960 = vpack.c.b16 %v3888, %v3887
      %v3961 = vpack.c.b16 %v3890, %v3889
      %v3962 = vpack.c.b16 %v3892, %v3891
      %v3963 = vpack.c.b16 %v3894, %v3893
      %v3964 = vpack.c.b16 %v3896, %v3895
      %v3965 = vpack.c.b16 %v3898, %v3897
      %v3966 = vpack.c.b16 %v3900, %v3899
      %v3967 = vpack.c.b16 %v3902, %v3901
      %v3968 = vpack.c.b16 %v3904, %v3903
      %v3969 = vpack.c.b16 %v3906, %v3905
      %v3970 = vpack.c.b16 %v3908, %v3907
      %v3971 = vpack.c.b16 %v3910, %v3909
      %v3972 = vpack.c.b16 %v3912, %v3911
      %v3973 = vpack.c.b16 %v3914, %v3913
      %v3974 = vpack.c.b16 %v3916, %v3915
      %v3975 = vpack.c.b16 %v3918, %v3917
      %v3976 = vpack.c.b16 %v3920, %v3919
      %v3977 = vpack.c.b16 %v3922, %v3921
      %v3978 = vpack.c.b16 %v3924, %v3923
      %v3979 = vpack.c.b16 %v3926, %v3925
      %v3980 = vpack.c.b16 %v3928, %v3927
      %v3981 = vpack.c.b16 %v3930, %v3929
      %v3982 = vpack.c.b16 %v3932, %v3931
      %v3983 = vpack.c.b16 %v3934, %v3933
      %v3984 = vpack.c.b16 %v3936, %v3935
      %v3985 = vpack.c.b16 %v3938, %v3937
      %v3986 = vpack.c.b16 %v3940, %v3939
      %v3987 = vpack.c.b16 %v3942, %v3941
      %3988 = vrot.lane.b32.xlu0 %v3943, 12
      %v3989 = vpop.permute.xlu0 %3988
      %3990 = vrot.lane.b32.xlu0 %v3944, 12
      %v3991 = vpop.permute.xlu0 %3990
      %3992 = vrot.lane.b32.xlu0 %v3945, 12
      %v3993 = vpop.permute.xlu0 %3992
      %3994 = vrot.lane.b32.xlu0 %v3946, 12
      %v3995 = vpop.permute.xlu0 %3994
      %3996 = vrot.lane.b32.xlu0 %v3947, 12
      %v3997 = vpop.permute.xlu0 %3996
      %3998 = vrot.lane.b32.xlu0 %v3948, 12
      %v3999 = vpop.permute.xlu0 %3998
      %4000 = vrot.lane.b32.xlu0 %v3949, 12
      %v4001 = vpop.permute.xlu0 %4000
      %4002 = vrot.lane.b32.xlu0 %v3950, 12
      %v4003 = vpop.permute.xlu0 %4002
      %4004 = vrot.lane.b32.xlu0 %v3951, 12
      %v4005 = vpop.permute.xlu0 %4004
      %4006 = vrot.lane.b32.xlu0 %v3952, 12
      %v4007 = vpop.permute.xlu0 %4006
      %4008 = vrot.lane.b32.xlu0 %v3953, 12
      %v4009 = vpop.permute.xlu0 %4008
      %4010 = vrot.lane.b32.xlu0 %v3954, 12
      %v4011 = vpop.permute.xlu0 %4010
      %4012 = vrot.lane.b32.xlu0 %v3955, 12
      %v4013 = vpop.permute.xlu0 %4012
      %4014 = vrot.lane.b32.xlu0 %v3956, 12
      %v4015 = vpop.permute.xlu0 %4014
      %4016 = vrot.lane.b32.xlu0 %v3957, 12
      %v4017 = vpop.permute.xlu0 %4016
      %4018 = vrot.lane.b32.xlu0 %v3958, 12
      %v4019 = vpop.permute.xlu0 %4018
      %4020 = vrot.lane.b32.xlu0 %v3959, 12
      %v4021 = vpop.permute.xlu0 %4020
      %4022 = vrot.lane.b32.xlu0 %v3960, 12
      %v4023 = vpop.permute.xlu0 %4022
      %4024 = vrot.lane.b32.xlu0 %v3961, 12
      %v4025 = vpop.permute.xlu0 %4024
      %4026 = vrot.lane.b32.xlu0 %v3962, 12
      %v4027 = vpop.permute.xlu0 %4026
      %4028 = vrot.lane.b32.xlu0 %v3963, 12
      %v4029 = vpop.permute.xlu0 %4028
      %4030 = vrot.lane.b32.xlu0 %v3964, 12
      %v4031 = vpop.permute.xlu0 %4030
      %4032 = vrot.lane.b32.xlu0 %v3965, 12
      %v4033 = vpop.permute.xlu0 %4032
      %4034 = vrot.lane.b32.xlu0 %v3966, 12
      %v4035 = vpop.permute.xlu0 %4034
      %4036 = vrot.lane.b32.xlu0 %v3967, 12
      %v4037 = vpop.permute.xlu0 %4036
      %4038 = vrot.lane.b32.xlu0 %v3968, 12
      %v4039 = vpop.permute.xlu0 %4038
      %4040 = vrot.lane.b32.xlu0 %v3969, 12
      %v4041 = vpop.permute.xlu0 %4040
      %4042 = vrot.lane.b32.xlu0 %v3970, 12
      %v4043 = vpop.permute.xlu0 %4042
      %4044 = vrot.lane.b32.xlu0 %v3971, 12
      %v4045 = vpop.permute.xlu0 %4044
      %4046 = vrot.lane.b32.xlu0 %v3972, 12
      %v4047 = vpop.permute.xlu0 %4046
      %4048 = vrot.lane.b32.xlu0 %v3973, 12
      %v4049 = vpop.permute.xlu0 %4048
      %4050 = vrot.lane.b32.xlu0 %v3974, 12
      %v4051 = vpop.permute.xlu0 %4050
      %4052 = vrot.lane.b32.xlu0 %v3975, 12
      %v4053 = vpop.permute.xlu0 %4052
      %4054 = vrot.lane.b32.xlu0 %v3976, 12
      %v4055 = vpop.permute.xlu0 %4054
      %4056 = vrot.lane.b32.xlu0 %v3977, 12
      %v4057 = vpop.permute.xlu0 %4056
      %4058 = vrot.lane.b32.xlu0 %v3978, 12
      %v4059 = vpop.permute.xlu0 %4058
      %4060 = vrot.lane.b32.xlu0 %v3979, 12
      %v4061 = vpop.permute.xlu0 %4060
      %4062 = vrot.lane.b32.xlu0 %v3980, 12
      %v4063 = vpop.permute.xlu0 %4062
      %4064 = vrot.lane.b32.xlu0 %v3981, 12
      %v4065 = vpop.permute.xlu0 %4064
      %4066 = vrot.lane.b32.xlu0 %v3982, 12
      %v4067 = vpop.permute.xlu0 %4066
      %4068 = vrot.lane.b32.xlu0 %v3983, 12
      %v4069 = vpop.permute.xlu0 %4068
      %4070 = vrot.lane.b32.xlu0 %v3984, 12
      %v4071 = vpop.permute.xlu0 %4070
      %4072 = vrot.lane.b32.xlu0 %v3985, 12
      %v4073 = vpop.permute.xlu0 %4072
      %4074 = vrot.lane.b32.xlu0 %v3986, 12
      %v4075 = vpop.permute.xlu0 %4074
      %4076 = vrot.lane.b32.xlu0 %v3987, 12
      %v4077 = vpop.permute.xlu0 %4076
      %vm4123 = vcmask 130144
      %4124 = vst.msk [vmem:[#allocation2] sm:$0xff] %vm4123, %v3989
      %4125 = vst.msk [vmem:[#allocation2 + $0x8] sm:$0xff] %vm4123, %v3991
      %4126 = vst.msk [vmem:[#allocation2 + $0x10] sm:$0xff] %vm4123, %v3993
      %4127 = vst.msk [vmem:[#allocation2 + $0x18] sm:$0xff] %vm4123, %v3995
      %4128 = vst.msk [vmem:[#allocation2 + $0x20] sm:$0xff] %vm4123, %v3997
      %4129 = vst.msk [vmem:[#allocation2 + $0x28] sm:$0xff] %vm4123, %v3999
      %4130 = vst.msk [vmem:[#allocation2 + $0x30] sm:$0xff] %vm4123, %v4001
      %4131 = vst.msk [vmem:[#allocation2 + $0x38] sm:$0xff] %vm4123, %v4003
      %4132 = vst.msk [vmem:[#allocation2 + $0x40] sm:$0xff] %vm4123, %v4005
      %4133 = vst.msk [vmem:[#allocation2 + $0x48] sm:$0xff] %vm4123, %v4007
      %4134 = vst.msk [vmem:[#allocation2 + $0x50] sm:$0xff] %vm4123, %v4009
      %4135 = vst.msk [vmem:[#allocation2 + $0x58] sm:$0xff] %vm4123, %v4011
      %4136 = vst.msk [vmem:[#allocation2 + $0x60] sm:$0xff] %vm4123, %v4013
      %4137 = vst.msk [vmem:[#allocation2 + $0x68] sm:$0xff] %vm4123, %v4015
      %4138 = vst.msk [vmem:[#allocation2 + $0x70] sm:$0xff] %vm4123, %v4017
      %4139 = vst.msk [vmem:[#allocation2 + $0x78] sm:$0xff] %vm4123, %v4019
      %4140 = vst.msk [vmem:[#allocation2 + $0x80] sm:$0xff] %vm4123, %v4021
      %4141 = vst.msk [vmem:[#allocation2 + $0x88] sm:$0xff] %vm4123, %v4023
      %4142 = vst.msk [vmem:[#allocation2 + $0x90] sm:$0xff] %vm4123, %v4025
      %4143 = vst.msk [vmem:[#allocation2 + $0x98] sm:$0xff] %vm4123, %v4027
      %4144 = vst.msk [vmem:[#allocation2 + $0xa0] sm:$0xff] %vm4123, %v4029
      %4145 = vst.msk [vmem:[#allocation2 + $0xa8] sm:$0xff] %vm4123, %v4031
      %4146 = vst.msk [vmem:[#allocation2 + $0xb0] sm:$0xff] %vm4123, %v4033
      %4147 = vst.msk [vmem:[#allocation2 + $0xb8] sm:$0xff] %vm4123, %v4035
      %4148 = vst.msk [vmem:[#allocation2 + $0xc0] sm:$0xff] %vm4123, %v4037
      %4149 = vst.msk [vmem:[#allocation2 + $0xc8] sm:$0xff] %vm4123, %v4039
      %4150 = vst.msk [vmem:[#allocation2 + $0xd0] sm:$0xff] %vm4123, %v4041
      %4151 = vst.msk [vmem:[#allocation2 + $0xd8] sm:$0xff] %vm4123, %v4043
      %4152 = vst.msk [vmem:[#allocation2 + $0xe0] sm:$0xff] %vm4123, %v4045
      %4153 = vst.msk [vmem:[#allocation2 + $0xe8] sm:$0xff] %vm4123, %v4047
      %4154 = vst.msk [vmem:[#allocation2 + $0xf0] sm:$0xff] %vm4123, %v4049
      %4155 = vst.msk [vmem:[#allocation2 + $0xf8] sm:$0xff] %vm4123, %v4051
      %4156 = vst.msk [vmem:[#allocation2 + $0x100] sm:$0xff] %vm4123, %v4053
      %4157 = vst.msk [vmem:[#allocation2 + $0x108] sm:$0xff] %vm4123, %v4055
      %4158 = vst.msk [vmem:[#allocation2 + $0x110] sm:$0xff] %vm4123, %v4057
      %4159 = vst.msk [vmem:[#allocation2 + $0x118] sm:$0xff] %vm4123, %v4059
      %4160 = vst.msk [vmem:[#allocation2 + $0x120] sm:$0xff] %vm4123, %v4061
      %4161 = vst.msk [vmem:[#allocation2 + $0x128] sm:$0xff] %vm4123, %v4063
      %4162 = vst.msk [vmem:[#allocation2 + $0x130] sm:$0xff] %vm4123, %v4065
      %4163 = vst.msk [vmem:[#allocation2 + $0x138] sm:$0xff] %vm4123, %v4067
      %4164 = vst.msk [vmem:[#allocation2 + $0x140] sm:$0xff] %vm4123, %v4069
      %4165 = vst.msk [vmem:[#allocation2 + $0x148] sm:$0xff] %vm4123, %v4071
      %4166 = vst.msk [vmem:[#allocation2 + $0x150] sm:$0xff] %vm4123, %v4073
      %4167 = vst.msk [vmem:[#allocation2 + $0x158] sm:$0xff] %vm4123, %v4075
      %4168 = vst.msk [vmem:[#allocation2 + $0x160] sm:$0xff] %vm4123, %v4077
      %s4169 = smul.u32 %s194, 30
      %s4170 = sadd.s32 3, %s4169
      %s4171 = smul.addr %s4170, 4
      %s4172 = scalar_lea.vmem %s183, %s4171
      %v4173 = vld [vmem:[%s4172] sm:$0xf]
      %v4174 = vld [vmem:[%s4172 + $0x4] sm:$0xf]
      %v4175 = vld [vmem:[%s4172 + $0x8] sm:$0x1]
      %v4176 = vld [vmem:[%s4172 + $0xc] sm:$0xf]
      %v4177 = vld [vmem:[%s4172 + $0x10] sm:$0xf]
      %v4178 = vld [vmem:[%s4172 + $0x14] sm:$0x1]
      %v4179 = vld [vmem:[%s4172 + $0x18] sm:$0xf]
      %v4180 = vld [vmem:[%s4172 + $0x1c] sm:$0xf]
      %v4181 = vld [vmem:[%s4172 + $0x20] sm:$0x1]
      %v4182 = vld [vmem:[%s4172 + $0x24] sm:$0xf]
      %v4183 = vld [vmem:[%s4172 + $0x28] sm:$0xf]
      %v4184 = vld [vmem:[%s4172 + $0x2c] sm:$0x1]
      %v4185 = vld [vmem:[%s4172 + $0x30] sm:$0xf]
      %v4186 = vld [vmem:[%s4172 + $0x34] sm:$0xf]
      %v4187 = vld [vmem:[%s4172 + $0x38] sm:$0x1]
      %v4188 = vld [vmem:[%s4172 + $0x3c] sm:$0xf]
      %v4189 = vld [vmem:[%s4172 + $0x40] sm:$0xf]
      %v4190 = vld [vmem:[%s4172 + $0x44] sm:$0x1]
      %v4191 = vld [vmem:[%s4172 + $0x48] sm:$0xf]
      %v4192 = vld [vmem:[%s4172 + $0x4c] sm:$0xf]
      %v4193 = vld [vmem:[%s4172 + $0x50] sm:$0x1]
      %v4194 = vld [vmem:[%s4172 + $0x54] sm:$0xf]
      %v4195 = vld [vmem:[%s4172 + $0x58] sm:$0xf]
      %v4196 = vld [vmem:[%s4172 + $0x5c] sm:$0x1]
      %v4197 = vld [vmem:[%s4172 + $0x60] sm:$0xf]
      %v4198 = vld [vmem:[%s4172 + $0x64] sm:$0xf]
      %v4199 = vld [vmem:[%s4172 + $0x68] sm:$0x1]
      %v4200 = vld [vmem:[%s4172 + $0x78] sm:$0xf]
      %v4201 = vld [vmem:[%s4172 + $0x7c] sm:$0xf]
      %v4202 = vld [vmem:[%s4172 + $0x80] sm:$0x1]
      %v4203 = vld [vmem:[%s4172 + $0x84] sm:$0xf]
      %v4204 = vld [vmem:[%s4172 + $0x88] sm:$0xf]
      %v4205 = vld [vmem:[%s4172 + $0x8c] sm:$0x1]
      %v4206 = vld [vmem:[%s4172 + $0x90] sm:$0xf]
      %v4207 = vld [vmem:[%s4172 + $0x94] sm:$0xf]
      %v4208 = vld [vmem:[%s4172 + $0x98] sm:$0x1]
      %v4209 = vld [vmem:[%s4172 + $0x9c] sm:$0xf]
      %v4210 = vld [vmem:[%s4172 + $0xa0] sm:$0xf]
      %v4211 = vld [vmem:[%s4172 + $0xa4] sm:$0x1]
      %v4212 = vld [vmem:[%s4172 + $0xa8] sm:$0xf]
      %v4213 = vld [vmem:[%s4172 + $0xac] sm:$0xf]
      %v4214 = vld [vmem:[%s4172 + $0xb0] sm:$0x1]
      %v4215 = vld [vmem:[%s4172 + $0xb4] sm:$0xf]
      %v4216 = vld [vmem:[%s4172 + $0xb8] sm:$0xf]
      %v4217 = vld [vmem:[%s4172 + $0xbc] sm:$0x1]
      %v4218 = vld [vmem:[%s4172 + $0xc0] sm:$0xf]
      %v4219 = vld [vmem:[%s4172 + $0xc4] sm:$0xf]
      %v4220 = vld [vmem:[%s4172 + $0xc8] sm:$0x1]
      %v4221 = vld [vmem:[%s4172 + $0xcc] sm:$0xf]
      %v4222 = vld [vmem:[%s4172 + $0xd0] sm:$0xf]
      %v4223 = vld [vmem:[%s4172 + $0xd4] sm:$0x1]
      %v4224 = vld [vmem:[%s4172 + $0xd8] sm:$0xf]
      %v4225 = vld [vmem:[%s4172 + $0xdc] sm:$0xf]
      %v4226 = vld [vmem:[%s4172 + $0xe0] sm:$0x1]
      %v4227 = vld [vmem:[%s4172 + $0xf0] sm:$0xf]
      %v4228 = vld [vmem:[%s4172 + $0xf4] sm:$0xf]
      %v4229 = vld [vmem:[%s4172 + $0xf8] sm:$0x1]
      %v4230 = vld [vmem:[%s4172 + $0xfc] sm:$0xf]
      %v4231 = vld [vmem:[%s4172 + $0x100] sm:$0xf]
      %v4232 = vld [vmem:[%s4172 + $0x104] sm:$0x1]
      %v4233 = vld [vmem:[%s4172 + $0x108] sm:$0xf]
      %v4234 = vld [vmem:[%s4172 + $0x10c] sm:$0xf]
      %v4235 = vld [vmem:[%s4172 + $0x110] sm:$0x1]
      %v4236 = vld [vmem:[%s4172 + $0x114] sm:$0xf]
      %v4237 = vld [vmem:[%s4172 + $0x118] sm:$0xf]
      %v4238 = vld [vmem:[%s4172 + $0x11c] sm:$0x1]
      %v4239 = vld [vmem:[%s4172 + $0x120] sm:$0xf]
      %v4240 = vld [vmem:[%s4172 + $0x124] sm:$0xf]
      %v4241 = vld [vmem:[%s4172 + $0x128] sm:$0x1]
      %v4242 = vld [vmem:[%s4172 + $0x12c] sm:$0xf]
      %v4243 = vld [vmem:[%s4172 + $0x130] sm:$0xf]
      %v4244 = vld [vmem:[%s4172 + $0x134] sm:$0x1]
      %v4245 = vld [vmem:[%s4172 + $0x138] sm:$0xf]
      %v4246 = vld [vmem:[%s4172 + $0x13c] sm:$0xf]
      %v4247 = vld [vmem:[%s4172 + $0x140] sm:$0x1]
      %v4248 = vld [vmem:[%s4172 + $0x144] sm:$0xf]
      %v4249 = vld [vmem:[%s4172 + $0x148] sm:$0xf]
      %v4250 = vld [vmem:[%s4172 + $0x14c] sm:$0x1]
      %v4251 = vld [vmem:[%s4172 + $0x150] sm:$0xf]
      %v4252 = vld [vmem:[%s4172 + $0x154] sm:$0xf]
      %v4253 = vld [vmem:[%s4172 + $0x158] sm:$0x1]
      %v4254 = vld [vmem:[%s4172 + $0x168] sm:$0xf]
      %v4255 = vld [vmem:[%s4172 + $0x16c] sm:$0xf]
      %v4256 = vld [vmem:[%s4172 + $0x170] sm:$0x1]
      %v4257 = vld [vmem:[%s4172 + $0x174] sm:$0xf]
      %v4258 = vld [vmem:[%s4172 + $0x178] sm:$0xf]
      %v4259 = vld [vmem:[%s4172 + $0x17c] sm:$0x1]
      %v4260 = vld [vmem:[%s4172 + $0x180] sm:$0xf]
      %v4261 = vld [vmem:[%s4172 + $0x184] sm:$0xf]
      %v4262 = vld [vmem:[%s4172 + $0x188] sm:$0x1]
      %v4263 = vld [vmem:[%s4172 + $0x18c] sm:$0xf]
      %v4264 = vld [vmem:[%s4172 + $0x190] sm:$0xf]
      %v4265 = vld [vmem:[%s4172 + $0x194] sm:$0x1]
      %v4266 = vld [vmem:[%s4172 + $0x198] sm:$0xf]
      %v4267 = vld [vmem:[%s4172 + $0x19c] sm:$0xf]
      %v4268 = vld [vmem:[%s4172 + $0x1a0] sm:$0x1]
      %v4269 = vld [vmem:[%s4172 + $0x1a4] sm:$0xf]
      %v4270 = vld [vmem:[%s4172 + $0x1a8] sm:$0xf]
      %v4271 = vld [vmem:[%s4172 + $0x1ac] sm:$0x1]
      %v4272 = vld [vmem:[%s4172 + $0x1b0] sm:$0xf]
      %v4273 = vld [vmem:[%s4172 + $0x1b4] sm:$0xf]
      %v4274 = vld [vmem:[%s4172 + $0x1b8] sm:$0x1]
      %v4275 = vld [vmem:[%s4172 + $0x1bc] sm:$0xf]
      %v4276 = vld [vmem:[%s4172 + $0x1c0] sm:$0xf]
      %v4277 = vld [vmem:[%s4172 + $0x1c4] sm:$0x1]
      %v4278 = vld [vmem:[%s4172 + $0x1c8] sm:$0xf]
      %v4279 = vld [vmem:[%s4172 + $0x1cc] sm:$0xf]
      %v4280 = vld [vmem:[%s4172 + $0x1d0] sm:$0x1]
      %v4281 = vld [vmem:[%s4172 + $0x1e0] sm:$0xf]
      %v4282 = vld [vmem:[%s4172 + $0x1e4] sm:$0xf]
      %v4283 = vld [vmem:[%s4172 + $0x1e8] sm:$0x1]
      %v4284 = vld [vmem:[%s4172 + $0x1ec] sm:$0xf]
      %v4285 = vld [vmem:[%s4172 + $0x1f0] sm:$0xf]
      %v4286 = vld [vmem:[%s4172 + $0x1f4] sm:$0x1]
      %v4287 = vld [vmem:[%s4172 + $0x1f8] sm:$0xf]
      %v4288 = vld [vmem:[%s4172 + $0x1fc] sm:$0xf]
      %v4289 = vld [vmem:[%s4172 + $0x200] sm:$0x1]
      %v4290 = vld [vmem:[%s4172 + $0x204] sm:$0xf]
      %v4291 = vld [vmem:[%s4172 + $0x208] sm:$0xf]
      %v4292 = vld [vmem:[%s4172 + $0x20c] sm:$0x1]
      %v4293 = vld [vmem:[%s4172 + $0x210] sm:$0xf]
      %v4294 = vld [vmem:[%s4172 + $0x214] sm:$0xf]
      %v4295 = vld [vmem:[%s4172 + $0x218] sm:$0x1]
      %v4296 = vld [vmem:[%s4172 + $0x21c] sm:$0xf]
      %v4297 = vld [vmem:[%s4172 + $0x220] sm:$0xf]
      %v4298 = vld [vmem:[%s4172 + $0x224] sm:$0x1]
      %v4299 = vld [vmem:[%s4172 + $0x228] sm:$0xf]
      %v4300 = vld [vmem:[%s4172 + $0x22c] sm:$0xf]
      %v4301 = vld [vmem:[%s4172 + $0x230] sm:$0x1]
      %v4302 = vld [vmem:[%s4172 + $0x234] sm:$0xf]
      %v4303 = vld [vmem:[%s4172 + $0x238] sm:$0xf]
      %v4304 = vld [vmem:[%s4172 + $0x23c] sm:$0x1]
      %v4305 = vld [vmem:[%s4172 + $0x240] sm:$0xf]
      %v4306 = vld [vmem:[%s4172 + $0x244] sm:$0xf]
      %v4307 = vld [vmem:[%s4172 + $0x248] sm:$0x1]
      %v4309 = vshrl.u32 %v4173, 16
      %v4311 = vrot.slane %v4309, 4
      %v4312 = vshll.u32 %v4173, 16
      %v4314 = vrot.slane %v4312, 5
      %v4315 = vor.u32 %v4311, %v4314
      %v4316 = vrot.slane %v4315, 4
      %v4318 = vshll.u32 %v4174, 16
      %v4320 = vrot.slane %v4318, 5
      %v4321 = vsel %vm337, %v4316, %v4320
      %v4322 = vshrl.u32 %v4174, 16
      %v4324 = vrot.slane %v4322, 4
      %v4325 = vor.u32 %v4324, %v4320
      %v4326 = vrot.slane %v4325, 4
      %v4328 = vshll.u32 %v4175, 16
      %v4330 = vrot.slane %v4328, 5
      %v4331 = vsel %vm337, %v4326, %v4330
      %v4333 = vshrl.u32 %v4176, 16
      %v4335 = vrot.slane %v4333, 4
      %v4336 = vshll.u32 %v4176, 16
      %v4338 = vrot.slane %v4336, 5
      %v4339 = vor.u32 %v4335, %v4338
      %v4340 = vrot.slane %v4339, 4
      %v4342 = vshll.u32 %v4177, 16
      %v4344 = vrot.slane %v4342, 5
      %v4345 = vsel %vm337, %v4340, %v4344
      %v4346 = vshrl.u32 %v4177, 16
      %v4348 = vrot.slane %v4346, 4
      %v4349 = vor.u32 %v4348, %v4344
      %v4350 = vrot.slane %v4349, 4
      %v4352 = vshll.u32 %v4178, 16
      %v4354 = vrot.slane %v4352, 5
      %v4355 = vsel %vm337, %v4350, %v4354
      %v4357 = vshrl.u32 %v4179, 16
      %v4359 = vrot.slane %v4357, 4
      %v4360 = vshll.u32 %v4179, 16
      %v4362 = vrot.slane %v4360, 5
      %v4363 = vor.u32 %v4359, %v4362
      %v4364 = vrot.slane %v4363, 4
      %v4366 = vshll.u32 %v4180, 16
      %v4368 = vrot.slane %v4366, 5
      %v4369 = vsel %vm337, %v4364, %v4368
      %v4370 = vshrl.u32 %v4180, 16
      %v4372 = vrot.slane %v4370, 4
      %v4373 = vor.u32 %v4372, %v4368
      %v4374 = vrot.slane %v4373, 4
      %v4376 = vshll.u32 %v4181, 16
      %v4378 = vrot.slane %v4376, 5
      %v4379 = vsel %vm337, %v4374, %v4378
      %v4381 = vshrl.u32 %v4182, 16
      %v4383 = vrot.slane %v4381, 4
      %v4384 = vshll.u32 %v4182, 16
      %v4386 = vrot.slane %v4384, 5
      %v4387 = vor.u32 %v4383, %v4386
      %v4388 = vrot.slane %v4387, 4
      %v4390 = vshll.u32 %v4183, 16
      %v4392 = vrot.slane %v4390, 5
      %v4393 = vsel %vm337, %v4388, %v4392
      %v4394 = vshrl.u32 %v4183, 16
      %v4396 = vrot.slane %v4394, 4
      %v4397 = vor.u32 %v4396, %v4392
      %v4398 = vrot.slane %v4397, 4
      %v4400 = vshll.u32 %v4184, 16
      %v4402 = vrot.slane %v4400, 5
      %v4403 = vsel %vm337, %v4398, %v4402
      %v4405 = vshrl.u32 %v4185, 16
      %v4407 = vrot.slane %v4405, 4
      %v4408 = vshll.u32 %v4185, 16
      %v4410 = vrot.slane %v4408, 5
      %v4411 = vor.u32 %v4407, %v4410
      %v4412 = vrot.slane %v4411, 4
      %v4414 = vshll.u32 %v4186, 16
      %v4416 = vrot.slane %v4414, 5
      %v4417 = vsel %vm337, %v4412, %v4416
      %v4418 = vshrl.u32 %v4186, 16
      %v4420 = vrot.slane %v4418, 4
      %v4421 = vor.u32 %v4420, %v4416
      %v4422 = vrot.slane %v4421, 4
      %v4424 = vshll.u32 %v4187, 16
      %v4426 = vrot.slane %v4424, 5
      %v4427 = vsel %vm337, %v4422, %v4426
      %v4429 = vshrl.u32 %v4188, 16
      %v4431 = vrot.slane %v4429, 4
      %v4432 = vshll.u32 %v4188, 16
      %v4434 = vrot.slane %v4432, 5
      %v4435 = vor.u32 %v4431, %v4434
      %v4436 = vrot.slane %v4435, 4
      %v4438 = vshll.u32 %v4189, 16
      %v4440 = vrot.slane %v4438, 5
      %v4441 = vsel %vm337, %v4436, %v4440
      %v4442 = vshrl.u32 %v4189, 16
      %v4444 = vrot.slane %v4442, 4
      %v4445 = vor.u32 %v4444, %v4440
      %v4446 = vrot.slane %v4445, 4
      %v4448 = vshll.u32 %v4190, 16
      %v4450 = vrot.slane %v4448, 5
      %v4451 = vsel %vm337, %v4446, %v4450
      %v4453 = vshrl.u32 %v4191, 16
      %v4455 = vrot.slane %v4453, 4
      %v4456 = vshll.u32 %v4191, 16
      %v4458 = vrot.slane %v4456, 5
      %v4459 = vor.u32 %v4455, %v4458
      %v4460 = vrot.slane %v4459, 4
      %v4462 = vshll.u32 %v4192, 16
      %v4464 = vrot.slane %v4462, 5
      %v4465 = vsel %vm337, %v4460, %v4464
      %v4466 = vshrl.u32 %v4192, 16
      %v4468 = vrot.slane %v4466, 4
      %v4469 = vor.u32 %v4468, %v4464
      %v4470 = vrot.slane %v4469, 4
      %v4472 = vshll.u32 %v4193, 16
      %v4474 = vrot.slane %v4472, 5
      %v4475 = vsel %vm337, %v4470, %v4474
      %v4477 = vshrl.u32 %v4194, 16
      %v4479 = vrot.slane %v4477, 4
      %v4480 = vshll.u32 %v4194, 16
      %v4482 = vrot.slane %v4480, 5
      %v4483 = vor.u32 %v4479, %v4482
      %v4484 = vrot.slane %v4483, 4
      %v4486 = vshll.u32 %v4195, 16
      %v4488 = vrot.slane %v4486, 5
      %v4489 = vsel %vm337, %v4484, %v4488
      %v4490 = vshrl.u32 %v4195, 16
      %v4492 = vrot.slane %v4490, 4
      %v4493 = vor.u32 %v4492, %v4488
      %v4494 = vrot.slane %v4493, 4
      %v4496 = vshll.u32 %v4196, 16
      %v4498 = vrot.slane %v4496, 5
      %v4499 = vsel %vm337, %v4494, %v4498
      %v4501 = vshrl.u32 %v4197, 16
      %v4503 = vrot.slane %v4501, 4
      %v4504 = vshll.u32 %v4197, 16
      %v4506 = vrot.slane %v4504, 5
      %v4507 = vor.u32 %v4503, %v4506
      %v4508 = vrot.slane %v4507, 4
      %v4510 = vshll.u32 %v4198, 16
      %v4512 = vrot.slane %v4510, 5
      %v4513 = vsel %vm337, %v4508, %v4512
      %v4514 = vshrl.u32 %v4198, 16
      %v4516 = vrot.slane %v4514, 4
      %v4517 = vor.u32 %v4516, %v4512
      %v4518 = vrot.slane %v4517, 4
      %v4520 = vshll.u32 %v4199, 16
      %v4522 = vrot.slane %v4520, 5
      %v4523 = vsel %vm337, %v4518, %v4522
      %v4525 = vshrl.u32 %v4200, 16
      %v4527 = vrot.slane %v4525, 4
      %v4528 = vshll.u32 %v4200, 16
      %v4530 = vrot.slane %v4528, 5
      %v4531 = vor.u32 %v4527, %v4530
      %v4532 = vrot.slane %v4531, 4
      %v4534 = vshll.u32 %v4201, 16
      %v4536 = vrot.slane %v4534, 5
      %v4537 = vsel %vm337, %v4532, %v4536
      %v4538 = vshrl.u32 %v4201, 16
      %v4540 = vrot.slane %v4538, 4
      %v4541 = vor.u32 %v4540, %v4536
      %v4542 = vrot.slane %v4541, 4
      %v4544 = vshll.u32 %v4202, 16
      %v4546 = vrot.slane %v4544, 5
      %v4547 = vsel %vm337, %v4542, %v4546
      %v4549 = vshrl.u32 %v4203, 16
      %v4551 = vrot.slane %v4549, 4
      %v4552 = vshll.u32 %v4203, 16
      %v4554 = vrot.slane %v4552, 5
      %v4555 = vor.u32 %v4551, %v4554
      %v4556 = vrot.slane %v4555, 4
      %v4558 = vshll.u32 %v4204, 16
      %v4560 = vrot.slane %v4558, 5
      %v4561 = vsel %vm337, %v4556, %v4560
      %v4562 = vshrl.u32 %v4204, 16
      %v4564 = vrot.slane %v4562, 4
      %v4565 = vor.u32 %v4564, %v4560
      %v4566 = vrot.slane %v4565, 4
      %v4568 = vshll.u32 %v4205, 16
      %v4570 = vrot.slane %v4568, 5
      %v4571 = vsel %vm337, %v4566, %v4570
      %v4573 = vshrl.u32 %v4206, 16
      %v4575 = vrot.slane %v4573, 4
      %v4576 = vshll.u32 %v4206, 16
      %v4578 = vrot.slane %v4576, 5
      %v4579 = vor.u32 %v4575, %v4578
      %v4580 = vrot.slane %v4579, 4
      %v4582 = vshll.u32 %v4207, 16
      %v4584 = vrot.slane %v4582, 5
      %v4585 = vsel %vm337, %v4580, %v4584
      %v4586 = vshrl.u32 %v4207, 16
      %v4588 = vrot.slane %v4586, 4
      %v4589 = vor.u32 %v4588, %v4584
      %v4590 = vrot.slane %v4589, 4
      %v4592 = vshll.u32 %v4208, 16
      %v4594 = vrot.slane %v4592, 5
      %v4595 = vsel %vm337, %v4590, %v4594
      %v4597 = vshrl.u32 %v4209, 16
      %v4599 = vrot.slane %v4597, 4
      %v4600 = vshll.u32 %v4209, 16
      %v4602 = vrot.slane %v4600, 5
      %v4603 = vor.u32 %v4599, %v4602
      %v4604 = vrot.slane %v4603, 4
      %v4606 = vshll.u32 %v4210, 16
      %v4608 = vrot.slane %v4606, 5
      %v4609 = vsel %vm337, %v4604, %v4608
      %v4610 = vshrl.u32 %v4210, 16
      %v4612 = vrot.slane %v4610, 4
      %v4613 = vor.u32 %v4612, %v4608
      %v4614 = vrot.slane %v4613, 4
      %v4616 = vshll.u32 %v4211, 16
      %v4618 = vrot.slane %v4616, 5
      %v4619 = vsel %vm337, %v4614, %v4618
      %v4621 = vshrl.u32 %v4212, 16
      %v4623 = vrot.slane %v4621, 4
      %v4624 = vshll.u32 %v4212, 16
      %v4626 = vrot.slane %v4624, 5
      %v4627 = vor.u32 %v4623, %v4626
      %v4628 = vrot.slane %v4627, 4
      %v4630 = vshll.u32 %v4213, 16
      %v4632 = vrot.slane %v4630, 5
      %v4633 = vsel %vm337, %v4628, %v4632
      %v4634 = vshrl.u32 %v4213, 16
      %v4636 = vrot.slane %v4634, 4
      %v4637 = vor.u32 %v4636, %v4632
      %v4638 = vrot.slane %v4637, 4
      %v4640 = vshll.u32 %v4214, 16
      %v4642 = vrot.slane %v4640, 5
      %v4643 = vsel %vm337, %v4638, %v4642
      %v4645 = vshrl.u32 %v4215, 16
      %v4647 = vrot.slane %v4645, 4
      %v4648 = vshll.u32 %v4215, 16
      %v4650 = vrot.slane %v4648, 5
      %v4651 = vor.u32 %v4647, %v4650
      %v4652 = vrot.slane %v4651, 4
      %v4654 = vshll.u32 %v4216, 16
      %v4656 = vrot.slane %v4654, 5
      %v4657 = vsel %vm337, %v4652, %v4656
      %v4658 = vshrl.u32 %v4216, 16
      %v4660 = vrot.slane %v4658, 4
      %v4661 = vor.u32 %v4660, %v4656
      %v4662 = vrot.slane %v4661, 4
      %v4664 = vshll.u32 %v4217, 16
      %v4666 = vrot.slane %v4664, 5
      %v4667 = vsel %vm337, %v4662, %v4666
      %v4669 = vshrl.u32 %v4218, 16
      %v4671 = vrot.slane %v4669, 4
      %v4672 = vshll.u32 %v4218, 16
      %v4674 = vrot.slane %v4672, 5
      %v4675 = vor.u32 %v4671, %v4674
      %v4676 = vrot.slane %v4675, 4
      %v4678 = vshll.u32 %v4219, 16
      %v4680 = vrot.slane %v4678, 5
      %v4681 = vsel %vm337, %v4676, %v4680
      %v4682 = vshrl.u32 %v4219, 16
      %v4684 = vrot.slane %v4682, 4
      %v4685 = vor.u32 %v4684, %v4680
      %v4686 = vrot.slane %v4685, 4
      %v4688 = vshll.u32 %v4220, 16
      %v4690 = vrot.slane %v4688, 5
      %v4691 = vsel %vm337, %v4686, %v4690
      %v4693 = vshrl.u32 %v4221, 16
      %v4695 = vrot.slane %v4693, 4
      %v4696 = vshll.u32 %v4221, 16
      %v4698 = vrot.slane %v4696, 5
      %v4699 = vor.u32 %v4695, %v4698
      %v4700 = vrot.slane %v4699, 4
      %v4702 = vshll.u32 %v4222, 16
      %v4704 = vrot.slane %v4702, 5
      %v4705 = vsel %vm337, %v4700, %v4704
      %v4706 = vshrl.u32 %v4222, 16
      %v4708 = vrot.slane %v4706, 4
      %v4709 = vor.u32 %v4708, %v4704
      %v4710 = vrot.slane %v4709, 4
      %v4712 = vshll.u32 %v4223, 16
      %v4714 = vrot.slane %v4712, 5
      %v4715 = vsel %vm337, %v4710, %v4714
      %v4717 = vshrl.u32 %v4224, 16
      %v4719 = vrot.slane %v4717, 4
      %v4720 = vshll.u32 %v4224, 16
      %v4722 = vrot.slane %v4720, 5
      %v4723 = vor.u32 %v4719, %v4722
      %v4724 = vrot.slane %v4723, 4
      %v4726 = vshll.u32 %v4225, 16
      %v4728 = vrot.slane %v4726, 5
      %v4729 = vsel %vm337, %v4724, %v4728
      %v4730 = vshrl.u32 %v4225, 16
      %v4732 = vrot.slane %v4730, 4
      %v4733 = vor.u32 %v4732, %v4728
      %v4734 = vrot.slane %v4733, 4
      %v4736 = vshll.u32 %v4226, 16
      %v4738 = vrot.slane %v4736, 5
      %v4739 = vsel %vm337, %v4734, %v4738
      %v4741 = vshrl.u32 %v4227, 16
      %v4743 = vrot.slane %v4741, 4
      %v4744 = vshll.u32 %v4227, 16
      %v4746 = vrot.slane %v4744, 5
      %v4747 = vor.u32 %v4743, %v4746
      %v4748 = vrot.slane %v4747, 4
      %v4750 = vshll.u32 %v4228, 16
      %v4752 = vrot.slane %v4750, 5
      %v4753 = vsel %vm337, %v4748, %v4752
      %v4754 = vshrl.u32 %v4228, 16
      %v4756 = vrot.slane %v4754, 4
      %v4757 = vor.u32 %v4756, %v4752
      %v4758 = vrot.slane %v4757, 4
      %v4760 = vshll.u32 %v4229, 16
      %v4762 = vrot.slane %v4760, 5
      %v4763 = vsel %vm337, %v4758, %v4762
      %v4765 = vshrl.u32 %v4230, 16
      %v4767 = vrot.slane %v4765, 4
      %v4768 = vshll.u32 %v4230, 16
      %v4770 = vrot.slane %v4768, 5
      %v4771 = vor.u32 %v4767, %v4770
      %v4772 = vrot.slane %v4771, 4
      %v4774 = vshll.u32 %v4231, 16
      %v4776 = vrot.slane %v4774, 5
      %v4777 = vsel %vm337, %v4772, %v4776
      %v4778 = vshrl.u32 %v4231, 16
      %v4780 = vrot.slane %v4778, 4
      %v4781 = vor.u32 %v4780, %v4776
      %v4782 = vrot.slane %v4781, 4
      %v4784 = vshll.u32 %v4232, 16
      %v4786 = vrot.slane %v4784, 5
      %v4787 = vsel %vm337, %v4782, %v4786
      %v4789 = vshrl.u32 %v4233, 16
      %v4791 = vrot.slane %v4789, 4
      %v4792 = vshll.u32 %v4233, 16
      %v4794 = vrot.slane %v4792, 5
      %v4795 = vor.u32 %v4791, %v4794
      %v4796 = vrot.slane %v4795, 4
      %v4798 = vshll.u32 %v4234, 16
      %v4800 = vrot.slane %v4798, 5
      %v4801 = vsel %vm337, %v4796, %v4800
      %v4802 = vshrl.u32 %v4234, 16
      %v4804 = vrot.slane %v4802, 4
      %v4805 = vor.u32 %v4804, %v4800
      %v4806 = vrot.slane %v4805, 4
      %v4808 = vshll.u32 %v4235, 16
      %v4810 = vrot.slane %v4808, 5
      %v4811 = vsel %vm337, %v4806, %v4810
      %v4813 = vshrl.u32 %v4236, 16
      %v4815 = vrot.slane %v4813, 4
      %v4816 = vshll.u32 %v4236, 16
      %v4818 = vrot.slane %v4816, 5
      %v4819 = vor.u32 %v4815, %v4818
      %v4820 = vrot.slane %v4819, 4
      %v4822 = vshll.u32 %v4237, 16
      %v4824 = vrot.slane %v4822, 5
      %v4825 = vsel %vm337, %v4820, %v4824
      %v4826 = vshrl.u32 %v4237, 16
      %v4828 = vrot.slane %v4826, 4
      %v4829 = vor.u32 %v4828, %v4824
      %v4830 = vrot.slane %v4829, 4
      %v4832 = vshll.u32 %v4238, 16
      %v4834 = vrot.slane %v4832, 5
      %v4835 = vsel %vm337, %v4830, %v4834
      %v4837 = vshrl.u32 %v4239, 16
      %v4839 = vrot.slane %v4837, 4
      %v4840 = vshll.u32 %v4239, 16
      %v4842 = vrot.slane %v4840, 5
      %v4843 = vor.u32 %v4839, %v4842
      %v4844 = vrot.slane %v4843, 4
      %v4846 = vshll.u32 %v4240, 16
      %v4848 = vrot.slane %v4846, 5
      %v4849 = vsel %vm337, %v4844, %v4848
      %v4850 = vshrl.u32 %v4240, 16
      %v4852 = vrot.slane %v4850, 4
      %v4853 = vor.u32 %v4852, %v4848
      %v4854 = vrot.slane %v4853, 4
      %v4856 = vshll.u32 %v4241, 16
      %v4858 = vrot.slane %v4856, 5
      %v4859 = vsel %vm337, %v4854, %v4858
      %v4861 = vshrl.u32 %v4242, 16
      %v4863 = vrot.slane %v4861, 4
      %v4864 = vshll.u32 %v4242, 16
      %v4866 = vrot.slane %v4864, 5
      %v4867 = vor.u32 %v4863, %v4866
      %v4868 = vrot.slane %v4867, 4
      %v4870 = vshll.u32 %v4243, 16
      %v4872 = vrot.slane %v4870, 5
      %v4873 = vsel %vm337, %v4868, %v4872
      %v4874 = vshrl.u32 %v4243, 16
      %v4876 = vrot.slane %v4874, 4
      %v4877 = vor.u32 %v4876, %v4872
      %v4878 = vrot.slane %v4877, 4
      %v4880 = vshll.u32 %v4244, 16
      %v4882 = vrot.slane %v4880, 5
      %v4883 = vsel %vm337, %v4878, %v4882
      %v4885 = vshrl.u32 %v4245, 16
      %v4887 = vrot.slane %v4885, 4
      %v4888 = vshll.u32 %v4245, 16
      %v4890 = vrot.slane %v4888, 5
      %v4891 = vor.u32 %v4887, %v4890
      %v4892 = vrot.slane %v4891, 4
      %v4894 = vshll.u32 %v4246, 16
      %v4896 = vrot.slane %v4894, 5
      %v4897 = vsel %vm337, %v4892, %v4896
      %v4898 = vshrl.u32 %v4246, 16
      %v4900 = vrot.slane %v4898, 4
      %v4901 = vor.u32 %v4900, %v4896
      %v4902 = vrot.slane %v4901, 4
      %v4904 = vshll.u32 %v4247, 16
      %v4906 = vrot.slane %v4904, 5
      %v4907 = vsel %vm337, %v4902, %v4906
      %v4909 = vshrl.u32 %v4248, 16
      %v4911 = vrot.slane %v4909, 4
      %v4912 = vshll.u32 %v4248, 16
      %v4914 = vrot.slane %v4912, 5
      %v4915 = vor.u32 %v4911, %v4914
      %v4916 = vrot.slane %v4915, 4
      %v4918 = vshll.u32 %v4249, 16
      %v4920 = vrot.slane %v4918, 5
      %v4921 = vsel %vm337, %v4916, %v4920
      %v4922 = vshrl.u32 %v4249, 16
      %v4924 = vrot.slane %v4922, 4
      %v4925 = vor.u32 %v4924, %v4920
      %v4926 = vrot.slane %v4925, 4
      %v4928 = vshll.u32 %v4250, 16
      %v4930 = vrot.slane %v4928, 5
      %v4931 = vsel %vm337, %v4926, %v4930
      %v4933 = vshrl.u32 %v4251, 16
      %v4935 = vrot.slane %v4933, 4
      %v4936 = vshll.u32 %v4251, 16
      %v4938 = vrot.slane %v4936, 5
      %v4939 = vor.u32 %v4935, %v4938
      %v4940 = vrot.slane %v4939, 4
      %v4942 = vshll.u32 %v4252, 16
      %v4944 = vrot.slane %v4942, 5
      %v4945 = vsel %vm337, %v4940, %v4944
      %v4946 = vshrl.u32 %v4252, 16
      %v4948 = vrot.slane %v4946, 4
      %v4949 = vor.u32 %v4948, %v4944
      %v4950 = vrot.slane %v4949, 4
      %v4952 = vshll.u32 %v4253, 16
      %v4954 = vrot.slane %v4952, 5
      %v4955 = vsel %vm337, %v4950, %v4954
      %v4957 = vshrl.u32 %v4254, 16
      %v4959 = vrot.slane %v4957, 4
      %v4960 = vshll.u32 %v4254, 16
      %v4962 = vrot.slane %v4960, 5
      %v4963 = vor.u32 %v4959, %v4962
      %v4964 = vrot.slane %v4963, 4
      %v4966 = vshll.u32 %v4255, 16
      %v4968 = vrot.slane %v4966, 5
      %v4969 = vsel %vm337, %v4964, %v4968
      %v4970 = vshrl.u32 %v4255, 16
      %v4972 = vrot.slane %v4970, 4
      %v4973 = vor.u32 %v4972, %v4968
      %v4974 = vrot.slane %v4973, 4
      %v4976 = vshll.u32 %v4256, 16
      %v4978 = vrot.slane %v4976, 5
      %v4979 = vsel %vm337, %v4974, %v4978
      %v4981 = vshrl.u32 %v4257, 16
      %v4983 = vrot.slane %v4981, 4
      %v4984 = vshll.u32 %v4257, 16
      %v4986 = vrot.slane %v4984, 5
      %v4987 = vor.u32 %v4983, %v4986
      %v4988 = vrot.slane %v4987, 4
      %v4990 = vshll.u32 %v4258, 16
      %v4992 = vrot.slane %v4990, 5
      %v4993 = vsel %vm337, %v4988, %v4992
      %v4994 = vshrl.u32 %v4258, 16
      %v4996 = vrot.slane %v4994, 4
      %v4997 = vor.u32 %v4996, %v4992
      %v4998 = vrot.slane %v4997, 4
      %v5000 = vshll.u32 %v4259, 16
      %v5002 = vrot.slane %v5000, 5
      %v5003 = vsel %vm337, %v4998, %v5002
      %v5005 = vshrl.u32 %v4260, 16
      %v5007 = vrot.slane %v5005, 4
      %v5008 = vshll.u32 %v4260, 16
      %v5010 = vrot.slane %v5008, 5
      %v5011 = vor.u32 %v5007, %v5010
      %v5012 = vrot.slane %v5011, 4
      %v5014 = vshll.u32 %v4261, 16
      %v5016 = vrot.slane %v5014, 5
      %v5017 = vsel %vm337, %v5012, %v5016
      %v5018 = vshrl.u32 %v4261, 16
      %v5020 = vrot.slane %v5018, 4
      %v5021 = vor.u32 %v5020, %v5016
      %v5022 = vrot.slane %v5021, 4
      %v5024 = vshll.u32 %v4262, 16
      %v5026 = vrot.slane %v5024, 5
      %v5027 = vsel %vm337, %v5022, %v5026
      %v5029 = vshrl.u32 %v4263, 16
      %v5031 = vrot.slane %v5029, 4
      %v5032 = vshll.u32 %v4263, 16
      %v5034 = vrot.slane %v5032, 5
      %v5035 = vor.u32 %v5031, %v5034
      %v5036 = vrot.slane %v5035, 4
      %v5038 = vshll.u32 %v4264, 16
      %v5040 = vrot.slane %v5038, 5
      %v5041 = vsel %vm337, %v5036, %v5040
      %v5042 = vshrl.u32 %v4264, 16
      %v5044 = vrot.slane %v5042, 4
      %v5045 = vor.u32 %v5044, %v5040
      %v5046 = vrot.slane %v5045, 4
      %v5048 = vshll.u32 %v4265, 16
      %v5050 = vrot.slane %v5048, 5
      %v5051 = vsel %vm337, %v5046, %v5050
      %v5053 = vshrl.u32 %v4266, 16
      %v5055 = vrot.slane %v5053, 4
      %v5056 = vshll.u32 %v4266, 16
      %v5058 = vrot.slane %v5056, 5
      %v5059 = vor.u32 %v5055, %v5058
      %v5060 = vrot.slane %v5059, 4
      %v5062 = vshll.u32 %v4267, 16
      %v5064 = vrot.slane %v5062, 5
      %v5065 = vsel %vm337, %v5060, %v5064
      %v5066 = vshrl.u32 %v4267, 16
      %v5068 = vrot.slane %v5066, 4
      %v5069 = vor.u32 %v5068, %v5064
      %v5070 = vrot.slane %v5069, 4
      %v5072 = vshll.u32 %v4268, 16
      %v5074 = vrot.slane %v5072, 5
      %v5075 = vsel %vm337, %v5070, %v5074
      %v5077 = vshrl.u32 %v4269, 16
      %v5079 = vrot.slane %v5077, 4
      %v5080 = vshll.u32 %v4269, 16
      %v5082 = vrot.slane %v5080, 5
      %v5083 = vor.u32 %v5079, %v5082
      %v5084 = vrot.slane %v5083, 4
      %v5086 = vshll.u32 %v4270, 16
      %v5088 = vrot.slane %v5086, 5
      %v5089 = vsel %vm337, %v5084, %v5088
      %v5090 = vshrl.u32 %v4270, 16
      %v5092 = vrot.slane %v5090, 4
      %v5093 = vor.u32 %v5092, %v5088
      %v5094 = vrot.slane %v5093, 4
      %v5096 = vshll.u32 %v4271, 16
      %v5098 = vrot.slane %v5096, 5
      %v5099 = vsel %vm337, %v5094, %v5098
      %v5101 = vshrl.u32 %v4272, 16
      %v5103 = vrot.slane %v5101, 4
      %v5104 = vshll.u32 %v4272, 16
      %v5106 = vrot.slane %v5104, 5
      %v5107 = vor.u32 %v5103, %v5106
      %v5108 = vrot.slane %v5107, 4
      %v5110 = vshll.u32 %v4273, 16
      %v5112 = vrot.slane %v5110, 5
      %v5113 = vsel %vm337, %v5108, %v5112
      %v5114 = vshrl.u32 %v4273, 16
      %v5116 = vrot.slane %v5114, 4
      %v5117 = vor.u32 %v5116, %v5112
      %v5118 = vrot.slane %v5117, 4
      %v5120 = vshll.u32 %v4274, 16
      %v5122 = vrot.slane %v5120, 5
      %v5123 = vsel %vm337, %v5118, %v5122
      %v5125 = vshrl.u32 %v4275, 16
      %v5127 = vrot.slane %v5125, 4
      %v5128 = vshll.u32 %v4275, 16
      %v5130 = vrot.slane %v5128, 5
      %v5131 = vor.u32 %v5127, %v5130
      %v5132 = vrot.slane %v5131, 4
      %v5134 = vshll.u32 %v4276, 16
      %v5136 = vrot.slane %v5134, 5
      %v5137 = vsel %vm337, %v5132, %v5136
      %v5138 = vshrl.u32 %v4276, 16
      %v5140 = vrot.slane %v5138, 4
      %v5141 = vor.u32 %v5140, %v5136
      %v5142 = vrot.slane %v5141, 4
      %v5144 = vshll.u32 %v4277, 16
      %v5146 = vrot.slane %v5144, 5
      %v5147 = vsel %vm337, %v5142, %v5146
      %v5149 = vshrl.u32 %v4278, 16
      %v5151 = vrot.slane %v5149, 4
      %v5152 = vshll.u32 %v4278, 16
      %v5154 = vrot.slane %v5152, 5
      %v5155 = vor.u32 %v5151, %v5154
      %v5156 = vrot.slane %v5155, 4
      %v5158 = vshll.u32 %v4279, 16
      %v5160 = vrot.slane %v5158, 5
      %v5161 = vsel %vm337, %v5156, %v5160
      %v5162 = vshrl.u32 %v4279, 16
      %v5164 = vrot.slane %v5162, 4
      %v5165 = vor.u32 %v5164, %v5160
      %v5166 = vrot.slane %v5165, 4
      %v5168 = vshll.u32 %v4280, 16
      %v5170 = vrot.slane %v5168, 5
      %v5171 = vsel %vm337, %v5166, %v5170
      %v5173 = vshrl.u32 %v4281, 16
      %v5175 = vrot.slane %v5173, 4
      %v5176 = vshll.u32 %v4281, 16
      %v5178 = vrot.slane %v5176, 5
      %v5179 = vor.u32 %v5175, %v5178
      %v5180 = vrot.slane %v5179, 4
      %v5182 = vshll.u32 %v4282, 16
      %v5184 = vrot.slane %v5182, 5
      %v5185 = vsel %vm337, %v5180, %v5184
      %v5186 = vshrl.u32 %v4282, 16
      %v5188 = vrot.slane %v5186, 4
      %v5189 = vor.u32 %v5188, %v5184
      %v5190 = vrot.slane %v5189, 4
      %v5192 = vshll.u32 %v4283, 16
      %v5194 = vrot.slane %v5192, 5
      %v5195 = vsel %vm337, %v5190, %v5194
      %v5197 = vshrl.u32 %v4284, 16
      %v5199 = vrot.slane %v5197, 4
      %v5200 = vshll.u32 %v4284, 16
      %v5202 = vrot.slane %v5200, 5
      %v5203 = vor.u32 %v5199, %v5202
      %v5204 = vrot.slane %v5203, 4
      %v5206 = vshll.u32 %v4285, 16
      %v5208 = vrot.slane %v5206, 5
      %v5209 = vsel %vm337, %v5204, %v5208
      %v5210 = vshrl.u32 %v4285, 16
      %v5212 = vrot.slane %v5210, 4
      %v5213 = vor.u32 %v5212, %v5208
      %v5214 = vrot.slane %v5213, 4
      %v5216 = vshll.u32 %v4286, 16
      %v5218 = vrot.slane %v5216, 5
      %v5219 = vsel %vm337, %v5214, %v5218
      %v5221 = vshrl.u32 %v4287, 16
      %v5223 = vrot.slane %v5221, 4
      %v5224 = vshll.u32 %v4287, 16
      %v5226 = vrot.slane %v5224, 5
      %v5227 = vor.u32 %v5223, %v5226
      %v5228 = vrot.slane %v5227, 4
      %v5230 = vshll.u32 %v4288, 16
      %v5232 = vrot.slane %v5230, 5
      %v5233 = vsel %vm337, %v5228, %v5232
      %v5234 = vshrl.u32 %v4288, 16
      %v5236 = vrot.slane %v5234, 4
      %v5237 = vor.u32 %v5236, %v5232
      %v5238 = vrot.slane %v5237, 4
      %v5240 = vshll.u32 %v4289, 16
      %v5242 = vrot.slane %v5240, 5
      %v5243 = vsel %vm337, %v5238, %v5242
      %v5245 = vshrl.u32 %v4290, 16
      %v5247 = vrot.slane %v5245, 4
      %v5248 = vshll.u32 %v4290, 16
      %v5250 = vrot.slane %v5248, 5
      %v5251 = vor.u32 %v5247, %v5250
      %v5252 = vrot.slane %v5251, 4
      %v5254 = vshll.u32 %v4291, 16
      %v5256 = vrot.slane %v5254, 5
      %v5257 = vsel %vm337, %v5252, %v5256
      %v5258 = vshrl.u32 %v4291, 16
      %v5260 = vrot.slane %v5258, 4
      %v5261 = vor.u32 %v5260, %v5256
      %v5262 = vrot.slane %v5261, 4
      %v5264 = vshll.u32 %v4292, 16
      %v5266 = vrot.slane %v5264, 5
      %v5267 = vsel %vm337, %v5262, %v5266
      %v5269 = vshrl.u32 %v4293, 16
      %v5271 = vrot.slane %v5269, 4
      %v5272 = vshll.u32 %v4293, 16
      %v5274 = vrot.slane %v5272, 5
      %v5275 = vor.u32 %v5271, %v5274
      %v5276 = vrot.slane %v5275, 4
      %v5278 = vshll.u32 %v4294, 16
      %v5280 = vrot.slane %v5278, 5
      %v5281 = vsel %vm337, %v5276, %v5280
      %v5282 = vshrl.u32 %v4294, 16
      %v5284 = vrot.slane %v5282, 4
      %v5285 = vor.u32 %v5284, %v5280
      %v5286 = vrot.slane %v5285, 4
      %v5288 = vshll.u32 %v4295, 16
      %v5290 = vrot.slane %v5288, 5
      %v5291 = vsel %vm337, %v5286, %v5290
      %v5293 = vshrl.u32 %v4296, 16
      %v5295 = vrot.slane %v5293, 4
      %v5296 = vshll.u32 %v4296, 16
      %v5298 = vrot.slane %v5296, 5
      %v5299 = vor.u32 %v5295, %v5298
      %v5300 = vrot.slane %v5299, 4
      %v5302 = vshll.u32 %v4297, 16
      %v5304 = vrot.slane %v5302, 5
      %v5305 = vsel %vm337, %v5300, %v5304
      %v5306 = vshrl.u32 %v4297, 16
      %v5308 = vrot.slane %v5306, 4
      %v5309 = vor.u32 %v5308, %v5304
      %v5310 = vrot.slane %v5309, 4
      %v5312 = vshll.u32 %v4298, 16
      %v5314 = vrot.slane %v5312, 5
      %v5315 = vsel %vm337, %v5310, %v5314
      %v5317 = vshrl.u32 %v4299, 16
      %v5319 = vrot.slane %v5317, 4
      %v5320 = vshll.u32 %v4299, 16
      %v5322 = vrot.slane %v5320, 5
      %v5323 = vor.u32 %v5319, %v5322
      %v5324 = vrot.slane %v5323, 4
      %v5326 = vshll.u32 %v4300, 16
      %v5328 = vrot.slane %v5326, 5
      %v5329 = vsel %vm337, %v5324, %v5328
      %v5330 = vshrl.u32 %v4300, 16
      %v5332 = vrot.slane %v5330, 4
      %v5333 = vor.u32 %v5332, %v5328
      %v5334 = vrot.slane %v5333, 4
      %v5336 = vshll.u32 %v4301, 16
      %v5338 = vrot.slane %v5336, 5
      %v5339 = vsel %vm337, %v5334, %v5338
      %v5341 = vshrl.u32 %v4302, 16
      %v5343 = vrot.slane %v5341, 4
      %v5344 = vshll.u32 %v4302, 16
      %v5346 = vrot.slane %v5344, 5
      %v5347 = vor.u32 %v5343, %v5346
      %v5348 = vrot.slane %v5347, 4
      %v5350 = vshll.u32 %v4303, 16
      %v5352 = vrot.slane %v5350, 5
      %v5353 = vsel %vm337, %v5348, %v5352
      %v5354 = vshrl.u32 %v4303, 16
      %v5356 = vrot.slane %v5354, 4
      %v5357 = vor.u32 %v5356, %v5352
      %v5358 = vrot.slane %v5357, 4
      %v5360 = vshll.u32 %v4304, 16
      %v5362 = vrot.slane %v5360, 5
      %v5363 = vsel %vm337, %v5358, %v5362
      %v5365 = vshrl.u32 %v4305, 16
      %v5367 = vrot.slane %v5365, 4
      %v5368 = vshll.u32 %v4305, 16
      %v5370 = vrot.slane %v5368, 5
      %v5371 = vor.u32 %v5367, %v5370
      %v5372 = vrot.slane %v5371, 4
      %v5374 = vshll.u32 %v4306, 16
      %v5376 = vrot.slane %v5374, 5
      %v5377 = vsel %vm337, %v5372, %v5376
      %v5378 = vshrl.u32 %v4306, 16
      %v5380 = vrot.slane %v5378, 4
      %v5381 = vor.u32 %v5380, %v5376
      %v5382 = vrot.slane %v5381, 4
      %v5384 = vshll.u32 %v4307, 16
      %v5386 = vrot.slane %v5384, 5
      %v5387 = vsel %vm337, %v5382, %v5386
      %v5388 = vunpack.c.l.b16 %v4321
      %v5389 = vunpack.c.l.b16 %v4331
      %v5390 = vunpack.c.l.b16 %v4345
      %v5391 = vunpack.c.l.b16 %v4355
      %v5392 = vunpack.c.l.b16 %v4369
      %v5393 = vunpack.c.l.b16 %v4379
      %v5394 = vunpack.c.l.b16 %v4393
      %v5395 = vunpack.c.l.b16 %v4403
      %v5396 = vunpack.c.l.b16 %v4417
      %v5397 = vunpack.c.l.b16 %v4427
      %v5398 = vunpack.c.l.b16 %v4441
      %v5399 = vunpack.c.l.b16 %v4451
      %v5400 = vunpack.c.l.b16 %v4465
      %v5401 = vunpack.c.l.b16 %v4475
      %v5402 = vunpack.c.l.b16 %v4489
      %v5403 = vunpack.c.l.b16 %v4499
      %v5404 = vunpack.c.l.b16 %v4513
      %v5405 = vunpack.c.l.b16 %v4523
      %v5406 = vunpack.c.l.b16 %v4537
      %v5407 = vunpack.c.l.b16 %v4547
      %v5408 = vunpack.c.l.b16 %v4561
      %v5409 = vunpack.c.l.b16 %v4571
      %v5410 = vunpack.c.l.b16 %v4585
      %v5411 = vunpack.c.l.b16 %v4595
      %v5412 = vunpack.c.l.b16 %v4609
      %v5413 = vunpack.c.l.b16 %v4619
      %v5414 = vunpack.c.l.b16 %v4633
      %v5415 = vunpack.c.l.b16 %v4643
      %v5416 = vunpack.c.l.b16 %v4657
      %v5417 = vunpack.c.l.b16 %v4667
      %v5418 = vunpack.c.l.b16 %v4681
      %v5419 = vunpack.c.l.b16 %v4691
      %v5420 = vunpack.c.l.b16 %v4705
      %v5421 = vunpack.c.l.b16 %v4715
      %v5422 = vunpack.c.l.b16 %v4729
      %v5423 = vunpack.c.l.b16 %v4739
      %v5424 = vunpack.c.l.b16 %v4753
      %v5425 = vunpack.c.l.b16 %v4763
      %v5426 = vunpack.c.l.b16 %v4777
      %v5427 = vunpack.c.l.b16 %v4787
      %v5428 = vunpack.c.l.b16 %v4801
      %v5429 = vunpack.c.l.b16 %v4811
      %v5430 = vunpack.c.l.b16 %v4825
      %v5431 = vunpack.c.l.b16 %v4835
      %v5432 = vunpack.c.l.b16 %v4849
      %v5433 = vunpack.c.l.b16 %v4859
      %v5434 = vunpack.c.l.b16 %v4873
      %v5435 = vunpack.c.l.b16 %v4883
      %v5436 = vunpack.c.l.b16 %v4897
      %v5437 = vunpack.c.l.b16 %v4907
      %v5438 = vunpack.c.l.b16 %v4921
      %v5439 = vunpack.c.l.b16 %v4931
      %v5440 = vunpack.c.l.b16 %v4945
      %v5441 = vunpack.c.l.b16 %v4955
      %v5442 = vunpack.c.l.b16 %v4969
      %v5443 = vunpack.c.l.b16 %v4979
      %v5444 = vunpack.c.l.b16 %v4993
      %v5445 = vunpack.c.l.b16 %v5003
      %v5446 = vunpack.c.l.b16 %v5017
      %v5447 = vunpack.c.l.b16 %v5027
      %v5448 = vunpack.c.l.b16 %v5041
      %v5449 = vunpack.c.l.b16 %v5051
      %v5450 = vunpack.c.l.b16 %v5065
      %v5451 = vunpack.c.l.b16 %v5075
      %v5452 = vunpack.c.l.b16 %v5089
      %v5453 = vunpack.c.l.b16 %v5099
      %v5454 = vunpack.c.l.b16 %v5113
      %v5455 = vunpack.c.l.b16 %v5123
      %v5456 = vunpack.c.l.b16 %v5137
      %v5457 = vunpack.c.l.b16 %v5147
      %v5458 = vunpack.c.l.b16 %v5161
      %v5459 = vunpack.c.l.b16 %v5171
      %v5460 = vunpack.c.l.b16 %v5185
      %v5461 = vunpack.c.l.b16 %v5195
      %v5462 = vunpack.c.l.b16 %v5209
      %v5463 = vunpack.c.l.b16 %v5219
      %v5464 = vunpack.c.l.b16 %v5233
      %v5465 = vunpack.c.l.b16 %v5243
      %v5466 = vunpack.c.l.b16 %v5257
      %v5467 = vunpack.c.l.b16 %v5267
      %v5468 = vunpack.c.l.b16 %v5281
      %v5469 = vunpack.c.l.b16 %v5291
      %v5470 = vunpack.c.l.b16 %v5305
      %v5471 = vunpack.c.l.b16 %v5315
      %v5472 = vunpack.c.l.b16 %v5329
      %v5473 = vunpack.c.l.b16 %v5339
      %v5474 = vunpack.c.l.b16 %v5353
      %v5475 = vunpack.c.l.b16 %v5363
      %v5476 = vunpack.c.l.b16 %v5377
      %v5477 = vunpack.c.l.b16 %v5387
      %v5478 = vpack.c.b16 %v5389, %v5388
      %v5479 = vpack.c.b16 %v5391, %v5390
      %v5480 = vpack.c.b16 %v5393, %v5392
      %v5481 = vpack.c.b16 %v5395, %v5394
      %v5482 = vpack.c.b16 %v5397, %v5396
      %v5483 = vpack.c.b16 %v5399, %v5398
      %v5484 = vpack.c.b16 %v5401, %v5400
      %v5485 = vpack.c.b16 %v5403, %v5402
      %v5486 = vpack.c.b16 %v5405, %v5404
      %v5487 = vpack.c.b16 %v5407, %v5406
      %v5488 = vpack.c.b16 %v5409, %v5408
      %v5489 = vpack.c.b16 %v5411, %v5410
      %v5490 = vpack.c.b16 %v5413, %v5412
      %v5491 = vpack.c.b16 %v5415, %v5414
      %v5492 = vpack.c.b16 %v5417, %v5416
      %v5493 = vpack.c.b16 %v5419, %v5418
      %v5494 = vpack.c.b16 %v5421, %v5420
      %v5495 = vpack.c.b16 %v5423, %v5422
      %v5496 = vpack.c.b16 %v5425, %v5424
      %v5497 = vpack.c.b16 %v5427, %v5426
      %v5498 = vpack.c.b16 %v5429, %v5428
      %v5499 = vpack.c.b16 %v5431, %v5430
      %v5500 = vpack.c.b16 %v5433, %v5432
      %v5501 = vpack.c.b16 %v5435, %v5434
      %v5502 = vpack.c.b16 %v5437, %v5436
      %v5503 = vpack.c.b16 %v5439, %v5438
      %v5504 = vpack.c.b16 %v5441, %v5440
      %v5505 = vpack.c.b16 %v5443, %v5442
      %v5506 = vpack.c.b16 %v5445, %v5444
      %v5507 = vpack.c.b16 %v5447, %v5446
      %v5508 = vpack.c.b16 %v5449, %v5448
      %v5509 = vpack.c.b16 %v5451, %v5450
      %v5510 = vpack.c.b16 %v5453, %v5452
      %v5511 = vpack.c.b16 %v5455, %v5454
      %v5512 = vpack.c.b16 %v5457, %v5456
      %v5513 = vpack.c.b16 %v5459, %v5458
      %v5514 = vpack.c.b16 %v5461, %v5460
      %v5515 = vpack.c.b16 %v5463, %v5462
      %v5516 = vpack.c.b16 %v5465, %v5464
      %v5517 = vpack.c.b16 %v5467, %v5466
      %v5518 = vpack.c.b16 %v5469, %v5468
      %v5519 = vpack.c.b16 %v5471, %v5470
      %v5520 = vpack.c.b16 %v5473, %v5472
      %v5521 = vpack.c.b16 %v5475, %v5474
      %v5522 = vpack.c.b16 %v5477, %v5476
      %5523 = vrot.lane.b32.xlu0 %v5478, 16
      %v5524 = vpop.permute.xlu0 %5523
      %5525 = vrot.lane.b32.xlu0 %v5479, 16
      %v5526 = vpop.permute.xlu0 %5525
      %5527 = vrot.lane.b32.xlu0 %v5480, 16
      %v5528 = vpop.permute.xlu0 %5527
      %5529 = vrot.lane.b32.xlu0 %v5481, 16
      %v5530 = vpop.permute.xlu0 %5529
      %5531 = vrot.lane.b32.xlu0 %v5482, 16
      %v5532 = vpop.permute.xlu0 %5531
      %5533 = vrot.lane.b32.xlu0 %v5483, 16
      %v5534 = vpop.permute.xlu0 %5533
      %5535 = vrot.lane.b32.xlu0 %v5484, 16
      %v5536 = vpop.permute.xlu0 %5535
      %5537 = vrot.lane.b32.xlu0 %v5485, 16
      %v5538 = vpop.permute.xlu0 %5537
      %5539 = vrot.lane.b32.xlu0 %v5486, 16
      %v5540 = vpop.permute.xlu0 %5539
      %5541 = vrot.lane.b32.xlu0 %v5487, 16
      %v5542 = vpop.permute.xlu0 %5541
      %5543 = vrot.lane.b32.xlu0 %v5488, 16
      %v5544 = vpop.permute.xlu0 %5543
      %5545 = vrot.lane.b32.xlu0 %v5489, 16
      %v5546 = vpop.permute.xlu0 %5545
      %5547 = vrot.lane.b32.xlu0 %v5490, 16
      %v5548 = vpop.permute.xlu0 %5547
      %5549 = vrot.lane.b32.xlu0 %v5491, 16
      %v5550 = vpop.permute.xlu0 %5549
      %5551 = vrot.lane.b32.xlu0 %v5492, 16
      %v5552 = vpop.permute.xlu0 %5551
      %5553 = vrot.lane.b32.xlu0 %v5493, 16
      %v5554 = vpop.permute.xlu0 %5553
      %5555 = vrot.lane.b32.xlu0 %v5494, 16
      %v5556 = vpop.permute.xlu0 %5555
      %5557 = vrot.lane.b32.xlu0 %v5495, 16
      %v5558 = vpop.permute.xlu0 %5557
      %5559 = vrot.lane.b32.xlu0 %v5496, 16
      %v5560 = vpop.permute.xlu0 %5559
      %5561 = vrot.lane.b32.xlu0 %v5497, 16
      %v5562 = vpop.permute.xlu0 %5561
      %5563 = vrot.lane.b32.xlu0 %v5498, 16
      %v5564 = vpop.permute.xlu0 %5563
      %5565 = vrot.lane.b32.xlu0 %v5499, 16
      %v5566 = vpop.permute.xlu0 %5565
      %5567 = vrot.lane.b32.xlu0 %v5500, 16
      %v5568 = vpop.permute.xlu0 %5567
      %5569 = vrot.lane.b32.xlu0 %v5501, 16
      %v5570 = vpop.permute.xlu0 %5569
      %5571 = vrot.lane.b32.xlu0 %v5502, 16
      %v5572 = vpop.permute.xlu0 %5571
      %5573 = vrot.lane.b32.xlu0 %v5503, 16
      %v5574 = vpop.permute.xlu0 %5573
      %5575 = vrot.lane.b32.xlu0 %v5504, 16
      %v5576 = vpop.permute.xlu0 %5575
      %5577 = vrot.lane.b32.xlu0 %v5505, 16
      %v5578 = vpop.permute.xlu0 %5577
      %5579 = vrot.lane.b32.xlu0 %v5506, 16
      %v5580 = vpop.permute.xlu0 %5579
      %5581 = vrot.lane.b32.xlu0 %v5507, 16
      %v5582 = vpop.permute.xlu0 %5581
      %5583 = vrot.lane.b32.xlu0 %v5508, 16
      %v5584 = vpop.permute.xlu0 %5583
      %5585 = vrot.lane.b32.xlu0 %v5509, 16
      %v5586 = vpop.permute.xlu0 %5585
      %5587 = vrot.lane.b32.xlu0 %v5510, 16
      %v5588 = vpop.permute.xlu0 %5587
      %5589 = vrot.lane.b32.xlu0 %v5511, 16
      %v5590 = vpop.permute.xlu0 %5589
      %5591 = vrot.lane.b32.xlu0 %v5512, 16
      %v5592 = vpop.permute.xlu0 %5591
      %5593 = vrot.lane.b32.xlu0 %v5513, 16
      %v5594 = vpop.permute.xlu0 %5593
      %5595 = vrot.lane.b32.xlu0 %v5514, 16
      %v5596 = vpop.permute.xlu0 %5595
      %5597 = vrot.lane.b32.xlu0 %v5515, 16
      %v5598 = vpop.permute.xlu0 %5597
      %5599 = vrot.lane.b32.xlu0 %v5516, 16
      %v5600 = vpop.permute.xlu0 %5599
      %5601 = vrot.lane.b32.xlu0 %v5517, 16
      %v5602 = vpop.permute.xlu0 %5601
      %5603 = vrot.lane.b32.xlu0 %v5518, 16
      %v5604 = vpop.permute.xlu0 %5603
      %5605 = vrot.lane.b32.xlu0 %v5519, 16
      %v5606 = vpop.permute.xlu0 %5605
      %5607 = vrot.lane.b32.xlu0 %v5520, 16
      %v5608 = vpop.permute.xlu0 %5607
      %5609 = vrot.lane.b32.xlu0 %v5521, 16
      %v5610 = vpop.permute.xlu0 %5609
      %5611 = vrot.lane.b32.xlu0 %v5522, 16
      %v5612 = vpop.permute.xlu0 %5611
      %vm5658 = vcmask 162944
      %5659 = vst.msk [vmem:[#allocation2] sm:$0xff] %vm5658, %v5524
      %5660 = vst.msk [vmem:[#allocation2 + $0x8] sm:$0xff] %vm5658, %v5526
      %5661 = vst.msk [vmem:[#allocation2 + $0x10] sm:$0xff] %vm5658, %v5528
      %5662 = vst.msk [vmem:[#allocation2 + $0x18] sm:$0xff] %vm5658, %v5530
      %5663 = vst.msk [vmem:[#allocation2 + $0x20] sm:$0xff] %vm5658, %v5532
      %5664 = vst.msk [vmem:[#allocation2 + $0x28] sm:$0xff] %vm5658, %v5534
      %5665 = vst.msk [vmem:[#allocation2 + $0x30] sm:$0xff] %vm5658, %v5536
      %5666 = vst.msk [vmem:[#allocation2 + $0x38] sm:$0xff] %vm5658, %v5538
      %5667 = vst.msk [vmem:[#allocation2 + $0x40] sm:$0xff] %vm5658, %v5540
      %5668 = vst.msk [vmem:[#allocation2 + $0x48] sm:$0xff] %vm5658, %v5542
      %5669 = vst.msk [vmem:[#allocation2 + $0x50] sm:$0xff] %vm5658, %v5544
      %5670 = vst.msk [vmem:[#allocation2 + $0x58] sm:$0xff] %vm5658, %v5546
      %5671 = vst.msk [vmem:[#allocation2 + $0x60] sm:$0xff] %vm5658, %v5548
      %5672 = vst.msk [vmem:[#allocation2 + $0x68] sm:$0xff] %vm5658, %v5550
      %5673 = vst.msk [vmem:[#allocation2 + $0x70] sm:$0xff] %vm5658, %v5552
      %5674 = vst.msk [vmem:[#allocation2 + $0x78] sm:$0xff] %vm5658, %v5554
      %5675 = vst.msk [vmem:[#allocation2 + $0x80] sm:$0xff] %vm5658, %v5556
      %5676 = vst.msk [vmem:[#allocation2 + $0x88] sm:$0xff] %vm5658, %v5558
      %5677 = vst.msk [vmem:[#allocation2 + $0x90] sm:$0xff] %vm5658, %v5560
      %5678 = vst.msk [vmem:[#allocation2 + $0x98] sm:$0xff] %vm5658, %v5562
      %5679 = vst.msk [vmem:[#allocation2 + $0xa0] sm:$0xff] %vm5658, %v5564
      %5680 = vst.msk [vmem:[#allocation2 + $0xa8] sm:$0xff] %vm5658, %v5566
      %5681 = vst.msk [vmem:[#allocation2 + $0xb0] sm:$0xff] %vm5658, %v5568
      %5682 = vst.msk [vmem:[#allocation2 + $0xb8] sm:$0xff] %vm5658, %v5570
      %5683 = vst.msk [vmem:[#allocation2 + $0xc0] sm:$0xff] %vm5658, %v5572
      %5684 = vst.msk [vmem:[#allocation2 + $0xc8] sm:$0xff] %vm5658, %v5574
      %5685 = vst.msk [vmem:[#allocation2 + $0xd0] sm:$0xff] %vm5658, %v5576
      %5686 = vst.msk [vmem:[#allocation2 + $0xd8] sm:$0xff] %vm5658, %v5578
      %5687 = vst.msk [vmem:[#allocation2 + $0xe0] sm:$0xff] %vm5658, %v5580
      %5688 = vst.msk [vmem:[#allocation2 + $0xe8] sm:$0xff] %vm5658, %v5582
      %5689 = vst.msk [vmem:[#allocation2 + $0xf0] sm:$0xff] %vm5658, %v5584
      %5690 = vst.msk [vmem:[#allocation2 + $0xf8] sm:$0xff] %vm5658, %v5586
      %5691 = vst.msk [vmem:[#allocation2 + $0x100] sm:$0xff] %vm5658, %v5588
      %5692 = vst.msk [vmem:[#allocation2 + $0x108] sm:$0xff] %vm5658, %v5590
      %5693 = vst.msk [vmem:[#allocation2 + $0x110] sm:$0xff] %vm5658, %v5592
      %5694 = vst.msk [vmem:[#allocation2 + $0x118] sm:$0xff] %vm5658, %v5594
      %5695 = vst.msk [vmem:[#allocation2 + $0x120] sm:$0xff] %vm5658, %v5596
      %5696 = vst.msk [vmem:[#allocation2 + $0x128] sm:$0xff] %vm5658, %v5598
      %5697 = vst.msk [vmem:[#allocation2 + $0x130] sm:$0xff] %vm5658, %v5600
      %5698 = vst.msk [vmem:[#allocation2 + $0x138] sm:$0xff] %vm5658, %v5602
      %5699 = vst.msk [vmem:[#allocation2 + $0x140] sm:$0xff] %vm5658, %v5604
      %5700 = vst.msk [vmem:[#allocation2 + $0x148] sm:$0xff] %vm5658, %v5606
      %5701 = vst.msk [vmem:[#allocation2 + $0x150] sm:$0xff] %vm5658, %v5608
      %5702 = vst.msk [vmem:[#allocation2 + $0x158] sm:$0xff] %vm5658, %v5610
      %5703 = vst.msk [vmem:[#allocation2 + $0x160] sm:$0xff] %vm5658, %v5612
      %v5704 = vld [vmem:[%s4172] sm:$0xf]
      %v5705 = vld [vmem:[%s4172 + $0x4] sm:$0xf]
      %v5706 = vld [vmem:[%s4172 + $0xc] sm:$0xf]
      %v5707 = vld [vmem:[%s4172 + $0x10] sm:$0xf]
      %v5708 = vld [vmem:[%s4172 + $0x18] sm:$0xf]
      %v5709 = vld [vmem:[%s4172 + $0x1c] sm:$0xf]
      %v5710 = vld [vmem:[%s4172 + $0x24] sm:$0xf]
      %v5711 = vld [vmem:[%s4172 + $0x28] sm:$0xf]
      %v5712 = vld [vmem:[%s4172 + $0x30] sm:$0xf]
      %v5713 = vld [vmem:[%s4172 + $0x34] sm:$0xf]
      %v5714 = vld [vmem:[%s4172 + $0x3c] sm:$0xf]
      %v5715 = vld [vmem:[%s4172 + $0x40] sm:$0xf]
      %v5716 = vld [vmem:[%s4172 + $0x48] sm:$0xf]
      %v5717 = vld [vmem:[%s4172 + $0x4c] sm:$0xf]
      %v5718 = vld [vmem:[%s4172 + $0x54] sm:$0xf]
      %v5719 = vld [vmem:[%s4172 + $0x58] sm:$0xf]
      %v5720 = vld [vmem:[%s4172 + $0x60] sm:$0xf]
      %v5721 = vld [vmem:[%s4172 + $0x64] sm:$0xf]
      %v5722 = vld [vmem:[%s4172 + $0x78] sm:$0xf]
      %v5723 = vld [vmem:[%s4172 + $0x7c] sm:$0xf]
      %v5724 = vld [vmem:[%s4172 + $0x84] sm:$0xf]
      %v5725 = vld [vmem:[%s4172 + $0x88] sm:$0xf]
      %v5726 = vld [vmem:[%s4172 + $0x90] sm:$0xf]
      %v5727 = vld [vmem:[%s4172 + $0x94] sm:$0xf]
      %v5728 = vld [vmem:[%s4172 + $0x9c] sm:$0xf]
      %v5729 = vld [vmem:[%s4172 + $0xa0] sm:$0xf]
      %v5730 = vld [vmem:[%s4172 + $0xa8] sm:$0xf]
      %v5731 = vld [vmem:[%s4172 + $0xac] sm:$0xf]
      %v5732 = vld [vmem:[%s4172 + $0xb4] sm:$0xf]
      %v5733 = vld [vmem:[%s4172 + $0xb8] sm:$0xf]
      %v5734 = vld [vmem:[%s4172 + $0xc0] sm:$0xf]
      %v5735 = vld [vmem:[%s4172 + $0xc4] sm:$0xf]
      %v5736 = vld [vmem:[%s4172 + $0xcc] sm:$0xf]
      %v5737 = vld [vmem:[%s4172 + $0xd0] sm:$0xf]
      %v5738 = vld [vmem:[%s4172 + $0xd8] sm:$0xf]
      %v5739 = vld [vmem:[%s4172 + $0xdc] sm:$0xf]
      %v5740 = vld [vmem:[%s4172 + $0xf0] sm:$0xf]
      %v5741 = vld [vmem:[%s4172 + $0xf4] sm:$0xf]
      %v5742 = vld [vmem:[%s4172 + $0xfc] sm:$0xf]
      %v5743 = vld [vmem:[%s4172 + $0x100] sm:$0xf]
      %v5744 = vld [vmem:[%s4172 + $0x108] sm:$0xf]
      %v5745 = vld [vmem:[%s4172 + $0x10c] sm:$0xf]
      %v5746 = vld [vmem:[%s4172 + $0x114] sm:$0xf]
      %v5747 = vld [vmem:[%s4172 + $0x118] sm:$0xf]
      %v5748 = vld [vmem:[%s4172 + $0x120] sm:$0xf]
      %v5749 = vld [vmem:[%s4172 + $0x124] sm:$0xf]
      %v5750 = vld [vmem:[%s4172 + $0x12c] sm:$0xf]
      %v5751 = vld [vmem:[%s4172 + $0x130] sm:$0xf]
      %v5752 = vld [vmem:[%s4172 + $0x138] sm:$0xf]
      %v5753 = vld [vmem:[%s4172 + $0x13c] sm:$0xf]
      %v5754 = vld [vmem:[%s4172 + $0x144] sm:$0xf]
      %v5755 = vld [vmem:[%s4172 + $0x148] sm:$0xf]
      %v5756 = vld [vmem:[%s4172 + $0x150] sm:$0xf]
      %v5757 = vld [vmem:[%s4172 + $0x154] sm:$0xf]
      %v5758 = vld [vmem:[%s4172 + $0x168] sm:$0xf]
      %v5759 = vld [vmem:[%s4172 + $0x16c] sm:$0xf]
      %v5760 = vld [vmem:[%s4172 + $0x174] sm:$0xf]
      %v5761 = vld [vmem:[%s4172 + $0x178] sm:$0xf]
      %v5762 = vld [vmem:[%s4172 + $0x180] sm:$0xf]
      %v5763 = vld [vmem:[%s4172 + $0x184] sm:$0xf]
      %v5764 = vld [vmem:[%s4172 + $0x18c] sm:$0xf]
      %v5765 = vld [vmem:[%s4172 + $0x190] sm:$0xf]
      %v5766 = vld [vmem:[%s4172 + $0x198] sm:$0xf]
      %v5767 = vld [vmem:[%s4172 + $0x19c] sm:$0xf]
      %v5768 = vld [vmem:[%s4172 + $0x1a4] sm:$0xf]
      %v5769 = vld [vmem:[%s4172 + $0x1a8] sm:$0xf]
      %v5770 = vld [vmem:[%s4172 + $0x1b0] sm:$0xf]
      %v5771 = vld [vmem:[%s4172 + $0x1b4] sm:$0xf]
      %v5772 = vld [vmem:[%s4172 + $0x1bc] sm:$0xf]
      %v5773 = vld [vmem:[%s4172 + $0x1c0] sm:$0xf]
      %v5774 = vld [vmem:[%s4172 + $0x1c8] sm:$0xf]
      %v5775 = vld [vmem:[%s4172 + $0x1cc] sm:$0xf]
      %v5776 = vld [vmem:[%s4172 + $0x1e0] sm:$0xf]
      %v5777 = vld [vmem:[%s4172 + $0x1e4] sm:$0xf]
      %v5778 = vld [vmem:[%s4172 + $0x1ec] sm:$0xf]
      %v5779 = vld [vmem:[%s4172 + $0x1f0] sm:$0xf]
      %v5780 = vld [vmem:[%s4172 + $0x1f8] sm:$0xf]
      %v5781 = vld [vmem:[%s4172 + $0x1fc] sm:$0xf]
      %v5782 = vld [vmem:[%s4172 + $0x204] sm:$0xf]
      %v5783 = vld [vmem:[%s4172 + $0x208] sm:$0xf]
      %v5784 = vld [vmem:[%s4172 + $0x210] sm:$0xf]
      %v5785 = vld [vmem:[%s4172 + $0x214] sm:$0xf]
      %v5786 = vld [vmem:[%s4172 + $0x21c] sm:$0xf]
      %v5787 = vld [vmem:[%s4172 + $0x220] sm:$0xf]
      %v5788 = vld [vmem:[%s4172 + $0x228] sm:$0xf]
      %v5789 = vld [vmem:[%s4172 + $0x22c] sm:$0xf]
      %v5790 = vld [vmem:[%s4172 + $0x234] sm:$0xf]
      %v5791 = vld [vmem:[%s4172 + $0x238] sm:$0xf]
      %v5792 = vld [vmem:[%s4172 + $0x240] sm:$0xf]
      %v5793 = vld [vmem:[%s4172 + $0x244] sm:$0xf]
      %v5884 = vunpack.c.l.b16 %v5704
      %v5885 = vunpack.c.l.b16 %v5705
      %v5886 = vunpack.c.l.b16 %v5706
      %v5887 = vunpack.c.l.b16 %v5707
      %v5888 = vunpack.c.l.b16 %v5708
      %v5889 = vunpack.c.l.b16 %v5709
      %v5890 = vunpack.c.l.b16 %v5710
      %v5891 = vunpack.c.l.b16 %v5711
      %v5892 = vunpack.c.l.b16 %v5712
      %v5893 = vunpack.c.l.b16 %v5713
      %v5894 = vunpack.c.l.b16 %v5714
      %v5895 = vunpack.c.l.b16 %v5715
      %v5896 = vunpack.c.l.b16 %v5716
      %v5897 = vunpack.c.l.b16 %v5717
      %v5898 = vunpack.c.l.b16 %v5718
      %v5899 = vunpack.c.l.b16 %v5719
      %v5900 = vunpack.c.l.b16 %v5720
      %v5901 = vunpack.c.l.b16 %v5721
      %v5902 = vunpack.c.l.b16 %v5722
      %v5903 = vunpack.c.l.b16 %v5723
      %v5904 = vunpack.c.l.b16 %v5724
      %v5905 = vunpack.c.l.b16 %v5725
      %v5906 = vunpack.c.l.b16 %v5726
      %v5907 = vunpack.c.l.b16 %v5727
      %v5908 = vunpack.c.l.b16 %v5728
      %v5909 = vunpack.c.l.b16 %v5729
      %v5910 = vunpack.c.l.b16 %v5730
      %v5911 = vunpack.c.l.b16 %v5731
      %v5912 = vunpack.c.l.b16 %v5732
      %v5913 = vunpack.c.l.b16 %v5733
      %v5914 = vunpack.c.l.b16 %v5734
      %v5915 = vunpack.c.l.b16 %v5735
      %v5916 = vunpack.c.l.b16 %v5736
      %v5917 = vunpack.c.l.b16 %v5737
      %v5918 = vunpack.c.l.b16 %v5738
      %v5919 = vunpack.c.l.b16 %v5739
      %v5920 = vunpack.c.l.b16 %v5740
      %v5921 = vunpack.c.l.b16 %v5741
      %v5922 = vunpack.c.l.b16 %v5742
      %v5923 = vunpack.c.l.b16 %v5743
      %v5924 = vunpack.c.l.b16 %v5744
      %v5925 = vunpack.c.l.b16 %v5745
      %v5926 = vunpack.c.l.b16 %v5746
      %v5927 = vunpack.c.l.b16 %v5747
      %v5928 = vunpack.c.l.b16 %v5748
      %v5929 = vunpack.c.l.b16 %v5749
      %v5930 = vunpack.c.l.b16 %v5750
      %v5931 = vunpack.c.l.b16 %v5751
      %v5932 = vunpack.c.l.b16 %v5752
      %v5933 = vunpack.c.l.b16 %v5753
      %v5934 = vunpack.c.l.b16 %v5754
      %v5935 = vunpack.c.l.b16 %v5755
      %v5936 = vunpack.c.l.b16 %v5756
      %v5937 = vunpack.c.l.b16 %v5757
      %v5938 = vunpack.c.l.b16 %v5758
      %v5939 = vunpack.c.l.b16 %v5759
      %v5940 = vunpack.c.l.b16 %v5760
      %v5941 = vunpack.c.l.b16 %v5761
      %v5942 = vunpack.c.l.b16 %v5762
      %v5943 = vunpack.c.l.b16 %v5763
      %v5944 = vunpack.c.l.b16 %v5764
      %v5945 = vunpack.c.l.b16 %v5765
      %v5946 = vunpack.c.l.b16 %v5766
      %v5947 = vunpack.c.l.b16 %v5767
      %v5948 = vunpack.c.l.b16 %v5768
      %v5949 = vunpack.c.l.b16 %v5769
      %v5950 = vunpack.c.l.b16 %v5770
      %v5951 = vunpack.c.l.b16 %v5771
      %v5952 = vunpack.c.l.b16 %v5772
      %v5953 = vunpack.c.l.b16 %v5773
      %v5954 = vunpack.c.l.b16 %v5774
      %v5955 = vunpack.c.l.b16 %v5775
      %v5956 = vunpack.c.l.b16 %v5776
      %v5957 = vunpack.c.l.b16 %v5777
      %v5958 = vunpack.c.l.b16 %v5778
      %v5959 = vunpack.c.l.b16 %v5779
      %v5960 = vunpack.c.l.b16 %v5780
      %v5961 = vunpack.c.l.b16 %v5781
      %v5962 = vunpack.c.l.b16 %v5782
      %v5963 = vunpack.c.l.b16 %v5783
      %v5964 = vunpack.c.l.b16 %v5784
      %v5965 = vunpack.c.l.b16 %v5785
      %v5966 = vunpack.c.l.b16 %v5786
      %v5967 = vunpack.c.l.b16 %v5787
      %v5968 = vunpack.c.l.b16 %v5788
      %v5969 = vunpack.c.l.b16 %v5789
      %v5970 = vunpack.c.l.b16 %v5790
      %v5971 = vunpack.c.l.b16 %v5791
      %v5972 = vunpack.c.l.b16 %v5792
      %v5973 = vunpack.c.l.b16 %v5793
      %v5974 = vpack.c.b16 %v5885, %v5884
      %v5975 = vpack.c.b16 %v5887, %v5886
      %v5976 = vpack.c.b16 %v5889, %v5888
      %v5977 = vpack.c.b16 %v5891, %v5890
      %v5978 = vpack.c.b16 %v5893, %v5892
      %v5979 = vpack.c.b16 %v5895, %v5894
      %v5980 = vpack.c.b16 %v5897, %v5896
      %v5981 = vpack.c.b16 %v5899, %v5898
      %v5982 = vpack.c.b16 %v5901, %v5900
      %v5983 = vpack.c.b16 %v5903, %v5902
      %v5984 = vpack.c.b16 %v5905, %v5904
      %v5985 = vpack.c.b16 %v5907, %v5906
      %v5986 = vpack.c.b16 %v5909, %v5908
      %v5987 = vpack.c.b16 %v5911, %v5910
      %v5988 = vpack.c.b16 %v5913, %v5912
      %v5989 = vpack.c.b16 %v5915, %v5914
      %v5990 = vpack.c.b16 %v5917, %v5916
      %v5991 = vpack.c.b16 %v5919, %v5918
      %v5992 = vpack.c.b16 %v5921, %v5920
      %v5993 = vpack.c.b16 %v5923, %v5922
      %v5994 = vpack.c.b16 %v5925, %v5924
      %v5995 = vpack.c.b16 %v5927, %v5926
      %v5996 = vpack.c.b16 %v5929, %v5928
      %v5997 = vpack.c.b16 %v5931, %v5930
      %v5998 = vpack.c.b16 %v5933, %v5932
      %v5999 = vpack.c.b16 %v5935, %v5934
      %v6000 = vpack.c.b16 %v5937, %v5936
      %v6001 = vpack.c.b16 %v5939, %v5938
      %v6002 = vpack.c.b16 %v5941, %v5940
      %v6003 = vpack.c.b16 %v5943, %v5942
      %v6004 = vpack.c.b16 %v5945, %v5944
      %v6005 = vpack.c.b16 %v5947, %v5946
      %v6006 = vpack.c.b16 %v5949, %v5948
      %v6007 = vpack.c.b16 %v5951, %v5950
      %v6008 = vpack.c.b16 %v5953, %v5952
      %v6009 = vpack.c.b16 %v5955, %v5954
      %v6010 = vpack.c.b16 %v5957, %v5956
      %v6011 = vpack.c.b16 %v5959, %v5958
      %v6012 = vpack.c.b16 %v5961, %v5960
      %v6013 = vpack.c.b16 %v5963, %v5962
      %v6014 = vpack.c.b16 %v5965, %v5964
      %v6015 = vpack.c.b16 %v5967, %v5966
      %v6016 = vpack.c.b16 %v5969, %v5968
      %v6017 = vpack.c.b16 %v5971, %v5970
      %v6018 = vpack.c.b16 %v5973, %v5972
      %6019 = vrot.lane.b32.xlu0 %v5974, 20
      %v6020 = vpop.permute.xlu0 %6019
      %6021 = vrot.lane.b32.xlu0 %v5975, 20
      %v6022 = vpop.permute.xlu0 %6021
      %6023 = vrot.lane.b32.xlu0 %v5976, 20
      %v6024 = vpop.permute.xlu0 %6023
      %6025 = vrot.lane.b32.xlu0 %v5977, 20
      %v6026 = vpop.permute.xlu0 %6025
      %6027 = vrot.lane.b32.xlu0 %v5978, 20
      %v6028 = vpop.permute.xlu0 %6027
      %6029 = vrot.lane.b32.xlu0 %v5979, 20
      %v6030 = vpop.permute.xlu0 %6029
      %6031 = vrot.lane.b32.xlu0 %v5980, 20
      %v6032 = vpop.permute.xlu0 %6031
      %6033 = vrot.lane.b32.xlu0 %v5981, 20
      %v6034 = vpop.permute.xlu0 %6033
      %6035 = vrot.lane.b32.xlu0 %v5982, 20
      %v6036 = vpop.permute.xlu0 %6035
      %6037 = vrot.lane.b32.xlu0 %v5983, 20
      %v6038 = vpop.permute.xlu0 %6037
      %6039 = vrot.lane.b32.xlu0 %v5984, 20
      %v6040 = vpop.permute.xlu0 %6039
      %6041 = vrot.lane.b32.xlu0 %v5985, 20
      %v6042 = vpop.permute.xlu0 %6041
      %6043 = vrot.lane.b32.xlu0 %v5986, 20
      %v6044 = vpop.permute.xlu0 %6043
      %6045 = vrot.lane.b32.xlu0 %v5987, 20
      %v6046 = vpop.permute.xlu0 %6045
      %6047 = vrot.lane.b32.xlu0 %v5988, 20
      %v6048 = vpop.permute.xlu0 %6047
      %6049 = vrot.lane.b32.xlu0 %v5989, 20
      %v6050 = vpop.permute.xlu0 %6049
      %6051 = vrot.lane.b32.xlu0 %v5990, 20
      %v6052 = vpop.permute.xlu0 %6051
      %6053 = vrot.lane.b32.xlu0 %v5991, 20
      %v6054 = vpop.permute.xlu0 %6053
      %6055 = vrot.lane.b32.xlu0 %v5992, 20
      %v6056 = vpop.permute.xlu0 %6055
      %6057 = vrot.lane.b32.xlu0 %v5993, 20
      %v6058 = vpop.permute.xlu0 %6057
      %6059 = vrot.lane.b32.xlu0 %v5994, 20
      %v6060 = vpop.permute.xlu0 %6059
      %6061 = vrot.lane.b32.xlu0 %v5995, 20
      %v6062 = vpop.permute.xlu0 %6061
      %6063 = vrot.lane.b32.xlu0 %v5996, 20
      %v6064 = vpop.permute.xlu0 %6063
      %6065 = vrot.lane.b32.xlu0 %v5997, 20
      %v6066 = vpop.permute.xlu0 %6065
      %6067 = vrot.lane.b32.xlu0 %v5998, 20
      %v6068 = vpop.permute.xlu0 %6067
      %6069 = vrot.lane.b32.xlu0 %v5999, 20
      %v6070 = vpop.permute.xlu0 %6069
      %6071 = vrot.lane.b32.xlu0 %v6000, 20
      %v6072 = vpop.permute.xlu0 %6071
      %6073 = vrot.lane.b32.xlu0 %v6001, 20
      %v6074 = vpop.permute.xlu0 %6073
      %6075 = vrot.lane.b32.xlu0 %v6002, 20
      %v6076 = vpop.permute.xlu0 %6075
      %6077 = vrot.lane.b32.xlu0 %v6003, 20
      %v6078 = vpop.permute.xlu0 %6077
      %6079 = vrot.lane.b32.xlu0 %v6004, 20
      %v6080 = vpop.permute.xlu0 %6079
      %6081 = vrot.lane.b32.xlu0 %v6005, 20
      %v6082 = vpop.permute.xlu0 %6081
      %6083 = vrot.lane.b32.xlu0 %v6006, 20
      %v6084 = vpop.permute.xlu0 %6083
      %6085 = vrot.lane.b32.xlu0 %v6007, 20
      %v6086 = vpop.permute.xlu0 %6085
      %6087 = vrot.lane.b32.xlu0 %v6008, 20
      %v6088 = vpop.permute.xlu0 %6087
      %6089 = vrot.lane.b32.xlu0 %v6009, 20
      %v6090 = vpop.permute.xlu0 %6089
      %6091 = vrot.lane.b32.xlu0 %v6010, 20
      %v6092 = vpop.permute.xlu0 %6091
      %6093 = vrot.lane.b32.xlu0 %v6011, 20
      %v6094 = vpop.permute.xlu0 %6093
      %6095 = vrot.lane.b32.xlu0 %v6012, 20
      %v6096 = vpop.permute.xlu0 %6095
      %6097 = vrot.lane.b32.xlu0 %v6013, 20
      %v6098 = vpop.permute.xlu0 %6097
      %6099 = vrot.lane.b32.xlu0 %v6014, 20
      %v6100 = vpop.permute.xlu0 %6099
      %6101 = vrot.lane.b32.xlu0 %v6015, 20
      %v6102 = vpop.permute.xlu0 %6101
      %6103 = vrot.lane.b32.xlu0 %v6016, 20
      %v6104 = vpop.permute.xlu0 %6103
      %6105 = vrot.lane.b32.xlu0 %v6017, 20
      %v6106 = vpop.permute.xlu0 %6105
      %6107 = vrot.lane.b32.xlu0 %v6018, 20
      %v6108 = vpop.permute.xlu0 %6107
      %vm6154 = vcmask 195744
      %6155 = vst.msk [vmem:[#allocation2] sm:$0xff] %vm6154, %v6020
      %6156 = vst.msk [vmem:[#allocation2 + $0x8] sm:$0xff] %vm6154, %v6022
      %6157 = vst.msk [vmem:[#allocation2 + $0x10] sm:$0xff] %vm6154, %v6024
      %6158 = vst.msk [vmem:[#allocation2 + $0x18] sm:$0xff] %vm6154, %v6026
      %6159 = vst.msk [vmem:[#allocation2 + $0x20] sm:$0xff] %vm6154, %v6028
      %6160 = vst.msk [vmem:[#allocation2 + $0x28] sm:$0xff] %vm6154, %v6030
      %6161 = vst.msk [vmem:[#allocation2 + $0x30] sm:$0xff] %vm6154, %v6032
      %6162 = vst.msk [vmem:[#allocation2 + $0x38] sm:$0xff] %vm6154, %v6034
      %6163 = vst.msk [vmem:[#allocation2 + $0x40] sm:$0xff] %vm6154, %v6036
      %6164 = vst.msk [vmem:[#allocation2 + $0x48] sm:$0xff] %vm6154, %v6038
      %6165 = vst.msk [vmem:[#allocation2 + $0x50] sm:$0xff] %vm6154, %v6040
      %6166 = vst.msk [vmem:[#allocation2 + $0x58] sm:$0xff] %vm6154, %v6042
      %6167 = vst.msk [vmem:[#allocation2 + $0x60] sm:$0xff] %vm6154, %v6044
      %6168 = vst.msk [vmem:[#allocation2 + $0x68] sm:$0xff] %vm6154, %v6046
      %6169 = vst.msk [vmem:[#allocation2 + $0x70] sm:$0xff] %vm6154, %v6048
      %6170 = vst.msk [vmem:[#allocation2 + $0x78] sm:$0xff] %vm6154, %v6050
      %6171 = vst.msk [vmem:[#allocation2 + $0x80] sm:$0xff] %vm6154, %v6052
      %6172 = vst.msk [vmem:[#allocation2 + $0x88] sm:$0xff] %vm6154, %v6054
      %6173 = vst.msk [vmem:[#allocation2 + $0x90] sm:$0xff] %vm6154, %v6056
      %6174 = vst.msk [vmem:[#allocation2 + $0x98] sm:$0xff] %vm6154, %v6058
      %6175 = vst.msk [vmem:[#allocation2 + $0xa0] sm:$0xff] %vm6154, %v6060
      %6176 = vst.msk [vmem:[#allocation2 + $0xa8] sm:$0xff] %vm6154, %v6062
      %6177 = vst.msk [vmem:[#allocation2 + $0xb0] sm:$0xff] %vm6154, %v6064
      %6178 = vst.msk [vmem:[#allocation2 + $0xb8] sm:$0xff] %vm6154, %v6066
      %6179 = vst.msk [vmem:[#allocation2 + $0xc0] sm:$0xff] %vm6154, %v6068
      %6180 = vst.msk [vmem:[#allocation2 + $0xc8] sm:$0xff] %vm6154, %v6070
      %6181 = vst.msk [vmem:[#allocation2 + $0xd0] sm:$0xff] %vm6154, %v6072
      %6182 = vst.msk [vmem:[#allocation2 + $0xd8] sm:$0xff] %vm6154, %v6074
      %6183 = vst.msk [vmem:[#allocation2 + $0xe0] sm:$0xff] %vm6154, %v6076
      %6184 = vst.msk [vmem:[#allocation2 + $0xe8] sm:$0xff] %vm6154, %v6078
      %6185 = vst.msk [vmem:[#allocation2 + $0xf0] sm:$0xff] %vm6154, %v6080
      %6186 = vst.msk [vmem:[#allocation2 + $0xf8] sm:$0xff] %vm6154, %v6082
      %6187 = vst.msk [vmem:[#allocation2 + $0x100] sm:$0xff] %vm6154, %v6084
      %6188 = vst.msk [vmem:[#allocation2 + $0x108] sm:$0xff] %vm6154, %v6086
      %6189 = vst.msk [vmem:[#allocation2 + $0x110] sm:$0xff] %vm6154, %v6088
      %6190 = vst.msk [vmem:[#allocation2 + $0x118] sm:$0xff] %vm6154, %v6090
      %6191 = vst.msk [vmem:[#allocation2 + $0x120] sm:$0xff] %vm6154, %v6092
      %6192 = vst.msk [vmem:[#allocation2 + $0x128] sm:$0xff] %vm6154, %v6094
      %6193 = vst.msk [vmem:[#allocation2 + $0x130] sm:$0xff] %vm6154, %v6096
      %6194 = vst.msk [vmem:[#allocation2 + $0x138] sm:$0xff] %vm6154, %v6098
      %6195 = vst.msk [vmem:[#allocation2 + $0x140] sm:$0xff] %vm6154, %v6100
      %6196 = vst.msk [vmem:[#allocation2 + $0x148] sm:$0xff] %vm6154, %v6102
      %6197 = vst.msk [vmem:[#allocation2 + $0x150] sm:$0xff] %vm6154, %v6104
      %6198 = vst.msk [vmem:[#allocation2 + $0x158] sm:$0xff] %vm6154, %v6106
      %6199 = vst.msk [vmem:[#allocation2 + $0x160] sm:$0xff] %vm6154, %v6108
      %s6200 = smul.addr %s4169, 4
      %s6201 = scalar_lea.vmem %s183, %s6200
      %v6202 = vld [vmem:[%s6201] sm:$0xf]
      %v6203 = vld [vmem:[%s6201 + $0x4] sm:$0xf]
      %v6204 = vld [vmem:[%s6201 + $0x8] sm:$0x1]
      %v6205 = vld [vmem:[%s6201 + $0xc] sm:$0xf]
      %v6206 = vld [vmem:[%s6201 + $0x10] sm:$0xf]
      %v6207 = vld [vmem:[%s6201 + $0x14] sm:$0x1]
      %v6208 = vld [vmem:[%s6201 + $0x18] sm:$0xf]
      %v6209 = vld [vmem:[%s6201 + $0x1c] sm:$0xf]
      %v6210 = vld [vmem:[%s6201 + $0x20] sm:$0x1]
      %v6211 = vld [vmem:[%s6201 + $0x24] sm:$0xf]
      %v6212 = vld [vmem:[%s6201 + $0x28] sm:$0xf]
      %v6213 = vld [vmem:[%s6201 + $0x2c] sm:$0x1]
      %v6214 = vld [vmem:[%s6201 + $0x30] sm:$0xf]
      %v6215 = vld [vmem:[%s6201 + $0x34] sm:$0xf]
      %v6216 = vld [vmem:[%s6201 + $0x38] sm:$0x1]
      %v6217 = vld [vmem:[%s6201 + $0x3c] sm:$0xf]
      %v6218 = vld [vmem:[%s6201 + $0x40] sm:$0xf]
      %v6219 = vld [vmem:[%s6201 + $0x44] sm:$0x1]
      %v6220 = vld [vmem:[%s6201 + $0x48] sm:$0xf]
      %v6221 = vld [vmem:[%s6201 + $0x4c] sm:$0xf]
      %v6222 = vld [vmem:[%s6201 + $0x50] sm:$0x1]
      %v6223 = vld [vmem:[%s6201 + $0x54] sm:$0xf]
      %v6224 = vld [vmem:[%s6201 + $0x58] sm:$0xf]
      %v6225 = vld [vmem:[%s6201 + $0x5c] sm:$0x1]
      %v6226 = vld [vmem:[%s6201 + $0x60] sm:$0xf]
      %v6227 = vld [vmem:[%s6201 + $0x64] sm:$0xf]
      %v6228 = vld [vmem:[%s6201 + $0x68] sm:$0x1]
      %v6229 = vld [vmem:[%s6201 + $0x78] sm:$0xf]
      %v6230 = vld [vmem:[%s6201 + $0x7c] sm:$0xf]
      %v6231 = vld [vmem:[%s6201 + $0x80] sm:$0x1]
      %v6232 = vld [vmem:[%s6201 + $0x84] sm:$0xf]
      %v6233 = vld [vmem:[%s6201 + $0x88] sm:$0xf]
      %v6234 = vld [vmem:[%s6201 + $0x8c] sm:$0x1]
      %v6235 = vld [vmem:[%s6201 + $0x90] sm:$0xf]
      %v6236 = vld [vmem:[%s6201 + $0x94] sm:$0xf]
      %v6237 = vld [vmem:[%s6201 + $0x98] sm:$0x1]
      %v6238 = vld [vmem:[%s6201 + $0x9c] sm:$0xf]
      %v6239 = vld [vmem:[%s6201 + $0xa0] sm:$0xf]
      %v6240 = vld [vmem:[%s6201 + $0xa4] sm:$0x1]
      %v6241 = vld [vmem:[%s6201 + $0xa8] sm:$0xf]
      %v6242 = vld [vmem:[%s6201 + $0xac] sm:$0xf]
      %v6243 = vld [vmem:[%s6201 + $0xb0] sm:$0x1]
      %v6244 = vld [vmem:[%s6201 + $0xb4] sm:$0xf]
      %v6245 = vld [vmem:[%s6201 + $0xb8] sm:$0xf]
      %v6246 = vld [vmem:[%s6201 + $0xbc] sm:$0x1]
      %v6247 = vld [vmem:[%s6201 + $0xc0] sm:$0xf]
      %v6248 = vld [vmem:[%s6201 + $0xc4] sm:$0xf]
      %v6249 = vld [vmem:[%s6201 + $0xc8] sm:$0x1]
      %v6250 = vld [vmem:[%s6201 + $0xcc] sm:$0xf]
      %v6251 = vld [vmem:[%s6201 + $0xd0] sm:$0xf]
      %v6252 = vld [vmem:[%s6201 + $0xd4] sm:$0x1]
      %v6253 = vld [vmem:[%s6201 + $0xd8] sm:$0xf]
      %v6254 = vld [vmem:[%s6201 + $0xdc] sm:$0xf]
      %v6255 = vld [vmem:[%s6201 + $0xe0] sm:$0x1]
      %v6256 = vld [vmem:[%s6201 + $0xf0] sm:$0xf]
      %v6257 = vld [vmem:[%s6201 + $0xf4] sm:$0xf]
      %v6258 = vld [vmem:[%s6201 + $0xf8] sm:$0x1]
      %v6259 = vld [vmem:[%s6201 + $0xfc] sm:$0xf]
      %v6260 = vld [vmem:[%s6201 + $0x100] sm:$0xf]
      %v6261 = vld [vmem:[%s6201 + $0x104] sm:$0x1]
      %v6262 = vld [vmem:[%s6201 + $0x108] sm:$0xf]
      %v6263 = vld [vmem:[%s6201 + $0x10c] sm:$0xf]
      %v6264 = vld [vmem:[%s6201 + $0x110] sm:$0x1]
      %v6265 = vld [vmem:[%s6201 + $0x114] sm:$0xf]
      %v6266 = vld [vmem:[%s6201 + $0x118] sm:$0xf]
      %v6267 = vld [vmem:[%s6201 + $0x11c] sm:$0x1]
      %v6268 = vld [vmem:[%s6201 + $0x120] sm:$0xf]
      %v6269 = vld [vmem:[%s6201 + $0x124] sm:$0xf]
      %v6270 = vld [vmem:[%s6201 + $0x128] sm:$0x1]
      %v6271 = vld [vmem:[%s6201 + $0x12c] sm:$0xf]
      %v6272 = vld [vmem:[%s6201 + $0x130] sm:$0xf]
      %v6273 = vld [vmem:[%s6201 + $0x134] sm:$0x1]
      %v6274 = vld [vmem:[%s6201 + $0x138] sm:$0xf]
      %v6275 = vld [vmem:[%s6201 + $0x13c] sm:$0xf]
      %v6276 = vld [vmem:[%s6201 + $0x140] sm:$0x1]
      %v6277 = vld [vmem:[%s6201 + $0x144] sm:$0xf]
      %v6278 = vld [vmem:[%s6201 + $0x148] sm:$0xf]
      %v6279 = vld [vmem:[%s6201 + $0x14c] sm:$0x1]
      %v6280 = vld [vmem:[%s6201 + $0x150] sm:$0xf]
      %v6281 = vld [vmem:[%s6201 + $0x154] sm:$0xf]
      %v6282 = vld [vmem:[%s6201 + $0x158] sm:$0x1]
      %v6283 = vld [vmem:[%s6201 + $0x168] sm:$0xf]
      %v6284 = vld [vmem:[%s6201 + $0x16c] sm:$0xf]
      %v6285 = vld [vmem:[%s6201 + $0x170] sm:$0x1]
      %v6286 = vld [vmem:[%s6201 + $0x174] sm:$0xf]
      %v6287 = vld [vmem:[%s6201 + $0x178] sm:$0xf]
      %v6288 = vld [vmem:[%s6201 + $0x17c] sm:$0x1]
      %v6289 = vld [vmem:[%s6201 + $0x180] sm:$0xf]
      %v6290 = vld [vmem:[%s6201 + $0x184] sm:$0xf]
      %v6291 = vld [vmem:[%s6201 + $0x188] sm:$0x1]
      %v6292 = vld [vmem:[%s6201 + $0x18c] sm:$0xf]
      %v6293 = vld [vmem:[%s6201 + $0x190] sm:$0xf]
      %v6294 = vld [vmem:[%s6201 + $0x194] sm:$0x1]
      %v6295 = vld [vmem:[%s6201 + $0x198] sm:$0xf]
      %v6296 = vld [vmem:[%s6201 + $0x19c] sm:$0xf]
      %v6297 = vld [vmem:[%s6201 + $0x1a0] sm:$0x1]
      %v6298 = vld [vmem:[%s6201 + $0x1a4] sm:$0xf]
      %v6299 = vld [vmem:[%s6201 + $0x1a8] sm:$0xf]
      %v6300 = vld [vmem:[%s6201 + $0x1ac] sm:$0x1]
      %v6301 = vld [vmem:[%s6201 + $0x1b0] sm:$0xf]
      %v6302 = vld [vmem:[%s6201 + $0x1b4] sm:$0xf]
      %v6303 = vld [vmem:[%s6201 + $0x1b8] sm:$0x1]
      %v6304 = vld [vmem:[%s6201 + $0x1bc] sm:$0xf]
      %v6305 = vld [vmem:[%s6201 + $0x1c0] sm:$0xf]
      %v6306 = vld [vmem:[%s6201 + $0x1c4] sm:$0x1]
      %v6307 = vld [vmem:[%s6201 + $0x1c8] sm:$0xf]
      %v6308 = vld [vmem:[%s6201 + $0x1cc] sm:$0xf]
      %v6309 = vld [vmem:[%s6201 + $0x1d0] sm:$0x1]
      %v6310 = vld [vmem:[%s6201 + $0x1e0] sm:$0xf]
      %v6311 = vld [vmem:[%s6201 + $0x1e4] sm:$0xf]
      %v6312 = vld [vmem:[%s6201 + $0x1e8] sm:$0x1]
      %v6313 = vld [vmem:[%s6201 + $0x1ec] sm:$0xf]
      %v6314 = vld [vmem:[%s6201 + $0x1f0] sm:$0xf]
      %v6315 = vld [vmem:[%s6201 + $0x1f4] sm:$0x1]
      %v6316 = vld [vmem:[%s6201 + $0x1f8] sm:$0xf]
      %v6317 = vld [vmem:[%s6201 + $0x1fc] sm:$0xf]
      %v6318 = vld [vmem:[%s6201 + $0x200] sm:$0x1]
      %v6319 = vld [vmem:[%s6201 + $0x204] sm:$0xf]
      %v6320 = vld [vmem:[%s6201 + $0x208] sm:$0xf]
      %v6321 = vld [vmem:[%s6201 + $0x20c] sm:$0x1]
      %v6322 = vld [vmem:[%s6201 + $0x210] sm:$0xf]
      %v6323 = vld [vmem:[%s6201 + $0x214] sm:$0xf]
      %v6324 = vld [vmem:[%s6201 + $0x218] sm:$0x1]
      %v6325 = vld [vmem:[%s6201 + $0x21c] sm:$0xf]
      %v6326 = vld [vmem:[%s6201 + $0x220] sm:$0xf]
      %v6327 = vld [vmem:[%s6201 + $0x224] sm:$0x1]
      %v6328 = vld [vmem:[%s6201 + $0x228] sm:$0xf]
      %v6329 = vld [vmem:[%s6201 + $0x22c] sm:$0xf]
      %v6330 = vld [vmem:[%s6201 + $0x230] sm:$0x1]
      %v6331 = vld [vmem:[%s6201 + $0x234] sm:$0xf]
      %v6332 = vld [vmem:[%s6201 + $0x238] sm:$0xf]
      %v6333 = vld [vmem:[%s6201 + $0x23c] sm:$0x1]
      %v6334 = vld [vmem:[%s6201 + $0x240] sm:$0xf]
      %v6335 = vld [vmem:[%s6201 + $0x244] sm:$0xf]
      %v6336 = vld [vmem:[%s6201 + $0x248] sm:$0x1]
      %v6338 = vshrl.u32 %v6202, 16
      %v6340 = vrot.slane %v6338, 4
      %v6341 = vshll.u32 %v6202, 16
      %v6343 = vrot.slane %v6341, 5
      %v6344 = vor.u32 %v6340, %v6343
      %v6345 = vrot.slane %v6344, 4
      %v6347 = vshll.u32 %v6203, 16
      %v6349 = vrot.slane %v6347, 5
      %v6350 = vsel %vm337, %v6345, %v6349
      %v6351 = vshrl.u32 %v6203, 16
      %v6353 = vrot.slane %v6351, 4
      %v6354 = vor.u32 %v6353, %v6349
      %v6355 = vrot.slane %v6354, 4
      %v6357 = vshll.u32 %v6204, 16
      %v6359 = vrot.slane %v6357, 5
      %v6360 = vsel %vm337, %v6355, %v6359
      %v6362 = vshrl.u32 %v6205, 16
      %v6364 = vrot.slane %v6362, 4
      %v6365 = vshll.u32 %v6205, 16
      %v6367 = vrot.slane %v6365, 5
      %v6368 = vor.u32 %v6364, %v6367
      %v6369 = vrot.slane %v6368, 4
      %v6371 = vshll.u32 %v6206, 16
      %v6373 = vrot.slane %v6371, 5
      %v6374 = vsel %vm337, %v6369, %v6373
      %v6375 = vshrl.u32 %v6206, 16
      %v6377 = vrot.slane %v6375, 4
      %v6378 = vor.u32 %v6377, %v6373
      %v6379 = vrot.slane %v6378, 4
      %v6381 = vshll.u32 %v6207, 16
      %v6383 = vrot.slane %v6381, 5
      %v6384 = vsel %vm337, %v6379, %v6383
      %v6386 = vshrl.u32 %v6208, 16
      %v6388 = vrot.slane %v6386, 4
      %v6389 = vshll.u32 %v6208, 16
      %v6391 = vrot.slane %v6389, 5
      %v6392 = vor.u32 %v6388, %v6391
      %v6393 = vrot.slane %v6392, 4
      %v6395 = vshll.u32 %v6209, 16
      %v6397 = vrot.slane %v6395, 5
      %v6398 = vsel %vm337, %v6393, %v6397
      %v6399 = vshrl.u32 %v6209, 16
      %v6401 = vrot.slane %v6399, 4
      %v6402 = vor.u32 %v6401, %v6397
      %v6403 = vrot.slane %v6402, 4
      %v6405 = vshll.u32 %v6210, 16
      %v6407 = vrot.slane %v6405, 5
      %v6408 = vsel %vm337, %v6403, %v6407
      %v6410 = vshrl.u32 %v6211, 16
      %v6412 = vrot.slane %v6410, 4
      %v6413 = vshll.u32 %v6211, 16
      %v6415 = vrot.slane %v6413, 5
      %v6416 = vor.u32 %v6412, %v6415
      %v6417 = vrot.slane %v6416, 4
      %v6419 = vshll.u32 %v6212, 16
      %v6421 = vrot.slane %v6419, 5
      %v6422 = vsel %vm337, %v6417, %v6421
      %v6423 = vshrl.u32 %v6212, 16
      %v6425 = vrot.slane %v6423, 4
      %v6426 = vor.u32 %v6425, %v6421
      %v6427 = vrot.slane %v6426, 4
      %v6429 = vshll.u32 %v6213, 16
      %v6431 = vrot.slane %v6429, 5
      %v6432 = vsel %vm337, %v6427, %v6431
      %v6434 = vshrl.u32 %v6214, 16
      %v6436 = vrot.slane %v6434, 4
      %v6437 = vshll.u32 %v6214, 16
      %v6439 = vrot.slane %v6437, 5
      %v6440 = vor.u32 %v6436, %v6439
      %v6441 = vrot.slane %v6440, 4
      %v6443 = vshll.u32 %v6215, 16
      %v6445 = vrot.slane %v6443, 5
      %v6446 = vsel %vm337, %v6441, %v6445
      %v6447 = vshrl.u32 %v6215, 16
      %v6449 = vrot.slane %v6447, 4
      %v6450 = vor.u32 %v6449, %v6445
      %v6451 = vrot.slane %v6450, 4
      %v6453 = vshll.u32 %v6216, 16
      %v6455 = vrot.slane %v6453, 5
      %v6456 = vsel %vm337, %v6451, %v6455
      %v6458 = vshrl.u32 %v6217, 16
      %v6460 = vrot.slane %v6458, 4
      %v6461 = vshll.u32 %v6217, 16
      %v6463 = vrot.slane %v6461, 5
      %v6464 = vor.u32 %v6460, %v6463
      %v6465 = vrot.slane %v6464, 4
      %v6467 = vshll.u32 %v6218, 16
      %v6469 = vrot.slane %v6467, 5
      %v6470 = vsel %vm337, %v6465, %v6469
      %v6471 = vshrl.u32 %v6218, 16
      %v6473 = vrot.slane %v6471, 4
      %v6474 = vor.u32 %v6473, %v6469
      %v6475 = vrot.slane %v6474, 4
      %v6477 = vshll.u32 %v6219, 16
      %v6479 = vrot.slane %v6477, 5
      %v6480 = vsel %vm337, %v6475, %v6479
      %v6482 = vshrl.u32 %v6220, 16
      %v6484 = vrot.slane %v6482, 4
      %v6485 = vshll.u32 %v6220, 16
      %v6487 = vrot.slane %v6485, 5
      %v6488 = vor.u32 %v6484, %v6487
      %v6489 = vrot.slane %v6488, 4
      %v6491 = vshll.u32 %v6221, 16
      %v6493 = vrot.slane %v6491, 5
      %v6494 = vsel %vm337, %v6489, %v6493
      %v6495 = vshrl.u32 %v6221, 16
      %v6497 = vrot.slane %v6495, 4
      %v6498 = vor.u32 %v6497, %v6493
      %v6499 = vrot.slane %v6498, 4
      %v6501 = vshll.u32 %v6222, 16
      %v6503 = vrot.slane %v6501, 5
      %v6504 = vsel %vm337, %v6499, %v6503
      %v6506 = vshrl.u32 %v6223, 16
      %v6508 = vrot.slane %v6506, 4
      %v6509 = vshll.u32 %v6223, 16
      %v6511 = vrot.slane %v6509, 5
      %v6512 = vor.u32 %v6508, %v6511
      %v6513 = vrot.slane %v6512, 4
      %v6515 = vshll.u32 %v6224, 16
      %v6517 = vrot.slane %v6515, 5
      %v6518 = vsel %vm337, %v6513, %v6517
      %v6519 = vshrl.u32 %v6224, 16
      %v6521 = vrot.slane %v6519, 4
      %v6522 = vor.u32 %v6521, %v6517
      %v6523 = vrot.slane %v6522, 4
      %v6525 = vshll.u32 %v6225, 16
      %v6527 = vrot.slane %v6525, 5
      %v6528 = vsel %vm337, %v6523, %v6527
      %v6530 = vshrl.u32 %v6226, 16
      %v6532 = vrot.slane %v6530, 4
      %v6533 = vshll.u32 %v6226, 16
      %v6535 = vrot.slane %v6533, 5
      %v6536 = vor.u32 %v6532, %v6535
      %v6537 = vrot.slane %v6536, 4
      %v6539 = vshll.u32 %v6227, 16
      %v6541 = vrot.slane %v6539, 5
      %v6542 = vsel %vm337, %v6537, %v6541
      %v6543 = vshrl.u32 %v6227, 16
      %v6545 = vrot.slane %v6543, 4
      %v6546 = vor.u32 %v6545, %v6541
      %v6547 = vrot.slane %v6546, 4
      %v6549 = vshll.u32 %v6228, 16
      %v6551 = vrot.slane %v6549, 5
      %v6552 = vsel %vm337, %v6547, %v6551
      %v6554 = vshrl.u32 %v6229, 16
      %v6556 = vrot.slane %v6554, 4
      %v6557 = vshll.u32 %v6229, 16
      %v6559 = vrot.slane %v6557, 5
      %v6560 = vor.u32 %v6556, %v6559
      %v6561 = vrot.slane %v6560, 4
      %v6563 = vshll.u32 %v6230, 16
      %v6565 = vrot.slane %v6563, 5
      %v6566 = vsel %vm337, %v6561, %v6565
      %v6567 = vshrl.u32 %v6230, 16
      %v6569 = vrot.slane %v6567, 4
      %v6570 = vor.u32 %v6569, %v6565
      %v6571 = vrot.slane %v6570, 4
      %v6573 = vshll.u32 %v6231, 16
      %v6575 = vrot.slane %v6573, 5
      %v6576 = vsel %vm337, %v6571, %v6575
      %v6578 = vshrl.u32 %v6232, 16
      %v6580 = vrot.slane %v6578, 4
      %v6581 = vshll.u32 %v6232, 16
      %v6583 = vrot.slane %v6581, 5
      %v6584 = vor.u32 %v6580, %v6583
      %v6585 = vrot.slane %v6584, 4
      %v6587 = vshll.u32 %v6233, 16
      %v6589 = vrot.slane %v6587, 5
      %v6590 = vsel %vm337, %v6585, %v6589
      %v6591 = vshrl.u32 %v6233, 16
      %v6593 = vrot.slane %v6591, 4
      %v6594 = vor.u32 %v6593, %v6589
      %v6595 = vrot.slane %v6594, 4
      %v6597 = vshll.u32 %v6234, 16
      %v6599 = vrot.slane %v6597, 5
      %v6600 = vsel %vm337, %v6595, %v6599
      %v6602 = vshrl.u32 %v6235, 16
      %v6604 = vrot.slane %v6602, 4
      %v6605 = vshll.u32 %v6235, 16
      %v6607 = vrot.slane %v6605, 5
      %v6608 = vor.u32 %v6604, %v6607
      %v6609 = vrot.slane %v6608, 4
      %v6611 = vshll.u32 %v6236, 16
      %v6613 = vrot.slane %v6611, 5
      %v6614 = vsel %vm337, %v6609, %v6613
      %v6615 = vshrl.u32 %v6236, 16
      %v6617 = vrot.slane %v6615, 4
      %v6618 = vor.u32 %v6617, %v6613
      %v6619 = vrot.slane %v6618, 4
      %v6621 = vshll.u32 %v6237, 16
      %v6623 = vrot.slane %v6621, 5
      %v6624 = vsel %vm337, %v6619, %v6623
      %v6626 = vshrl.u32 %v6238, 16
      %v6628 = vrot.slane %v6626, 4
      %v6629 = vshll.u32 %v6238, 16
      %v6631 = vrot.slane %v6629, 5
      %v6632 = vor.u32 %v6628, %v6631
      %v6633 = vrot.slane %v6632, 4
      %v6635 = vshll.u32 %v6239, 16
      %v6637 = vrot.slane %v6635, 5
      %v6638 = vsel %vm337, %v6633, %v6637
      %v6639 = vshrl.u32 %v6239, 16
      %v6641 = vrot.slane %v6639, 4
      %v6642 = vor.u32 %v6641, %v6637
      %v6643 = vrot.slane %v6642, 4
      %v6645 = vshll.u32 %v6240, 16
      %v6647 = vrot.slane %v6645, 5
      %v6648 = vsel %vm337, %v6643, %v6647
      %v6650 = vshrl.u32 %v6241, 16
      %v6652 = vrot.slane %v6650, 4
      %v6653 = vshll.u32 %v6241, 16
      %v6655 = vrot.slane %v6653, 5
      %v6656 = vor.u32 %v6652, %v6655
      %v6657 = vrot.slane %v6656, 4
      %v6659 = vshll.u32 %v6242, 16
      %v6661 = vrot.slane %v6659, 5
      %v6662 = vsel %vm337, %v6657, %v6661
      %v6663 = vshrl.u32 %v6242, 16
      %v6665 = vrot.slane %v6663, 4
      %v6666 = vor.u32 %v6665, %v6661
      %v6667 = vrot.slane %v6666, 4
      %v6669 = vshll.u32 %v6243, 16
      %v6671 = vrot.slane %v6669, 5
      %v6672 = vsel %vm337, %v6667, %v6671
      %v6674 = vshrl.u32 %v6244, 16
      %v6676 = vrot.slane %v6674, 4
      %v6677 = vshll.u32 %v6244, 16
      %v6679 = vrot.slane %v6677, 5
      %v6680 = vor.u32 %v6676, %v6679
      %v6681 = vrot.slane %v6680, 4
      %v6683 = vshll.u32 %v6245, 16
      %v6685 = vrot.slane %v6683, 5
      %v6686 = vsel %vm337, %v6681, %v6685
      %v6687 = vshrl.u32 %v6245, 16
      %v6689 = vrot.slane %v6687, 4
      %v6690 = vor.u32 %v6689, %v6685
      %v6691 = vrot.slane %v6690, 4
      %v6693 = vshll.u32 %v6246, 16
      %v6695 = vrot.slane %v6693, 5
      %v6696 = vsel %vm337, %v6691, %v6695
      %v6698 = vshrl.u32 %v6247, 16
      %v6700 = vrot.slane %v6698, 4
      %v6701 = vshll.u32 %v6247, 16
      %v6703 = vrot.slane %v6701, 5
      %v6704 = vor.u32 %v6700, %v6703
      %v6705 = vrot.slane %v6704, 4
      %v6707 = vshll.u32 %v6248, 16
      %v6709 = vrot.slane %v6707, 5
      %v6710 = vsel %vm337, %v6705, %v6709
      %v6711 = vshrl.u32 %v6248, 16
      %v6713 = vrot.slane %v6711, 4
      %v6714 = vor.u32 %v6713, %v6709
      %v6715 = vrot.slane %v6714, 4
      %v6717 = vshll.u32 %v6249, 16
      %v6719 = vrot.slane %v6717, 5
      %v6720 = vsel %vm337, %v6715, %v6719
      %v6722 = vshrl.u32 %v6250, 16
      %v6724 = vrot.slane %v6722, 4
      %v6725 = vshll.u32 %v6250, 16
      %v6727 = vrot.slane %v6725, 5
      %v6728 = vor.u32 %v6724, %v6727
      %v6729 = vrot.slane %v6728, 4
      %v6731 = vshll.u32 %v6251, 16
      %v6733 = vrot.slane %v6731, 5
      %v6734 = vsel %vm337, %v6729, %v6733
      %v6735 = vshrl.u32 %v6251, 16
      %v6737 = vrot.slane %v6735, 4
      %v6738 = vor.u32 %v6737, %v6733
      %v6739 = vrot.slane %v6738, 4
      %v6741 = vshll.u32 %v6252, 16
      %v6743 = vrot.slane %v6741, 5
      %v6744 = vsel %vm337, %v6739, %v6743
      %v6746 = vshrl.u32 %v6253, 16
      %v6748 = vrot.slane %v6746, 4
      %v6749 = vshll.u32 %v6253, 16
      %v6751 = vrot.slane %v6749, 5
      %v6752 = vor.u32 %v6748, %v6751
      %v6753 = vrot.slane %v6752, 4
      %v6755 = vshll.u32 %v6254, 16
      %v6757 = vrot.slane %v6755, 5
      %v6758 = vsel %vm337, %v6753, %v6757
      %v6759 = vshrl.u32 %v6254, 16
      %v6761 = vrot.slane %v6759, 4
      %v6762 = vor.u32 %v6761, %v6757
      %v6763 = vrot.slane %v6762, 4
      %v6765 = vshll.u32 %v6255, 16
      %v6767 = vrot.slane %v6765, 5
      %v6768 = vsel %vm337, %v6763, %v6767
      %v6770 = vshrl.u32 %v6256, 16
      %v6772 = vrot.slane %v6770, 4
      %v6773 = vshll.u32 %v6256, 16
      %v6775 = vrot.slane %v6773, 5
      %v6776 = vor.u32 %v6772, %v6775
      %v6777 = vrot.slane %v6776, 4
      %v6779 = vshll.u32 %v6257, 16
      %v6781 = vrot.slane %v6779, 5
      %v6782 = vsel %vm337, %v6777, %v6781
      %v6783 = vshrl.u32 %v6257, 16
      %v6785 = vrot.slane %v6783, 4
      %v6786 = vor.u32 %v6785, %v6781
      %v6787 = vrot.slane %v6786, 4
      %v6789 = vshll.u32 %v6258, 16
      %v6791 = vrot.slane %v6789, 5
      %v6792 = vsel %vm337, %v6787, %v6791
      %v6794 = vshrl.u32 %v6259, 16
      %v6796 = vrot.slane %v6794, 4
      %v6797 = vshll.u32 %v6259, 16
      %v6799 = vrot.slane %v6797, 5
      %v6800 = vor.u32 %v6796, %v6799
      %v6801 = vrot.slane %v6800, 4
      %v6803 = vshll.u32 %v6260, 16
      %v6805 = vrot.slane %v6803, 5
      %v6806 = vsel %vm337, %v6801, %v6805
      %v6807 = vshrl.u32 %v6260, 16
      %v6809 = vrot.slane %v6807, 4
      %v6810 = vor.u32 %v6809, %v6805
      %v6811 = vrot.slane %v6810, 4
      %v6813 = vshll.u32 %v6261, 16
      %v6815 = vrot.slane %v6813, 5
      %v6816 = vsel %vm337, %v6811, %v6815
      %v6818 = vshrl.u32 %v6262, 16
      %v6820 = vrot.slane %v6818, 4
      %v6821 = vshll.u32 %v6262, 16
      %v6823 = vrot.slane %v6821, 5
      %v6824 = vor.u32 %v6820, %v6823
      %v6825 = vrot.slane %v6824, 4
      %v6827 = vshll.u32 %v6263, 16
      %v6829 = vrot.slane %v6827, 5
      %v6830 = vsel %vm337, %v6825, %v6829
      %v6831 = vshrl.u32 %v6263, 16
      %v6833 = vrot.slane %v6831, 4
      %v6834 = vor.u32 %v6833, %v6829
      %v6835 = vrot.slane %v6834, 4
      %v6837 = vshll.u32 %v6264, 16
      %v6839 = vrot.slane %v6837, 5
      %v6840 = vsel %vm337, %v6835, %v6839
      %v6842 = vshrl.u32 %v6265, 16
      %v6844 = vrot.slane %v6842, 4
      %v6845 = vshll.u32 %v6265, 16
      %v6847 = vrot.slane %v6845, 5
      %v6848 = vor.u32 %v6844, %v6847
      %v6849 = vrot.slane %v6848, 4
      %v6851 = vshll.u32 %v6266, 16
      %v6853 = vrot.slane %v6851, 5
      %v6854 = vsel %vm337, %v6849, %v6853
      %v6855 = vshrl.u32 %v6266, 16
      %v6857 = vrot.slane %v6855, 4
      %v6858 = vor.u32 %v6857, %v6853
      %v6859 = vrot.slane %v6858, 4
      %v6861 = vshll.u32 %v6267, 16
      %v6863 = vrot.slane %v6861, 5
      %v6864 = vsel %vm337, %v6859, %v6863
      %v6866 = vshrl.u32 %v6268, 16
      %v6868 = vrot.slane %v6866, 4
      %v6869 = vshll.u32 %v6268, 16
      %v6871 = vrot.slane %v6869, 5
      %v6872 = vor.u32 %v6868, %v6871
      %v6873 = vrot.slane %v6872, 4
      %v6875 = vshll.u32 %v6269, 16
      %v6877 = vrot.slane %v6875, 5
      %v6878 = vsel %vm337, %v6873, %v6877
      %v6879 = vshrl.u32 %v6269, 16
      %v6881 = vrot.slane %v6879, 4
      %v6882 = vor.u32 %v6881, %v6877
      %v6883 = vrot.slane %v6882, 4
      %v6885 = vshll.u32 %v6270, 16
      %v6887 = vrot.slane %v6885, 5
      %v6888 = vsel %vm337, %v6883, %v6887
      %v6890 = vshrl.u32 %v6271, 16
      %v6892 = vrot.slane %v6890, 4
      %v6893 = vshll.u32 %v6271, 16
      %v6895 = vrot.slane %v6893, 5
      %v6896 = vor.u32 %v6892, %v6895
      %v6897 = vrot.slane %v6896, 4
      %v6899 = vshll.u32 %v6272, 16
      %v6901 = vrot.slane %v6899, 5
      %v6902 = vsel %vm337, %v6897, %v6901
      %v6903 = vshrl.u32 %v6272, 16
      %v6905 = vrot.slane %v6903, 4
      %v6906 = vor.u32 %v6905, %v6901
      %v6907 = vrot.slane %v6906, 4
      %v6909 = vshll.u32 %v6273, 16
      %v6911 = vrot.slane %v6909, 5
      %v6912 = vsel %vm337, %v6907, %v6911
      %v6914 = vshrl.u32 %v6274, 16
      %v6916 = vrot.slane %v6914, 4
      %v6917 = vshll.u32 %v6274, 16
      %v6919 = vrot.slane %v6917, 5
      %v6920 = vor.u32 %v6916, %v6919
      %v6921 = vrot.slane %v6920, 4
      %v6923 = vshll.u32 %v6275, 16
      %v6925 = vrot.slane %v6923, 5
      %v6926 = vsel %vm337, %v6921, %v6925
      %v6927 = vshrl.u32 %v6275, 16
      %v6929 = vrot.slane %v6927, 4
      %v6930 = vor.u32 %v6929, %v6925
      %v6931 = vrot.slane %v6930, 4
      %v6933 = vshll.u32 %v6276, 16
      %v6935 = vrot.slane %v6933, 5
      %v6936 = vsel %vm337, %v6931, %v6935
      %v6938 = vshrl.u32 %v6277, 16
      %v6940 = vrot.slane %v6938, 4
      %v6941 = vshll.u32 %v6277, 16
      %v6943 = vrot.slane %v6941, 5
      %v6944 = vor.u32 %v6940, %v6943
      %v6945 = vrot.slane %v6944, 4
      %v6947 = vshll.u32 %v6278, 16
      %v6949 = vrot.slane %v6947, 5
      %v6950 = vsel %vm337, %v6945, %v6949
      %v6951 = vshrl.u32 %v6278, 16
      %v6953 = vrot.slane %v6951, 4
      %v6954 = vor.u32 %v6953, %v6949
      %v6955 = vrot.slane %v6954, 4
      %v6957 = vshll.u32 %v6279, 16
      %v6959 = vrot.slane %v6957, 5
      %v6960 = vsel %vm337, %v6955, %v6959
      %v6962 = vshrl.u32 %v6280, 16
      %v6964 = vrot.slane %v6962, 4
      %v6965 = vshll.u32 %v6280, 16
      %v6967 = vrot.slane %v6965, 5
      %v6968 = vor.u32 %v6964, %v6967
      %v6969 = vrot.slane %v6968, 4
      %v6971 = vshll.u32 %v6281, 16
      %v6973 = vrot.slane %v6971, 5
      %v6974 = vsel %vm337, %v6969, %v6973
      %v6975 = vshrl.u32 %v6281, 16
      %v6977 = vrot.slane %v6975, 4
      %v6978 = vor.u32 %v6977, %v6973
      %v6979 = vrot.slane %v6978, 4
      %v6981 = vshll.u32 %v6282, 16
      %v6983 = vrot.slane %v6981, 5
      %v6984 = vsel %vm337, %v6979, %v6983
      %v6986 = vshrl.u32 %v6283, 16
      %v6988 = vrot.slane %v6986, 4
      %v6989 = vshll.u32 %v6283, 16
      %v6991 = vrot.slane %v6989, 5
      %v6992 = vor.u32 %v6988, %v6991
      %v6993 = vrot.slane %v6992, 4
      %v6995 = vshll.u32 %v6284, 16
      %v6997 = vrot.slane %v6995, 5
      %v6998 = vsel %vm337, %v6993, %v6997
      %v6999 = vshrl.u32 %v6284, 16
      %v7001 = vrot.slane %v6999, 4
      %v7002 = vor.u32 %v7001, %v6997
      %v7003 = vrot.slane %v7002, 4
      %v7005 = vshll.u32 %v6285, 16
      %v7007 = vrot.slane %v7005, 5
      %v7008 = vsel %vm337, %v7003, %v7007
      %v7010 = vshrl.u32 %v6286, 16
      %v7012 = vrot.slane %v7010, 4
      %v7013 = vshll.u32 %v6286, 16
      %v7015 = vrot.slane %v7013, 5
      %v7016 = vor.u32 %v7012, %v7015
      %v7017 = vrot.slane %v7016, 4
      %v7019 = vshll.u32 %v6287, 16
      %v7021 = vrot.slane %v7019, 5
      %v7022 = vsel %vm337, %v7017, %v7021
      %v7023 = vshrl.u32 %v6287, 16
      %v7025 = vrot.slane %v7023, 4
      %v7026 = vor.u32 %v7025, %v7021
      %v7027 = vrot.slane %v7026, 4
      %v7029 = vshll.u32 %v6288, 16
      %v7031 = vrot.slane %v7029, 5
      %v7032 = vsel %vm337, %v7027, %v7031
      %v7034 = vshrl.u32 %v6289, 16
      %v7036 = vrot.slane %v7034, 4
      %v7037 = vshll.u32 %v6289, 16
      %v7039 = vrot.slane %v7037, 5
      %v7040 = vor.u32 %v7036, %v7039
      %v7041 = vrot.slane %v7040, 4
      %v7043 = vshll.u32 %v6290, 16
      %v7045 = vrot.slane %v7043, 5
      %v7046 = vsel %vm337, %v7041, %v7045
      %v7047 = vshrl.u32 %v6290, 16
      %v7049 = vrot.slane %v7047, 4
      %v7050 = vor.u32 %v7049, %v7045
      %v7051 = vrot.slane %v7050, 4
      %v7053 = vshll.u32 %v6291, 16
      %v7055 = vrot.slane %v7053, 5
      %v7056 = vsel %vm337, %v7051, %v7055
      %v7058 = vshrl.u32 %v6292, 16
      %v7060 = vrot.slane %v7058, 4
      %v7061 = vshll.u32 %v6292, 16
      %v7063 = vrot.slane %v7061, 5
      %v7064 = vor.u32 %v7060, %v7063
      %v7065 = vrot.slane %v7064, 4
      %v7067 = vshll.u32 %v6293, 16
      %v7069 = vrot.slane %v7067, 5
      %v7070 = vsel %vm337, %v7065, %v7069
      %v7071 = vshrl.u32 %v6293, 16
      %v7073 = vrot.slane %v7071, 4
      %v7074 = vor.u32 %v7073, %v7069
      %v7075 = vrot.slane %v7074, 4
      %v7077 = vshll.u32 %v6294, 16
      %v7079 = vrot.slane %v7077, 5
      %v7080 = vsel %vm337, %v7075, %v7079
      %v7082 = vshrl.u32 %v6295, 16
      %v7084 = vrot.slane %v7082, 4
      %v7085 = vshll.u32 %v6295, 16
      %v7087 = vrot.slane %v7085, 5
      %v7088 = vor.u32 %v7084, %v7087
      %v7089 = vrot.slane %v7088, 4
      %v7091 = vshll.u32 %v6296, 16
      %v7093 = vrot.slane %v7091, 5
      %v7094 = vsel %vm337, %v7089, %v7093
      %v7095 = vshrl.u32 %v6296, 16
      %v7097 = vrot.slane %v7095, 4
      %v7098 = vor.u32 %v7097, %v7093
      %v7099 = vrot.slane %v7098, 4
      %v7101 = vshll.u32 %v6297, 16
      %v7103 = vrot.slane %v7101, 5
      %v7104 = vsel %vm337, %v7099, %v7103
      %v7106 = vshrl.u32 %v6298, 16
      %v7108 = vrot.slane %v7106, 4
      %v7109 = vshll.u32 %v6298, 16
      %v7111 = vrot.slane %v7109, 5
      %v7112 = vor.u32 %v7108, %v7111
      %v7113 = vrot.slane %v7112, 4
      %v7115 = vshll.u32 %v6299, 16
      %v7117 = vrot.slane %v7115, 5
      %v7118 = vsel %vm337, %v7113, %v7117
      %v7119 = vshrl.u32 %v6299, 16
      %v7121 = vrot.slane %v7119, 4
      %v7122 = vor.u32 %v7121, %v7117
      %v7123 = vrot.slane %v7122, 4
      %v7125 = vshll.u32 %v6300, 16
      %v7127 = vrot.slane %v7125, 5
      %v7128 = vsel %vm337, %v7123, %v7127
      %v7130 = vshrl.u32 %v6301, 16
      %v7132 = vrot.slane %v7130, 4
      %v7133 = vshll.u32 %v6301, 16
      %v7135 = vrot.slane %v7133, 5
      %v7136 = vor.u32 %v7132, %v7135
      %v7137 = vrot.slane %v7136, 4
      %v7139 = vshll.u32 %v6302, 16
      %v7141 = vrot.slane %v7139, 5
      %v7142 = vsel %vm337, %v7137, %v7141
      %v7143 = vshrl.u32 %v6302, 16
      %v7145 = vrot.slane %v7143, 4
      %v7146 = vor.u32 %v7145, %v7141
      %v7147 = vrot.slane %v7146, 4
      %v7149 = vshll.u32 %v6303, 16
      %v7151 = vrot.slane %v7149, 5
      %v7152 = vsel %vm337, %v7147, %v7151
      %v7154 = vshrl.u32 %v6304, 16
      %v7156 = vrot.slane %v7154, 4
      %v7157 = vshll.u32 %v6304, 16
      %v7159 = vrot.slane %v7157, 5
      %v7160 = vor.u32 %v7156, %v7159
      %v7161 = vrot.slane %v7160, 4
      %v7163 = vshll.u32 %v6305, 16
      %v7165 = vrot.slane %v7163, 5
      %v7166 = vsel %vm337, %v7161, %v7165
      %v7167 = vshrl.u32 %v6305, 16
      %v7169 = vrot.slane %v7167, 4
      %v7170 = vor.u32 %v7169, %v7165
      %v7171 = vrot.slane %v7170, 4
      %v7173 = vshll.u32 %v6306, 16
      %v7175 = vrot.slane %v7173, 5
      %v7176 = vsel %vm337, %v7171, %v7175
      %v7178 = vshrl.u32 %v6307, 16
      %v7180 = vrot.slane %v7178, 4
      %v7181 = vshll.u32 %v6307, 16
      %v7183 = vrot.slane %v7181, 5
      %v7184 = vor.u32 %v7180, %v7183
      %v7185 = vrot.slane %v7184, 4
      %v7187 = vshll.u32 %v6308, 16
      %v7189 = vrot.slane %v7187, 5
      %v7190 = vsel %vm337, %v7185, %v7189
      %v7191 = vshrl.u32 %v6308, 16
      %v7193 = vrot.slane %v7191, 4
      %v7194 = vor.u32 %v7193, %v7189
      %v7195 = vrot.slane %v7194, 4
      %v7197 = vshll.u32 %v6309, 16
      %v7199 = vrot.slane %v7197, 5
      %v7200 = vsel %vm337, %v7195, %v7199
      %v7202 = vshrl.u32 %v6310, 16
      %v7204 = vrot.slane %v7202, 4
      %v7205 = vshll.u32 %v6310, 16
      %v7207 = vrot.slane %v7205, 5
      %v7208 = vor.u32 %v7204, %v7207
      %v7209 = vrot.slane %v7208, 4
      %v7211 = vshll.u32 %v6311, 16
      %v7213 = vrot.slane %v7211, 5
      %v7214 = vsel %vm337, %v7209, %v7213
      %v7215 = vshrl.u32 %v6311, 16
      %v7217 = vrot.slane %v7215, 4
      %v7218 = vor.u32 %v7217, %v7213
      %v7219 = vrot.slane %v7218, 4
      %v7221 = vshll.u32 %v6312, 16
      %v7223 = vrot.slane %v7221, 5
      %v7224 = vsel %vm337, %v7219, %v7223
      %v7226 = vshrl.u32 %v6313, 16
      %v7228 = vrot.slane %v7226, 4
      %v7229 = vshll.u32 %v6313, 16
      %v7231 = vrot.slane %v7229, 5
      %v7232 = vor.u32 %v7228, %v7231
      %v7233 = vrot.slane %v7232, 4
      %v7235 = vshll.u32 %v6314, 16
      %v7237 = vrot.slane %v7235, 5
      %v7238 = vsel %vm337, %v7233, %v7237
      %v7239 = vshrl.u32 %v6314, 16
      %v7241 = vrot.slane %v7239, 4
      %v7242 = vor.u32 %v7241, %v7237
      %v7243 = vrot.slane %v7242, 4
      %v7245 = vshll.u32 %v6315, 16
      %v7247 = vrot.slane %v7245, 5
      %v7248 = vsel %vm337, %v7243, %v7247
      %v7250 = vshrl.u32 %v6316, 16
      %v7252 = vrot.slane %v7250, 4
      %v7253 = vshll.u32 %v6316, 16
      %v7255 = vrot.slane %v7253, 5
      %v7256 = vor.u32 %v7252, %v7255
      %v7257 = vrot.slane %v7256, 4
      %v7259 = vshll.u32 %v6317, 16
      %v7261 = vrot.slane %v7259, 5
      %v7262 = vsel %vm337, %v7257, %v7261
      %v7263 = vshrl.u32 %v6317, 16
      %v7265 = vrot.slane %v7263, 4
      %v7266 = vor.u32 %v7265, %v7261
      %v7267 = vrot.slane %v7266, 4
      %v7269 = vshll.u32 %v6318, 16
      %v7271 = vrot.slane %v7269, 5
      %v7272 = vsel %vm337, %v7267, %v7271
      %v7274 = vshrl.u32 %v6319, 16
      %v7276 = vrot.slane %v7274, 4
      %v7277 = vshll.u32 %v6319, 16
      %v7279 = vrot.slane %v7277, 5
      %v7280 = vor.u32 %v7276, %v7279
      %v7281 = vrot.slane %v7280, 4
      %v7283 = vshll.u32 %v6320, 16
      %v7285 = vrot.slane %v7283, 5
      %v7286 = vsel %vm337, %v7281, %v7285
      %v7287 = vshrl.u32 %v6320, 16
      %v7289 = vrot.slane %v7287, 4
      %v7290 = vor.u32 %v7289, %v7285
      %v7291 = vrot.slane %v7290, 4
      %v7293 = vshll.u32 %v6321, 16
      %v7295 = vrot.slane %v7293, 5
      %v7296 = vsel %vm337, %v7291, %v7295
      %v7298 = vshrl.u32 %v6322, 16
      %v7300 = vrot.slane %v7298, 4
      %v7301 = vshll.u32 %v6322, 16
      %v7303 = vrot.slane %v7301, 5
      %v7304 = vor.u32 %v7300, %v7303
      %v7305 = vrot.slane %v7304, 4
      %v7307 = vshll.u32 %v6323, 16
      %v7309 = vrot.slane %v7307, 5
      %v7310 = vsel %vm337, %v7305, %v7309
      %v7311 = vshrl.u32 %v6323, 16
      %v7313 = vrot.slane %v7311, 4
      %v7314 = vor.u32 %v7313, %v7309
      %v7315 = vrot.slane %v7314, 4
      %v7317 = vshll.u32 %v6324, 16
      %v7319 = vrot.slane %v7317, 5
      %v7320 = vsel %vm337, %v7315, %v7319
      %v7322 = vshrl.u32 %v6325, 16
      %v7324 = vrot.slane %v7322, 4
      %v7325 = vshll.u32 %v6325, 16
      %v7327 = vrot.slane %v7325, 5
      %v7328 = vor.u32 %v7324, %v7327
      %v7329 = vrot.slane %v7328, 4
      %v7331 = vshll.u32 %v6326, 16
      %v7333 = vrot.slane %v7331, 5
      %v7334 = vsel %vm337, %v7329, %v7333
      %v7335 = vshrl.u32 %v6326, 16
      %v7337 = vrot.slane %v7335, 4
      %v7338 = vor.u32 %v7337, %v7333
      %v7339 = vrot.slane %v7338, 4
      %v7341 = vshll.u32 %v6327, 16
      %v7343 = vrot.slane %v7341, 5
      %v7344 = vsel %vm337, %v7339, %v7343
      %v7346 = vshrl.u32 %v6328, 16
      %v7348 = vrot.slane %v7346, 4
      %v7349 = vshll.u32 %v6328, 16
      %v7351 = vrot.slane %v7349, 5
      %v7352 = vor.u32 %v7348, %v7351
      %v7353 = vrot.slane %v7352, 4
      %v7355 = vshll.u32 %v6329, 16
      %v7357 = vrot.slane %v7355, 5
      %v7358 = vsel %vm337, %v7353, %v7357
      %v7359 = vshrl.u32 %v6329, 16
      %v7361 = vrot.slane %v7359, 4
      %v7362 = vor.u32 %v7361, %v7357
      %v7363 = vrot.slane %v7362, 4
      %v7365 = vshll.u32 %v6330, 16
      %v7367 = vrot.slane %v7365, 5
      %v7368 = vsel %vm337, %v7363, %v7367
      %v7370 = vshrl.u32 %v6331, 16
      %v7372 = vrot.slane %v7370, 4
      %v7373 = vshll.u32 %v6331, 16
      %v7375 = vrot.slane %v7373, 5
      %v7376 = vor.u32 %v7372, %v7375
      %v7377 = vrot.slane %v7376, 4
      %v7379 = vshll.u32 %v6332, 16
      %v7381 = vrot.slane %v7379, 5
      %v7382 = vsel %vm337, %v7377, %v7381
      %v7383 = vshrl.u32 %v6332, 16
      %v7385 = vrot.slane %v7383, 4
      %v7386 = vor.u32 %v7385, %v7381
      %v7387 = vrot.slane %v7386, 4
      %v7389 = vshll.u32 %v6333, 16
      %v7391 = vrot.slane %v7389, 5
      %v7392 = vsel %vm337, %v7387, %v7391
      %v7394 = vshrl.u32 %v6334, 16
      %v7396 = vrot.slane %v7394, 4
      %v7397 = vshll.u32 %v6334, 16
      %v7399 = vrot.slane %v7397, 5
      %v7400 = vor.u32 %v7396, %v7399
      %v7401 = vrot.slane %v7400, 4
      %v7403 = vshll.u32 %v6335, 16
      %v7405 = vrot.slane %v7403, 5
      %v7406 = vsel %vm337, %v7401, %v7405
      %v7407 = vshrl.u32 %v6335, 16
      %v7409 = vrot.slane %v7407, 4
      %v7410 = vor.u32 %v7409, %v7405
      %v7411 = vrot.slane %v7410, 4
      %v7413 = vshll.u32 %v6336, 16
      %v7415 = vrot.slane %v7413, 5
      %v7416 = vsel %vm337, %v7411, %v7415
      %v7417 = vunpack.c.l.b16 %v6350
      %v7418 = vunpack.c.l.b16 %v6360
      %v7419 = vunpack.c.l.b16 %v6374
      %v7420 = vunpack.c.l.b16 %v6384
      %v7421 = vunpack.c.l.b16 %v6398
      %v7422 = vunpack.c.l.b16 %v6408
      %v7423 = vunpack.c.l.b16 %v6422
      %v7424 = vunpack.c.l.b16 %v6432
      %v7425 = vunpack.c.l.b16 %v6446
      %v7426 = vunpack.c.l.b16 %v6456
      %v7427 = vunpack.c.l.b16 %v6470
      %v7428 = vunpack.c.l.b16 %v6480
      %v7429 = vunpack.c.l.b16 %v6494
      %v7430 = vunpack.c.l.b16 %v6504
      %v7431 = vunpack.c.l.b16 %v6518
      %v7432 = vunpack.c.l.b16 %v6528
      %v7433 = vunpack.c.l.b16 %v6542
      %v7434 = vunpack.c.l.b16 %v6552
      %v7435 = vunpack.c.l.b16 %v6566
      %v7436 = vunpack.c.l.b16 %v6576
      %v7437 = vunpack.c.l.b16 %v6590
      %v7438 = vunpack.c.l.b16 %v6600
      %v7439 = vunpack.c.l.b16 %v6614
      %v7440 = vunpack.c.l.b16 %v6624
      %v7441 = vunpack.c.l.b16 %v6638
      %v7442 = vunpack.c.l.b16 %v6648
      %v7443 = vunpack.c.l.b16 %v6662
      %v7444 = vunpack.c.l.b16 %v6672
      %v7445 = vunpack.c.l.b16 %v6686
      %v7446 = vunpack.c.l.b16 %v6696
      %v7447 = vunpack.c.l.b16 %v6710
      %v7448 = vunpack.c.l.b16 %v6720
      %v7449 = vunpack.c.l.b16 %v6734
      %v7450 = vunpack.c.l.b16 %v6744
      %v7451 = vunpack.c.l.b16 %v6758
      %v7452 = vunpack.c.l.b16 %v6768
      %v7453 = vunpack.c.l.b16 %v6782
      %v7454 = vunpack.c.l.b16 %v6792
      %v7455 = vunpack.c.l.b16 %v6806
      %v7456 = vunpack.c.l.b16 %v6816
      %v7457 = vunpack.c.l.b16 %v6830
      %v7458 = vunpack.c.l.b16 %v6840
      %v7459 = vunpack.c.l.b16 %v6854
      %v7460 = vunpack.c.l.b16 %v6864
      %v7461 = vunpack.c.l.b16 %v6878
      %v7462 = vunpack.c.l.b16 %v6888
      %v7463 = vunpack.c.l.b16 %v6902
      %v7464 = vunpack.c.l.b16 %v6912
      %v7465 = vunpack.c.l.b16 %v6926
      %v7466 = vunpack.c.l.b16 %v6936
      %v7467 = vunpack.c.l.b16 %v6950
      %v7468 = vunpack.c.l.b16 %v6960
      %v7469 = vunpack.c.l.b16 %v6974
      %v7470 = vunpack.c.l.b16 %v6984
      %v7471 = vunpack.c.l.b16 %v6998
      %v7472 = vunpack.c.l.b16 %v7008
      %v7473 = vunpack.c.l.b16 %v7022
      %v7474 = vunpack.c.l.b16 %v7032
      %v7475 = vunpack.c.l.b16 %v7046
      %v7476 = vunpack.c.l.b16 %v7056
      %v7477 = vunpack.c.l.b16 %v7070
      %v7478 = vunpack.c.l.b16 %v7080
      %v7479 = vunpack.c.l.b16 %v7094
      %v7480 = vunpack.c.l.b16 %v7104
      %v7481 = vunpack.c.l.b16 %v7118
      %v7482 = vunpack.c.l.b16 %v7128
      %v7483 = vunpack.c.l.b16 %v7142
      %v7484 = vunpack.c.l.b16 %v7152
      %v7485 = vunpack.c.l.b16 %v7166
      %v7486 = vunpack.c.l.b16 %v7176
      %v7487 = vunpack.c.l.b16 %v7190
      %v7488 = vunpack.c.l.b16 %v7200
      %v7489 = vunpack.c.l.b16 %v7214
      %v7490 = vunpack.c.l.b16 %v7224
      %v7491 = vunpack.c.l.b16 %v7238
      %v7492 = vunpack.c.l.b16 %v7248
      %v7493 = vunpack.c.l.b16 %v7262
      %v7494 = vunpack.c.l.b16 %v7272
      %v7495 = vunpack.c.l.b16 %v7286
      %v7496 = vunpack.c.l.b16 %v7296
      %v7497 = vunpack.c.l.b16 %v7310
      %v7498 = vunpack.c.l.b16 %v7320
      %v7499 = vunpack.c.l.b16 %v7334
      %v7500 = vunpack.c.l.b16 %v7344
      %v7501 = vunpack.c.l.b16 %v7358
      %v7502 = vunpack.c.l.b16 %v7368
      %v7503 = vunpack.c.l.b16 %v7382
      %v7504 = vunpack.c.l.b16 %v7392
      %v7505 = vunpack.c.l.b16 %v7406
      %v7506 = vunpack.c.l.b16 %v7416
      %v7507 = vpack.c.b16 %v7418, %v7417
      %v7508 = vpack.c.b16 %v7420, %v7419
      %v7509 = vpack.c.b16 %v7422, %v7421
      %v7510 = vpack.c.b16 %v7424, %v7423
      %v7511 = vpack.c.b16 %v7426, %v7425
      %v7512 = vpack.c.b16 %v7428, %v7427
      %v7513 = vpack.c.b16 %v7430, %v7429
      %v7514 = vpack.c.b16 %v7432, %v7431
      %v7515 = vpack.c.b16 %v7434, %v7433
      %v7516 = vpack.c.b16 %v7436, %v7435
      %v7517 = vpack.c.b16 %v7438, %v7437
      %v7518 = vpack.c.b16 %v7440, %v7439
      %v7519 = vpack.c.b16 %v7442, %v7441
      %v7520 = vpack.c.b16 %v7444, %v7443
      %v7521 = vpack.c.b16 %v7446, %v7445
      %v7522 = vpack.c.b16 %v7448, %v7447
      %v7523 = vpack.c.b16 %v7450, %v7449
      %v7524 = vpack.c.b16 %v7452, %v7451
      %v7525 = vpack.c.b16 %v7454, %v7453
      %v7526 = vpack.c.b16 %v7456, %v7455
      %v7527 = vpack.c.b16 %v7458, %v7457
      %v7528 = vpack.c.b16 %v7460, %v7459
      %v7529 = vpack.c.b16 %v7462, %v7461
      %v7530 = vpack.c.b16 %v7464, %v7463
      %v7531 = vpack.c.b16 %v7466, %v7465
      %v7532 = vpack.c.b16 %v7468, %v7467
      %v7533 = vpack.c.b16 %v7470, %v7469
      %v7534 = vpack.c.b16 %v7472, %v7471
      %v7535 = vpack.c.b16 %v7474, %v7473
      %v7536 = vpack.c.b16 %v7476, %v7475
      %v7537 = vpack.c.b16 %v7478, %v7477
      %v7538 = vpack.c.b16 %v7480, %v7479
      %v7539 = vpack.c.b16 %v7482, %v7481
      %v7540 = vpack.c.b16 %v7484, %v7483
      %v7541 = vpack.c.b16 %v7486, %v7485
      %v7542 = vpack.c.b16 %v7488, %v7487
      %v7543 = vpack.c.b16 %v7490, %v7489
      %v7544 = vpack.c.b16 %v7492, %v7491
      %v7545 = vpack.c.b16 %v7494, %v7493
      %v7546 = vpack.c.b16 %v7496, %v7495
      %v7547 = vpack.c.b16 %v7498, %v7497
      %v7548 = vpack.c.b16 %v7500, %v7499
      %v7549 = vpack.c.b16 %v7502, %v7501
      %v7550 = vpack.c.b16 %v7504, %v7503
      %v7551 = vpack.c.b16 %v7506, %v7505
      %7552 = vrot.lane.b32.xlu0 %v7507, 24
      %v7553 = vpop.permute.xlu0 %7552
      %7554 = vrot.lane.b32.xlu0 %v7508, 24
      %v7555 = vpop.permute.xlu0 %7554
      %7556 = vrot.lane.b32.xlu0 %v7509, 24
      %v7557 = vpop.permute.xlu0 %7556
      %7558 = vrot.lane.b32.xlu0 %v7510, 24
      %v7559 = vpop.permute.xlu0 %7558
      %7560 = vrot.lane.b32.xlu0 %v7511, 24
      %v7561 = vpop.permute.xlu0 %7560
      %7562 = vrot.lane.b32.xlu0 %v7512, 24
      %v7563 = vpop.permute.xlu0 %7562
      %7564 = vrot.lane.b32.xlu0 %v7513, 24
      %v7565 = vpop.permute.xlu0 %7564
      %7566 = vrot.lane.b32.xlu0 %v7514, 24
      %v7567 = vpop.permute.xlu0 %7566
      %7568 = vrot.lane.b32.xlu0 %v7515, 24
      %v7569 = vpop.permute.xlu0 %7568
      %7570 = vrot.lane.b32.xlu0 %v7516, 24
      %v7571 = vpop.permute.xlu0 %7570
      %7572 = vrot.lane.b32.xlu0 %v7517, 24
      %v7573 = vpop.permute.xlu0 %7572
      %7574 = vrot.lane.b32.xlu0 %v7518, 24
      %v7575 = vpop.permute.xlu0 %7574
      %7576 = vrot.lane.b32.xlu0 %v7519, 24
      %v7577 = vpop.permute.xlu0 %7576
      %7578 = vrot.lane.b32.xlu0 %v7520, 24
      %v7579 = vpop.permute.xlu0 %7578
      %7580 = vrot.lane.b32.xlu0 %v7521, 24
      %v7581 = vpop.permute.xlu0 %7580
      %7582 = vrot.lane.b32.xlu0 %v7522, 24
      %v7583 = vpop.permute.xlu0 %7582
      %7584 = vrot.lane.b32.xlu0 %v7523, 24
      %v7585 = vpop.permute.xlu0 %7584
      %7586 = vrot.lane.b32.xlu0 %v7524, 24
      %v7587 = vpop.permute.xlu0 %7586
      %7588 = vrot.lane.b32.xlu0 %v7525, 24
      %v7589 = vpop.permute.xlu0 %7588
      %7590 = vrot.lane.b32.xlu0 %v7526, 24
      %v7591 = vpop.permute.xlu0 %7590
      %7592 = vrot.lane.b32.xlu0 %v7527, 24
      %v7593 = vpop.permute.xlu0 %7592
      %7594 = vrot.lane.b32.xlu0 %v7528, 24
      %v7595 = vpop.permute.xlu0 %7594
      %7596 = vrot.lane.b32.xlu0 %v7529, 24
      %v7597 = vpop.permute.xlu0 %7596
      %7598 = vrot.lane.b32.xlu0 %v7530, 24
      %v7599 = vpop.permute.xlu0 %7598
      %7600 = vrot.lane.b32.xlu0 %v7531, 24
      %v7601 = vpop.permute.xlu0 %7600
      %7602 = vrot.lane.b32.xlu0 %v7532, 24
      %v7603 = vpop.permute.xlu0 %7602
      %7604 = vrot.lane.b32.xlu0 %v7533, 24
      %v7605 = vpop.permute.xlu0 %7604
      %7606 = vrot.lane.b32.xlu0 %v7534, 24
      %v7607 = vpop.permute.xlu0 %7606
      %7608 = vrot.lane.b32.xlu0 %v7535, 24
      %v7609 = vpop.permute.xlu0 %7608
      %7610 = vrot.lane.b32.xlu0 %v7536, 24
      %v7611 = vpop.permute.xlu0 %7610
      %7612 = vrot.lane.b32.xlu0 %v7537, 24
      %v7613 = vpop.permute.xlu0 %7612
      %7614 = vrot.lane.b32.xlu0 %v7538, 24
      %v7615 = vpop.permute.xlu0 %7614
      %7616 = vrot.lane.b32.xlu0 %v7539, 24
      %v7617 = vpop.permute.xlu0 %7616
      %7618 = vrot.lane.b32.xlu0 %v7540, 24
      %v7619 = vpop.permute.xlu0 %7618
      %7620 = vrot.lane.b32.xlu0 %v7541, 24
      %v7621 = vpop.permute.xlu0 %7620
      %7622 = vrot.lane.b32.xlu0 %v7542, 24
      %v7623 = vpop.permute.xlu0 %7622
      %7624 = vrot.lane.b32.xlu0 %v7543, 24
      %v7625 = vpop.permute.xlu0 %7624
      %7626 = vrot.lane.b32.xlu0 %v7544, 24
      %v7627 = vpop.permute.xlu0 %7626
      %7628 = vrot.lane.b32.xlu0 %v7545, 24
      %v7629 = vpop.permute.xlu0 %7628
      %7630 = vrot.lane.b32.xlu0 %v7546, 24
      %v7631 = vpop.permute.xlu0 %7630
      %7632 = vrot.lane.b32.xlu0 %v7547, 24
      %v7633 = vpop.permute.xlu0 %7632
      %7634 = vrot.lane.b32.xlu0 %v7548, 24
      %v7635 = vpop.permute.xlu0 %7634
      %7636 = vrot.lane.b32.xlu0 %v7549, 24
      %v7637 = vpop.permute.xlu0 %7636
      %7638 = vrot.lane.b32.xlu0 %v7550, 24
      %v7639 = vpop.permute.xlu0 %7638
      %7640 = vrot.lane.b32.xlu0 %v7551, 24
      %v7641 = vpop.permute.xlu0 %7640
      %vm7687 = vcmask 228544
      %7688 = vst.msk [vmem:[#allocation2] sm:$0xff] %vm7687, %v7553
      %7689 = vst.msk [vmem:[#allocation2 + $0x8] sm:$0xff] %vm7687, %v7555
      %7690 = vst.msk [vmem:[#allocation2 + $0x10] sm:$0xff] %vm7687, %v7557
      %7691 = vst.msk [vmem:[#allocation2 + $0x18] sm:$0xff] %vm7687, %v7559
      %7692 = vst.msk [vmem:[#allocation2 + $0x20] sm:$0xff] %vm7687, %v7561
      %7693 = vst.msk [vmem:[#allocation2 + $0x28] sm:$0xff] %vm7687, %v7563
      %7694 = vst.msk [vmem:[#allocation2 + $0x30] sm:$0xff] %vm7687, %v7565
      %7695 = vst.msk [vmem:[#allocation2 + $0x38] sm:$0xff] %vm7687, %v7567
      %7696 = vst.msk [vmem:[#allocation2 + $0x40] sm:$0xff] %vm7687, %v7569
      %7697 = vst.msk [vmem:[#allocation2 + $0x48] sm:$0xff] %vm7687, %v7571
      %7698 = vst.msk [vmem:[#allocation2 + $0x50] sm:$0xff] %vm7687, %v7573
      %7699 = vst.msk [vmem:[#allocation2 + $0x58] sm:$0xff] %vm7687, %v7575
      %7700 = vst.msk [vmem:[#allocation2 + $0x60] sm:$0xff] %vm7687, %v7577
      %7701 = vst.msk [vmem:[#allocation2 + $0x68] sm:$0xff] %vm7687, %v7579
      %7702 = vst.msk [vmem:[#allocation2 + $0x70] sm:$0xff] %vm7687, %v7581
      %7703 = vst.msk [vmem:[#allocation2 + $0x78] sm:$0xff] %vm7687, %v7583
      %7704 = vst.msk [vmem:[#allocation2 + $0x80] sm:$0xff] %vm7687, %v7585
      %7705 = vst.msk [vmem:[#allocation2 + $0x88] sm:$0xff] %vm7687, %v7587
      %7706 = vst.msk [vmem:[#allocation2 + $0x90] sm:$0xff] %vm7687, %v7589
      %7707 = vst.msk [vmem:[#allocation2 + $0x98] sm:$0xff] %vm7687, %v7591
      %7708 = vst.msk [vmem:[#allocation2 + $0xa0] sm:$0xff] %vm7687, %v7593
      %7709 = vst.msk [vmem:[#allocation2 + $0xa8] sm:$0xff] %vm7687, %v7595
      %7710 = vst.msk [vmem:[#allocation2 + $0xb0] sm:$0xff] %vm7687, %v7597
      %7711 = vst.msk [vmem:[#allocation2 + $0xb8] sm:$0xff] %vm7687, %v7599
      %7712 = vst.msk [vmem:[#allocation2 + $0xc0] sm:$0xff] %vm7687, %v7601
      %7713 = vst.msk [vmem:[#allocation2 + $0xc8] sm:$0xff] %vm7687, %v7603
      %7714 = vst.msk [vmem:[#allocation2 + $0xd0] sm:$0xff] %vm7687, %v7605
      %7715 = vst.msk [vmem:[#allocation2 + $0xd8] sm:$0xff] %vm7687, %v7607
      %7716 = vst.msk [vmem:[#allocation2 + $0xe0] sm:$0xff] %vm7687, %v7609
      %7717 = vst.msk [vmem:[#allocation2 + $0xe8] sm:$0xff] %vm7687, %v7611
      %7718 = vst.msk [vmem:[#allocation2 + $0xf0] sm:$0xff] %vm7687, %v7613
      %7719 = vst.msk [vmem:[#allocation2 + $0xf8] sm:$0xff] %vm7687, %v7615
      %7720 = vst.msk [vmem:[#allocation2 + $0x100] sm:$0xff] %vm7687, %v7617
      %7721 = vst.msk [vmem:[#allocation2 + $0x108] sm:$0xff] %vm7687, %v7619
      %7722 = vst.msk [vmem:[#allocation2 + $0x110] sm:$0xff] %vm7687, %v7621
      %7723 = vst.msk [vmem:[#allocation2 + $0x118] sm:$0xff] %vm7687, %v7623
      %7724 = vst.msk [vmem:[#allocation2 + $0x120] sm:$0xff] %vm7687, %v7625
      %7725 = vst.msk [vmem:[#allocation2 + $0x128] sm:$0xff] %vm7687, %v7627
      %7726 = vst.msk [vmem:[#allocation2 + $0x130] sm:$0xff] %vm7687, %v7629
      %7727 = vst.msk [vmem:[#allocation2 + $0x138] sm:$0xff] %vm7687, %v7631
      %7728 = vst.msk [vmem:[#allocation2 + $0x140] sm:$0xff] %vm7687, %v7633
      %7729 = vst.msk [vmem:[#allocation2 + $0x148] sm:$0xff] %vm7687, %v7635
      %7730 = vst.msk [vmem:[#allocation2 + $0x150] sm:$0xff] %vm7687, %v7637
      %7731 = vst.msk [vmem:[#allocation2 + $0x158] sm:$0xff] %vm7687, %v7639
      %7732 = vst.msk [vmem:[#allocation2 + $0x160] sm:$0xff] %vm7687, %v7641
      %v7733 = vld [vmem:[%s6201] sm:$0xf]
      %v7734 = vld [vmem:[%s6201 + $0x4] sm:$0xf]
      %v7735 = vld [vmem:[%s6201 + $0xc] sm:$0xf]
      %v7736 = vld [vmem:[%s6201 + $0x10] sm:$0xf]
      %v7737 = vld [vmem:[%s6201 + $0x18] sm:$0xf]
      %v7738 = vld [vmem:[%s6201 + $0x1c] sm:$0xf]
      %v7739 = vld [vmem:[%s6201 + $0x24] sm:$0xf]
      %v7740 = vld [vmem:[%s6201 + $0x28] sm:$0xf]
      %v7741 = vld [vmem:[%s6201 + $0x30] sm:$0xf]
      %v7742 = vld [vmem:[%s6201 + $0x34] sm:$0xf]
      %v7743 = vld [vmem:[%s6201 + $0x3c] sm:$0xf]
      %v7744 = vld [vmem:[%s6201 + $0x40] sm:$0xf]
      %v7745 = vld [vmem:[%s6201 + $0x48] sm:$0xf]
      %v7746 = vld [vmem:[%s6201 + $0x4c] sm:$0xf]
      %v7747 = vld [vmem:[%s6201 + $0x54] sm:$0xf]
      %v7748 = vld [vmem:[%s6201 + $0x58] sm:$0xf]
      %v7749 = vld [vmem:[%s6201 + $0x60] sm:$0xf]
      %v7750 = vld [vmem:[%s6201 + $0x64] sm:$0xf]
      %v7751 = vld [vmem:[%s6201 + $0x78] sm:$0xf]
      %v7752 = vld [vmem:[%s6201 + $0x7c] sm:$0xf]
      %v7753 = vld [vmem:[%s6201 + $0x84] sm:$0xf]
      %v7754 = vld [vmem:[%s6201 + $0x88] sm:$0xf]
      %v7755 = vld [vmem:[%s6201 + $0x90] sm:$0xf]
      %v7756 = vld [vmem:[%s6201 + $0x94] sm:$0xf]
      %v7757 = vld [vmem:[%s6201 + $0x9c] sm:$0xf]
      %v7758 = vld [vmem:[%s6201 + $0xa0] sm:$0xf]
      %v7759 = vld [vmem:[%s6201 + $0xa8] sm:$0xf]
      %v7760 = vld [vmem:[%s6201 + $0xac] sm:$0xf]
      %v7761 = vld [vmem:[%s6201 + $0xb4] sm:$0xf]
      %v7762 = vld [vmem:[%s6201 + $0xb8] sm:$0xf]
      %v7763 = vld [vmem:[%s6201 + $0xc0] sm:$0xf]
      %v7764 = vld [vmem:[%s6201 + $0xc4] sm:$0xf]
      %v7765 = vld [vmem:[%s6201 + $0xcc] sm:$0xf]
      %v7766 = vld [vmem:[%s6201 + $0xd0] sm:$0xf]
      %v7767 = vld [vmem:[%s6201 + $0xd8] sm:$0xf]
      %v7768 = vld [vmem:[%s6201 + $0xdc] sm:$0xf]
      %v7769 = vld [vmem:[%s6201 + $0xf0] sm:$0xf]
      %v7770 = vld [vmem:[%s6201 + $0xf4] sm:$0xf]
      %v7771 = vld [vmem:[%s6201 + $0xfc] sm:$0xf]
      %v7772 = vld [vmem:[%s6201 + $0x100] sm:$0xf]
      %v7773 = vld [vmem:[%s6201 + $0x108] sm:$0xf]
      %v7774 = vld [vmem:[%s6201 + $0x10c] sm:$0xf]
      %v7775 = vld [vmem:[%s6201 + $0x114] sm:$0xf]
      %v7776 = vld [vmem:[%s6201 + $0x118] sm:$0xf]
      %v7777 = vld [vmem:[%s6201 + $0x120] sm:$0xf]
      %v7778 = vld [vmem:[%s6201 + $0x124] sm:$0xf]
      %v7779 = vld [vmem:[%s6201 + $0x12c] sm:$0xf]
      %v7780 = vld [vmem:[%s6201 + $0x130] sm:$0xf]
      %v7781 = vld [vmem:[%s6201 + $0x138] sm:$0xf]
      %v7782 = vld [vmem:[%s6201 + $0x13c] sm:$0xf]
      %v7783 = vld [vmem:[%s6201 + $0x144] sm:$0xf]
      %v7784 = vld [vmem:[%s6201 + $0x148] sm:$0xf]
      %v7785 = vld [vmem:[%s6201 + $0x150] sm:$0xf]
      %v7786 = vld [vmem:[%s6201 + $0x154] sm:$0xf]
      %v7787 = vld [vmem:[%s6201 + $0x168] sm:$0xf]
      %v7788 = vld [vmem:[%s6201 + $0x16c] sm:$0xf]
      %v7789 = vld [vmem:[%s6201 + $0x174] sm:$0xf]
      %v7790 = vld [vmem:[%s6201 + $0x178] sm:$0xf]
      %v7791 = vld [vmem:[%s6201 + $0x180] sm:$0xf]
      %v7792 = vld [vmem:[%s6201 + $0x184] sm:$0xf]
      %v7793 = vld [vmem:[%s6201 + $0x18c] sm:$0xf]
      %v7794 = vld [vmem:[%s6201 + $0x190] sm:$0xf]
      %v7795 = vld [vmem:[%s6201 + $0x198] sm:$0xf]
      %v7796 = vld [vmem:[%s6201 + $0x19c] sm:$0xf]
      %v7797 = vld [vmem:[%s6201 + $0x1a4] sm:$0xf]
      %v7798 = vld [vmem:[%s6201 + $0x1a8] sm:$0xf]
      %v7799 = vld [vmem:[%s6201 + $0x1b0] sm:$0xf]
      %v7800 = vld [vmem:[%s6201 + $0x1b4] sm:$0xf]
      %v7801 = vld [vmem:[%s6201 + $0x1bc] sm:$0xf]
      %v7802 = vld [vmem:[%s6201 + $0x1c0] sm:$0xf]
      %v7803 = vld [vmem:[%s6201 + $0x1c8] sm:$0xf]
      %v7804 = vld [vmem:[%s6201 + $0x1cc] sm:$0xf]
      %v7805 = vld [vmem:[%s6201 + $0x1e0] sm:$0xf]
      %v7806 = vld [vmem:[%s6201 + $0x1e4] sm:$0xf]
      %v7807 = vld [vmem:[%s6201 + $0x1ec] sm:$0xf]
      %v7808 = vld [vmem:[%s6201 + $0x1f0] sm:$0xf]
      %v7809 = vld [vmem:[%s6201 + $0x1f8] sm:$0xf]
      %v7810 = vld [vmem:[%s6201 + $0x1fc] sm:$0xf]
      %v7811 = vld [vmem:[%s6201 + $0x204] sm:$0xf]
      %v7812 = vld [vmem:[%s6201 + $0x208] sm:$0xf]
      %v7813 = vld [vmem:[%s6201 + $0x210] sm:$0xf]
      %v7814 = vld [vmem:[%s6201 + $0x214] sm:$0xf]
      %v7815 = vld [vmem:[%s6201 + $0x21c] sm:$0xf]
      %v7816 = vld [vmem:[%s6201 + $0x220] sm:$0xf]
      %v7817 = vld [vmem:[%s6201 + $0x228] sm:$0xf]
      %v7818 = vld [vmem:[%s6201 + $0x22c] sm:$0xf]
      %v7819 = vld [vmem:[%s6201 + $0x234] sm:$0xf]
      %v7820 = vld [vmem:[%s6201 + $0x238] sm:$0xf]
      %v7821 = vld [vmem:[%s6201 + $0x240] sm:$0xf]
      %v7822 = vld [vmem:[%s6201 + $0x244] sm:$0xf]
      %v7913 = vunpack.c.l.b16 %v7733
      %v7914 = vunpack.c.l.b16 %v7734
      %v7915 = vunpack.c.l.b16 %v7735
      %v7916 = vunpack.c.l.b16 %v7736
      %v7917 = vunpack.c.l.b16 %v7737
      %v7918 = vunpack.c.l.b16 %v7738
      %v7919 = vunpack.c.l.b16 %v7739
      %v7920 = vunpack.c.l.b16 %v7740
      %v7921 = vunpack.c.l.b16 %v7741
      %v7922 = vunpack.c.l.b16 %v7742
      %v7923 = vunpack.c.l.b16 %v7743
      %v7924 = vunpack.c.l.b16 %v7744
      %v7925 = vunpack.c.l.b16 %v7745
      %v7926 = vunpack.c.l.b16 %v7746
      %v7927 = vunpack.c.l.b16 %v7747
      %v7928 = vunpack.c.l.b16 %v7748
      %v7929 = vunpack.c.l.b16 %v7749
      %v7930 = vunpack.c.l.b16 %v7750
      %v7931 = vunpack.c.l.b16 %v7751
      %v7932 = vunpack.c.l.b16 %v7752
      %v7933 = vunpack.c.l.b16 %v7753
      %v7934 = vunpack.c.l.b16 %v7754
      %v7935 = vunpack.c.l.b16 %v7755
      %v7936 = vunpack.c.l.b16 %v7756
      %v7937 = vunpack.c.l.b16 %v7757
      %v7938 = vunpack.c.l.b16 %v7758
      %v7939 = vunpack.c.l.b16 %v7759
      %v7940 = vunpack.c.l.b16 %v7760
      %v7941 = vunpack.c.l.b16 %v7761
      %v7942 = vunpack.c.l.b16 %v7762
      %v7943 = vunpack.c.l.b16 %v7763
      %v7944 = vunpack.c.l.b16 %v7764
      %v7945 = vunpack.c.l.b16 %v7765
      %v7946 = vunpack.c.l.b16 %v7766
      %v7947 = vunpack.c.l.b16 %v7767
      %v7948 = vunpack.c.l.b16 %v7768
      %v7949 = vunpack.c.l.b16 %v7769
      %v7950 = vunpack.c.l.b16 %v7770
      %v7951 = vunpack.c.l.b16 %v7771
      %v7952 = vunpack.c.l.b16 %v7772
      %v7953 = vunpack.c.l.b16 %v7773
      %v7954 = vunpack.c.l.b16 %v7774
      %v7955 = vunpack.c.l.b16 %v7775
      %v7956 = vunpack.c.l.b16 %v7776
      %v7957 = vunpack.c.l.b16 %v7777
      %v7958 = vunpack.c.l.b16 %v7778
      %v7959 = vunpack.c.l.b16 %v7779
      %v7960 = vunpack.c.l.b16 %v7780
      %v7961 = vunpack.c.l.b16 %v7781
      %v7962 = vunpack.c.l.b16 %v7782
      %v7963 = vunpack.c.l.b16 %v7783
      %v7964 = vunpack.c.l.b16 %v7784
      %v7965 = vunpack.c.l.b16 %v7785
      %v7966 = vunpack.c.l.b16 %v7786
      %v7967 = vunpack.c.l.b16 %v7787
      %v7968 = vunpack.c.l.b16 %v7788
      %v7969 = vunpack.c.l.b16 %v7789
      %v7970 = vunpack.c.l.b16 %v7790
      %v7971 = vunpack.c.l.b16 %v7791
      %v7972 = vunpack.c.l.b16 %v7792
      %v7973 = vunpack.c.l.b16 %v7793
      %v7974 = vunpack.c.l.b16 %v7794
      %v7975 = vunpack.c.l.b16 %v7795
      %v7976 = vunpack.c.l.b16 %v7796
      %v7977 = vunpack.c.l.b16 %v7797
      %v7978 = vunpack.c.l.b16 %v7798
      %v7979 = vunpack.c.l.b16 %v7799
      %v7980 = vunpack.c.l.b16 %v7800
      %v7981 = vunpack.c.l.b16 %v7801
      %v7982 = vunpack.c.l.b16 %v7802
      %v7983 = vunpack.c.l.b16 %v7803
      %v7984 = vunpack.c.l.b16 %v7804
      %v7985 = vunpack.c.l.b16 %v7805
      %v7986 = vunpack.c.l.b16 %v7806
      %v7987 = vunpack.c.l.b16 %v7807
      %v7988 = vunpack.c.l.b16 %v7808
      %v7989 = vunpack.c.l.b16 %v7809
      %v7990 = vunpack.c.l.b16 %v7810
      %v7991 = vunpack.c.l.b16 %v7811
      %v7992 = vunpack.c.l.b16 %v7812
      %v7993 = vunpack.c.l.b16 %v7813
      %v7994 = vunpack.c.l.b16 %v7814
      %v7995 = vunpack.c.l.b16 %v7815
      %v7996 = vunpack.c.l.b16 %v7816
      %v7997 = vunpack.c.l.b16 %v7817
      %v7998 = vunpack.c.l.b16 %v7818
      %v7999 = vunpack.c.l.b16 %v7819
      %v8000 = vunpack.c.l.b16 %v7820
      %v8001 = vunpack.c.l.b16 %v7821
      %v8002 = vunpack.c.l.b16 %v7822
      %v8003 = vpack.c.b16 %v7914, %v7913
      %v8004 = vpack.c.b16 %v7916, %v7915
      %v8005 = vpack.c.b16 %v7918, %v7917
      %v8006 = vpack.c.b16 %v7920, %v7919
      %v8007 = vpack.c.b16 %v7922, %v7921
      %v8008 = vpack.c.b16 %v7924, %v7923
      %v8009 = vpack.c.b16 %v7926, %v7925
      %v8010 = vpack.c.b16 %v7928, %v7927
      %v8011 = vpack.c.b16 %v7930, %v7929
      %v8012 = vpack.c.b16 %v7932, %v7931
      %v8013 = vpack.c.b16 %v7934, %v7933
      %v8014 = vpack.c.b16 %v7936, %v7935
      %v8015 = vpack.c.b16 %v7938, %v7937
      %v8016 = vpack.c.b16 %v7940, %v7939
      %v8017 = vpack.c.b16 %v7942, %v7941
      %v8018 = vpack.c.b16 %v7944, %v7943
      %v8019 = vpack.c.b16 %v7946, %v7945
      %v8020 = vpack.c.b16 %v7948, %v7947
      %v8021 = vpack.c.b16 %v7950, %v7949
      %v8022 = vpack.c.b16 %v7952, %v7951
      %v8023 = vpack.c.b16 %v7954, %v7953
      %v8024 = vpack.c.b16 %v7956, %v7955
      %v8025 = vpack.c.b16 %v7958, %v7957
      %v8026 = vpack.c.b16 %v7960, %v7959
      %v8027 = vpack.c.b16 %v7962, %v7961
      %v8028 = vpack.c.b16 %v7964, %v7963
      %v8029 = vpack.c.b16 %v7966, %v7965
      %v8030 = vpack.c.b16 %v7968, %v7967
      %v8031 = vpack.c.b16 %v7970, %v7969
      %v8032 = vpack.c.b16 %v7972, %v7971
      %v8033 = vpack.c.b16 %v7974, %v7973
      %v8034 = vpack.c.b16 %v7976, %v7975
      %v8035 = vpack.c.b16 %v7978, %v7977
      %v8036 = vpack.c.b16 %v7980, %v7979
      %v8037 = vpack.c.b16 %v7982, %v7981
      %v8038 = vpack.c.b16 %v7984, %v7983
      %v8039 = vpack.c.b16 %v7986, %v7985
      %v8040 = vpack.c.b16 %v7988, %v7987
      %v8041 = vpack.c.b16 %v7990, %v7989
      %v8042 = vpack.c.b16 %v7992, %v7991
      %v8043 = vpack.c.b16 %v7994, %v7993
      %v8044 = vpack.c.b16 %v7996, %v7995
      %v8045 = vpack.c.b16 %v7998, %v7997
      %v8046 = vpack.c.b16 %v8000, %v7999
      %v8047 = vpack.c.b16 %v8002, %v8001
      %8048 = vrot.lane.b32.xlu0 %v8003, 28
      %v8049 = vpop.permute.xlu0 %8048
      %8050 = vrot.lane.b32.xlu0 %v8004, 28
      %v8051 = vpop.permute.xlu0 %8050
      %8052 = vrot.lane.b32.xlu0 %v8005, 28
      %v8053 = vpop.permute.xlu0 %8052
      %8054 = vrot.lane.b32.xlu0 %v8006, 28
      %v8055 = vpop.permute.xlu0 %8054
      %8056 = vrot.lane.b32.xlu0 %v8007, 28
      %v8057 = vpop.permute.xlu0 %8056
      %8058 = vrot.lane.b32.xlu0 %v8008, 28
      %v8059 = vpop.permute.xlu0 %8058
      %8060 = vrot.lane.b32.xlu0 %v8009, 28
      %v8061 = vpop.permute.xlu0 %8060
      %8062 = vrot.lane.b32.xlu0 %v8010, 28
      %v8063 = vpop.permute.xlu0 %8062
      %8064 = vrot.lane.b32.xlu0 %v8011, 28
      %v8065 = vpop.permute.xlu0 %8064
      %8066 = vrot.lane.b32.xlu0 %v8012, 28
      %v8067 = vpop.permute.xlu0 %8066
      %8068 = vrot.lane.b32.xlu0 %v8013, 28
      %v8069 = vpop.permute.xlu0 %8068
      %8070 = vrot.lane.b32.xlu0 %v8014, 28
      %v8071 = vpop.permute.xlu0 %8070
      %8072 = vrot.lane.b32.xlu0 %v8015, 28
      %v8073 = vpop.permute.xlu0 %8072
      %8074 = vrot.lane.b32.xlu0 %v8016, 28
      %v8075 = vpop.permute.xlu0 %8074
      %8076 = vrot.lane.b32.xlu0 %v8017, 28
      %v8077 = vpop.permute.xlu0 %8076
      %8078 = vrot.lane.b32.xlu0 %v8018, 28
      %v8079 = vpop.permute.xlu0 %8078
      %8080 = vrot.lane.b32.xlu0 %v8019, 28
      %v8081 = vpop.permute.xlu0 %8080
      %8082 = vrot.lane.b32.xlu0 %v8020, 28
      %v8083 = vpop.permute.xlu0 %8082
      %8084 = vrot.lane.b32.xlu0 %v8021, 28
      %v8085 = vpop.permute.xlu0 %8084
      %8086 = vrot.lane.b32.xlu0 %v8022, 28
      %v8087 = vpop.permute.xlu0 %8086
      %8088 = vrot.lane.b32.xlu0 %v8023, 28
      %v8089 = vpop.permute.xlu0 %8088
      %8090 = vrot.lane.b32.xlu0 %v8024, 28
      %v8091 = vpop.permute.xlu0 %8090
      %8092 = vrot.lane.b32.xlu0 %v8025, 28
      %v8093 = vpop.permute.xlu0 %8092
      %8094 = vrot.lane.b32.xlu0 %v8026, 28
      %v8095 = vpop.permute.xlu0 %8094
      %8096 = vrot.lane.b32.xlu0 %v8027, 28
      %v8097 = vpop.permute.xlu0 %8096
      %8098 = vrot.lane.b32.xlu0 %v8028, 28
      %v8099 = vpop.permute.xlu0 %8098
      %8100 = vrot.lane.b32.xlu0 %v8029, 28
      %v8101 = vpop.permute.xlu0 %8100
      %8102 = vrot.lane.b32.xlu0 %v8030, 28
      %v8103 = vpop.permute.xlu0 %8102
      %8104 = vrot.lane.b32.xlu0 %v8031, 28
      %v8105 = vpop.permute.xlu0 %8104
      %8106 = vrot.lane.b32.xlu0 %v8032, 28
      %v8107 = vpop.permute.xlu0 %8106
      %8108 = vrot.lane.b32.xlu0 %v8033, 28
      %v8109 = vpop.permute.xlu0 %8108
      %8110 = vrot.lane.b32.xlu0 %v8034, 28
      %v8111 = vpop.permute.xlu0 %8110
      %8112 = vrot.lane.b32.xlu0 %v8035, 28
      %v8113 = vpop.permute.xlu0 %8112
      %8114 = vrot.lane.b32.xlu0 %v8036, 28
      %v8115 = vpop.permute.xlu0 %8114
      %8116 = vrot.lane.b32.xlu0 %v8037, 28
      %v8117 = vpop.permute.xlu0 %8116
      %8118 = vrot.lane.b32.xlu0 %v8038, 28
      %v8119 = vpop.permute.xlu0 %8118
      %8120 = vrot.lane.b32.xlu0 %v8039, 28
      %v8121 = vpop.permute.xlu0 %8120
      %8122 = vrot.lane.b32.xlu0 %v8040, 28
      %v8123 = vpop.permute.xlu0 %8122
      %8124 = vrot.lane.b32.xlu0 %v8041, 28
      %v8125 = vpop.permute.xlu0 %8124
      %8126 = vrot.lane.b32.xlu0 %v8042, 28
      %v8127 = vpop.permute.xlu0 %8126
      %8128 = vrot.lane.b32.xlu0 %v8043, 28
      %v8129 = vpop.permute.xlu0 %8128
      %8130 = vrot.lane.b32.xlu0 %v8044, 28
      %v8131 = vpop.permute.xlu0 %8130
      %8132 = vrot.lane.b32.xlu0 %v8045, 28
      %v8133 = vpop.permute.xlu0 %8132
      %8134 = vrot.lane.b32.xlu0 %v8046, 28
      %v8135 = vpop.permute.xlu0 %8134
      %8136 = vrot.lane.b32.xlu0 %v8047, 28
      %v8137 = vpop.permute.xlu0 %8136
      %vm8183 = vcmask 261344
      %8184 = vst.msk [vmem:[#allocation2] sm:$0xff] %vm8183, %v8049
      %8185 = vst.msk [vmem:[#allocation2 + $0x8] sm:$0xff] %vm8183, %v8051
      %8186 = vst.msk [vmem:[#allocation2 + $0x10] sm:$0xff] %vm8183, %v8053
      %8187 = vst.msk [vmem:[#allocation2 + $0x18] sm:$0xff] %vm8183, %v8055
      %8188 = vst.msk [vmem:[#allocation2 + $0x20] sm:$0xff] %vm8183, %v8057
      %8189 = vst.msk [vmem:[#allocation2 + $0x28] sm:$0xff] %vm8183, %v8059
      %8190 = vst.msk [vmem:[#allocation2 + $0x30] sm:$0xff] %vm8183, %v8061
      %8191 = vst.msk [vmem:[#allocation2 + $0x38] sm:$0xff] %vm8183, %v8063
      %8192 = vst.msk [vmem:[#allocation2 + $0x40] sm:$0xff] %vm8183, %v8065
      %8193 = vst.msk [vmem:[#allocation2 + $0x48] sm:$0xff] %vm8183, %v8067
      %8194 = vst.msk [vmem:[#allocation2 + $0x50] sm:$0xff] %vm8183, %v8069
      %8195 = vst.msk [vmem:[#allocation2 + $0x58] sm:$0xff] %vm8183, %v8071
      %8196 = vst.msk [vmem:[#allocation2 + $0x60] sm:$0xff] %vm8183, %v8073
      %8197 = vst.msk [vmem:[#allocation2 + $0x68] sm:$0xff] %vm8183, %v8075
      %8198 = vst.msk [vmem:[#allocation2 + $0x70] sm:$0xff] %vm8183, %v8077
      %8199 = vst.msk [vmem:[#allocation2 + $0x78] sm:$0xff] %vm8183, %v8079
      %8200 = vst.msk [vmem:[#allocation2 + $0x80] sm:$0xff] %vm8183, %v8081
      %8201 = vst.msk [vmem:[#allocation2 + $0x88] sm:$0xff] %vm8183, %v8083
      %8202 = vst.msk [vmem:[#allocation2 + $0x90] sm:$0xff] %vm8183, %v8085
      %8203 = vst.msk [vmem:[#allocation2 + $0x98] sm:$0xff] %vm8183, %v8087
      %8204 = vst.msk [vmem:[#allocation2 + $0xa0] sm:$0xff] %vm8183, %v8089
      %8205 = vst.msk [vmem:[#allocation2 + $0xa8] sm:$0xff] %vm8183, %v8091
      %8206 = vst.msk [vmem:[#allocation2 + $0xb0] sm:$0xff] %vm8183, %v8093
      %8207 = vst.msk [vmem:[#allocation2 + $0xb8] sm:$0xff] %vm8183, %v8095
      %8208 = vst.msk [vmem:[#allocation2 + $0xc0] sm:$0xff] %vm8183, %v8097
      %8209 = vst.msk [vmem:[#allocation2 + $0xc8] sm:$0xff] %vm8183, %v8099
      %8210 = vst.msk [vmem:[#allocation2 + $0xd0] sm:$0xff] %vm8183, %v8101
      %8211 = vst.msk [vmem:[#allocation2 + $0xd8] sm:$0xff] %vm8183, %v8103
      %8212 = vst.msk [vmem:[#allocation2 + $0xe0] sm:$0xff] %vm8183, %v8105
      %8213 = vst.msk [vmem:[#allocation2 + $0xe8] sm:$0xff] %vm8183, %v8107
      %8214 = vst.msk [vmem:[#allocation2 + $0xf0] sm:$0xff] %vm8183, %v8109
      %8215 = vst.msk [vmem:[#allocation2 + $0xf8] sm:$0xff] %vm8183, %v8111
      %8216 = vst.msk [vmem:[#allocation2 + $0x100] sm:$0xff] %vm8183, %v8113
      %8217 = vst.msk [vmem:[#allocation2 + $0x108] sm:$0xff] %vm8183, %v8115
      %8218 = vst.msk [vmem:[#allocation2 + $0x110] sm:$0xff] %vm8183, %v8117
      %8219 = vst.msk [vmem:[#allocation2 + $0x118] sm:$0xff] %vm8183, %v8119
      %8220 = vst.msk [vmem:[#allocation2 + $0x120] sm:$0xff] %vm8183, %v8121
      %8221 = vst.msk [vmem:[#allocation2 + $0x128] sm:$0xff] %vm8183, %v8123
      %8222 = vst.msk [vmem:[#allocation2 + $0x130] sm:$0xff] %vm8183, %v8125
      %8223 = vst.msk [vmem:[#allocation2 + $0x138] sm:$0xff] %vm8183, %v8127
      %8224 = vst.msk [vmem:[#allocation2 + $0x140] sm:$0xff] %vm8183, %v8129
      %8225 = vst.msk [vmem:[#allocation2 + $0x148] sm:$0xff] %vm8183, %v8131
      %8226 = vst.msk [vmem:[#allocation2 + $0x150] sm:$0xff] %vm8183, %v8133
      %8227 = vst.msk [vmem:[#allocation2 + $0x158] sm:$0xff] %vm8183, %v8135
      %8228 = vst.msk [vmem:[#allocation2 + $0x160] sm:$0xff] %vm8183, %v8137
      %v8229 = vld [vmem:[%s1] sm:$0xf]
      %v8230 = vld [vmem:[%s1 + $0x4] sm:$0xf]
      %v8231 = vld [vmem:[%s1 + $0x8] sm:$0xf]
      %v8232 = vld [vmem:[%s1 + $0xc] sm:$0xf]
      %v8233 = vld [vmem:[%s1 + $0x10] sm:$0xf]
      %v8234 = vld [vmem:[%s1 + $0x14] sm:$0xf]
      %v8235 = vld [vmem:[%s1 + $0x18] sm:$0xf]
      %v8236 = vld [vmem:[%s1 + $0x1c] sm:$0xf]
      %v8237 = vld [vmem:[#allocation2] sm:$0xff]
      %v8238 = vld [vmem:[#allocation2 + $0x8] sm:$0xff]
      %v8239 = vld [vmem:[#allocation2 + $0x10] sm:$0xff]
      %v8240 = vld [vmem:[#allocation2 + $0x18] sm:$0xff]
      %v8241 = vld [vmem:[#allocation2 + $0x20] sm:$0xff]
      %v8242 = vld [vmem:[#allocation2 + $0x28] sm:$0xff]
      %v8243 = vld [vmem:[#allocation2 + $0x30] sm:$0xff]
      %v8244 = vld [vmem:[#allocation2 + $0x38] sm:$0xff]
      %v8245 = vld [vmem:[#allocation2 + $0x40] sm:$0xff]
      %v8246 = vld [vmem:[#allocation2 + $0x48] sm:$0xff]
      %v8247 = vld [vmem:[#allocation2 + $0x50] sm:$0xff]
      %v8248 = vld [vmem:[#allocation2 + $0x58] sm:$0xff]
      %v8249 = vld [vmem:[#allocation2 + $0x60] sm:$0xff]
      %v8250 = vld [vmem:[#allocation2 + $0x68] sm:$0xff]
      %v8251 = vld [vmem:[#allocation2 + $0x70] sm:$0xff]
      %v8252 = vld [vmem:[#allocation2 + $0x78] sm:$0xff]
      %v8253 = vld [vmem:[#allocation2 + $0x80] sm:$0xff]
      %v8254 = vld [vmem:[#allocation2 + $0x88] sm:$0xff]
      %v8255 = vld [vmem:[#allocation2 + $0x90] sm:$0xff]
      %v8256 = vld [vmem:[#allocation2 + $0x98] sm:$0xff]
      %v8257 = vld [vmem:[#allocation2 + $0xa0] sm:$0xff]
      %v8258 = vld [vmem:[#allocation2 + $0xa8] sm:$0xff]
      %v8259 = vld [vmem:[#allocation2 + $0xb0] sm:$0xff]
      %v8260 = vld [vmem:[#allocation2 + $0xb8] sm:$0xff]
      %v8261 = vld [vmem:[#allocation2 + $0xc0] sm:$0xff]
      %v8262 = vld [vmem:[#allocation2 + $0xc8] sm:$0xff]
      %v8263 = vld [vmem:[#allocation2 + $0xd0] sm:$0xff]
      %v8264 = vld [vmem:[#allocation2 + $0xd8] sm:$0xff]
      %v8265 = vld [vmem:[#allocation2 + $0xe0] sm:$0xff]
      %v8266 = vld [vmem:[#allocation2 + $0xe8] sm:$0xff]
      %v8267 = vld [vmem:[#allocation2 + $0xf0] sm:$0xff]
      %v8268 = vld [vmem:[#allocation2 + $0xf8] sm:$0xff]
      %v8269 = vld [vmem:[#allocation2 + $0x100] sm:$0xff]
      %v8270 = vld [vmem:[#allocation2 + $0x108] sm:$0xff]
      %v8271 = vld [vmem:[#allocation2 + $0x110] sm:$0xff]
      %v8272 = vld [vmem:[#allocation2 + $0x118] sm:$0xff]
      %v8273 = vld [vmem:[#allocation2 + $0x120] sm:$0xff]
      %v8274 = vld [vmem:[#allocation2 + $0x128] sm:$0xff]
      %v8275 = vld [vmem:[#allocation2 + $0x130] sm:$0xff]
      %v8276 = vld [vmem:[#allocation2 + $0x138] sm:$0xff]
      %v8277 = vld [vmem:[#allocation2 + $0x140] sm:$0xff]
      %v8278 = vld [vmem:[#allocation2 + $0x148] sm:$0xff]
      %v8279 = vld [vmem:[#allocation2 + $0x150] sm:$0xff]
      %v8280 = vld [vmem:[#allocation2 + $0x158] sm:$0xff]
      %v8281 = vld [vmem:[#allocation2 + $0x160] sm:$0xff]
      %v8282 = vld [vmem:[%s2] sm:$0xff]
      %v8283 = vld [vmem:[%s2 + $0x8] sm:$0xff]
      %v8284 = vld [vmem:[%s2 + $0x10] sm:$0xff]
      %v8285 = vld [vmem:[%s2 + $0x18] sm:$0xff]
      %v8286 = vld [vmem:[%s2 + $0x20] sm:$0xff]
      %v8287 = vld [vmem:[%s2 + $0x28] sm:$0xff]
      %v8288 = vld [vmem:[%s2 + $0x30] sm:$0xff]
      %v8289 = vld [vmem:[%s2 + $0x38] sm:$0xff]
      %8291 = vset.pattern.permute.xlu0 0
      %8292 = vperm.xlu0 %8291, %v8282
      %v8293 = vpop.permute.xlu0 %8292
      %8296 = vset.pattern.permute.xlu0 0
      %8297 = vperm.xlu0 %8296, %v8283
      %v8298 = vpop.permute.xlu0 %8297
      %8301 = vset.pattern.permute.xlu0 0
      %8302 = vperm.xlu0 %8301, %v8284
      %v8303 = vpop.permute.xlu0 %8302
      %8306 = vset.pattern.permute.xlu0 0
      %8307 = vperm.xlu0 %8306, %v8285
      %v8308 = vpop.permute.xlu0 %8307
      %8311 = vset.pattern.permute.xlu0 0
      %8312 = vperm.xlu0 %8311, %v8286
      %v8313 = vpop.permute.xlu0 %8312
      %8316 = vset.pattern.permute.xlu0 0
      %8317 = vperm.xlu0 %8316, %v8287
      %v8318 = vpop.permute.xlu0 %8317
      %8321 = vset.pattern.permute.xlu0 0
      %8322 = vperm.xlu0 %8321, %v8288
      %v8323 = vpop.permute.xlu0 %8322
      %8326 = vset.pattern.permute.xlu0 0
      %8327 = vperm.xlu0 %8326, %v8289
      %v8328 = vpop.permute.xlu0 %8327
      %v8338 = vunpack.c.l.b16 %v8229
      %v8339 = vunpack.c.l.b16 %v8230
      %v8340 = vunpack.c.l.b16 %v8231
      %v8341 = vunpack.c.l.b16 %v8232
      %v8342 = vunpack.c.l.b16 %v8233
      %v8343 = vunpack.c.l.b16 %v8234
      %v8344 = vunpack.c.l.b16 %v8235
      %v8345 = vunpack.c.l.b16 %v8236
      %v8346 = vpack.c.b16 %v8339, %v8338
      %v8347 = vpack.c.b16 %v8341, %v8340
      %v8348 = vpack.c.b16 %v8343, %v8342
      %v8349 = vpack.c.b16 %v8345, %v8344
      %vm8350 = vcmask 261120
      %v8352 = vsel %vm8350, %v8346, 0
      %v8355 = vsel %vm8350, %v8347, 0
      %v8358 = vsel %vm8350, %v8348, 0
      %v8361 = vsel %vm8350, %v8349, 0
      %v8364 = vsel %vm8350, %v8237, 0
      %v8367 = vsel %vm8350, %v8238, 0
      %v8370 = vsel %vm8350, %v8239, 0
      %v8373 = vsel %vm8350, %v8240, 0
      %v8376 = vsel %vm8350, %v8241, 0
      %v8379 = vsel %vm8350, %v8242, 0
      %v8382 = vsel %vm8350, %v8243, 0
      %v8385 = vsel %vm8350, %v8244, 0
      %v8388 = vsel %vm8350, %v8245, 0
      %v8391 = vsel %vm8350, %v8246, 0
      %v8394 = vsel %vm8350, %v8247, 0
      %v8397 = vsel %vm8350, %v8248, 0
      %v8400 = vsel %vm8350, %v8249, 0
      %v8403 = vsel %vm8350, %v8250, 0
      %v8406 = vsel %vm8350, %v8251, 0
      %v8409 = vsel %vm8350, %v8252, 0
      %v8412 = vsel %vm8350, %v8253, 0
      %v8415 = vsel %vm8350, %v8254, 0
      %v8418 = vsel %vm8350, %v8255, 0
      %v8421 = vsel %vm8350, %v8256, 0
      %v8424 = vsel %vm8350, %v8257, 0
      %v8427 = vsel %vm8350, %v8258, 0
      %v8430 = vsel %vm8350, %v8259, 0
      %v8433 = vsel %vm8350, %v8260, 0
      %v8436 = vsel %vm8350, %v8261, 0
      %v8439 = vsel %vm8350, %v8262, 0
      %v8442 = vsel %vm8350, %v8263, 0
      %v8445 = vsel %vm8350, %v8264, 0
      %v8448 = vsel %vm8350, %v8265, 0
      %v8451 = vsel %vm8350, %v8266, 0
      %v8454 = vsel %vm8350, %v8267, 0
      %v8457 = vsel %vm8350, %v8268, 0
      %v8460 = vsel %vm8350, %v8269, 0
      %v8463 = vsel %vm8350, %v8270, 0
      %v8466 = vsel %vm8350, %v8271, 0
      %v8469 = vsel %vm8350, %v8272, 0
      %v8472 = vsel %vm8350, %v8273, 0
      %v8475 = vsel %vm8350, %v8274, 0
      %v8478 = vsel %vm8350, %v8275, 0
      %v8481 = vsel %vm8350, %v8276, 0
      %v8484 = vsel %vm8350, %v8277, 0
      %v8487 = vsel %vm8350, %v8278, 0
      %v8490 = vsel %vm8350, %v8279, 0
      %v8493 = vsel %vm8350, %v8280, 0
      %v8496 = vsel %vm8350, %v8281, 0
      %8498 = vmatprep.subr.bf16.mxu0 0
      %8499 = vmatpush1.bf16.xpose.msra.mxu0 %v8364
      %8500 = vmatprep.subr.bf16.mxu0 0
      %8501 = vmatpush1.bf16.xpose.msra.mxu0 %v8367
      %8502 = vmatprep.subr.bf16.mxu0 0
      %8503 = vmatpush1.bf16.xpose.msra.mxu0 %v8370
      %8504 = vmatprep.subr.bf16.mxu0 0
      %8505 = vmatpush1.bf16.xpose.msra.mxu0 %v8373
      %8506 = vmatprep.subr.bf16.mxu0 0
      %8507 = vmatpush1.bf16.xpose.msra.mxu0 %v8376
      %8508 = vmatprep.subr.bf16.mxu0 0
      %8509 = vmatpush1.bf16.xpose.msra.mxu0 %v8379
      %8510 = vmatprep.subr.bf16.mxu0 0
      %8511 = vmatpush1.bf16.xpose.msra.mxu0 %v8382
      %8512 = vmatprep.subr.bf16.mxu0 0
      %8513 = vmatpush1.bf16.xpose.msra.mxu0 %v8385
      %8514 = vmatprep.subr.bf16.mxu0 0
      %8515 = vmatpush1.bf16.xpose.msra.mxu0 %v8388
      %8516 = vmatprep.subr.bf16.mxu0 0
      %8517 = vmatpush1.bf16.xpose.msra.mxu0 %v8391
      %8518 = vmatprep.subr.bf16.mxu0 0
      %8519 = vmatpush1.bf16.xpose.msra.mxu0 %v8394
      %8520 = vmatprep.subr.bf16.mxu0 0
      %8521 = vmatpush1.bf16.xpose.msra.mxu0 %v8397
      %8522 = vmatprep.subr.bf16.mxu0 0
      %8523 = vmatpush1.bf16.xpose.msra.mxu0 %v8400
      %8524 = vmatprep.subr.bf16.mxu0 0
      %8525 = vmatpush1.bf16.xpose.msra.mxu0 %v8403
      %8526 = vmatprep.subr.bf16.mxu0 0
      %8527 = vmatpush1.bf16.xpose.msra.mxu0 %v8406
      %8528 = vmatprep.subr.bf16.mxu0 0
      %8529 = vmatpush1.bf16.xpose.msra.mxu0 %v8409
      %8530 = vmatprep.mubr.bf16.mxu0 0
      %8531 = vmatmul.mubr.bf16.gmra.mrb[0].mxu0 %v8352
      %v8532 = vpop.f32.mrb[0].mxu0
      %v8533 = vadd.f32 %v8293, %v8532
      %v8534 = vpop.f32.mrb[0].mxu0
      %v8535 = vadd.f32 %v8293, %v8534
      %v8536 = vpop.f32.mrb[0].mxu0
      %v8537 = vadd.f32 %v8298, %v8536
      %v8538 = vpop.f32.mrb[0].mxu0
      %v8539 = vadd.f32 %v8298, %v8538
      %8540 = vmatprep.mubr.bf16.mxu0 0
      %8541 = vmatmul.mubr.bf16.gmra.mrb[0].mxu0 %v8355
      %v8542 = vpop.f32.mrb[0].mxu0
      %v8543 = vadd.f32 %v8303, %v8542
      %v8544 = vpop.f32.mrb[0].mxu0
      %v8545 = vadd.f32 %v8303, %v8544
      %v8546 = vpop.f32.mrb[0].mxu0
      %v8547 = vadd.f32 %v8308, %v8546
      %v8548 = vpop.f32.mrb[0].mxu0
      %v8549 = vadd.f32 %v8308, %v8548
      %8550 = vmatprep.mubr.bf16.mxu0 0
      %8551 = vmatmul.mubr.bf16.gmra.mrb[0].mxu0 %v8358
      %v8552 = vpop.f32.mrb[0].mxu0
      %v8553 = vadd.f32 %v8313, %v8552
      %v8554 = vpop.f32.mrb[0].mxu0
      %v8555 = vadd.f32 %v8313, %v8554
      %v8556 = vpop.f32.mrb[0].mxu0
      %v8557 = vadd.f32 %v8318, %v8556
      %v8558 = vpop.f32.mrb[0].mxu0
      %v8559 = vadd.f32 %v8318, %v8558
      %8560 = vmatprep.mubr.bf16.mxu0 0
      %8561 = vmatmul.mubr.bf16.gmra.mrb[0].mxu0 %v8361
      %v8562 = vpop.f32.mrb[0].mxu0
      %v8563 = vadd.f32 %v8323, %v8562
      %v8564 = vpop.f32.mrb[0].mxu0
      %v8565 = vadd.f32 %v8323, %v8564
      %v8566 = vpop.f32.mrb[0].mxu0
      %v8567 = vadd.f32 %v8328, %v8566
      %v8568 = vpop.f32.mrb[0].mxu0
      %v8569 = vadd.f32 %v8328, %v8568
      %8570 = vdwg.mxu0
      %8571 = vmatprep.subr.bf16.mxu0 0
      %8572 = vmatpush1.bf16.xpose.msra.mxu0 %v8412
      %8573 = vmatprep.subr.bf16.mxu0 0
      %8574 = vmatpush1.bf16.xpose.msra.mxu0 %v8415
      %8575 = vmatprep.subr.bf16.mxu0 0
      %8576 = vmatpush1.bf16.xpose.msra.mxu0 %v8418
      %8577 = vmatprep.subr.bf16.mxu0 0
      %8578 = vmatpush1.bf16.xpose.msra.mxu0 %v8421
      %8579 = vmatprep.subr.bf16.mxu0 0
      %8580 = vmatpush1.bf16.xpose.msra.mxu0 %v8424
      %8581 = vmatprep.subr.bf16.mxu0 0
      %8582 = vmatpush1.bf16.xpose.msra.mxu0 %v8427
      %8583 = vmatprep.subr.bf16.mxu0 0
      %8584 = vmatpush1.bf16.xpose.msra.mxu0 %v8430
      %8585 = vmatprep.subr.bf16.mxu0 0
      %8586 = vmatpush1.bf16.xpose.msra.mxu0 %v8433
      %8587 = vmatprep.subr.bf16.mxu0 0
      %8588 = vmatpush1.bf16.xpose.msra.mxu0 %v8436
      %8589 = vmatprep.subr.bf16.mxu0 0
      %8590 = vmatpush1.bf16.xpose.msra.mxu0 %v8439
      %8591 = vmatprep.subr.bf16.mxu0 0
      %8592 = vmatpush1.bf16.xpose.msra.mxu0 %v8442
      %8593 = vmatprep.subr.bf16.mxu0 0
      %8594 = vmatpush1.bf16.xpose.msra.mxu0 %v8445
      %8595 = vmatprep.subr.bf16.mxu0 0
      %8596 = vmatpush1.bf16.xpose.msra.mxu0 %v8448
      %8597 = vmatprep.subr.bf16.mxu0 0
      %8598 = vmatpush1.bf16.xpose.msra.mxu0 %v8451
      %8599 = vmatprep.subr.bf16.mxu0 0
      %8600 = vmatpush1.bf16.xpose.msra.mxu0 %v8454
      %8601 = vmatprep.subr.bf16.mxu0 0
      %8602 = vmatpush1.bf16.xpose.msra.mxu0 %v8457
      %8603 = vmatprep.mubr.bf16.mxu0 0
      %8604 = vmatmul.mubr.bf16.gmra.mrb[0].mxu0 %v8352
      %v8605 = vpop.f32.mrb[0].mxu0
      %v8606 = vadd.f32 %v8293, %v8605
      %v8607 = vpop.f32.mrb[0].mxu0
      %v8608 = vadd.f32 %v8293, %v8607
      %v8609 = vpop.f32.mrb[0].mxu0
      %v8610 = vadd.f32 %v8298, %v8609
      %v8611 = vpop.f32.mrb[0].mxu0
      %v8612 = vadd.f32 %v8298, %v8611
      %8613 = vmatprep.mubr.bf16.mxu0 0
      %8614 = vmatmul.mubr.bf16.gmra.mrb[0].mxu0 %v8355
      %v8615 = vpop.f32.mrb[0].mxu0
      %v8616 = vadd.f32 %v8303, %v8615
      %v8617 = vpop.f32.mrb[0].mxu0
      %v8618 = vadd.f32 %v8303, %v8617
      %v8619 = vpop.f32.mrb[0].mxu0
      %v8620 = vadd.f32 %v8308, %v8619
      %v8621 = vpop.f32.mrb[0].mxu0
      %v8622 = vadd.f32 %v8308, %v8621
      %8623 = vmatprep.mubr.bf16.mxu0 0
      %8624 = vmatmul.mubr.bf16.gmra.mrb[0].mxu0 %v8358
      %v8625 = vpop.f32.mrb[0].mxu0
      %v8626 = vadd.f32 %v8313, %v8625
      %v8627 = vpop.f32.mrb[0].mxu0
      %v8628 = vadd.f32 %v8313, %v8627
      %v8629 = vpop.f32.mrb[0].mxu0
      %v8630 = vadd.f32 %v8318, %v8629
      %v8631 = vpop.f32.mrb[0].mxu0
      %v8632 = vadd.f32 %v8318, %v8631
      %8633 = vmatprep.mubr.bf16.mxu0 0
      %8634 = vmatmul.mubr.bf16.gmra.mrb[0].mxu0 %v8361
      %v8635 = vpop.f32.mrb[0].mxu0
      %v8636 = vadd.f32 %v8323, %v8635
      %v8637 = vpop.f32.mrb[0].mxu0
      %v8638 = vadd.f32 %v8323, %v8637
      %v8639 = vpop.f32.mrb[0].mxu0
      %v8640 = vadd.f32 %v8328, %v8639
      %v8641 = vpop.f32.mrb[0].mxu0
      %v8642 = vadd.f32 %v8328, %v8641
      %8643 = vdwg.mxu0
      %8644 = vmatprep.subr.bf16.mxu0 0
      %8645 = vmatpush1.bf16.xpose.msra.mxu0 %v8460
      %8646 = vmatprep.subr.bf16.mxu0 0
      %8647 = vmatpush1.bf16.xpose.msra.mxu0 %v8463
      %8648 = vmatprep.subr.bf16.mxu0 0
      %8649 = vmatpush1.bf16.xpose.msra.mxu0 %v8466
      %8650 = vmatprep.subr.bf16.mxu0 0
      %8651 = vmatpush1.bf16.xpose.msra.mxu0 %v8469
      %8652 = vmatprep.subr.bf16.mxu0 0
      %8653 = vmatpush1.bf16.xpose.msra.mxu0 %v8472
      %8654 = vmatprep.subr.bf16.mxu0 0
      %8655 = vmatpush1.bf16.xpose.msra.mxu0 %v8475
      %8656 = vmatprep.subr.bf16.mxu0 0
      %8657 = vmatpush1.bf16.xpose.msra.mxu0 %v8478
      %8658 = vmatprep.subr.bf16.mxu0 0
      %8659 = vmatpush1.bf16.xpose.msra.mxu0 %v8481
      %8660 = vmatprep.subr.bf16.mxu0 0
      %8661 = vmatpush1.bf16.xpose.msra.mxu0 %v8484
      %8662 = vmatprep.subr.bf16.mxu0 0
      %8663 = vmatpush1.bf16.xpose.msra.mxu0 %v8487
      %8664 = vmatprep.subr.bf16.mxu0 0
      %8665 = vmatpush1.bf16.xpose.msra.mxu0 %v8490
      %8666 = vmatprep.subr.bf16.mxu0 0
      %8667 = vmatpush1.bf16.xpose.msra.mxu0 %v8493
      %8668 = vmatprep.subr.bf16.mxu0 0
      %8669 = vmatpush1.bf16.xpose.msra.mxu0 %v8496
      %8670 = vmatprep.subr.bf16.mxu0 0
      %8671 = vmatpush1.bf16.xpose.msra.mxu0 0
      %8672 = vmatprep.subr.bf16.mxu0 0
      %8673 = vmatpush1.bf16.xpose.msra.mxu0 0
      %8674 = vmatprep.subr.bf16.mxu0 0
      %8675 = vmatpush1.bf16.xpose.msra.mxu0 0
      %8676 = vmatprep.mubr.bf16.mxu0 0
      %8677 = vmatmul.mubr.bf16.gmra.mrb[0].mxu0 %v8352
      %v8678 = vpop.f32.mrb[0].mxu0
      %v8679 = vadd.f32 %v8293, %v8678
      %v8680 = vpop.f32.mrb[0].mxu0
      %v8681 = vadd.f32 %v8293, %v8680
      %v8682 = vpop.f32.mrb[0].mxu0
      %v8683 = vadd.f32 %v8298, %v8682
      %v8684 = vpop.f32.mrb[0].mxu0
      %v8685 = vadd.f32 %v8298, %v8684
      %8686 = vmatprep.mubr.bf16.mxu0 0
      %8687 = vmatmul.mubr.bf16.gmra.mrb[0].mxu0 %v8355
      %v8688 = vpop.f32.mrb[0].mxu0
      %v8689 = vadd.f32 %v8303, %v8688
      %v8690 = vpop.f32.mrb[0].mxu0
      %v8691 = vadd.f32 %v8303, %v8690
      %v8692 = vpop.f32.mrb[0].mxu0
      %v8693 = vadd.f32 %v8308, %v8692
      %v8694 = vpop.f32.mrb[0].mxu0
      %v8695 = vadd.f32 %v8308, %v8694
      %8696 = vmatprep.mubr.bf16.mxu0 0
      %8697 = vmatmul.mubr.bf16.gmra.mrb[0].mxu0 %v8358
      %v8698 = vpop.f32.mrb[0].mxu0
      %v8699 = vadd.f32 %v8313, %v8698
      %v8700 = vpop.f32.mrb[0].mxu0
      %v8701 = vadd.f32 %v8313, %v8700
      %v8702 = vpop.f32.mrb[0].mxu0
      %v8703 = vadd.f32 %v8318, %v8702
      %v8704 = vpop.f32.mrb[0].mxu0
      %v8705 = vadd.f32 %v8318, %v8704
      %8706 = vmatprep.mubr.bf16.mxu0 0
      %8707 = vmatmul.mubr.bf16.gmra.mrb[0].mxu0 %v8361
      %v8708 = vpop.f32.mrb[0].mxu0
      %v8709 = vadd.f32 %v8323, %v8708
      %v8710 = vpop.f32.mrb[0].mxu0
      %v8711 = vadd.f32 %v8323, %v8710
      %v8712 = vpop.f32.mrb[0].mxu0
      %v8713 = vadd.f32 %v8328, %v8712
      %v8714 = vpop.f32.mrb[0].mxu0
      %v8715 = vadd.f32 %v8328, %v8714
      %8716 = vdwg.mxu0
      %v8717 = vmax.f32 %v8533, 0.0
      %v8718 = vmax.f32 %v8535, 0.0
      %v8719 = vmax.f32 %v8606, 0.0
      %v8720 = vmax.f32 %v8608, 0.0
      %v8721 = vmax.f32 %v8679, 0.0
      %v8722 = vmax.f32 %v8681, 0.0
      %v8723 = vmax.f32 %v8537, 0.0
      %v8724 = vmax.f32 %v8539, 0.0
      %v8725 = vmax.f32 %v8610, 0.0
      %v8726 = vmax.f32 %v8612, 0.0
      %v8727 = vmax.f32 %v8683, 0.0
      %v8728 = vmax.f32 %v8685, 0.0
      %v8729 = vmax.f32 %v8543, 0.0
      %v8730 = vmax.f32 %v8545, 0.0
      %v8731 = vmax.f32 %v8616, 0.0
      %v8732 = vmax.f32 %v8618, 0.0
      %v8733 = vmax.f32 %v8689, 0.0
      %v8734 = vmax.f32 %v8691, 0.0
      %v8735 = vmax.f32 %v8547, 0.0
      %v8736 = vmax.f32 %v8549, 0.0
      %v8737 = vmax.f32 %v8620, 0.0
      %v8738 = vmax.f32 %v8622, 0.0
      %v8739 = vmax.f32 %v8693, 0.0
      %v8740 = vmax.f32 %v8695, 0.0
      %v8741 = vmax.f32 %v8553, 0.0
      %v8742 = vmax.f32 %v8555, 0.0
      %v8743 = vmax.f32 %v8626, 0.0
      %v8744 = vmax.f32 %v8628, 0.0
      %v8745 = vmax.f32 %v8699, 0.0
      %v8746 = vmax.f32 %v8701, 0.0
      %v8747 = vmax.f32 %v8557, 0.0
      %v8748 = vmax.f32 %v8559, 0.0
      %v8749 = vmax.f32 %v8630, 0.0
      %v8750 = vmax.f32 %v8632, 0.0
      %v8751 = vmax.f32 %v8703, 0.0
      %v8752 = vmax.f32 %v8705, 0.0
      %v8753 = vmax.f32 %v8563, 0.0
      %v8754 = vmax.f32 %v8565, 0.0
      %v8755 = vmax.f32 %v8636, 0.0
      %v8756 = vmax.f32 %v8638, 0.0
      %v8757 = vmax.f32 %v8709, 0.0
      %v8758 = vmax.f32 %v8711, 0.0
      %v8759 = vmax.f32 %v8567, 0.0
      %v8760 = vmax.f32 %v8569, 0.0
      %v8761 = vmax.f32 %v8640, 0.0
      %v8762 = vmax.f32 %v8642, 0.0
      %v8763 = vmax.f32 %v8713, 0.0
      %v8764 = vmax.f32 %v8715, 0.0
      %8765 = vst [vmem:[%s192] sm:$0xff] %v8717
      %8766 = vst [vmem:[%s192 + $0x8] sm:$0xff] %v8718
      %8767 = vst [vmem:[%s192 + $0x10] sm:$0xff] %v8719
      %8768 = vst [vmem:[%s192 + $0x18] sm:$0xff] %v8720
      %8769 = vst [vmem:[%s192 + $0x20] sm:$0xff] %v8721
      %vm8770 = vcmask 654336
      %8771 = vst.msk [vmem:[%s192 + $0x28] sm:$0xff] %vm8770, %v8722
      %8772 = vst [vmem:[%s192 + $0x30] sm:$0xff] %v8723
      %8773 = vst [vmem:[%s192 + $0x38] sm:$0xff] %v8724
      %8774 = vst [vmem:[%s192 + $0x40] sm:$0xff] %v8725
      %8775 = vst [vmem:[%s192 + $0x48] sm:$0xff] %v8726
      %8776 = vst [vmem:[%s192 + $0x50] sm:$0xff] %v8727
      %8777 = vst.msk [vmem:[%s192 + $0x58] sm:$0xff] %vm8770, %v8728
      %8778 = vst [vmem:[%s192 + $0x60] sm:$0xff] %v8729
      %8779 = vst [vmem:[%s192 + $0x68] sm:$0xff] %v8730
      %8780 = vst [vmem:[%s192 + $0x70] sm:$0xff] %v8731
      %8781 = vst [vmem:[%s192 + $0x78] sm:$0xff] %v8732
      %8782 = vst [vmem:[%s192 + $0x80] sm:$0xff] %v8733
      %8783 = vst.msk [vmem:[%s192 + $0x88] sm:$0xff] %vm8770, %v8734
      %8784 = vst [vmem:[%s192 + $0x90] sm:$0xff] %v8735
      %8785 = vst [vmem:[%s192 + $0x98] sm:$0xff] %v8736
      %8786 = vst [vmem:[%s192 + $0xa0] sm:$0xff] %v8737
      %8787 = vst [vmem:[%s192 + $0xa8] sm:$0xff] %v8738
      %8788 = vst [vmem:[%s192 + $0xb0] sm:$0xff] %v8739
      %8789 = vst.msk [vmem:[%s192 + $0xb8] sm:$0xff] %vm8770, %v8740
      %8790 = vst [vmem:[%s192 + $0xc0] sm:$0xff] %v8741
      %8791 = vst [vmem:[%s192 + $0xc8] sm:$0xff] %v8742
      %8792 = vst [vmem:[%s192 + $0xd0] sm:$0xff] %v8743
      %8793 = vst [vmem:[%s192 + $0xd8] sm:$0xff] %v8744
      %8794 = vst [vmem:[%s192 + $0xe0] sm:$0xff] %v8745
      %8795 = vst.msk [vmem:[%s192 + $0xe8] sm:$0xff] %vm8770, %v8746
      %8796 = vst [vmem:[%s192 + $0xf0] sm:$0xff] %v8747
      %8797 = vst [vmem:[%s192 + $0xf8] sm:$0xff] %v8748
      %8798 = vst [vmem:[%s192 + $0x100] sm:$0xff] %v8749
      %8799 = vst [vmem:[%s192 + $0x108] sm:$0xff] %v8750
      %8800 = vst [vmem:[%s192 + $0x110] sm:$0xff] %v8751
      %8801 = vst.msk [vmem:[%s192 + $0x118] sm:$0xff] %vm8770, %v8752
      %8802 = vst [vmem:[%s192 + $0x120] sm:$0xff] %v8753
      %8803 = vst [vmem:[%s192 + $0x128] sm:$0xff] %v8754
      %8804 = vst [vmem:[%s192 + $0x130] sm:$0xff] %v8755
      %8805 = vst [vmem:[%s192 + $0x138] sm:$0xff] %v8756
      %8806 = vst [vmem:[%s192 + $0x140] sm:$0xff] %v8757
      %8807 = vst.msk [vmem:[%s192 + $0x148] sm:$0xff] %vm8770, %v8758
      %8808 = vst [vmem:[%s192 + $0x150] sm:$0xff] %v8759
      %8809 = vst [vmem:[%s192 + $0x158] sm:$0xff] %v8760
      %8810 = vst [vmem:[%s192 + $0x160] sm:$0xff] %v8761
      %8811 = vst [vmem:[%s192 + $0x168] sm:$0xff] %v8762
      %8812 = vst [vmem:[%s192 + $0x170] sm:$0xff] %v8763
      %8813 = vst.msk [vmem:[%s192 + $0x178] sm:$0xff] %vm8770, %v8764
      %p8814 = scmp.lt.s32.totalorder %s18, 1
      %s8815 = scalar_select %p8814, %s18, 1
      %p8816 = scmp.lt.s32.totalorder %s19, 1
      %s8817 = scalar_select %p8816, %s19, 1
      %s8818 = smul.addr %s8817, 48
      %s8819 = smul.addr %s8815, 96
      %s8820 = sadd.s32 %s8818, %s8819
      %s8821 = smul.addr %s8820, 8
      %s8822 = scalar_lea.vmem %s3, %s8821
      // Predicated region
      $region33: #{convT3d_relu.1} parent=31 // pred_check
        %p8823 = pneg %p114
      $region34: #{convT3d_relu.1} parent=31 // pred_check_branch
        %8825 = sbr.rel (%p8823) target = $region36
      $region35: #{convT3d_relu.1} parent=31 // pred_region
        _
      $region36: #{convT3d_relu.1} parent=31 // pred_fallthru
        _
    $region32: #{convT3d_relu.1} parent=5 // pred_fallthru
      _
    %p8826 = scmp.le.s32.totalorder 2, %s9
    // Predicated region
    $region37: #{convT3d_relu.1} parent=5 // pred_check
      %p8827 = pneg %p8826
    $region38: #{convT3d_relu.1} parent=5 // pred_check_branch
      %8829 = sbr.rel (%p8827) target = $region40
    $region39: #{convT3d_relu.1} parent=5 // pred_region
      %s8830 = ssub.s32 %s9, 2
      // Predicated region
      $region41: #{convT3d_relu.1} parent=39 // pred_check
        %p8831 = pneg %p120
      $region42: #{convT3d_relu.1} parent=39 // pred_check_branch
        %8833 = sbr.rel (%p8831) target = $region44
      $region43: #{convT3d_relu.1} parent=39 // pred_region
        %p8834 = scmp.lt.s32.totalorder %s20, 1
        %s8835 = scalar_select %p8834, %s20, 1
        %p8836 = scmp.lt.s32.totalorder %s21, 1
        %s8837 = scalar_select %p8836, %s21, 1
        %s8838 = smul.addr %s8837, 48
        %s8839 = smul.addr %s8835, 96
        %s8840 = sadd.s32 %s8838, %s8839
        %s8841 = smul.addr %s8840, 8
        %s8842 = scalar_lea.vmem %s3, %s8841
      $region44: #{convT3d_relu.1} parent=39 // pred_fallthru
        _
    $region40: #{convT3d_relu.1} parent=5 // pred_fallthru
      _
  $region6: #{convT3d_relu.1} parent=0 // loop_footer
    %s13 = sadd.s32 1, %s9
  $region7: #{convT3d_relu.1} parent=0 // loop_footer_branch
    %8 = sbr.rel target = $region3
  $region8: #{convT3d_relu.1} parent=0 // loop_exit
    _

</llo_original>
